<compile_context>
chip_gen: v5e
topology: v5e:2x2
jax: 0.10.0
libtpu: 0.0.40
codegen_flags: <defaults>
</compile_context>

<pallas_src>
import jax
import jax.numpy as jnp
from jax import lax
from jax.experimental import pallas as pl
from jax.experimental.pallas import tpu as pltpu

# ----------------------------- fixed sizes --------------------------------- #
C_OUT = 16                    # conv output channels
KTAPS = 9                     # 3x3 conv taps
NPOS = 4                      # 2x2 max-pool positions
NTAPS = NPOS * KTAPS + 1      # 36 conv taps + 1 bias/valid-mask row = 37
S_VALID = 13 * 13             # 169 pooled spatial positions per image
S_PAD = 256                   # spatial positions padded to a lane-aligned size
FEAT_PAD = C_OUT * S_PAD      # 4096 padded flattened feature size (torch order)
H1 = 64                       # hidden width
NCLS = 10                     # classes
NCLS_PAD = 128                # lane-dense padded logits width
GROUP = 16                    # images per in-kernel conv dot (bf16 sublane tile)
TB_MAX = 64                   # max images per grid step


def _choose_tb(batch):
    """Batch-tile size: multiple of GROUP, <= TB_MAX, aiming for >= 2 grid steps."""
    target = min(TB_MAX, max(GROUP, (batch + 1) // 2))
    return max(GROUP, (target // GROUP) * GROUP)


# ----------------------------- fused kernel -------------------------------- #

def fused_cnn_kernel(p_ref, wc_ref, w1_ref, b1_ref, w2_ref, b2_ref, o_ref,
                     feat_ref, gfeat_ref):
    """Fused conv(3x3)+bias+ReLU+maxpool(2x2) -> FC1 -> ReLU -> FC2 for TB images.

    p_ref    : [TB/16, 37, 16*256] bf16  packed patches
               (leading = 16-image group, row = pool_pos*9+tap for rows 0..35,
                row 36 = bias/valid-lane mask, lane = g*256 + pooled spatial idx)
    wc_ref   : [64, 37]   bf16  block-diag conv weight (4 pool branches) + bias col
    w1_ref   : [4096, 64] bf16  FC1 weight, rows = c*256 + s (zero for s >= 169)
    b1_ref   : [1, 64]    f32
    w2_ref   : [64, 128]  bf16  FC2 weight padded to 128 cols
    b2_ref   : [1, 128]   f32
    o_ref    : [TB, 128]  f32   padded logits
    feat_ref : [TB, 4096] bf16  scratch, flattened features (torch order, padded)
    gfeat_ref: [16, 4096] f32   scratch, one group's features (static-row stores)
    """
    n_grp = p_ref.shape[0]
    wc = wc_ref[...]                                      # [64, 37] bf16

    def conv_group(grp, carry):
        # One MXU dot covers 16 images x 4 pool positions; bias folded into K,
        # and the valid-mask row makes padded spatial lanes exactly 0.
        pg = p_ref[grp]                                   # [37, 16*256] bf16
        z = jnp.dot(wc, pg, preferred_element_type=jnp.float32)   # [64, 16*256]
        # 2x2 max-pool = max over the 4 sublane groups of 16 channel rows;
        # max-then-ReLU == pool-of-ReLU since ReLU is monotone.
        zm = jnp.maximum(jnp.maximum(z[0:16, :], z[16:32, :]),
                         jnp.maximum(z[32:48, :], z[48:64, :]))
        pooled = jnp.maximum(zm, 0.0)                     # [16, 16*256] f32
        # Scatter into torch Flatten order (c*169+s, padded to c*256+s) using
        # fully static indices into the group staging buffer.
        for g in range(GROUP):
            for c in range(C_OUT):
                gfeat_ref[g:g + 1, c * S_PAD:(c + 1) * S_PAD] = (
                    pooled[c:c + 1, g * S_PAD:(g + 1) * S_PAD])
        # One tile-aligned bulk store per group (GROUP=16 == bf16 sublane tile).
        row0 = pl.multiple_of(grp * GROUP, GROUP)
        feat_ref[pl.ds(row0, GROUP), :] = gfeat_ref[...].astype(jnp.bfloat16)
        return carry

    lax.fori_loop(0, n_grp, conv_group, 0)

    # FC1 -> ReLU -> FC2 on the whole batch tile: two big MXU dots.
    h = jnp.dot(feat_ref[...], w1_ref[...],
                preferred_element_type=jnp.float32) + b1_ref[...]
    h = jnp.maximum(h, 0.0).astype(jnp.bfloat16)          # [TB, 64]
    o_ref[...] = jnp.dot(h, w2_ref[...],
                         preferred_element_type=jnp.float32) + b2_ref[...]


def cnn_fused_call(patches, wc, w1p, b1, w2p, b2p, tb):
    b_pad = patches.shape[0] * GROUP
    grid = (b_pad // tb,)
    return pl.pallas_call(
        fused_cnn_kernel,
        out_shape=jax.ShapeDtypeStruct((b_pad, NCLS_PAD), jnp.float32),
        grid_spec=pltpu.PrefetchScalarGridSpec(
            num_scalar_prefetch=0,
            grid=grid,
            in_specs=[
                pl.BlockSpec((tb // GROUP, NTAPS, GROUP * S_PAD),
                             lambda i: (i, 0, 0)),
                pl.BlockSpec((NPOS * C_OUT, NTAPS), lambda i: (0, 0)),
                pl.BlockSpec((FEAT_PAD, H1), lambda i: (0, 0)),
                pl.BlockSpec((1, H1), lambda i: (0, 0)),
                pl.BlockSpec((H1, NCLS_PAD), lambda i: (0, 0)),
                pl.BlockSpec((1, NCLS_PAD), lambda i: (0, 0)),
            ],
            out_specs=pl.BlockSpec((tb, NCLS_PAD), lambda i: (i, 0)),
            scratch_shapes=[pltpu.VMEM((tb, FEAT_PAD), jnp.bfloat16),
                            pltpu.VMEM((GROUP, FEAT_PAD), jnp.float32)],
        ),
        compiler_params=pltpu.CompilerParams(
            dimension_semantics=("parallel",),
        ),
    )(patches, wc, w1p, b1, w2p, b2p)


# ----------------------------- host-side glue ------------------------------ #

def _pack_patches(x2, b_pad):
    """x2: [B_pad, 28, 28] bf16 -> packed patches [B_pad/16, 37, 16*256] bf16.

    Row index = k*9 + t for k = pool position (pi*2+pj), t = tap (di*3+dj);
    row 36 = 1.0 on valid pooled positions (s < 169) else 0 (bias / valid mask).
    Lane index = g*256 + (oh*13 + ow) for image g within its 16-image group.
    """
    cols = []
    for pi in (0, 1):
        for pj in (0, 1):
            for di in range(3):
                for dj in range(3):
                    a, c = pi + di, pj + dj
                    sl = x2[:, a:a + 26:2, c:c + 26:2]        # [B, 13, 13]
                    cols.append(sl.reshape(b_pad, S_VALID))
    taps = jnp.stack(cols, axis=1)                            # [B, 36, 169]
    ones = jnp.ones((b_pad, 1, S_VALID), taps.dtype)          # bias / valid row
    p = jnp.concatenate([taps, ones], axis=1)                 # [B, 37, 169]
    p = jnp.pad(p, ((0, 0), (0, 0), (0, S_PAD - S_VALID)))    # [B, 37, 256]
    p = p.reshape(b_pad // GROUP, GROUP, NTAPS, S_PAD)
    p = p.transpose(0, 2, 1, 3).reshape(b_pad // GROUP, NTAPS, GROUP * S_PAD)
    return p


def init_params(key):
    """Deterministic init, PyTorch-default-style uniform(-1/sqrt(fan_in), ...)."""
    ks = jax.random.split(key, 6)

    def unif(k, shape, fan_in):
        bound = 1.0 / jnp.sqrt(jnp.float32(fan_in))
        return jax.random.uniform(k, shape, jnp.float32, -bound, bound)

    return {
        "w_conv": unif(ks[0], (16, 1, 3, 3), 9),                     # OIHW
        "b_conv": unif(ks[1], (16,), 9),
        "w1": unif(ks[2], (C_OUT * S_VALID, H1), C_OUT * S_VALID),   # transposed vs torch
        "b1": unif(ks[3], (H1,), C_OUT * S_VALID),
        "w2": unif(ks[4], (H1, NCLS), H1),
        "b2": unif(ks[5], (NCLS,), H1),
    }


@jax.jit
def cnn_forward(x, params):
    """x: [B, 1, 28, 28] float32 (NCHW). Returns logits [B, 10]."""
    B = x.shape[0]
    tb = _choose_tb(B)
    b_pad = -(-B // tb) * tb

    x2 = x[:, 0].astype(jnp.bfloat16)                     # bf16 input path
    if b_pad != B:
        x2 = jnp.pad(x2, ((0, b_pad - B), (0, 0), (0, 0)))
    # TODO(synk): im2col inflates HBM read ~6x vs raw images; moving it
    # in-kernel (DMA raw [TB,28,28] tiles + stride-2 slicing in VMEM) is the
    # remaining input-bandwidth optimization.
    patches = _pack_patches(x2, b_pad)                    # [B_pad/16, 37, 4096]

    # Block-diagonal conv weight (4 pool branches) + bias column (K row 36).
    wc2 = params["w_conv"].reshape(C_OUT, KTAPS)          # [16, 9]
    w_blk = jnp.kron(jnp.eye(NPOS, dtype=wc2.dtype), wc2)            # [64, 36]
    bias_col = jnp.tile(params["b_conv"], NPOS).reshape(NPOS * C_OUT, 1)
    wc = jnp.concatenate([w_blk, bias_col], axis=1).astype(jnp.bfloat16)  # [64, 37]

    # FC1 weight: torch row order c*169+s -> padded row order c*256+s.
    w1p = params["w1"].reshape(C_OUT, S_VALID, H1)
    w1p = jnp.pad(w1p, ((0, 0), (0, S_PAD - S_VALID), (0, 0)))
    w1p = w1p.reshape(FEAT_PAD, H1).astype(jnp.bfloat16)
    b1 = params["b1"].reshape(1, H1)

    # FC2 padded to a lane-dense 128-wide output, weights in bf16.
    w2p = jnp.pad(params["w2"], ((0, 0), (0, NCLS_PAD - NCLS))).astype(jnp.bfloat16)
    b2p = jnp.pad(params["b2"], (0, NCLS_PAD - NCLS)).reshape(1, NCLS_PAD)

    out = cnn_fused_call(patches, wc, w1p, b1, w2p, b2p, tb)
    return out[:B, :NCLS]


def cnn_reference(x, params):
    """Pure-JAX f32 reference mirroring the PyTorch forward exactly."""
    B = x.shape[0]
    conv = lax.conv_general_dilated(
        x, params["w_conv"], window_strides=(1, 1), padding="VALID",
        dimension_numbers=("NCHW", "OIHW", "NCHW"),
    ) + params["b_conv"][None, :, None, None]
    conv = jnp.maximum(conv, 0.0)                                    # [B,16,26,26]
    pooled = conv.reshape(B, 16, 13, 2, 13, 2).max(axis=(3, 5))      # [B,16,13,13]
    feat = pooled.reshape(B, C_OUT * S_VALID)
    h = jnp.maximum(feat @ params["w1"] + params["b1"], 0.0)
    return h @ params["w2"] + params["b2"]


# ----------------------------- main ---------------------------------------- #

if __name__ == "__main__":
    key = jax.random.PRNGKey(0)
    k_x, k_p, k_x2 = jax.random.split(key, 3)
    params = init_params(k_p)

    # Small-batch check (B=2 -> TB=16, single grid step).
    x_small = jax.random.normal(k_x, (2, 1, 28, 28), dtype=jnp.float32)
    out_small = jax.block_until_ready(cnn_forward(x_small, params))
    ref_small = cnn_reference(x_small, params)
    assert out_small.shape == (2, NCLS)
    diff_s = jnp.max(jnp.abs(out_small - ref_small))
    assert jnp.allclose(out_small, ref_small, atol=4e-2, rtol=4e-2), (
        f"small-batch mismatch: max abs diff {diff_s}")

    # Multi-step grid check (B=83 -> TB=32, b_pad=96, grid=3): exercises batch
    # padding, scratch reuse across grid steps, and the megacore-parallel path.
    x_big = jax.random.normal(k_x2, (83, 1, 28, 28), dtype=jnp.float32)
    out_big = jax.block_until_ready(cnn_forward(x_big, params))
    ref_big = cnn_reference(x_big, params)
    assert out_big.shape == (83, NCLS)
    diff_b = jnp.max(jnp.abs(out_big - ref_big))
    # bf16 MXU inputs (f32 accumulation) -> relaxed tolerance vs f32 reference.
    assert jnp.allclose(out_big, ref_big, atol=4e-2, rtol=4e-2), (
        f"multi-step mismatch: max abs diff {diff_b}")

    print("KERNEL_OK")
</pallas_src>

<mosaic_0001>
module attributes {stable_mosaic.version = 11 : i64} {
  func.func @fused_cnn_kernel(%arg0: i32, %arg1: memref<1x37x4096xbf16, #tpu.memory_space<vmem>>, %arg2: memref<64x37xbf16, #tpu.memory_space<vmem>>, %arg3: memref<4096x64xbf16, #tpu.memory_space<vmem>>, %arg4: memref<1x64xf32, #tpu.memory_space<vmem>>, %arg5: memref<64x128xbf16, #tpu.memory_space<vmem>>, %arg6: memref<1x128xf32, #tpu.memory_space<vmem>>, %arg7: memref<16x128xf32, #tpu.memory_space<vmem>>, %arg8: memref<16x4096xbf16, #tpu.memory_space<vmem>>, %arg9: memref<16x4096xf32, #tpu.memory_space<vmem>>) attributes {dimension_semantics = [#tpu.dimension_semantics<parallel>], iteration_bounds = array<i64: 1>, scalar_prefetch = 0 : i64, scratch_operands = 2 : i64, tpu.core_type = #tpu.core_type<tc>, window_params = [{transform_indices = @transform_0, window_bounds = array<i64: 1, 37, 4096>}, {pipeline_mode = #tpu.pipeline_mode<synchronous>, transform_indices = @transform_1, window_bounds = array<i64: 64, 37>}, {pipeline_mode = #tpu.pipeline_mode<synchronous>, transform_indices = @transform_2, window_bounds = array<i64: 4096, 64>}, {pipeline_mode = #tpu.pipeline_mode<synchronous>, transform_indices = @transform_3, window_bounds = array<i64: 1, 64>}, {pipeline_mode = #tpu.pipeline_mode<synchronous>, transform_indices = @transform_4, window_bounds = array<i64: 64, 128>}, {pipeline_mode = #tpu.pipeline_mode<synchronous>, transform_indices = @transform_5, window_bounds = array<i64: 1, 128>}, {transform_indices = @transform_6, window_bounds = array<i64: 16, 128>}]} {
    %c0 = arith.constant 0 : index
    %c0_0 = arith.constant 0 : index
    %0 = vector.load %arg2[%c0, %c0_0] : memref<64x37xbf16, #tpu.memory_space<vmem>>, vector<64x37xbf16>
    %c0_i32 = arith.constant 0 : i32
    %1 = arith.index_cast %c0_i32 : i32 to index
    %c0_1 = arith.constant 0 : index
    %c0_2 = arith.constant 0 : index
    %2 = vector.load %arg1[%1, %c0_1, %c0_2] : memref<1x37x4096xbf16, #tpu.memory_space<vmem>>, vector<1x37x4096xbf16>
    %3 = vector.shape_cast %2 : vector<1x37x4096xbf16> to vector<37x4096xbf16>
    %cst = arith.constant dense<0.000000e+00> : vector<64x4096xf32>
    %4 = tpu.matmul %0, %3, %cst {dimension_numbers = #tpu.dot_dimension_numbers<[1], [0], [0], [1], [0, 0, 1, 1], [], []>} : vector<64x37xbf16>, vector<37x4096xbf16>, vector<64x4096xf32> -> vector<64x4096xf32>
    %5 = vector.extract_strided_slice %4 {offsets = [0, 0], sizes = [16, 4096], strides = [1, 1]} : vector<64x4096xf32> to vector<16x4096xf32>
    %6 = vector.extract_strided_slice %4 {offsets = [16, 0], sizes = [16, 4096], strides = [1, 1]} : vector<64x4096xf32> to vector<16x4096xf32>
    %7 = arith.maximumf %5, %6 : vector<16x4096xf32>
    %8 = vector.extract_strided_slice %4 {offsets = [32, 0], sizes = [16, 4096], strides = [1, 1]} : vector<64x4096xf32> to vector<16x4096xf32>
    %9 = vector.extract_strided_slice %4 {offsets = [48, 0], sizes = [16, 4096], strides = [1, 1]} : vector<64x4096xf32> to vector<16x4096xf32>
    %10 = arith.maximumf %8, %9 : vector<16x4096xf32>
    %11 = arith.maximumf %7, %10 : vector<16x4096xf32>
    %cst_3 = arith.constant 0.000000e+00 : f32
    %12 = vector.broadcast %cst_3 : f32 to vector<16x4096xf32>
    %13 = arith.maximumf %11, %12 : vector<16x4096xf32>
    %14 = vector.extract_strided_slice %13 {offsets = [0, 0], sizes = [1, 256], strides = [1, 1]} : vector<16x4096xf32> to vector<1x256xf32>
    %c0_4 = arith.constant 0 : index
    %c0_5 = arith.constant 0 : index
    %15 = vector.load %arg9[%c0_4, %c0_5] : memref<16x4096xf32, #tpu.memory_space<vmem>>, vector<1x256xf32>
    tpu.vector_store %arg9[%c0_4, %c0_5], %14 {strides = array<i32>} : memref<16x4096xf32, #tpu.memory_space<vmem>>, vector<1x256xf32>,
    %16 = vector.extract_strided_slice %13 {offsets = [1, 0], sizes = [1, 256], strides = [1, 1]} : vector<16x4096xf32> to vector<1x256xf32>
    %c0_6 = arith.constant 0 : index
    %c256 = arith.constant 256 : index
    %17 = vector.load %arg9[%c0_6, %c256] : memref<16x4096xf32, #tpu.memory_space<vmem>>, vector<1x256xf32>
    tpu.vector_store %arg9[%c0_6, %c256], %16 {strides = array<i32>} : memref<16x4096xf32, #tpu.memory_space<vmem>>, vector<1x256xf32>,
    %18 = vector.extract_strided_slice %13 {offsets = [2, 0], sizes = [1, 256], strides = [1, 1]} : vector<16x4096xf32> to vector<1x256xf32>
    %c0_7 = arith.constant 0 : index
    %c512 = arith.constant 512 : index
    %19 = vector.load %arg9[%c0_7, %c512] : memref<16x4096xf32, #tpu.memory_space<vmem>>, vector<1x256xf32>
    tpu.vector_store %arg9[%c0_7, %c512], %18 {strides = array<i32>} : memref<16x4096xf32, #tpu.memory_space<vmem>>, vector<1x256xf32>,
    %20 = vector.extract_strided_slice %13 {offsets = [3, 0], sizes = [1, 256], strides = [1, 1]} : vector<16x4096xf32> to vector<1x256xf32>
    %c0_8 = arith.constant 0 : index
    %c768 = arith.constant 768 : index
    %21 = vector.load %arg9[%c0_8, %c768] : memref<16x4096xf32, #tpu.memory_space<vmem>>, vector<1x256xf32>
    tpu.vector_store %arg9[%c0_8, %c768], %20 {strides = array<i32>} : memref<16x4096xf32, #tpu.memory_space<vmem>>, vector<1x256xf32>,
    %22 = vector.extract_strided_slice %13 {offsets = [4, 0], sizes = [1, 256], strides = [1, 1]} : vector<16x4096xf32> to vector<1x256xf32>
    %c0_9 = arith.constant 0 : index
    %c1024 = arith.constant 1024 : index
    %23 = vector.load %arg9[%c0_9, %c1024] : memref<16x4096xf32, #tpu.memory_space<vmem>>, vector<1x256xf32>
    tpu.vector_store %arg9[%c0_9, %c1024], %22 {strides = array<i32>} : memref<16x4096xf32, #tpu.memory_space<vmem>>, vector<1x256xf32>,
    %24 = vector.extract_strided_slice %13 {offsets = [5, 0], sizes = [1, 256], strides = [1, 1]} : vector<16x4096xf32> to vector<1x256xf32>
    %c0_10 = arith.constant 0 : index
    %c1280 = arith.constant 1280 : index
    %25 = vector.load %arg9[%c0_10, %c1280] : memref<16x4096xf32, #tpu.memory_space<vmem>>, vector<1x256xf32>
    tpu.vector_store %arg9[%c0_10, %c1280], %24 {strides = array<i32>} : memref<16x4096xf32, #tpu.memory_space<vmem>>, vector<1x256xf32>,
    %26 = vector.extract_strided_slice %13 {offsets = [6, 0], sizes = [1, 256], strides = [1, 1]} : vector<16x4096xf32> to vector<1x256xf32>
    %c0_11 = arith.constant 0 : index
    %c1536 = arith.constant 1536 : index
    %27 = vector.load %arg9[%c0_11, %c1536] : memref<16x4096xf32, #tpu.memory_space<vmem>>, vector<1x256xf32>
    tpu.vector_store %arg9[%c0_11, %c1536], %26 {strides = array<i32>} : memref<16x4096xf32, #tpu.memory_space<vmem>>, vector<1x256xf32>,
    %28 = vector.extract_strided_slice %13 {offsets = [7, 0], sizes = [1, 256], strides = [1, 1]} : vector<16x4096xf32> to vector<1x256xf32>
    %c0_12 = arith.constant 0 : index
    %c1792 = arith.constant 1792 : index
    %29 = vector.load %arg9[%c0_12, %c1792] : memref<16x4096xf32, #tpu.memory_space<vmem>>, vector<1x256xf32>
    tpu.vector_store %arg9[%c0_12, %c1792], %28 {strides = array<i32>} : memref<16x4096xf32, #tpu.memory_space<vmem>>, vector<1x256xf32>,
    %30 = vector.extract_strided_slice %13 {offsets = [8, 0], sizes = [1, 256], strides = [1, 1]} : vector<16x4096xf32> to vector<1x256xf32>
    %c0_13 = arith.constant 0 : index
    %c2048 = arith.constant 2048 : index
    %31 = vector.load %arg9[%c0_13, %c2048] : memref<16x4096xf32, #tpu.memory_space<vmem>>, vector<1x256xf32>
    tpu.vector_store %arg9[%c0_13, %c2048], %30 {strides = array<i32>} : memref<16x4096xf32, #tpu.memory_space<vmem>>, vector<1x256xf32>,
    %32 = vector.extract_strided_slice %13 {offsets = [9, 0], sizes = [1, 256], strides = [1, 1]} : vector<16x4096xf32> to vector<1x256xf32>
    %c0_14 = arith.constant 0 : index
    %c2304 = arith.constant 2304 : index
    %33 = vector.load %arg9[%c0_14, %c2304] : memref<16x4096xf32, #tpu.memory_space<vmem>>, vector<1x256xf32>
    tpu.vector_store %arg9[%c0_14, %c2304], %32 {strides = array<i32>} : memref<16x4096xf32, #tpu.memory_space<vmem>>, vector<1x256xf32>,
    %34 = vector.extract_strided_slice %13 {offsets = [10, 0], sizes = [1, 256], strides = [1, 1]} : vector<16x4096xf32> to vector<1x256xf32>
    %c0_15 = arith.constant 0 : index
    %c2560 = arith.constant 2560 : index
    %35 = vector.load %arg9[%c0_15, %c2560] : memref<16x4096xf32, #tpu.memory_space<vmem>>, vector<1x256xf32>
    tpu.vector_store %arg9[%c0_15, %c2560], %34 {strides = array<i32>} : memref<16x4096xf32, #tpu.memory_space<vmem>>, vector<1x256xf32>,
    %36 = vector.extract_strided_slice %13 {offsets = [11, 0], sizes = [1, 256], strides = [1, 1]} : vector<16x4096xf32> to vector<1x256xf32>
    %c0_16 = arith.constant 0 : index
    %c2816 = arith.constant 2816 : index
    %37 = vector.load %arg9[%c0_16, %c2816] : memref<16x4096xf32, #tpu.memory_space<vmem>>, vector<1x256xf32>
    tpu.vector_store %arg9[%c0_16, %c2816], %36 {strides = array<i32>} : memref<16x4096xf32, #tpu.memory_space<vmem>>, vector<1x256xf32>,
    %38 = vector.extract_strided_slice %13 {offsets = [12, 0], sizes = [1, 256], strides = [1, 1]} : vector<16x4096xf32> to vector<1x256xf32>
    %c0_17 = arith.constant 0 : index
    %c3072 = arith.constant 3072 : index
    %39 = vector.load %arg9[%c0_17, %c3072] : memref<16x4096xf32, #tpu.memory_space<vmem>>, vector<1x256xf32>
    tpu.vector_store %arg9[%c0_17, %c3072], %38 {strides = array<i32>} : memref<16x4096xf32, #tpu.memory_space<vmem>>, vector<1x256xf32>,
    %40 = vector.extract_strided_slice %13 {offsets = [13, 0], sizes = [1, 256], strides = [1, 1]} : vector<16x4096xf32> to vector<1x256xf32>
    %c0_18 = arith.constant 0 : index
    %c3328 = arith.constant 3328 : index
    %41 = vector.load %arg9[%c0_18, %c3328] : memref<16x4096xf32, #tpu.memory_space<vmem>>, vector<1x256xf32>
    tpu.vector_store %arg9[%c0_18, %c3328], %40 {strides = array<i32>} : memref<16x4096xf32, #tpu.memory_space<vmem>>, vector<1x256xf32>,
    %42 = vector.extract_strided_slice %13 {offsets = [14, 0], sizes = [1, 256], strides = [1, 1]} : vector<16x4096xf32> to vector<1x256xf32>
    %c0_19 = arith.constant 0 : index
    %c3584 = arith.constant 3584 : index
    %43 = vector.load %arg9[%c0_19, %c3584] : memref<16x4096xf32, #tpu.memory_space<vmem>>, vector<1x256xf32>
    tpu.vector_store %arg9[%c0_19, %c3584], %42 {strides = array<i32>} : memref<16x4096xf32, #tpu.memory_space<vmem>>, vector<1x256xf32>,
    %44 = vector.extract_strided_slice %13 {offsets = [15, 0], sizes = [1, 256], strides = [1, 1]} : vector<16x4096xf32> to vector<1x256xf32>
    %c0_20 = arith.constant 0 : index
    %c3840 = arith.constant 3840 : index
    %45 = vector.load %arg9[%c0_20, %c3840] : memref<16x4096xf32, #tpu.memory_space<vmem>>, vector<1x256xf32>
    tpu.vector_store %arg9[%c0_20, %c3840], %44 {strides = array<i32>} : memref<16x4096xf32, #tpu.memory_space<vmem>>, vector<1x256xf32>,
    %46 = vector.extract_strided_slice %13 {offsets = [0, 256], sizes = [1, 256], strides = [1, 1]} : vector<16x4096xf32> to vector<1x256xf32>
    %c1 = arith.constant 1 : index
    %c0_21 = arith.constant 0 : index
    %47 = vector.load %arg9[%c1, %c0_21] : memref<16x4096xf32, #tpu.memory_space<vmem>>, vector<1x256xf32>
    tpu.vector_store %arg9[%c1, %c0_21], %46 {strides = array<i32>} : memref<16x4096xf32, #tpu.memory_space<vmem>>, vector<1x256xf32>,
    %48 = vector.extract_strided_slice %13 {offsets = [1, 256], sizes = [1, 256], strides = [1, 1]} : vector<16x4096xf32> to vector<1x256xf32>
    %c1_22 = arith.constant 1 : index
    %c256_23 = arith.constant 256 : index
    %49 = vector.load %arg9[%c1_22, %c256_23] : memref<16x4096xf32, #tpu.memory_space<vmem>>, vector<1x256xf32>
    tpu.vector_store %arg9[%c1_22, %c256_23], %48 {strides = array<i32>} : memref<16x4096xf32, #tpu.memory_space<vmem>>, vector<1x256xf32>,
    %50 = vector.extract_strided_slice %13 {offsets = [2, 256], sizes = [1, 256], strides = [1, 1]} : vector<16x4096xf32> to vector<1x256xf32>
    %c1_24 = arith.constant 1 : index
    %c512_25 = arith.constant 512 : index
    %51 = vector.load %arg9[%c1_24, %c512_25] : memref<16x4096xf32, #tpu.memory_space<vmem>>, vector<1x256xf32>
    tpu.vector_store %arg9[%c1_24, %c512_25], %50 {strides = array<i32>} : memref<16x4096xf32, #tpu.memory_space<vmem>>, vector<1x256xf32>,
    %52 = vector.extract_strided_slice %13 {offsets = [3, 256], sizes = [1, 256], strides = [1, 1]} : vector<16x4096xf32> to vector<1x256xf32>
    %c1_26 = arith.constant 1 : index
    %c768_27 = arith.constant 768 : index
    %53 = vector.load %arg9[%c1_26, %c768_27] : memref<16x4096xf32, #tpu.memory_space<vmem>>, vector<1x256xf32>
    tpu.vector_store %arg9[%c1_26, %c768_27], %52 {strides = array<i32>} : memref<16x4096xf32, #tpu.memory_space<vmem>>, vector<1x256xf32>,
    %54 = vector.extract_strided_slice %13 {offsets = [4, 256], sizes = [1, 256], strides = [1, 1]} : vector<16x4096xf32> to vector<1x256xf32>
    %c1_28 = arith.constant 1 : index
    %c1024_29 = arith.constant 1024 : index
    %55 = vector.load %arg9[%c1_28, %c1024_29] : memref<16x4096xf32, #tpu.memory_space<vmem>>, vector<1x256xf32>
    tpu.vector_store %arg9[%c1_28, %c1024_29], %54 {strides = array<i32>} : memref<16x4096xf32, #tpu.memory_space<vmem>>, vector<1x256xf32>,
    %56 = vector.extract_strided_slice %13 {offsets = [5, 256], sizes = [1, 256], strides = [1, 1]} : vector<16x4096xf32> to vector<1x256xf32>
    %c1_30 = arith.constant 1 : index
    %c1280_31 = arith.constant 1280 : index
    %57 = vector.load %arg9[%c1_30, %c1280_31] : memref<16x4096xf32, #tpu.memory_space<vmem>>, vector<1x256xf32>
    tpu.vector_store %arg9[%c1_30, %c1280_31], %56 {strides = array<i32>} : memref<16x4096xf32, #tpu.memory_space<vmem>>, vector<1x256xf32>,
    %58 = vector.extract_strided_slice %13 {offsets = [6, 256], sizes = [1, 256], strides = [1, 1]} : vector<16x4096xf32> to vector<1x256xf32>
    %c1_32 = arith.constant 1 : index
    %c1536_33 = arith.constant 1536 : index
    %59 = vector.load %arg9[%c1_32, %c1536_33] : memref<16x4096xf32, #tpu.memory_space<vmem>>, vector<1x256xf32>
    tpu.vector_store %arg9[%c1_32, %c1536_33], %58 {strides = array<i32>} : memref<16x4096xf32, #tpu.memory_space<vmem>>, vector<1x256xf32>,
    %60 = vector.extract_strided_slice %13 {offsets = [7, 256], sizes = [1, 256], strides = [1, 1]} : vector<16x4096xf32> to vector<1x256xf32>
    %c1_34 = arith.constant 1 : index
    %c1792_35 = arith.constant 1792 : index
    %61 = vector.load %arg9[%c1_34, %c1792_35] : memref<16x4096xf32, #tpu.memory_space<vmem>>, vector<1x256xf32>
    tpu.vector_store %arg9[%c1_34, %c1792_35], %60 {strides = array<i32>} : memref<16x4096xf32, #tpu.memory_space<vmem>>, vector<1x256xf32>,
    %62 = vector.extract_strided_slice %13 {offsets = [8, 256], sizes = [1, 256], strides = [1, 1]} : vector<16x4096xf32> to vector<1x256xf32>
    %c1_36 = arith.constant 1 : index
    %c2048_37 = arith.constant 2048 : index
    %63 = vector.load %arg9[%c1_36, %c2048_37] : memref<16x4096xf32, #tpu.memory_space<vmem>>, vector<1x256xf32>
    tpu.vector_store %arg9[%c1_36, %c2048_37], %62 {strides = array<i32>} : memref<16x4096xf32, #tpu.memory_space<vmem>>, vector<1x256xf32>,
    %64 = vector.extract_strided_slice %13 {offsets = [9, 256], sizes = [1, 256], strides = [1, 1]} : vector<16x4096xf32> to vector<1x256xf32>
    %c1_38 = arith.constant 1 : index
    %c2304_39 = arith.constant 2304 : index
    %65 = vector.load %arg9[%c1_38, %c2304_39] : memref<16x4096xf32, #tpu.memory_space<vmem>>, vector<1x256xf32>
    tpu.vector_store %arg9[%c1_38, %c2304_39], %64 {strides = array<i32>} : memref<16x4096xf32, #tpu.memory_space<vmem>>, vector<1x256xf32>,
    %66 = vector.extract_strided_slice %13 {offsets = [10, 256], sizes = [1, 256], strides = [1, 1]} : vector<16x4096xf32> to vector<1x256xf32>
    %c1_40 = arith.constant 1 : index
    %c2560_41 = arith.constant 2560 : index
    %67 = vector.load %arg9[%c1_40, %c2560_41] : memref<16x4096xf32, #tpu.memory_space<vmem>>, vector<1x256xf32>
    tpu.vector_store %arg9[%c1_40, %c2560_41], %66 {strides = array<i32>} : memref<16x4096xf32, #tpu.memory_space<vmem>>, vector<1x256xf32>,
    %68 = vector.extract_strided_slice %13 {offsets = [11, 256], sizes = [1, 256], strides = [1, 1]} : vector<16x4096xf32> to vector<1x256xf32>
    %c1_42 = arith.constant 1 : index
    %c2816_43 = arith.constant 2816 : index
    %69 = vector.load %arg9[%c1_42, %c2816_43] : memref<16x4096xf32, #tpu.memory_space<vmem>>, vector<1x256xf32>
    tpu.vector_store %arg9[%c1_42, %c2816_43], %68 {strides = array<i32>} : memref<16x4096xf32, #tpu.memory_space<vmem>>, vector<1x256xf32>,
    %70 = vector.extract_strided_slice %13 {offsets = [12, 256], sizes = [1, 256], strides = [1, 1]} : vector<16x4096xf32> to vector<1x256xf32>
    %c1_44 = arith.constant 1 : index
    %c3072_45 = arith.constant 3072 : index
    %71 = vector.load %arg9[%c1_44, %c3072_45] : memref<16x4096xf32, #tpu.memory_space<vmem>>, vector<1x256xf32>
    tpu.vector_store %arg9[%c1_44, %c3072_45], %70 {strides = array<i32>} : memref<16x4096xf32, #tpu.memory_space<vmem>>, vector<1x256xf32>,
    %72 = vector.extract_strided_slice %13 {offsets = [13, 256], sizes = [1, 256], strides = [1, 1]} : vector<16x4096xf32> to vector<1x256xf32>
    %c1_46 = arith.constant 1 : index
    %c3328_47 = arith.constant 3328 : index
    %73 = vector.load %arg9[%c1_46, %c3328_47] : memref<16x4096xf32, #tpu.memory_space<vmem>>, vector<1x256xf32>
    tpu.vector_store %arg9[%c1_46, %c3328_47], %72 {strides = array<i32>} : memref<16x4096xf32, #tpu.memory_space<vmem>>, vector<1x256xf32>,
    %74 = vector.extract_strided_slice %13 {offsets = [14, 256], sizes = [1, 256], strides = [1, 1]} : vector<16x4096xf32> to vector<1x256xf32>
    %c1_48 = arith.constant 1 : index
    %c3584_49 = arith.constant 3584 : index
    %75 = vector.load %arg9[%c1_48, %c3584_49] : memref<16x4096xf32, #tpu.memory_space<vmem>>, vector<1x256xf32>
    tpu.vector_store %arg9[%c1_48, %c3584_49], %74 {strides = array<i32>} : memref<16x4096xf32, #tpu.memory_space<vmem>>, vector<1x256xf32>,
    %76 = vector.extract_strided_slice %13 {offsets = [15, 256], sizes = [1, 256], strides = [1, 1]} : vector<16x4096xf32> to vector<1x256xf32>
    %c1_50 = arith.constant 1 : index
    %c3840_51 = arith.constant 3840 : index
    %77 = vector.load %arg9[%c1_50, %c3840_51] : memref<16x4096xf32, #tpu.memory_space<vmem>>, vector<1x256xf32>
    tpu.vector_store %arg9[%c1_50, %c3840_51], %76 {strides = array<i32>} : memref<16x4096xf32, #tpu.memory_space<vmem>>, vector<1x256xf32>,
    %78 = vector.extract_strided_slice %13 {offsets = [0, 512], sizes = [1, 256], strides = [1, 1]} : vector<16x4096xf32> to vector<1x256xf32>
    %c2 = arith.constant 2 : index
    %c0_52 = arith.constant 0 : index
    %79 = vector.load %arg9[%c2, %c0_52] : memref<16x4096xf32, #tpu.memory_space<vmem>>, vector<1x256xf32>
    tpu.vector_store %arg9[%c2, %c0_52], %78 {strides = array<i32>} : memref<16x4096xf32, #tpu.memory_space<vmem>>, vector<1x256xf32>,
    %80 = vector.extract_strided_slice %13 {offsets = [1, 512], sizes = [1, 256], strides = [1, 1]} : vector<16x4096xf32> to vector<1x256xf32>
    %c2_53 = arith.constant 2 : index
    %c256_54 = arith.constant 256 : index
    %81 = vector.load %arg9[%c2_53, %c256_54] : memref<16x4096xf32, #tpu.memory_space<vmem>>, vector<1x256xf32>
    tpu.vector_store %arg9[%c2_53, %c256_54], %80 {strides = array<i32>} : memref<16x4096xf32, #tpu.memory_space<vmem>>, vector<1x256xf32>,
    %82 = vector.extract_strided_slice %13 {offsets = [2, 512], sizes = [1, 256], strides = [1, 1]} : vector<16x4096xf32> to vector<1x256xf32>
    %c2_55 = arith.constant 2 : index
    %c512_56 = arith.constant 512 : index
    %83 = vector.load %arg9[%c2_55, %c512_56] : memref<16x4096xf32, #tpu.memory_space<vmem>>, vector<1x256xf32>
    tpu.vector_store %arg9[%c2_55, %c512_56], %82 {strides = array<i32>} : memref<16x4096xf32, #tpu.memory_space<vmem>>, vector<1x256xf32>,
    %84 = vector.extract_strided_slice %13 {offsets = [3, 512], sizes = [1, 256], strides = [1, 1]} : vector<16x4096xf32> to vector<1x256xf32>
    %c2_57 = arith.constant 2 : index
    %c768_58 = arith.constant 768 : index
    %85 = vector.load %arg9[%c2_57, %c768_58] : memref<16x4096xf32, #tpu.memory_space<vmem>>, vector<1x256xf32>
    tpu.vector_store %arg9[%c2_57, %c768_58], %84 {strides = array<i32>} : memref<16x4096xf32, #tpu.memory_space<vmem>>, vector<1x256xf32>,
    %86 = vector.extract_strided_slice %13 {offsets = [4, 512], sizes = [1, 256], strides = [1, 1]} : vector<16x4096xf32> to vector<1x256xf32>
    %c2_59 = arith.constant 2 : index
    %c1024_60 = arith.constant 1024 : index
    %87 = vector.load %arg9[%c2_59, %c1024_60] : memref<16x4096xf32, #tpu.memory_space<vmem>>, vector<1x256xf32>
    tpu.vector_store %arg9[%c2_59, %c1024_60], %86 {strides = array<i32>} : memref<16x4096xf32, #tpu.memory_space<vmem>>, vector<1x256xf32>,
    %88 = vector.extract_strided_slice %13 {offsets = [5, 512], sizes = [1, 256], strides = [1, 1]} : vector<16x4096xf32> to vector<1x256xf32>
    %c2_61 = arith.constant 2 : index
    %c1280_62 = arith.constant 1280 : index
    %89 = vector.load %arg9[%c2_61, %c1280_62] : memref<16x4096xf32, #tpu.memory_space<vmem>>, vector<1x256xf32>
    tpu.vector_store %arg9[%c2_61, %c1280_62], %88 {strides = array<i32>} : memref<16x4096xf32, #tpu.memory_space<vmem>>, vector<1x256xf32>,
    %90 = vector.extract_strided_slice %13 {offsets = [6, 512], sizes = [1, 256], strides = [1, 1]} : vector<16x4096xf32> to vector<1x256xf32>
    %c2_63 = arith.constant 2 : index
    %c1536_64 = arith.constant 1536 : index
    %91 = vector.load %arg9[%c2_63, %c1536_64] : memref<16x4096xf32, #tpu.memory_space<vmem>>, vector<1x256xf32>
    tpu.vector_store %arg9[%c2_63, %c1536_64], %90 {strides = array<i32>} : memref<16x4096xf32, #tpu.memory_space<vmem>>, vector<1x256xf32>,
    %92 = vector.extract_strided_slice %13 {offsets = [7, 512], sizes = [1, 256], strides = [1, 1]} : vector<16x4096xf32> to vector<1x256xf32>
    %c2_65 = arith.constant 2 : index
    %c1792_66 = arith.constant 1792 : index
    %93 = vector.load %arg9[%c2_65, %c1792_66] : memref<16x4096xf32, #tpu.memory_space<vmem>>, vector<1x256xf32>
    tpu.vector_store %arg9[%c2_65, %c1792_66], %92 {strides = array<i32>} : memref<16x4096xf32, #tpu.memory_space<vmem>>, vector<1x256xf32>,
    %94 = vector.extract_strided_slice %13 {offsets = [8, 512], sizes = [1, 256], strides = [1, 1]} : vector<16x4096xf32> to vector<1x256xf32>
    %c2_67 = arith.constant 2 : index
    %c2048_68 = arith.constant 2048 : index
    %95 = vector.load %arg9[%c2_67, %c2048_68] : memref<16x4096xf32, #tpu.memory_space<vmem>>, vector<1x256xf32>
    tpu.vector_store %arg9[%c2_67, %c2048_68], %94 {strides = array<i32>} : memref<16x4096xf32, #tpu.memory_space<vmem>>, vector<1x256xf32>,
    %96 = vector.extract_strided_slice %13 {offsets = [9, 512], sizes = [1, 256], strides = [1, 1]} : vector<16x4096xf32> to vector<1x256xf32>
    %c2_69 = arith.constant 2 : index
    %c2304_70 = arith.constant 2304 : index
    %97 = vector.load %arg9[%c2_69, %c2304_70] : memref<16x4096xf32, #tpu.memory_space<vmem>>, vector<1x256xf32>
    tpu.vector_store %arg9[%c2_69, %c2304_70], %96 {strides = array<i32>} : memref<16x4096xf32, #tpu.memory_space<vmem>>, vector<1x256xf32>,
    %98 = vector.extract_strided_slice %13 {offsets = [10, 512], sizes = [1, 256], strides = [1, 1]} : vector<16x4096xf32> to vector<1x256xf32>
    %c2_71 = arith.constant 2 : index
    %c2560_72 = arith.constant 2560 : index
    %99 = vector.load %arg9[%c2_71, %c2560_72] : memref<16x4096xf32, #tpu.memory_space<vmem>>, vector<1x256xf32>
    tpu.vector_store %arg9[%c2_71, %c2560_72], %98 {strides = array<i32>} : memref<16x4096xf32, #tpu.memory_space<vmem>>, vector<1x256xf32>,
    %100 = vector.extract_strided_slice %13 {offsets = [11, 512], sizes = [1, 256], strides = [1, 1]} : vector<16x4096xf32> to vector<1x256xf32>
    %c2_73 = arith.constant 2 : index
    %c2816_74 = arith.constant 2816 : index
    %101 = vector.load %arg9[%c2_73, %c2816_74] : memref<16x4096xf32, #tpu.memory_space<vmem>>, vector<1x256xf32>
    tpu.vector_store %arg9[%c2_73, %c2816_74], %100 {strides = array<i32>} : memref<16x4096xf32, #tpu.memory_space<vmem>>, vector<1x256xf32>,
    %102 = vector.extract_strided_slice %13 {offsets = [12, 512], sizes = [1, 256], strides = [1, 1]} : vector<16x4096xf32> to vector<1x256xf32>
    %c2_75 = arith.constant 2 : index
    %c3072_76 = arith.constant 3072 : index
    %103 = vector.load %arg9[%c2_75, %c3072_76] : memref<16x4096xf32, #tpu.memory_space<vmem>>, vector<1x256xf32>
    tpu.vector_store %arg9[%c2_75, %c3072_76], %102 {strides = array<i32>} : memref<16x4096xf32, #tpu.memory_space<vmem>>, vector<1x256xf32>,
    %104 = vector.extract_strided_slice %13 {offsets = [13, 512], sizes = [1, 256], strides = [1, 1]} : vector<16x4096xf32> to vector<1x256xf32>
    %c2_77 = arith.constant 2 : index
    %c3328_78 = arith.constant 3328 : index
    %105 = vector.load %arg9[%c2_77, %c3328_78] : memref<16x4096xf32, #tpu.memory_space<vmem>>, vector<1x256xf32>
    tpu.vector_store %arg9[%c2_77, %c3328_78], %104 {strides = array<i32>} : memref<16x4096xf32, #tpu.memory_space<vmem>>, vector<1x256xf32>,
    %106 = vector.extract_strided_slice %13 {offsets = [14, 512], sizes = [1, 256], strides = [1, 1]} : vector<16x4096xf32> to vector<1x256xf32>
    %c2_79 = arith.constant 2 : index
    %c3584_80 = arith.constant 3584 : index
    %107 = vector.load %arg9[%c2_79, %c3584_80] : memref<16x4096xf32, #tpu.memory_space<vmem>>, vector<1x256xf32>
    tpu.vector_store %arg9[%c2_79, %c3584_80], %106 {strides = array<i32>} : memref<16x4096xf32, #tpu.memory_space<vmem>>, vector<1x256xf32>,
    %108 = vector.extract_strided_slice %13 {offsets = [15, 512], sizes = [1, 256], strides = [1, 1]} : vector<16x4096xf32> to vector<1x256xf32>
    %c2_81 = arith.constant 2 : index
    %c3840_82 = arith.constant 3840 : index
    %109 = vector.load %arg9[%c2_81, %c3840_82] : memref<16x4096xf32, #tpu.memory_space<vmem>>, vector<1x256xf32>
    tpu.vector_store %arg9[%c2_81, %c3840_82], %108 {strides = array<i32>} : memref<16x4096xf32, #tpu.memory_space<vmem>>, vector<1x256xf32>,
    %110 = vector.extract_strided_slice %13 {offsets = [0, 768], sizes = [1, 256], strides = [1, 1]} : vector<16x4096xf32> to vector<1x256xf32>
    %c3 = arith.constant 3 : index
    %c0_83 = arith.constant 0 : index
    %111 = vector.load %arg9[%c3, %c0_83] : memref<16x4096xf32, #tpu.memory_space<vmem>>, vector<1x256xf32>
    tpu.vector_store %arg9[%c3, %c0_83], %110 {strides = array<i32>} : memref<16x4096xf32, #tpu.memory_space<vmem>>, vector<1x256xf32>,
    %112 = vector.extract_strided_slice %13 {offsets = [1, 768], sizes = [1, 256], strides = [1, 1]} : vector<16x4096xf32> to vector<1x256xf32>
    %c3_84 = arith.constant 3 : index
    %c256_85 = arith.constant 256 : index
    %113 = vector.load %arg9[%c3_84, %c256_85] : memref<16x4096xf32, #tpu.memory_space<vmem>>, vector<1x256xf32>
    tpu.vector_store %arg9[%c3_84, %c256_85], %112 {strides = array<i32>} : memref<16x4096xf32, #tpu.memory_space<vmem>>, vector<1x256xf32>,
    %114 = vector.extract_strided_slice %13 {offsets = [2, 768], sizes = [1, 256], strides = [1, 1]} : vector<16x4096xf32> to vector<1x256xf32>
    %c3_86 = arith.constant 3 : index
    %c512_87 = arith.constant 512 : index
    %115 = vector.load %arg9[%c3_86, %c512_87] : memref<16x4096xf32, #tpu.memory_space<vmem>>, vector<1x256xf32>
    tpu.vector_store %arg9[%c3_86, %c512_87], %114 {strides = array<i32>} : memref<16x4096xf32, #tpu.memory_space<vmem>>, vector<1x256xf32>,
    %116 = vector.extract_strided_slice %13 {offsets = [3, 768], sizes = [1, 256], strides = [1, 1]} : vector<16x4096xf32> to vector<1x256xf32>
    %c3_88 = arith.constant 3 : index
    %c768_89 = arith.constant 768 : index
    %117 = vector.load %arg9[%c3_88, %c768_89] : memref<16x4096xf32, #tpu.memory_space<vmem>>, vector<1x256xf32>
    tpu.vector_store %arg9[%c3_88, %c768_89], %116 {strides = array<i32>} : memref<16x4096xf32, #tpu.memory_space<vmem>>, vector<1x256xf32>,
    %118 = vector.extract_strided_slice %13 {offsets = [4, 768], sizes = [1, 256], strides = [1, 1]} : vector<16x4096xf32> to vector<1x256xf32>
    %c3_90 = arith.constant 3 : index
    %c1024_91 = arith.constant 1024 : index
    %119 = vector.load %arg9[%c3_90, %c1024_91] : memref<16x4096xf32, #tpu.memory_space<vmem>>, vector<1x256xf32>
    tpu.vector_store %arg9[%c3_90, %c1024_91], %118 {strides = array<i32>} : memref<16x4096xf32, #tpu.memory_space<vmem>>, vector<1x256xf32>,
    %120 = vector.extract_strided_slice %13 {offsets = [5, 768], sizes = [1, 256], strides = [1, 1]} : vector<16x4096xf32> to vector<1x256xf32>
    %c3_92 = arith.constant 3 : index
    %c1280_93 = arith.constant 1280 : index
    %121 = vector.load %arg9[%c3_92, %c1280_93] : memref<16x4096xf32, #tpu.memory_space<vmem>>, vector<1x256xf32>
    tpu.vector_store %arg9[%c3_92, %c1280_93], %120 {strides = array<i32>} : memref<16x4096xf32, #tpu.memory_space<vmem>>, vector<1x256xf32>,
    %122 = vector.extract_strided_slice %13 {offsets = [6, 768], sizes = [1, 256], strides = [1, 1]} : vector<16x4096xf32> to vector<1x256xf32>
    %c3_94 = arith.constant 3 : index
    %c1536_95 = arith.constant 1536 : index
    %123 = vector.load %arg9[%c3_94, %c1536_95] : memref<16x4096xf32, #tpu.memory_space<vmem>>, vector<1x256xf32>
    tpu.vector_store %arg9[%c3_94, %c1536_95], %122 {strides = array<i32>} : memref<16x4096xf32, #tpu.memory_space<vmem>>, vector<1x256xf32>,
    %124 = vector.extract_strided_slice %13 {offsets = [7, 768], sizes = [1, 256], strides = [1, 1]} : vector<16x4096xf32> to vector<1x256xf32>
    %c3_96 = arith.constant 3 : index
    %c1792_97 = arith.constant 1792 : index
    %125 = vector.load %arg9[%c3_96, %c1792_97] : memref<16x4096xf32, #tpu.memory_space<vmem>>, vector<1x256xf32>
    tpu.vector_store %arg9[%c3_96, %c1792_97], %124 {strides = array<i32>} : memref<16x4096xf32, #tpu.memory_space<vmem>>, vector<1x256xf32>,
    %126 = vector.extract_strided_slice %13 {offsets = [8, 768], sizes = [1, 256], strides = [1, 1]} : vector<16x4096xf32> to vector<1x256xf32>
    %c3_98 = arith.constant 3 : index
    %c2048_99 = arith.constant 2048 : index
    %127 = vector.load %arg9[%c3_98, %c2048_99] : memref<16x4096xf32, #tpu.memory_space<vmem>>, vector<1x256xf32>
    tpu.vector_store %arg9[%c3_98, %c2048_99], %126 {strides = array<i32>} : memref<16x4096xf32, #tpu.memory_space<vmem>>, vector<1x256xf32>,
    %128 = vector.extract_strided_slice %13 {offsets = [9, 768], sizes = [1, 256], strides = [1, 1]} : vector<16x4096xf32> to vector<1x256xf32>
    %c3_100 = arith.constant 3 : index
    %c2304_101 = arith.constant 2304 : index
    %129 = vector.load %arg9[%c3_100, %c2304_101] : memref<16x4096xf32, #tpu.memory_space<vmem>>, vector<1x256xf32>
    tpu.vector_store %arg9[%c3_100, %c2304_101], %128 {strides = array<i32>} : memref<16x4096xf32, #tpu.memory_space<vmem>>, vector<1x256xf32>,
    %130 = vector.extract_strided_slice %13 {offsets = [10, 768], sizes = [1, 256], strides = [1, 1]} : vector<16x4096xf32> to vector<1x256xf32>
    %c3_102 = arith.constant 3 : index
    %c2560_103 = arith.constant 2560 : index
    %131 = vector.load %arg9[%c3_102, %c2560_103] : memref<16x4096xf32, #tpu.memory_space<vmem>>, vector<1x256xf32>
    tpu.vector_store %arg9[%c3_102, %c2560_103], %130 {strides = array<i32>} : memref<16x4096xf32, #tpu.memory_space<vmem>>, vector<1x256xf32>,
    %132 = vector.extract_strided_slice %13 {offsets = [11, 768], sizes = [1, 256], strides = [1, 1]} : vector<16x4096xf32> to vector<1x256xf32>
    %c3_104 = arith.constant 3 : index
    %c2816_105 = arith.constant 2816 : index
    %133 = vector.load %arg9[%c3_104, %c2816_105] : memref<16x4096xf32, #tpu.memory_space<vmem>>, vector<1x256xf32>
    tpu.vector_store %arg9[%c3_104, %c2816_105], %132 {strides = array<i32>} : memref<16x4096xf32, #tpu.memory_space<vmem>>, vector<1x256xf32>,
    %134 = vector.extract_strided_slice %13 {offsets = [12, 768], sizes = [1, 256], strides = [1, 1]} : vector<16x4096xf32> to vector<1x256xf32>
    %c3_106 = arith.constant 3 : index
    %c3072_107 = arith.constant 3072 : index
    %135 = vector.load %arg9[%c3_106, %c3072_107] : memref<16x4096xf32, #tpu.memory_space<vmem>>, vector<1x256xf32>
    tpu.vector_store %arg9[%c3_106, %c3072_107], %134 {strides = array<i32>} : memref<16x4096xf32, #tpu.memory_space<vmem>>, vector<1x256xf32>,
    %136 = vector.extract_strided_slice %13 {offsets = [13, 768], sizes = [1, 256], strides = [1, 1]} : vector<16x4096xf32> to vector<1x256xf32>
    %c3_108 = arith.constant 3 : index
    %c3328_109 = arith.constant 3328 : index
    %137 = vector.load %arg9[%c3_108, %c3328_109] : memref<16x4096xf32, #tpu.memory_space<vmem>>, vector<1x256xf32>
    tpu.vector_store %arg9[%c3_108, %c3328_109], %136 {strides = array<i32>} : memref<16x4096xf32, #tpu.memory_space<vmem>>, vector<1x256xf32>,
    %138 = vector.extract_strided_slice %13 {offsets = [14, 768], sizes = [1, 256], strides = [1, 1]} : vector<16x4096xf32> to vector<1x256xf32>
    %c3_110 = arith.constant 3 : index
    %c3584_111 = arith.constant 3584 : index
    %139 = vector.load %arg9[%c3_110, %c3584_111] : memref<16x4096xf32, #tpu.memory_space<vmem>>, vector<1x256xf32>
    tpu.vector_store %arg9[%c3_110, %c3584_111], %138 {strides = array<i32>} : memref<16x4096xf32, #tpu.memory_space<vmem>>, vector<1x256xf32>,
    %140 = vector.extract_strided_slice %13 {offsets = [15, 768], sizes = [1, 256], strides = [1, 1]} : vector<16x4096xf32> to vector<1x256xf32>
    %c3_112 = arith.constant 3 : index
    %c3840_113 = arith.constant 3840 : index
    %141 = vector.load %arg9[%c3_112, %c3840_113] : memref<16x4096xf32, #tpu.memory_space<vmem>>, vector<1x256xf32>
    tpu.vector_store %arg9[%c3_112, %c3840_113], %140 {strides = array<i32>} : memref<16x4096xf32, #tpu.memory_space<vmem>>, vector<1x256xf32>,
    %142 = vector.extract_strided_slice %13 {offsets = [0, 1024], sizes = [1, 256], strides = [1, 1]} : vector<16x4096xf32> to vector<1x256xf32>
    %c4 = arith.constant 4 : index
    %c0_114 = arith.constant 0 : index
    %143 = vector.load %arg9[%c4, %c0_114] : memref<16x4096xf32, #tpu.memory_space<vmem>>, vector<1x256xf32>
    tpu.vector_store %arg9[%c4, %c0_114], %142 {strides = array<i32>} : memref<16x4096xf32, #tpu.memory_space<vmem>>, vector<1x256xf32>,
    %144 = vector.extract_strided_slice %13 {offsets = [1, 1024], sizes = [1, 256], strides = [1, 1]} : vector<16x4096xf32> to vector<1x256xf32>
    %c4_115 = arith.constant 4 : index
    %c256_116 = arith.constant 256 : index
    %145 = vector.load %arg9[%c4_115, %c256_116] : memref<16x4096xf32, #tpu.memory_space<vmem>>, vector<1x256xf32>
    tpu.vector_store %arg9[%c4_115, %c256_116], %144 {strides = array<i32>} : memref<16x4096xf32, #tpu.memory_space<vmem>>, vector<1x256xf32>,
    %146 = vector.extract_strided_slice %13 {offsets = [2, 1024], sizes = [1, 256], strides = [1, 1]} : vector<16x4096xf32> to vector<1x256xf32>
    %c4_117 = arith.constant 4 : index
    %c512_118 = arith.constant 512 : index
    %147 = vector.load %arg9[%c4_117, %c512_118] : memref<16x4096xf32, #tpu.memory_space<vmem>>, vector<1x256xf32>
    tpu.vector_store %arg9[%c4_117, %c512_118], %146 {strides = array<i32>} : memref<16x4096xf32, #tpu.memory_space<vmem>>, vector<1x256xf32>,
    %148 = vector.extract_strided_slice %13 {offsets = [3, 1024], sizes = [1, 256], strides = [1, 1]} : vector<16x4096xf32> to vector<1x256xf32>
    %c4_119 = arith.constant 4 : index
    %c768_120 = arith.constant 768 : index
    %149 = vector.load %arg9[%c4_119, %c768_120] : memref<16x4096xf32, #tpu.memory_space<vmem>>, vector<1x256xf32>
    tpu.vector_store %arg9[%c4_119, %c768_120], %148 {strides = array<i32>} : memref<16x4096xf32, #tpu.memory_space<vmem>>, vector<1x256xf32>,
    %150 = vector.extract_strided_slice %13 {offsets = [4, 1024], sizes = [1, 256], strides = [1, 1]} : vector<16x4096xf32> to vector<1x256xf32>
    %c4_121 = arith.constant 4 : index
    %c1024_122 = arith.constant 1024 : index
    %151 = vector.load %arg9[%c4_121, %c1024_122] : memref<16x4096xf32, #tpu.memory_space<vmem>>, vector<1x256xf32>
    tpu.vector_store %arg9[%c4_121, %c1024_122], %150 {strides = array<i32>} : memref<16x4096xf32, #tpu.memory_space<vmem>>, vector<1x256xf32>,
    %152 = vector.extract_strided_slice %13 {offsets = [5, 1024], sizes = [1, 256], strides = [1, 1]} : vector<16x4096xf32> to vector<1x256xf32>
    %c4_123 = arith.constant 4 : index
    %c1280_124 = arith.constant 1280 : index
    %153 = vector.load %arg9[%c4_123, %c1280_124] : memref<16x4096xf32, #tpu.memory_space<vmem>>, vector<1x256xf32>
    tpu.vector_store %arg9[%c4_123, %c1280_124], %152 {strides = array<i32>} : memref<16x4096xf32, #tpu.memory_space<vmem>>, vector<1x256xf32>,
    %154 = vector.extract_strided_slice %13 {offsets = [6, 1024], sizes = [1, 256], strides = [1, 1]} : vector<16x4096xf32> to vector<1x256xf32>
    %c4_125 = arith.constant 4 : index
    %c1536_126 = arith.constant 1536 : index
    %155 = vector.load %arg9[%c4_125, %c1536_126] : memref<16x4096xf32, #tpu.memory_space<vmem>>, vector<1x256xf32>
    tpu.vector_store %arg9[%c4_125, %c1536_126], %154 {strides = array<i32>} : memref<16x4096xf32, #tpu.memory_space<vmem>>, vector<1x256xf32>,
    %156 = vector.extract_strided_slice %13 {offsets = [7, 1024], sizes = [1, 256], strides = [1, 1]} : vector<16x4096xf32> to vector<1x256xf32>
    %c4_127 = arith.constant 4 : index
    %c1792_128 = arith.constant 1792 : index
    %157 = vector.load %arg9[%c4_127, %c1792_128] : memref<16x4096xf32, #tpu.memory_space<vmem>>, vector<1x256xf32>
    tpu.vector_store %arg9[%c4_127, %c1792_128], %156 {strides = array<i32>} : memref<16x4096xf32, #tpu.memory_space<vmem>>, vector<1x256xf32>,
    %158 = vector.extract_strided_slice %13 {offsets = [8, 1024], sizes = [1, 256], strides = [1, 1]} : vector<16x4096xf32> to vector<1x256xf32>
    %c4_129 = arith.constant 4 : index
    %c2048_130 = arith.constant 2048 : index
    %159 = vector.load %arg9[%c4_129, %c2048_130] : memref<16x4096xf32, #tpu.memory_space<vmem>>, vector<1x256xf32>
    tpu.vector_store %arg9[%c4_129, %c2048_130], %158 {strides = array<i32>} : memref<16x4096xf32, #tpu.memory_space<vmem>>, vector<1x256xf32>,
    %160 = vector.extract_strided_slice %13 {offsets = [9, 1024], sizes = [1, 256], strides = [1, 1]} : vector<16x4096xf32> to vector<1x256xf32>
    %c4_131 = arith.constant 4 : index
    %c2304_132 = arith.constant 2304 : index
    %161 = vector.load %arg9[%c4_131, %c2304_132] : memref<16x4096xf32, #tpu.memory_space<vmem>>, vector<1x256xf32>
    tpu.vector_store %arg9[%c4_131, %c2304_132], %160 {strides = array<i32>} : memref<16x4096xf32, #tpu.memory_space<vmem>>, vector<1x256xf32>,
    %162 = vector.extract_strided_slice %13 {offsets = [10, 1024], sizes = [1, 256], strides = [1, 1]} : vector<16x4096xf32> to vector<1x256xf32>
    %c4_133 = arith.constant 4 : index
    %c2560_134 = arith.constant 2560 : index
    %163 = vector.load %arg9[%c4_133, %c2560_134] : memref<16x4096xf32, #tpu.memory_space<vmem>>, vector<1x256xf32>
    tpu.vector_store %arg9[%c4_133, %c2560_134], %162 {strides = array<i32>} : memref<16x4096xf32, #tpu.memory_space<vmem>>, vector<1x256xf32>,
    %164 = vector.extract_strided_slice %13 {offsets = [11, 1024], sizes = [1, 256], strides = [1, 1]} : vector<16x4096xf32> to vector<1x256xf32>
    %c4_135 = arith.constant 4 : index
    %c2816_136 = arith.constant 2816 : index
    %165 = vector.load %arg9[%c4_135, %c2816_136] : memref<16x4096xf32, #tpu.memory_space<vmem>>, vector<1x256xf32>
    tpu.vector_store %arg9[%c4_135, %c2816_136], %164 {strides = array<i32>} : memref<16x4096xf32, #tpu.memory_space<vmem>>, vector<1x256xf32>,
    %166 = vector.extract_strided_slice %13 {offsets = [12, 1024], sizes = [1, 256], strides = [1, 1]} : vector<16x4096xf32> to vector<1x256xf32>
    %c4_137 = arith.constant 4 : index
    %c3072_138 = arith.constant 3072 : index
    %167 = vector.load %arg9[%c4_137, %c3072_138] : memref<16x4096xf32, #tpu.memory_space<vmem>>, vector<1x256xf32>
    tpu.vector_store %arg9[%c4_137, %c3072_138], %166 {strides = array<i32>} : memref<16x4096xf32, #tpu.memory_space<vmem>>, vector<1x256xf32>,
    %168 = vector.extract_strided_slice %13 {offsets = [13, 1024], sizes = [1, 256], strides = [1, 1]} : vector<16x4096xf32> to vector<1x256xf32>
    %c4_139 = arith.constant 4 : index
    %c3328_140 = arith.constant 3328 : index
    %169 = vector.load %arg9[%c4_139, %c3328_140] : memref<16x4096xf32, #tpu.memory_space<vmem>>, vector<1x256xf32>
    tpu.vector_store %arg9[%c4_139, %c3328_140], %168 {strides = array<i32>} : memref<16x4096xf32, #tpu.memory_space<vmem>>, vector<1x256xf32>,
    %170 = vector.extract_strided_slice %13 {offsets = [14, 1024], sizes = [1, 256], strides = [1, 1]} : vector<16x4096xf32> to vector<1x256xf32>
    %c4_141 = arith.constant 4 : index
    %c3584_142 = arith.constant 3584 : index
    %171 = vector.load %arg9[%c4_141, %c3584_142] : memref<16x4096xf32, #tpu.memory_space<vmem>>, vector<1x256xf32>
    tpu.vector_store %arg9[%c4_141, %c3584_142], %170 {strides = array<i32>} : memref<16x4096xf32, #tpu.memory_space<vmem>>, vector<1x256xf32>,
    %172 = vector.extract_strided_slice %13 {offsets = [15, 1024], sizes = [1, 256], strides = [1, 1]} : vector<16x4096xf32> to vector<1x256xf32>
    %c4_143 = arith.constant 4 : index
    %c3840_144 = arith.constant 3840 : index
    %173 = vector.load %arg9[%c4_143, %c3840_144] : memref<16x4096xf32, #tpu.memory_space<vmem>>, vector<1x256xf32>
    tpu.vector_store %arg9[%c4_143, %c3840_144], %172 {strides = array<i32>} : memref<16x4096xf32, #tpu.memory_space<vmem>>, vector<1x256xf32>,
    %174 = vector.extract_strided_slice %13 {offsets = [0, 1280], sizes = [1, 256], strides = [1, 1]} : vector<16x4096xf32> to vector<1x256xf32>
    %c5 = arith.constant 5 : index
    %c0_145 = arith.constant 0 : index
    %175 = vector.load %arg9[%c5, %c0_145] : memref<16x4096xf32, #tpu.memory_space<vmem>>, vector<1x256xf32>
    tpu.vector_store %arg9[%c5, %c0_145], %174 {strides = array<i32>} : memref<16x4096xf32, #tpu.memory_space<vmem>>, vector<1x256xf32>,
    %176 = vector.extract_strided_slice %13 {offsets = [1, 1280], sizes = [1, 256], strides = [1, 1]} : vector<16x4096xf32> to vector<1x256xf32>
    %c5_146 = arith.constant 5 : index
    %c256_147 = arith.constant 256 : index
    %177 = vector.load %arg9[%c5_146, %c256_147] : memref<16x4096xf32, #tpu.memory_space<vmem>>, vector<1x256xf32>
    tpu.vector_store %arg9[%c5_146, %c256_147], %176 {strides = array<i32>} : memref<16x4096xf32, #tpu.memory_space<vmem>>, vector<1x256xf32>,
    %178 = vector.extract_strided_slice %13 {offsets = [2, 1280], sizes = [1, 256], strides = [1, 1]} : vector<16x4096xf32> to vector<1x256xf32>
    %c5_148 = arith.constant 5 : index
    %c512_149 = arith.constant 512 : index
    %179 = vector.load %arg9[%c5_148, %c512_149] : memref<16x4096xf32, #tpu.memory_space<vmem>>, vector<1x256xf32>
    tpu.vector_store %arg9[%c5_148, %c512_149], %178 {strides = array<i32>} : memref<16x4096xf32, #tpu.memory_space<vmem>>, vector<1x256xf32>,
    %180 = vector.extract_strided_slice %13 {offsets = [3, 1280], sizes = [1, 256], strides = [1, 1]} : vector<16x4096xf32> to vector<1x256xf32>
    %c5_150 = arith.constant 5 : index
    %c768_151 = arith.constant 768 : index
    %181 = vector.load %arg9[%c5_150, %c768_151] : memref<16x4096xf32, #tpu.memory_space<vmem>>, vector<1x256xf32>
    tpu.vector_store %arg9[%c5_150, %c768_151], %180 {strides = array<i32>} : memref<16x4096xf32, #tpu.memory_space<vmem>>, vector<1x256xf32>,
    %182 = vector.extract_strided_slice %13 {offsets = [4, 1280], sizes = [1, 256], strides = [1, 1]} : vector<16x4096xf32> to vector<1x256xf32>
    %c5_152 = arith.constant 5 : index
    %c1024_153 = arith.constant 1024 : index
    %183 = vector.load %arg9[%c5_152, %c1024_153] : memref<16x4096xf32, #tpu.memory_space<vmem>>, vector<1x256xf32>
    tpu.vector_store %arg9[%c5_152, %c1024_153], %182 {strides = array<i32>} : memref<16x4096xf32, #tpu.memory_space<vmem>>, vector<1x256xf32>,
    %184 = vector.extract_strided_slice %13 {offsets = [5, 1280], sizes = [1, 256], strides = [1, 1]} : vector<16x4096xf32> to vector<1x256xf32>
    %c5_154 = arith.constant 5 : index
    %c1280_155 = arith.constant 1280 : index
    %185 = vector.load %arg9[%c5_154, %c1280_155] : memref<16x4096xf32, #tpu.memory_space<vmem>>, vector<1x256xf32>
    tpu.vector_store %arg9[%c5_154, %c1280_155], %184 {strides = array<i32>} : memref<16x4096xf32, #tpu.memory_space<vmem>>, vector<1x256xf32>,
    %186 = vector.extract_strided_slice %13 {offsets = [6, 1280], sizes = [1, 256], strides = [1, 1]} : vector<16x4096xf32> to vector<1x256xf32>
    %c5_156 = arith.constant 5 : index
    %c1536_157 = arith.constant 1536 : index
    %187 = vector.load %arg9[%c5_156, %c1536_157] : memref<16x4096xf32, #tpu.memory_space<vmem>>, vector<1x256xf32>
    tpu.vector_store %arg9[%c5_156, %c1536_157], %186 {strides = array<i32>} : memref<16x4096xf32, #tpu.memory_space<vmem>>, vector<1x256xf32>,
    %188 = vector.extract_strided_slice %13 {offsets = [7, 1280], sizes = [1, 256], strides = [1, 1]} : vector<16x4096xf32> to vector<1x256xf32>
    %c5_158 = arith.constant 5 : index
    %c1792_159 = arith.constant 1792 : index
    %189 = vector.load %arg9[%c5_158, %c1792_159] : memref<16x4096xf32, #tpu.memory_space<vmem>>, vector<1x256xf32>
    tpu.vector_store %arg9[%c5_158, %c1792_159], %188 {strides = array<i32>} : memref<16x4096xf32, #tpu.memory_space<vmem>>, vector<1x256xf32>,
    %190 = vector.extract_strided_slice %13 {offsets = [8, 1280], sizes = [1, 256], strides = [1, 1]} : vector<16x4096xf32> to vector<1x256xf32>
    %c5_160 = arith.constant 5 : index
    %c2048_161 = arith.constant 2048 : index
    %191 = vector.load %arg9[%c5_160, %c2048_161] : memref<16x4096xf32, #tpu.memory_space<vmem>>, vector<1x256xf32>
    tpu.vector_store %arg9[%c5_160, %c2048_161], %190 {strides = array<i32>} : memref<16x4096xf32, #tpu.memory_space<vmem>>, vector<1x256xf32>,
    %192 = vector.extract_strided_slice %13 {offsets = [9, 1280], sizes = [1, 256], strides = [1, 1]} : vector<16x4096xf32> to vector<1x256xf32>
    %c5_162 = arith.constant 5 : index
    %c2304_163 = arith.constant 2304 : index
    %193 = vector.load %arg9[%c5_162, %c2304_163] : memref<16x4096xf32, #tpu.memory_space<vmem>>, vector<1x256xf32>
    tpu.vector_store %arg9[%c5_162, %c2304_163], %192 {strides = array<i32>} : memref<16x4096xf32, #tpu.memory_space<vmem>>, vector<1x256xf32>,
    %194 = vector.extract_strided_slice %13 {offsets = [10, 1280], sizes = [1, 256], strides = [1, 1]} : vector<16x4096xf32> to vector<1x256xf32>
    %c5_164 = arith.constant 5 : index
    %c2560_165 = arith.constant 2560 : index
    %195 = vector.load %arg9[%c5_164, %c2560_165] : memref<16x4096xf32, #tpu.memory_space<vmem>>, vector<1x256xf32>
    tpu.vector_store %arg9[%c5_164, %c2560_165], %194 {strides = array<i32>} : memref<16x4096xf32, #tpu.memory_space<vmem>>, vector<1x256xf32>,
    %196 = vector.extract_strided_slice %13 {offsets = [11, 1280], sizes = [1, 256], strides = [1, 1]} : vector<16x4096xf32> to vector<1x256xf32>
    %c5_166 = arith.constant 5 : index
    %c2816_167 = arith.constant 2816 : index
    %197 = vector.load %arg9[%c5_166, %c2816_167] : memref<16x4096xf32, #tpu.memory_space<vmem>>, vector<1x256xf32>
    tpu.vector_store %arg9[%c5_166, %c2816_167], %196 {strides = array<i32>} : memref<16x4096xf32, #tpu.memory_space<vmem>>, vector<1x256xf32>,
    %198 = vector.extract_strided_slice %13 {offsets = [12, 1280], sizes = [1, 256], strides = [1, 1]} : vector<16x4096xf32> to vector<1x256xf32>
    %c5_168 = arith.constant 5 : index
    %c3072_169 = arith.constant 3072 : index
    %199 = vector.load %arg9[%c5_168, %c3072_169] : memref<16x4096xf32, #tpu.memory_space<vmem>>, vector<1x256xf32>
    tpu.vector_store %arg9[%c5_168, %c3072_169], %198 {strides = array<i32>} : memref<16x4096xf32, #tpu.memory_space<vmem>>, vector<1x256xf32>,
    %200 = vector.extract_strided_slice %13 {offsets = [13, 1280], sizes = [1, 256], strides = [1, 1]} : vector<16x4096xf32> to vector<1x256xf32>
    %c5_170 = arith.constant 5 : index
    %c3328_171 = arith.constant 3328 : index
    %201 = vector.load %arg9[%c5_170, %c3328_171] : memref<16x4096xf32, #tpu.memory_space<vmem>>, vector<1x256xf32>
    tpu.vector_store %arg9[%c5_170, %c3328_171], %200 {strides = array<i32>} : memref<16x4096xf32, #tpu.memory_space<vmem>>, vector<1x256xf32>,
    %202 = vector.extract_strided_slice %13 {offsets = [14, 1280], sizes = [1, 256], strides = [1, 1]} : vector<16x4096xf32> to vector<1x256xf32>
    %c5_172 = arith.constant 5 : index
    %c3584_173 = arith.constant 3584 : index
    %203 = vector.load %arg9[%c5_172, %c3584_173] : memref<16x4096xf32, #tpu.memory_space<vmem>>, vector<1x256xf32>
    tpu.vector_store %arg9[%c5_172, %c3584_173], %202 {strides = array<i32>} : memref<16x4096xf32, #tpu.memory_space<vmem>>, vector<1x256xf32>,
    %204 = vector.extract_strided_slice %13 {offsets = [15, 1280], sizes = [1, 256], strides = [1, 1]} : vector<16x4096xf32> to vector<1x256xf32>
    %c5_174 = arith.constant 5 : index
    %c3840_175 = arith.constant 3840 : index
    %205 = vector.load %arg9[%c5_174, %c3840_175] : memref<16x4096xf32, #tpu.memory_space<vmem>>, vector<1x256xf32>
    tpu.vector_store %arg9[%c5_174, %c3840_175], %204 {strides = array<i32>} : memref<16x4096xf32, #tpu.memory_space<vmem>>, vector<1x256xf32>,
    %206 = vector.extract_strided_slice %13 {offsets = [0, 1536], sizes = [1, 256], strides = [1, 1]} : vector<16x4096xf32> to vector<1x256xf32>
    %c6 = arith.constant 6 : index
    %c0_176 = arith.constant 0 : index
    %207 = vector.load %arg9[%c6, %c0_176] : memref<16x4096xf32, #tpu.memory_space<vmem>>, vector<1x256xf32>
    tpu.vector_store %arg9[%c6, %c0_176], %206 {strides = array<i32>} : memref<16x4096xf32, #tpu.memory_space<vmem>>, vector<1x256xf32>,
    %208 = vector.extract_strided_slice %13 {offsets = [1, 1536], sizes = [1, 256], strides = [1, 1]} : vector<16x4096xf32> to vector<1x256xf32>
    %c6_177 = arith.constant 6 : index
    %c256_178 = arith.constant 256 : index
    %209 = vector.load %arg9[%c6_177, %c256_178] : memref<16x4096xf32, #tpu.memory_space<vmem>>, vector<1x256xf32>
    tpu.vector_store %arg9[%c6_177, %c256_178], %208 {strides = array<i32>} : memref<16x4096xf32, #tpu.memory_space<vmem>>, vector<1x256xf32>,
    %210 = vector.extract_strided_slice %13 {offsets = [2, 1536], sizes = [1, 256], strides = [1, 1]} : vector<16x4096xf32> to vector<1x256xf32>
    %c6_179 = arith.constant 6 : index
    %c512_180 = arith.constant 512 : index
    %211 = vector.load %arg9[%c6_179, %c512_180] : memref<16x4096xf32, #tpu.memory_space<vmem>>, vector<1x256xf32>
    tpu.vector_store %arg9[%c6_179, %c512_180], %210 {strides = array<i32>} : memref<16x4096xf32, #tpu.memory_space<vmem>>, vector<1x256xf32>,
    %212 = vector.extract_strided_slice %13 {offsets = [3, 1536], sizes = [1, 256], strides = [1, 1]} : vector<16x4096xf32> to vector<1x256xf32>
    %c6_181 = arith.constant 6 : index
    %c768_182 = arith.constant 768 : index
    %213 = vector.load %arg9[%c6_181, %c768_182] : memref<16x4096xf32, #tpu.memory_space<vmem>>, vector<1x256xf32>
    tpu.vector_store %arg9[%c6_181, %c768_182], %212 {strides = array<i32>} : memref<16x4096xf32, #tpu.memory_space<vmem>>, vector<1x256xf32>,
    %214 = vector.extract_strided_slice %13 {offsets = [4, 1536], sizes = [1, 256], strides = [1, 1]} : vector<16x4096xf32> to vector<1x256xf32>
    %c6_183 = arith.constant 6 : index
    %c1024_184 = arith.constant 1024 : index
    %215 = vector.load %arg9[%c6_183, %c1024_184] : memref<16x4096xf32, #tpu.memory_space<vmem>>, vector<1x256xf32>
    tpu.vector_store %arg9[%c6_183, %c1024_184], %214 {strides = array<i32>} : memref<16x4096xf32, #tpu.memory_space<vmem>>, vector<1x256xf32>,
    %216 = vector.extract_strided_slice %13 {offsets = [5, 1536], sizes = [1, 256], strides = [1, 1]} : vector<16x4096xf32> to vector<1x256xf32>
    %c6_185 = arith.constant 6 : index
    %c1280_186 = arith.constant 1280 : index
    %217 = vector.load %arg9[%c6_185, %c1280_186] : memref<16x4096xf32, #tpu.memory_space<vmem>>, vector<1x256xf32>
    tpu.vector_store %arg9[%c6_185, %c1280_186], %216 {strides = array<i32>} : memref<16x4096xf32, #tpu.memory_space<vmem>>, vector<1x256xf32>,
    %218 = vector.extract_strided_slice %13 {offsets = [6, 1536], sizes = [1, 256], strides = [1, 1]} : vector<16x4096xf32> to vector<1x256xf32>
    %c6_187 = arith.constant 6 : index
    %c1536_188 = arith.constant 1536 : index
    %219 = vector.load %arg9[%c6_187, %c1536_188] : memref<16x4096xf32, #tpu.memory_space<vmem>>, vector<1x256xf32>
    tpu.vector_store %arg9[%c6_187, %c1536_188], %218 {strides = array<i32>} : memref<16x4096xf32, #tpu.memory_space<vmem>>, vector<1x256xf32>,
    %220 = vector.extract_strided_slice %13 {offsets = [7, 1536], sizes = [1, 256], strides = [1, 1]} : vector<16x4096xf32> to vector<1x256xf32>
    %c6_189 = arith.constant 6 : index
    %c1792_190 = arith.constant 1792 : index
    %221 = vector.load %arg9[%c6_189, %c1792_190] : memref<16x4096xf32, #tpu.memory_space<vmem>>, vector<1x256xf32>
    tpu.vector_store %arg9[%c6_189, %c1792_190], %220 {strides = array<i32>} : memref<16x4096xf32, #tpu.memory_space<vmem>>, vector<1x256xf32>,
    %222 = vector.extract_strided_slice %13 {offsets = [8, 1536], sizes = [1, 256], strides = [1, 1]} : vector<16x4096xf32> to vector<1x256xf32>
    %c6_191 = arith.constant 6 : index
    %c2048_192 = arith.constant 2048 : index
    %223 = vector.load %arg9[%c6_191, %c2048_192] : memref<16x4096xf32, #tpu.memory_space<vmem>>, vector<1x256xf32>
    tpu.vector_store %arg9[%c6_191, %c2048_192], %222 {strides = array<i32>} : memref<16x4096xf32, #tpu.memory_space<vmem>>, vector<1x256xf32>,
    %224 = vector.extract_strided_slice %13 {offsets = [9, 1536], sizes = [1, 256], strides = [1, 1]} : vector<16x4096xf32> to vector<1x256xf32>
    %c6_193 = arith.constant 6 : index
    %c2304_194 = arith.constant 2304 : index
    %225 = vector.load %arg9[%c6_193, %c2304_194] : memref<16x4096xf32, #tpu.memory_space<vmem>>, vector<1x256xf32>
    tpu.vector_store %arg9[%c6_193, %c2304_194], %224 {strides = array<i32>} : memref<16x4096xf32, #tpu.memory_space<vmem>>, vector<1x256xf32>,
    %226 = vector.extract_strided_slice %13 {offsets = [10, 1536], sizes = [1, 256], strides = [1, 1]} : vector<16x4096xf32> to vector<1x256xf32>
    %c6_195 = arith.constant 6 : index
    %c2560_196 = arith.constant 2560 : index
    %227 = vector.load %arg9[%c6_195, %c2560_196] : memref<16x4096xf32, #tpu.memory_space<vmem>>, vector<1x256xf32>
    tpu.vector_store %arg9[%c6_195, %c2560_196], %226 {strides = array<i32>} : memref<16x4096xf32, #tpu.memory_space<vmem>>, vector<1x256xf32>,
    %228 = vector.extract_strided_slice %13 {offsets = [11, 1536], sizes = [1, 256], strides = [1, 1]} : vector<16x4096xf32> to vector<1x256xf32>
    %c6_197 = arith.constant 6 : index
    %c2816_198 = arith.constant 2816 : index
    %229 = vector.load %arg9[%c6_197, %c2816_198] : memref<16x4096xf32, #tpu.memory_space<vmem>>, vector<1x256xf32>
    tpu.vector_store %arg9[%c6_197, %c2816_198], %228 {strides = array<i32>} : memref<16x4096xf32, #tpu.memory_space<vmem>>, vector<1x256xf32>,
    %230 = vector.extract_strided_slice %13 {offsets = [12, 1536], sizes = [1, 256], strides = [1, 1]} : vector<16x4096xf32> to vector<1x256xf32>
    %c6_199 = arith.constant 6 : index
    %c3072_200 = arith.constant 3072 : index
    %231 = vector.load %arg9[%c6_199, %c3072_200] : memref<16x4096xf32, #tpu.memory_space<vmem>>, vector<1x256xf32>
    tpu.vector_store %arg9[%c6_199, %c3072_200], %230 {strides = array<i32>} : memref<16x4096xf32, #tpu.memory_space<vmem>>, vector<1x256xf32>,
    %232 = vector.extract_strided_slice %13 {offsets = [13, 1536], sizes = [1, 256], strides = [1, 1]} : vector<16x4096xf32> to vector<1x256xf32>
    %c6_201 = arith.constant 6 : index
    %c3328_202 = arith.constant 3328 : index
    %233 = vector.load %arg9[%c6_201, %c3328_202] : memref<16x4096xf32, #tpu.memory_space<vmem>>, vector<1x256xf32>
    tpu.vector_store %arg9[%c6_201, %c3328_202], %232 {strides = array<i32>} : memref<16x4096xf32, #tpu.memory_space<vmem>>, vector<1x256xf32>,
    %234 = vector.extract_strided_slice %13 {offsets = [14, 1536], sizes = [1, 256], strides = [1, 1]} : vector<16x4096xf32> to vector<1x256xf32>
    %c6_203 = arith.constant 6 : index
    %c3584_204 = arith.constant 3584 : index
    %235 = vector.load %arg9[%c6_203, %c3584_204] : memref<16x4096xf32, #tpu.memory_space<vmem>>, vector<1x256xf32>
    tpu.vector_store %arg9[%c6_203, %c3584_204], %234 {strides = array<i32>} : memref<16x4096xf32, #tpu.memory_space<vmem>>, vector<1x256xf32>,
    %236 = vector.extract_strided_slice %13 {offsets = [15, 1536], sizes = [1, 256], strides = [1, 1]} : vector<16x4096xf32> to vector<1x256xf32>
    %c6_205 = arith.constant 6 : index
    %c3840_206 = arith.constant 3840 : index
    %237 = vector.load %arg9[%c6_205, %c3840_206] : memref<16x4096xf32, #tpu.memory_space<vmem>>, vector<1x256xf32>
    tpu.vector_store %arg9[%c6_205, %c3840_206], %236 {strides = array<i32>} : memref<16x4096xf32, #tpu.memory_space<vmem>>, vector<1x256xf32>,
    %238 = vector.extract_strided_slice %13 {offsets = [0, 1792], sizes = [1, 256], strides = [1, 1]} : vector<16x4096xf32> to vector<1x256xf32>
    %c7 = arith.constant 7 : index
    %c0_207 = arith.constant 0 : index
    %239 = vector.load %arg9[%c7, %c0_207] : memref<16x4096xf32, #tpu.memory_space<vmem>>, vector<1x256xf32>
    tpu.vector_store %arg9[%c7, %c0_207], %238 {strides = array<i32>} : memref<16x4096xf32, #tpu.memory_space<vmem>>, vector<1x256xf32>,
    %240 = vector.extract_strided_slice %13 {offsets = [1, 1792], sizes = [1, 256], strides = [1, 1]} : vector<16x4096xf32> to vector<1x256xf32>
    %c7_208 = arith.constant 7 : index
    %c256_209 = arith.constant 256 : index
    %241 = vector.load %arg9[%c7_208, %c256_209] : memref<16x4096xf32, #tpu.memory_space<vmem>>, vector<1x256xf32>
    tpu.vector_store %arg9[%c7_208, %c256_209], %240 {strides = array<i32>} : memref<16x4096xf32, #tpu.memory_space<vmem>>, vector<1x256xf32>,
    %242 = vector.extract_strided_slice %13 {offsets = [2, 1792], sizes = [1, 256], strides = [1, 1]} : vector<16x4096xf32> to vector<1x256xf32>
    %c7_210 = arith.constant 7 : index
    %c512_211 = arith.constant 512 : index
    %243 = vector.load %arg9[%c7_210, %c512_211] : memref<16x4096xf32, #tpu.memory_space<vmem>>, vector<1x256xf32>
    tpu.vector_store %arg9[%c7_210, %c512_211], %242 {strides = array<i32>} : memref<16x4096xf32, #tpu.memory_space<vmem>>, vector<1x256xf32>,
    %244 = vector.extract_strided_slice %13 {offsets = [3, 1792], sizes = [1, 256], strides = [1, 1]} : vector<16x4096xf32> to vector<1x256xf32>
    %c7_212 = arith.constant 7 : index
    %c768_213 = arith.constant 768 : index
    %245 = vector.load %arg9[%c7_212, %c768_213] : memref<16x4096xf32, #tpu.memory_space<vmem>>, vector<1x256xf32>
    tpu.vector_store %arg9[%c7_212, %c768_213], %244 {strides = array<i32>} : memref<16x4096xf32, #tpu.memory_space<vmem>>, vector<1x256xf32>,
    %246 = vector.extract_strided_slice %13 {offsets = [4, 1792], sizes = [1, 256], strides = [1, 1]} : vector<16x4096xf32> to vector<1x256xf32>
    %c7_214 = arith.constant 7 : index
    %c1024_215 = arith.constant 1024 : index
    %247 = vector.load %arg9[%c7_214, %c1024_215] : memref<16x4096xf32, #tpu.memory_space<vmem>>, vector<1x256xf32>
    tpu.vector_store %arg9[%c7_214, %c1024_215], %246 {strides = array<i32>} : memref<16x4096xf32, #tpu.memory_space<vmem>>, vector<1x256xf32>,
    %248 = vector.extract_strided_slice %13 {offsets = [5, 1792], sizes = [1, 256], strides = [1, 1]} : vector<16x4096xf32> to vector<1x256xf32>
    %c7_216 = arith.constant 7 : index
    %c1280_217 = arith.constant 1280 : index
    %249 = vector.load %arg9[%c7_216, %c1280_217] : memref<16x4096xf32, #tpu.memory_space<vmem>>, vector<1x256xf32>
    tpu.vector_store %arg9[%c7_216, %c1280_217], %248 {strides = array<i32>} : memref<16x4096xf32, #tpu.memory_space<vmem>>, vector<1x256xf32>,
    %250 = vector.extract_strided_slice %13 {offsets = [6, 1792], sizes = [1, 256], strides = [1, 1]} : vector<16x4096xf32> to vector<1x256xf32>
    %c7_218 = arith.constant 7 : index
    %c1536_219 = arith.constant 1536 : index
    %251 = vector.load %arg9[%c7_218, %c1536_219] : memref<16x4096xf32, #tpu.memory_space<vmem>>, vector<1x256xf32>
    tpu.vector_store %arg9[%c7_218, %c1536_219], %250 {strides = array<i32>} : memref<16x4096xf32, #tpu.memory_space<vmem>>, vector<1x256xf32>,
    %252 = vector.extract_strided_slice %13 {offsets = [7, 1792], sizes = [1, 256], strides = [1, 1]} : vector<16x4096xf32> to vector<1x256xf32>
    %c7_220 = arith.constant 7 : index
    %c1792_221 = arith.constant 1792 : index
    %253 = vector.load %arg9[%c7_220, %c1792_221] : memref<16x4096xf32, #tpu.memory_space<vmem>>, vector<1x256xf32>
    tpu.vector_store %arg9[%c7_220, %c1792_221], %252 {strides = array<i32>} : memref<16x4096xf32, #tpu.memory_space<vmem>>, vector<1x256xf32>,
    %254 = vector.extract_strided_slice %13 {offsets = [8, 1792], sizes = [1, 256], strides = [1, 1]} : vector<16x4096xf32> to vector<1x256xf32>
    %c7_222 = arith.constant 7 : index
    %c2048_223 = arith.constant 2048 : index
    %255 = vector.load %arg9[%c7_222, %c2048_223] : memref<16x4096xf32, #tpu.memory_space<vmem>>, vector<1x256xf32>
    tpu.vector_store %arg9[%c7_222, %c2048_223], %254 {strides = array<i32>} : memref<16x4096xf32, #tpu.memory_space<vmem>>, vector<1x256xf32>,
    %256 = vector.extract_strided_slice %13 {offsets = [9, 1792], sizes = [1, 256], strides = [1, 1]} : vector<16x4096xf32> to vector<1x256xf32>
    %c7_224 = arith.constant 7 : index
    %c2304_225 = arith.constant 2304 : index
    %257 = vector.load %arg9[%c7_224, %c2304_225] : memref<16x4096xf32, #tpu.memory_space<vmem>>, vector<1x256xf32>
    tpu.vector_store %arg9[%c7_224, %c2304_225], %256 {strides = array<i32>} : memref<16x4096xf32, #tpu.memory_space<vmem>>, vector<1x256xf32>,
    %258 = vector.extract_strided_slice %13 {offsets = [10, 1792], sizes = [1, 256], strides = [1, 1]} : vector<16x4096xf32> to vector<1x256xf32>
    %c7_226 = arith.constant 7 : index
    %c2560_227 = arith.constant 2560 : index
    %259 = vector.load %arg9[%c7_226, %c2560_227] : memref<16x4096xf32, #tpu.memory_space<vmem>>, vector<1x256xf32>
    tpu.vector_store %arg9[%c7_226, %c2560_227], %258 {strides = array<i32>} : memref<16x4096xf32, #tpu.memory_space<vmem>>, vector<1x256xf32>,
    %260 = vector.extract_strided_slice %13 {offsets = [11, 1792], sizes = [1, 256], strides = [1, 1]} : vector<16x4096xf32> to vector<1x256xf32>
    %c7_228 = arith.constant 7 : index
    %c2816_229 = arith.constant 2816 : index
    %261 = vector.load %arg9[%c7_228, %c2816_229] : memref<16x4096xf32, #tpu.memory_space<vmem>>, vector<1x256xf32>
    tpu.vector_store %arg9[%c7_228, %c2816_229], %260 {strides = array<i32>} : memref<16x4096xf32, #tpu.memory_space<vmem>>, vector<1x256xf32>,
    %262 = vector.extract_strided_slice %13 {offsets = [12, 1792], sizes = [1, 256], strides = [1, 1]} : vector<16x4096xf32> to vector<1x256xf32>
    %c7_230 = arith.constant 7 : index
    %c3072_231 = arith.constant 3072 : index
    %263 = vector.load %arg9[%c7_230, %c3072_231] : memref<16x4096xf32, #tpu.memory_space<vmem>>, vector<1x256xf32>
    tpu.vector_store %arg9[%c7_230, %c3072_231], %262 {strides = array<i32>} : memref<16x4096xf32, #tpu.memory_space<vmem>>, vector<1x256xf32>,
    %264 = vector.extract_strided_slice %13 {offsets = [13, 1792], sizes = [1, 256], strides = [1, 1]} : vector<16x4096xf32> to vector<1x256xf32>
    %c7_232 = arith.constant 7 : index
    %c3328_233 = arith.constant 3328 : index
    %265 = vector.load %arg9[%c7_232, %c3328_233] : memref<16x4096xf32, #tpu.memory_space<vmem>>, vector<1x256xf32>
    tpu.vector_store %arg9[%c7_232, %c3328_233], %264 {strides = array<i32>} : memref<16x4096xf32, #tpu.memory_space<vmem>>, vector<1x256xf32>,
    %266 = vector.extract_strided_slice %13 {offsets = [14, 1792], sizes = [1, 256], strides = [1, 1]} : vector<16x4096xf32> to vector<1x256xf32>
    %c7_234 = arith.constant 7 : index
    %c3584_235 = arith.constant 3584 : index
    %267 = vector.load %arg9[%c7_234, %c3584_235] : memref<16x4096xf32, #tpu.memory_space<vmem>>, vector<1x256xf32>
    tpu.vector_store %arg9[%c7_234, %c3584_235], %266 {strides = array<i32>} : memref<16x4096xf32, #tpu.memory_space<vmem>>, vector<1x256xf32>,
    %268 = vector.extract_strided_slice %13 {offsets = [15, 1792], sizes = [1, 256], strides = [1, 1]} : vector<16x4096xf32> to vector<1x256xf32>
    %c7_236 = arith.constant 7 : index
    %c3840_237 = arith.constant 3840 : index
    %269 = vector.load %arg9[%c7_236, %c3840_237] : memref<16x4096xf32, #tpu.memory_space<vmem>>, vector<1x256xf32>
    tpu.vector_store %arg9[%c7_236, %c3840_237], %268 {strides = array<i32>} : memref<16x4096xf32, #tpu.memory_space<vmem>>, vector<1x256xf32>,
    %270 = vector.extract_strided_slice %13 {offsets = [0, 2048], sizes = [1, 256], strides = [1, 1]} : vector<16x4096xf32> to vector<1x256xf32>
    %c8 = arith.constant 8 : index
    %c0_238 = arith.constant 0 : index
    %271 = vector.load %arg9[%c8, %c0_238] : memref<16x4096xf32, #tpu.memory_space<vmem>>, vector<1x256xf32>
    tpu.vector_store %arg9[%c8, %c0_238], %270 {strides = array<i32>} : memref<16x4096xf32, #tpu.memory_space<vmem>>, vector<1x256xf32>,
    %272 = vector.extract_strided_slice %13 {offsets = [1, 2048], sizes = [1, 256], strides = [1, 1]} : vector<16x4096xf32> to vector<1x256xf32>
    %c8_239 = arith.constant 8 : index
    %c256_240 = arith.constant 256 : index
    %273 = vector.load %arg9[%c8_239, %c256_240] : memref<16x4096xf32, #tpu.memory_space<vmem>>, vector<1x256xf32>
    tpu.vector_store %arg9[%c8_239, %c256_240], %272 {strides = array<i32>} : memref<16x4096xf32, #tpu.memory_space<vmem>>, vector<1x256xf32>,
    %274 = vector.extract_strided_slice %13 {offsets = [2, 2048], sizes = [1, 256], strides = [1, 1]} : vector<16x4096xf32> to vector<1x256xf32>
    %c8_241 = arith.constant 8 : index
    %c512_242 = arith.constant 512 : index
    %275 = vector.load %arg9[%c8_241, %c512_242] : memref<16x4096xf32, #tpu.memory_space<vmem>>, vector<1x256xf32>
    tpu.vector_store %arg9[%c8_241, %c512_242], %274 {strides = array<i32>} : memref<16x4096xf32, #tpu.memory_space<vmem>>, vector<1x256xf32>,
    %276 = vector.extract_strided_slice %13 {offsets = [3, 2048], sizes = [1, 256], strides = [1, 1]} : vector<16x4096xf32> to vector<1x256xf32>
    %c8_243 = arith.constant 8 : index
    %c768_244 = arith.constant 768 : index
    %277 = vector.load %arg9[%c8_243, %c768_244] : memref<16x4096xf32, #tpu.memory_space<vmem>>, vector<1x256xf32>
    tpu.vector_store %arg9[%c8_243, %c768_244], %276 {strides = array<i32>} : memref<16x4096xf32, #tpu.memory_space<vmem>>, vector<1x256xf32>,
    %278 = vector.extract_strided_slice %13 {offsets = [4, 2048], sizes = [1, 256], strides = [1, 1]} : vector<16x4096xf32> to vector<1x256xf32>
    %c8_245 = arith.constant 8 : index
    %c1024_246 = arith.constant 1024 : index
    %279 = vector.load %arg9[%c8_245, %c1024_246] : memref<16x4096xf32, #tpu.memory_space<vmem>>, vector<1x256xf32>
    tpu.vector_store %arg9[%c8_245, %c1024_246], %278 {strides = array<i32>} : memref<16x4096xf32, #tpu.memory_space<vmem>>, vector<1x256xf32>,
    %280 = vector.extract_strided_slice %13 {offsets = [5, 2048], sizes = [1, 256], strides = [1, 1]} : vector<16x4096xf32> to vector<1x256xf32>
    %c8_247 = arith.constant 8 : index
    %c1280_248 = arith.constant 1280 : index
    %281 = vector.load %arg9[%c8_247, %c1280_248] : memref<16x4096xf32, #tpu.memory_space<vmem>>, vector<1x256xf32>
    tpu.vector_store %arg9[%c8_247, %c1280_248], %280 {strides = array<i32>} : memref<16x4096xf32, #tpu.memory_space<vmem>>, vector<1x256xf32>,
    %282 = vector.extract_strided_slice %13 {offsets = [6, 2048], sizes = [1, 256], strides = [1, 1]} : vector<16x4096xf32> to vector<1x256xf32>
    %c8_249 = arith.constant 8 : index
    %c1536_250 = arith.constant 1536 : index
    %283 = vector.load %arg9[%c8_249, %c1536_250] : memref<16x4096xf32, #tpu.memory_space<vmem>>, vector<1x256xf32>
    tpu.vector_store %arg9[%c8_249, %c1536_250], %282 {strides = array<i32>} : memref<16x4096xf32, #tpu.memory_space<vmem>>, vector<1x256xf32>,
    %284 = vector.extract_strided_slice %13 {offsets = [7, 2048], sizes = [1, 256], strides = [1, 1]} : vector<16x4096xf32> to vector<1x256xf32>
    %c8_251 = arith.constant 8 : index
    %c1792_252 = arith.constant 1792 : index
    %285 = vector.load %arg9[%c8_251, %c1792_252] : memref<16x4096xf32, #tpu.memory_space<vmem>>, vector<1x256xf32>
    tpu.vector_store %arg9[%c8_251, %c1792_252], %284 {strides = array<i32>} : memref<16x4096xf32, #tpu.memory_space<vmem>>, vector<1x256xf32>,
    %286 = vector.extract_strided_slice %13 {offsets = [8, 2048], sizes = [1, 256], strides = [1, 1]} : vector<16x4096xf32> to vector<1x256xf32>
    %c8_253 = arith.constant 8 : index
    %c2048_254 = arith.constant 2048 : index
    %287 = vector.load %arg9[%c8_253, %c2048_254] : memref<16x4096xf32, #tpu.memory_space<vmem>>, vector<1x256xf32>
    tpu.vector_store %arg9[%c8_253, %c2048_254], %286 {strides = array<i32>} : memref<16x4096xf32, #tpu.memory_space<vmem>>, vector<1x256xf32>,
    %288 = vector.extract_strided_slice %13 {offsets = [9, 2048], sizes = [1, 256], strides = [1, 1]} : vector<16x4096xf32> to vector<1x256xf32>
    %c8_255 = arith.constant 8 : index
    %c2304_256 = arith.constant 2304 : index
    %289 = vector.load %arg9[%c8_255, %c2304_256] : memref<16x4096xf32, #tpu.memory_space<vmem>>, vector<1x256xf32>
    tpu.vector_store %arg9[%c8_255, %c2304_256], %288 {strides = array<i32>} : memref<16x4096xf32, #tpu.memory_space<vmem>>, vector<1x256xf32>,
    %290 = vector.extract_strided_slice %13 {offsets = [10, 2048], sizes = [1, 256], strides = [1, 1]} : vector<16x4096xf32> to vector<1x256xf32>
    %c8_257 = arith.constant 8 : index
    %c2560_258 = arith.constant 2560 : index
    %291 = vector.load %arg9[%c8_257, %c2560_258] : memref<16x4096xf32, #tpu.memory_space<vmem>>, vector<1x256xf32>
    tpu.vector_store %arg9[%c8_257, %c2560_258], %290 {strides = array<i32>} : memref<16x4096xf32, #tpu.memory_space<vmem>>, vector<1x256xf32>,
    %292 = vector.extract_strided_slice %13 {offsets = [11, 2048], sizes = [1, 256], strides = [1, 1]} : vector<16x4096xf32> to vector<1x256xf32>
    %c8_259 = arith.constant 8 : index
    %c2816_260 = arith.constant 2816 : index
    %293 = vector.load %arg9[%c8_259, %c2816_260] : memref<16x4096xf32, #tpu.memory_space<vmem>>, vector<1x256xf32>
    tpu.vector_store %arg9[%c8_259, %c2816_260], %292 {strides = array<i32>} : memref<16x4096xf32, #tpu.memory_space<vmem>>, vector<1x256xf32>,
    %294 = vector.extract_strided_slice %13 {offsets = [12, 2048], sizes = [1, 256], strides = [1, 1]} : vector<16x4096xf32> to vector<1x256xf32>
    %c8_261 = arith.constant 8 : index
    %c3072_262 = arith.constant 3072 : index
    %295 = vector.load %arg9[%c8_261, %c3072_262] : memref<16x4096xf32, #tpu.memory_space<vmem>>, vector<1x256xf32>
    tpu.vector_store %arg9[%c8_261, %c3072_262], %294 {strides = array<i32>} : memref<16x4096xf32, #tpu.memory_space<vmem>>, vector<1x256xf32>,
    %296 = vector.extract_strided_slice %13 {offsets = [13, 2048], sizes = [1, 256], strides = [1, 1]} : vector<16x4096xf32> to vector<1x256xf32>
    %c8_263 = arith.constant 8 : index
    %c3328_264 = arith.constant 3328 : index
    %297 = vector.load %arg9[%c8_263, %c3328_264] : memref<16x4096xf32, #tpu.memory_space<vmem>>, vector<1x256xf32>
    tpu.vector_store %arg9[%c8_263, %c3328_264], %296 {strides = array<i32>} : memref<16x4096xf32, #tpu.memory_space<vmem>>, vector<1x256xf32>,
    %298 = vector.extract_strided_slice %13 {offsets = [14, 2048], sizes = [1, 256], strides = [1, 1]} : vector<16x4096xf32> to vector<1x256xf32>
    %c8_265 = arith.constant 8 : index
    %c3584_266 = arith.constant 3584 : index
    %299 = vector.load %arg9[%c8_265, %c3584_266] : memref<16x4096xf32, #tpu.memory_space<vmem>>, vector<1x256xf32>
    tpu.vector_store %arg9[%c8_265, %c3584_266], %298 {strides = array<i32>} : memref<16x4096xf32, #tpu.memory_space<vmem>>, vector<1x256xf32>,
    %300 = vector.extract_strided_slice %13 {offsets = [15, 2048], sizes = [1, 256], strides = [1, 1]} : vector<16x4096xf32> to vector<1x256xf32>
    %c8_267 = arith.constant 8 : index
    %c3840_268 = arith.constant 3840 : index
    %301 = vector.load %arg9[%c8_267, %c3840_268] : memref<16x4096xf32, #tpu.memory_space<vmem>>, vector<1x256xf32>
    tpu.vector_store %arg9[%c8_267, %c3840_268], %300 {strides = array<i32>} : memref<16x4096xf32, #tpu.memory_space<vmem>>, vector<1x256xf32>,
    %302 = vector.extract_strided_slice %13 {offsets = [0, 2304], sizes = [1, 256], strides = [1, 1]} : vector<16x4096xf32> to vector<1x256xf32>
    %c9 = arith.constant 9 : index
    %c0_269 = arith.constant 0 : index
    %303 = vector.load %arg9[%c9, %c0_269] : memref<16x4096xf32, #tpu.memory_space<vmem>>, vector<1x256xf32>
    tpu.vector_store %arg9[%c9, %c0_269], %302 {strides = array<i32>} : memref<16x4096xf32, #tpu.memory_space<vmem>>, vector<1x256xf32>,
    %304 = vector.extract_strided_slice %13 {offsets = [1, 2304], sizes = [1, 256], strides = [1, 1]} : vector<16x4096xf32> to vector<1x256xf32>
    %c9_270 = arith.constant 9 : index
    %c256_271 = arith.constant 256 : index
    %305 = vector.load %arg9[%c9_270, %c256_271] : memref<16x4096xf32, #tpu.memory_space<vmem>>, vector<1x256xf32>
    tpu.vector_store %arg9[%c9_270, %c256_271], %304 {strides = array<i32>} : memref<16x4096xf32, #tpu.memory_space<vmem>>, vector<1x256xf32>,
    %306 = vector.extract_strided_slice %13 {offsets = [2, 2304], sizes = [1, 256], strides = [1, 1]} : vector<16x4096xf32> to vector<1x256xf32>
    %c9_272 = arith.constant 9 : index
    %c512_273 = arith.constant 512 : index
    %307 = vector.load %arg9[%c9_272, %c512_273] : memref<16x4096xf32, #tpu.memory_space<vmem>>, vector<1x256xf32>
    tpu.vector_store %arg9[%c9_272, %c512_273], %306 {strides = array<i32>} : memref<16x4096xf32, #tpu.memory_space<vmem>>, vector<1x256xf32>,
    %308 = vector.extract_strided_slice %13 {offsets = [3, 2304], sizes = [1, 256], strides = [1, 1]} : vector<16x4096xf32> to vector<1x256xf32>
    %c9_274 = arith.constant 9 : index
    %c768_275 = arith.constant 768 : index
    %309 = vector.load %arg9[%c9_274, %c768_275] : memref<16x4096xf32, #tpu.memory_space<vmem>>, vector<1x256xf32>
    tpu.vector_store %arg9[%c9_274, %c768_275], %308 {strides = array<i32>} : memref<16x4096xf32, #tpu.memory_space<vmem>>, vector<1x256xf32>,
    %310 = vector.extract_strided_slice %13 {offsets = [4, 2304], sizes = [1, 256], strides = [1, 1]} : vector<16x4096xf32> to vector<1x256xf32>
    %c9_276 = arith.constant 9 : index
    %c1024_277 = arith.constant 1024 : index
    %311 = vector.load %arg9[%c9_276, %c1024_277] : memref<16x4096xf32, #tpu.memory_space<vmem>>, vector<1x256xf32>
    tpu.vector_store %arg9[%c9_276, %c1024_277], %310 {strides = array<i32>} : memref<16x4096xf32, #tpu.memory_space<vmem>>, vector<1x256xf32>,
    %312 = vector.extract_strided_slice %13 {offsets = [5, 2304], sizes = [1, 256], strides = [1, 1]} : vector<16x4096xf32> to vector<1x256xf32>
    %c9_278 = arith.constant 9 : index
    %c1280_279 = arith.constant 1280 : index
    %313 = vector.load %arg9[%c9_278, %c1280_279] : memref<16x4096xf32, #tpu.memory_space<vmem>>, vector<1x256xf32>
    tpu.vector_store %arg9[%c9_278, %c1280_279], %312 {strides = array<i32>} : memref<16x4096xf32, #tpu.memory_space<vmem>>, vector<1x256xf32>,
    %314 = vector.extract_strided_slice %13 {offsets = [6, 2304], sizes = [1, 256], strides = [1, 1]} : vector<16x4096xf32> to vector<1x256xf32>
    %c9_280 = arith.constant 9 : index
    %c1536_281 = arith.constant 1536 : index
    %315 = vector.load %arg9[%c9_280, %c1536_281] : memref<16x4096xf32, #tpu.memory_space<vmem>>, vector<1x256xf32>
    tpu.vector_store %arg9[%c9_280, %c1536_281], %314 {strides = array<i32>} : memref<16x4096xf32, #tpu.memory_space<vmem>>, vector<1x256xf32>,
    %316 = vector.extract_strided_slice %13 {offsets = [7, 2304], sizes = [1, 256], strides = [1, 1]} : vector<16x4096xf32> to vector<1x256xf32>
    %c9_282 = arith.constant 9 : index
    %c1792_283 = arith.constant 1792 : index
    %317 = vector.load %arg9[%c9_282, %c1792_283] : memref<16x4096xf32, #tpu.memory_space<vmem>>, vector<1x256xf32>
    tpu.vector_store %arg9[%c9_282, %c1792_283], %316 {strides = array<i32>} : memref<16x4096xf32, #tpu.memory_space<vmem>>, vector<1x256xf32>,
    %318 = vector.extract_strided_slice %13 {offsets = [8, 2304], sizes = [1, 256], strides = [1, 1]} : vector<16x4096xf32> to vector<1x256xf32>
    %c9_284 = arith.constant 9 : index
    %c2048_285 = arith.constant 2048 : index
    %319 = vector.load %arg9[%c9_284, %c2048_285] : memref<16x4096xf32, #tpu.memory_space<vmem>>, vector<1x256xf32>
    tpu.vector_store %arg9[%c9_284, %c2048_285], %318 {strides = array<i32>} : memref<16x4096xf32, #tpu.memory_space<vmem>>, vector<1x256xf32>,
    %320 = vector.extract_strided_slice %13 {offsets = [9, 2304], sizes = [1, 256], strides = [1, 1]} : vector<16x4096xf32> to vector<1x256xf32>
    %c9_286 = arith.constant 9 : index
    %c2304_287 = arith.constant 2304 : index
    %321 = vector.load %arg9[%c9_286, %c2304_287] : memref<16x4096xf32, #tpu.memory_space<vmem>>, vector<1x256xf32>
    tpu.vector_store %arg9[%c9_286, %c2304_287], %320 {strides = array<i32>} : memref<16x4096xf32, #tpu.memory_space<vmem>>, vector<1x256xf32>,
    %322 = vector.extract_strided_slice %13 {offsets = [10, 2304], sizes = [1, 256], strides = [1, 1]} : vector<16x4096xf32> to vector<1x256xf32>
    %c9_288 = arith.constant 9 : index
    %c2560_289 = arith.constant 2560 : index
    %323 = vector.load %arg9[%c9_288, %c2560_289] : memref<16x4096xf32, #tpu.memory_space<vmem>>, vector<1x256xf32>
    tpu.vector_store %arg9[%c9_288, %c2560_289], %322 {strides = array<i32>} : memref<16x4096xf32, #tpu.memory_space<vmem>>, vector<1x256xf32>,
    %324 = vector.extract_strided_slice %13 {offsets = [11, 2304], sizes = [1, 256], strides = [1, 1]} : vector<16x4096xf32> to vector<1x256xf32>
    %c9_290 = arith.constant 9 : index
    %c2816_291 = arith.constant 2816 : index
    %325 = vector.load %arg9[%c9_290, %c2816_291] : memref<16x4096xf32, #tpu.memory_space<vmem>>, vector<1x256xf32>
    tpu.vector_store %arg9[%c9_290, %c2816_291], %324 {strides = array<i32>} : memref<16x4096xf32, #tpu.memory_space<vmem>>, vector<1x256xf32>,
    %326 = vector.extract_strided_slice %13 {offsets = [12, 2304], sizes = [1, 256], strides = [1, 1]} : vector<16x4096xf32> to vector<1x256xf32>
    %c9_292 = arith.constant 9 : index
    %c3072_293 = arith.constant 3072 : index
    %327 = vector.load %arg9[%c9_292, %c3072_293] : memref<16x4096xf32, #tpu.memory_space<vmem>>, vector<1x256xf32>
    tpu.vector_store %arg9[%c9_292, %c3072_293], %326 {strides = array<i32>} : memref<16x4096xf32, #tpu.memory_space<vmem>>, vector<1x256xf32>,
    %328 = vector.extract_strided_slice %13 {offsets = [13, 2304], sizes = [1, 256], strides = [1, 1]} : vector<16x4096xf32> to vector<1x256xf32>
    %c9_294 = arith.constant 9 : index
    %c3328_295 = arith.constant 3328 : index
    %329 = vector.load %arg9[%c9_294, %c3328_295] : memref<16x4096xf32, #tpu.memory_space<vmem>>, vector<1x256xf32>
    tpu.vector_store %arg9[%c9_294, %c3328_295], %328 {strides = array<i32>} : memref<16x4096xf32, #tpu.memory_space<vmem>>, vector<1x256xf32>,
    %330 = vector.extract_strided_slice %13 {offsets = [14, 2304], sizes = [1, 256], strides = [1, 1]} : vector<16x4096xf32> to vector<1x256xf32>
    %c9_296 = arith.constant 9 : index
    %c3584_297 = arith.constant 3584 : index
    %331 = vector.load %arg9[%c9_296, %c3584_297] : memref<16x4096xf32, #tpu.memory_space<vmem>>, vector<1x256xf32>
    tpu.vector_store %arg9[%c9_296, %c3584_297], %330 {strides = array<i32>} : memref<16x4096xf32, #tpu.memory_space<vmem>>, vector<1x256xf32>,
    %332 = vector.extract_strided_slice %13 {offsets = [15, 2304], sizes = [1, 256], strides = [1, 1]} : vector<16x4096xf32> to vector<1x256xf32>
    %c9_298 = arith.constant 9 : index
    %c3840_299 = arith.constant 3840 : index
    %333 = vector.load %arg9[%c9_298, %c3840_299] : memref<16x4096xf32, #tpu.memory_space<vmem>>, vector<1x256xf32>
    tpu.vector_store %arg9[%c9_298, %c3840_299], %332 {strides = array<i32>} : memref<16x4096xf32, #tpu.memory_space<vmem>>, vector<1x256xf32>,
    %334 = vector.extract_strided_slice %13 {offsets = [0, 2560], sizes = [1, 256], strides = [1, 1]} : vector<16x4096xf32> to vector<1x256xf32>
    %c10 = arith.constant 10 : index
    %c0_300 = arith.constant 0 : index
    %335 = vector.load %arg9[%c10, %c0_300] : memref<16x4096xf32, #tpu.memory_space<vmem>>, vector<1x256xf32>
    tpu.vector_store %arg9[%c10, %c0_300], %334 {strides = array<i32>} : memref<16x4096xf32, #tpu.memory_space<vmem>>, vector<1x256xf32>,
    %336 = vector.extract_strided_slice %13 {offsets = [1, 2560], sizes = [1, 256], strides = [1, 1]} : vector<16x4096xf32> to vector<1x256xf32>
    %c10_301 = arith.constant 10 : index
    %c256_302 = arith.constant 256 : index
    %337 = vector.load %arg9[%c10_301, %c256_302] : memref<16x4096xf32, #tpu.memory_space<vmem>>, vector<1x256xf32>
    tpu.vector_store %arg9[%c10_301, %c256_302], %336 {strides = array<i32>} : memref<16x4096xf32, #tpu.memory_space<vmem>>, vector<1x256xf32>,
    %338 = vector.extract_strided_slice %13 {offsets = [2, 2560], sizes = [1, 256], strides = [1, 1]} : vector<16x4096xf32> to vector<1x256xf32>
    %c10_303 = arith.constant 10 : index
    %c512_304 = arith.constant 512 : index
    %339 = vector.load %arg9[%c10_303, %c512_304] : memref<16x4096xf32, #tpu.memory_space<vmem>>, vector<1x256xf32>
    tpu.vector_store %arg9[%c10_303, %c512_304], %338 {strides = array<i32>} : memref<16x4096xf32, #tpu.memory_space<vmem>>, vector<1x256xf32>,
    %340 = vector.extract_strided_slice %13 {offsets = [3, 2560], sizes = [1, 256], strides = [1, 1]} : vector<16x4096xf32> to vector<1x256xf32>
    %c10_305 = arith.constant 10 : index
    %c768_306 = arith.constant 768 : index
    %341 = vector.load %arg9[%c10_305, %c768_306] : memref<16x4096xf32, #tpu.memory_space<vmem>>, vector<1x256xf32>
    tpu.vector_store %arg9[%c10_305, %c768_306], %340 {strides = array<i32>} : memref<16x4096xf32, #tpu.memory_space<vmem>>, vector<1x256xf32>,
    %342 = vector.extract_strided_slice %13 {offsets = [4, 2560], sizes = [1, 256], strides = [1, 1]} : vector<16x4096xf32> to vector<1x256xf32>
    %c10_307 = arith.constant 10 : index
    %c1024_308 = arith.constant 1024 : index
    %343 = vector.load %arg9[%c10_307, %c1024_308] : memref<16x4096xf32, #tpu.memory_space<vmem>>, vector<1x256xf32>
    tpu.vector_store %arg9[%c10_307, %c1024_308], %342 {strides = array<i32>} : memref<16x4096xf32, #tpu.memory_space<vmem>>, vector<1x256xf32>,
    %344 = vector.extract_strided_slice %13 {offsets = [5, 2560], sizes = [1, 256], strides = [1, 1]} : vector<16x4096xf32> to vector<1x256xf32>
    %c10_309 = arith.constant 10 : index
    %c1280_310 = arith.constant 1280 : index
    %345 = vector.load %arg9[%c10_309, %c1280_310] : memref<16x4096xf32, #tpu.memory_space<vmem>>, vector<1x256xf32>
    tpu.vector_store %arg9[%c10_309, %c1280_310], %344 {strides = array<i32>} : memref<16x4096xf32, #tpu.memory_space<vmem>>, vector<1x256xf32>,
    %346 = vector.extract_strided_slice %13 {offsets = [6, 2560], sizes = [1, 256], strides = [1, 1]} : vector<16x4096xf32> to vector<1x256xf32>
    %c10_311 = arith.constant 10 : index
    %c1536_312 = arith.constant 1536 : index
    %347 = vector.load %arg9[%c10_311, %c1536_312] : memref<16x4096xf32, #tpu.memory_space<vmem>>, vector<1x256xf32>
    tpu.vector_store %arg9[%c10_311, %c1536_312], %346 {strides = array<i32>} : memref<16x4096xf32, #tpu.memory_space<vmem>>, vector<1x256xf32>,
    %348 = vector.extract_strided_slice %13 {offsets = [7, 2560], sizes = [1, 256], strides = [1, 1]} : vector<16x4096xf32> to vector<1x256xf32>
    %c10_313 = arith.constant 10 : index
    %c1792_314 = arith.constant 1792 : index
    %349 = vector.load %arg9[%c10_313, %c1792_314] : memref<16x4096xf32, #tpu.memory_space<vmem>>, vector<1x256xf32>
    tpu.vector_store %arg9[%c10_313, %c1792_314], %348 {strides = array<i32>} : memref<16x4096xf32, #tpu.memory_space<vmem>>, vector<1x256xf32>,
    %350 = vector.extract_strided_slice %13 {offsets = [8, 2560], sizes = [1, 256], strides = [1, 1]} : vector<16x4096xf32> to vector<1x256xf32>
    %c10_315 = arith.constant 10 : index
    %c2048_316 = arith.constant 2048 : index
    %351 = vector.load %arg9[%c10_315, %c2048_316] : memref<16x4096xf32, #tpu.memory_space<vmem>>, vector<1x256xf32>
    tpu.vector_store %arg9[%c10_315, %c2048_316], %350 {strides = array<i32>} : memref<16x4096xf32, #tpu.memory_space<vmem>>, vector<1x256xf32>,
    %352 = vector.extract_strided_slice %13 {offsets = [9, 2560], sizes = [1, 256], strides = [1, 1]} : vector<16x4096xf32> to vector<1x256xf32>
    %c10_317 = arith.constant 10 : index
    %c2304_318 = arith.constant 2304 : index
    %353 = vector.load %arg9[%c10_317, %c2304_318] : memref<16x4096xf32, #tpu.memory_space<vmem>>, vector<1x256xf32>
    tpu.vector_store %arg9[%c10_317, %c2304_318], %352 {strides = array<i32>} : memref<16x4096xf32, #tpu.memory_space<vmem>>, vector<1x256xf32>,
    %354 = vector.extract_strided_slice %13 {offsets = [10, 2560], sizes = [1, 256], strides = [1, 1]} : vector<16x4096xf32> to vector<1x256xf32>
    %c10_319 = arith.constant 10 : index
    %c2560_320 = arith.constant 2560 : index
    %355 = vector.load %arg9[%c10_319, %c2560_320] : memref<16x4096xf32, #tpu.memory_space<vmem>>, vector<1x256xf32>
    tpu.vector_store %arg9[%c10_319, %c2560_320], %354 {strides = array<i32>} : memref<16x4096xf32, #tpu.memory_space<vmem>>, vector<1x256xf32>,
    %356 = vector.extract_strided_slice %13 {offsets = [11, 2560], sizes = [1, 256], strides = [1, 1]} : vector<16x4096xf32> to vector<1x256xf32>
    %c10_321 = arith.constant 10 : index
    %c2816_322 = arith.constant 2816 : index
    %357 = vector.load %arg9[%c10_321, %c2816_322] : memref<16x4096xf32, #tpu.memory_space<vmem>>, vector<1x256xf32>
    tpu.vector_store %arg9[%c10_321, %c2816_322], %356 {strides = array<i32>} : memref<16x4096xf32, #tpu.memory_space<vmem>>, vector<1x256xf32>,
    %358 = vector.extract_strided_slice %13 {offsets = [12, 2560], sizes = [1, 256], strides = [1, 1]} : vector<16x4096xf32> to vector<1x256xf32>
    %c10_323 = arith.constant 10 : index
    %c3072_324 = arith.constant 3072 : index
    %359 = vector.load %arg9[%c10_323, %c3072_324] : memref<16x4096xf32, #tpu.memory_space<vmem>>, vector<1x256xf32>
    tpu.vector_store %arg9[%c10_323, %c3072_324], %358 {strides = array<i32>} : memref<16x4096xf32, #tpu.memory_space<vmem>>, vector<1x256xf32>,
    %360 = vector.extract_strided_slice %13 {offsets = [13, 2560], sizes = [1, 256], strides = [1, 1]} : vector<16x4096xf32> to vector<1x256xf32>
    %c10_325 = arith.constant 10 : index
    %c3328_326 = arith.constant 3328 : index
    %361 = vector.load %arg9[%c10_325, %c3328_326] : memref<16x4096xf32, #tpu.memory_space<vmem>>, vector<1x256xf32>
    tpu.vector_store %arg9[%c10_325, %c3328_326], %360 {strides = array<i32>} : memref<16x4096xf32, #tpu.memory_space<vmem>>, vector<1x256xf32>,
    %362 = vector.extract_strided_slice %13 {offsets = [14, 2560], sizes = [1, 256], strides = [1, 1]} : vector<16x4096xf32> to vector<1x256xf32>
    %c10_327 = arith.constant 10 : index
    %c3584_328 = arith.constant 3584 : index
    %363 = vector.load %arg9[%c10_327, %c3584_328] : memref<16x4096xf32, #tpu.memory_space<vmem>>, vector<1x256xf32>
    tpu.vector_store %arg9[%c10_327, %c3584_328], %362 {strides = array<i32>} : memref<16x4096xf32, #tpu.memory_space<vmem>>, vector<1x256xf32>,
    %364 = vector.extract_strided_slice %13 {offsets = [15, 2560], sizes = [1, 256], strides = [1, 1]} : vector<16x4096xf32> to vector<1x256xf32>
    %c10_329 = arith.constant 10 : index
    %c3840_330 = arith.constant 3840 : index
    %365 = vector.load %arg9[%c10_329, %c3840_330] : memref<16x4096xf32, #tpu.memory_space<vmem>>, vector<1x256xf32>
    tpu.vector_store %arg9[%c10_329, %c3840_330], %364 {strides = array<i32>} : memref<16x4096xf32, #tpu.memory_space<vmem>>, vector<1x256xf32>,
    %366 = vector.extract_strided_slice %13 {offsets = [0, 2816], sizes = [1, 256], strides = [1, 1]} : vector<16x4096xf32> to vector<1x256xf32>
    %c11 = arith.constant 11 : index
    %c0_331 = arith.constant 0 : index
    %367 = vector.load %arg9[%c11, %c0_331] : memref<16x4096xf32, #tpu.memory_space<vmem>>, vector<1x256xf32>
    tpu.vector_store %arg9[%c11, %c0_331], %366 {strides = array<i32>} : memref<16x4096xf32, #tpu.memory_space<vmem>>, vector<1x256xf32>,
    %368 = vector.extract_strided_slice %13 {offsets = [1, 2816], sizes = [1, 256], strides = [1, 1]} : vector<16x4096xf32> to vector<1x256xf32>
    %c11_332 = arith.constant 11 : index
    %c256_333 = arith.constant 256 : index
    %369 = vector.load %arg9[%c11_332, %c256_333] : memref<16x4096xf32, #tpu.memory_space<vmem>>, vector<1x256xf32>
    tpu.vector_store %arg9[%c11_332, %c256_333], %368 {strides = array<i32>} : memref<16x4096xf32, #tpu.memory_space<vmem>>, vector<1x256xf32>,
    %370 = vector.extract_strided_slice %13 {offsets = [2, 2816], sizes = [1, 256], strides = [1, 1]} : vector<16x4096xf32> to vector<1x256xf32>
    %c11_334 = arith.constant 11 : index
    %c512_335 = arith.constant 512 : index
    %371 = vector.load %arg9[%c11_334, %c512_335] : memref<16x4096xf32, #tpu.memory_space<vmem>>, vector<1x256xf32>
    tpu.vector_store %arg9[%c11_334, %c512_335], %370 {strides = array<i32>} : memref<16x4096xf32, #tpu.memory_space<vmem>>, vector<1x256xf32>,
    %372 = vector.extract_strided_slice %13 {offsets = [3, 2816], sizes = [1, 256], strides = [1, 1]} : vector<16x4096xf32> to vector<1x256xf32>
    %c11_336 = arith.constant 11 : index
    %c768_337 = arith.constant 768 : index
    %373 = vector.load %arg9[%c11_336, %c768_337] : memref<16x4096xf32, #tpu.memory_space<vmem>>, vector<1x256xf32>
    tpu.vector_store %arg9[%c11_336, %c768_337], %372 {strides = array<i32>} : memref<16x4096xf32, #tpu.memory_space<vmem>>, vector<1x256xf32>,
    %374 = vector.extract_strided_slice %13 {offsets = [4, 2816], sizes = [1, 256], strides = [1, 1]} : vector<16x4096xf32> to vector<1x256xf32>
    %c11_338 = arith.constant 11 : index
    %c1024_339 = arith.constant 1024 : index
    %375 = vector.load %arg9[%c11_338, %c1024_339] : memref<16x4096xf32, #tpu.memory_space<vmem>>, vector<1x256xf32>
    tpu.vector_store %arg9[%c11_338, %c1024_339], %374 {strides = array<i32>} : memref<16x4096xf32, #tpu.memory_space<vmem>>, vector<1x256xf32>,
    %376 = vector.extract_strided_slice %13 {offsets = [5, 2816], sizes = [1, 256], strides = [1, 1]} : vector<16x4096xf32> to vector<1x256xf32>
    %c11_340 = arith.constant 11 : index
    %c1280_341 = arith.constant 1280 : index
    %377 = vector.load %arg9[%c11_340, %c1280_341] : memref<16x4096xf32, #tpu.memory_space<vmem>>, vector<1x256xf32>
    tpu.vector_store %arg9[%c11_340, %c1280_341], %376 {strides = array<i32>} : memref<16x4096xf32, #tpu.memory_space<vmem>>, vector<1x256xf32>,
    %378 = vector.extract_strided_slice %13 {offsets = [6, 2816], sizes = [1, 256], strides = [1, 1]} : vector<16x4096xf32> to vector<1x256xf32>
    %c11_342 = arith.constant 11 : index
    %c1536_343 = arith.constant 1536 : index
    %379 = vector.load %arg9[%c11_342, %c1536_343] : memref<16x4096xf32, #tpu.memory_space<vmem>>, vector<1x256xf32>
    tpu.vector_store %arg9[%c11_342, %c1536_343], %378 {strides = array<i32>} : memref<16x4096xf32, #tpu.memory_space<vmem>>, vector<1x256xf32>,
    %380 = vector.extract_strided_slice %13 {offsets = [7, 2816], sizes = [1, 256], strides = [1, 1]} : vector<16x4096xf32> to vector<1x256xf32>
    %c11_344 = arith.constant 11 : index
    %c1792_345 = arith.constant 1792 : index
    %381 = vector.load %arg9[%c11_344, %c1792_345] : memref<16x4096xf32, #tpu.memory_space<vmem>>, vector<1x256xf32>
    tpu.vector_store %arg9[%c11_344, %c1792_345], %380 {strides = array<i32>} : memref<16x4096xf32, #tpu.memory_space<vmem>>, vector<1x256xf32>,
    %382 = vector.extract_strided_slice %13 {offsets = [8, 2816], sizes = [1, 256], strides = [1, 1]} : vector<16x4096xf32> to vector<1x256xf32>
    %c11_346 = arith.constant 11 : index
    %c2048_347 = arith.constant 2048 : index
    %383 = vector.load %arg9[%c11_346, %c2048_347] : memref<16x4096xf32, #tpu.memory_space<vmem>>, vector<1x256xf32>
    tpu.vector_store %arg9[%c11_346, %c2048_347], %382 {strides = array<i32>} : memref<16x4096xf32, #tpu.memory_space<vmem>>, vector<1x256xf32>,
    %384 = vector.extract_strided_slice %13 {offsets = [9, 2816], sizes = [1, 256], strides = [1, 1]} : vector<16x4096xf32> to vector<1x256xf32>
    %c11_348 = arith.constant 11 : index
    %c2304_349 = arith.constant 2304 : index
    %385 = vector.load %arg9[%c11_348, %c2304_349] : memref<16x4096xf32, #tpu.memory_space<vmem>>, vector<1x256xf32>
    tpu.vector_store %arg9[%c11_348, %c2304_349], %384 {strides = array<i32>} : memref<16x4096xf32, #tpu.memory_space<vmem>>, vector<1x256xf32>,
    %386 = vector.extract_strided_slice %13 {offsets = [10, 2816], sizes = [1, 256], strides = [1, 1]} : vector<16x4096xf32> to vector<1x256xf32>
    %c11_350 = arith.constant 11 : index
    %c2560_351 = arith.constant 2560 : index
    %387 = vector.load %arg9[%c11_350, %c2560_351] : memref<16x4096xf32, #tpu.memory_space<vmem>>, vector<1x256xf32>
    tpu.vector_store %arg9[%c11_350, %c2560_351], %386 {strides = array<i32>} : memref<16x4096xf32, #tpu.memory_space<vmem>>, vector<1x256xf32>,
    %388 = vector.extract_strided_slice %13 {offsets = [11, 2816], sizes = [1, 256], strides = [1, 1]} : vector<16x4096xf32> to vector<1x256xf32>
    %c11_352 = arith.constant 11 : index
    %c2816_353 = arith.constant 2816 : index
    %389 = vector.load %arg9[%c11_352, %c2816_353] : memref<16x4096xf32, #tpu.memory_space<vmem>>, vector<1x256xf32>
    tpu.vector_store %arg9[%c11_352, %c2816_353], %388 {strides = array<i32>} : memref<16x4096xf32, #tpu.memory_space<vmem>>, vector<1x256xf32>,
    %390 = vector.extract_strided_slice %13 {offsets = [12, 2816], sizes = [1, 256], strides = [1, 1]} : vector<16x4096xf32> to vector<1x256xf32>
    %c11_354 = arith.constant 11 : index
    %c3072_355 = arith.constant 3072 : index
    %391 = vector.load %arg9[%c11_354, %c3072_355] : memref<16x4096xf32, #tpu.memory_space<vmem>>, vector<1x256xf32>
    tpu.vector_store %arg9[%c11_354, %c3072_355], %390 {strides = array<i32>} : memref<16x4096xf32, #tpu.memory_space<vmem>>, vector<1x256xf32>,
    %392 = vector.extract_strided_slice %13 {offsets = [13, 2816], sizes = [1, 256], strides = [1, 1]} : vector<16x4096xf32> to vector<1x256xf32>
    %c11_356 = arith.constant 11 : index
    %c3328_357 = arith.constant 3328 : index
    %393 = vector.load %arg9[%c11_356, %c3328_357] : memref<16x4096xf32, #tpu.memory_space<vmem>>, vector<1x256xf32>
    tpu.vector_store %arg9[%c11_356, %c3328_357], %392 {strides = array<i32>} : memref<16x4096xf32, #tpu.memory_space<vmem>>, vector<1x256xf32>,
    %394 = vector.extract_strided_slice %13 {offsets = [14, 2816], sizes = [1, 256], strides = [1, 1]} : vector<16x4096xf32> to vector<1x256xf32>
    %c11_358 = arith.constant 11 : index
    %c3584_359 = arith.constant 3584 : index
    %395 = vector.load %arg9[%c11_358, %c3584_359] : memref<16x4096xf32, #tpu.memory_space<vmem>>, vector<1x256xf32>
    tpu.vector_store %arg9[%c11_358, %c3584_359], %394 {strides = array<i32>} : memref<16x4096xf32, #tpu.memory_space<vmem>>, vector<1x256xf32>,
    %396 = vector.extract_strided_slice %13 {offsets = [15, 2816], sizes = [1, 256], strides = [1, 1]} : vector<16x4096xf32> to vector<1x256xf32>
    %c11_360 = arith.constant 11 : index
    %c3840_361 = arith.constant 3840 : index
    %397 = vector.load %arg9[%c11_360, %c3840_361] : memref<16x4096xf32, #tpu.memory_space<vmem>>, vector<1x256xf32>
    tpu.vector_store %arg9[%c11_360, %c3840_361], %396 {strides = array<i32>} : memref<16x4096xf32, #tpu.memory_space<vmem>>, vector<1x256xf32>,
    %398 = vector.extract_strided_slice %13 {offsets = [0, 3072], sizes = [1, 256], strides = [1, 1]} : vector<16x4096xf32> to vector<1x256xf32>
    %c12 = arith.constant 12 : index
    %c0_362 = arith.constant 0 : index
    %399 = vector.load %arg9[%c12, %c0_362] : memref<16x4096xf32, #tpu.memory_space<vmem>>, vector<1x256xf32>
    tpu.vector_store %arg9[%c12, %c0_362], %398 {strides = array<i32>} : memref<16x4096xf32, #tpu.memory_space<vmem>>, vector<1x256xf32>,
    %400 = vector.extract_strided_slice %13 {offsets = [1, 3072], sizes = [1, 256], strides = [1, 1]} : vector<16x4096xf32> to vector<1x256xf32>
    %c12_363 = arith.constant 12 : index
    %c256_364 = arith.constant 256 : index
    %401 = vector.load %arg9[%c12_363, %c256_364] : memref<16x4096xf32, #tpu.memory_space<vmem>>, vector<1x256xf32>
    tpu.vector_store %arg9[%c12_363, %c256_364], %400 {strides = array<i32>} : memref<16x4096xf32, #tpu.memory_space<vmem>>, vector<1x256xf32>,
    %402 = vector.extract_strided_slice %13 {offsets = [2, 3072], sizes = [1, 256], strides = [1, 1]} : vector<16x4096xf32> to vector<1x256xf32>
    %c12_365 = arith.constant 12 : index
    %c512_366 = arith.constant 512 : index
    %403 = vector.load %arg9[%c12_365, %c512_366] : memref<16x4096xf32, #tpu.memory_space<vmem>>, vector<1x256xf32>
    tpu.vector_store %arg9[%c12_365, %c512_366], %402 {strides = array<i32>} : memref<16x4096xf32, #tpu.memory_space<vmem>>, vector<1x256xf32>,
    %404 = vector.extract_strided_slice %13 {offsets = [3, 3072], sizes = [1, 256], strides = [1, 1]} : vector<16x4096xf32> to vector<1x256xf32>
    %c12_367 = arith.constant 12 : index
    %c768_368 = arith.constant 768 : index
    %405 = vector.load %arg9[%c12_367, %c768_368] : memref<16x4096xf32, #tpu.memory_space<vmem>>, vector<1x256xf32>
    tpu.vector_store %arg9[%c12_367, %c768_368], %404 {strides = array<i32>} : memref<16x4096xf32, #tpu.memory_space<vmem>>, vector<1x256xf32>,
    %406 = vector.extract_strided_slice %13 {offsets = [4, 3072], sizes = [1, 256], strides = [1, 1]} : vector<16x4096xf32> to vector<1x256xf32>
    %c12_369 = arith.constant 12 : index
    %c1024_370 = arith.constant 1024 : index
    %407 = vector.load %arg9[%c12_369, %c1024_370] : memref<16x4096xf32, #tpu.memory_space<vmem>>, vector<1x256xf32>
    tpu.vector_store %arg9[%c12_369, %c1024_370], %406 {strides = array<i32>} : memref<16x4096xf32, #tpu.memory_space<vmem>>, vector<1x256xf32>,
    %408 = vector.extract_strided_slice %13 {offsets = [5, 3072], sizes = [1, 256], strides = [1, 1]} : vector<16x4096xf32> to vector<1x256xf32>
    %c12_371 = arith.constant 12 : index
    %c1280_372 = arith.constant 1280 : index
    %409 = vector.load %arg9[%c12_371, %c1280_372] : memref<16x4096xf32, #tpu.memory_space<vmem>>, vector<1x256xf32>
    tpu.vector_store %arg9[%c12_371, %c1280_372], %408 {strides = array<i32>} : memref<16x4096xf32, #tpu.memory_space<vmem>>, vector<1x256xf32>,
    %410 = vector.extract_strided_slice %13 {offsets = [6, 3072], sizes = [1, 256], strides = [1, 1]} : vector<16x4096xf32> to vector<1x256xf32>
    %c12_373 = arith.constant 12 : index
    %c1536_374 = arith.constant 1536 : index
    %411 = vector.load %arg9[%c12_373, %c1536_374] : memref<16x4096xf32, #tpu.memory_space<vmem>>, vector<1x256xf32>
    tpu.vector_store %arg9[%c12_373, %c1536_374], %410 {strides = array<i32>} : memref<16x4096xf32, #tpu.memory_space<vmem>>, vector<1x256xf32>,
    %412 = vector.extract_strided_slice %13 {offsets = [7, 3072], sizes = [1, 256], strides = [1, 1]} : vector<16x4096xf32> to vector<1x256xf32>
    %c12_375 = arith.constant 12 : index
    %c1792_376 = arith.constant 1792 : index
    %413 = vector.load %arg9[%c12_375, %c1792_376] : memref<16x4096xf32, #tpu.memory_space<vmem>>, vector<1x256xf32>
    tpu.vector_store %arg9[%c12_375, %c1792_376], %412 {strides = array<i32>} : memref<16x4096xf32, #tpu.memory_space<vmem>>, vector<1x256xf32>,
    %414 = vector.extract_strided_slice %13 {offsets = [8, 3072], sizes = [1, 256], strides = [1, 1]} : vector<16x4096xf32> to vector<1x256xf32>
    %c12_377 = arith.constant 12 : index
    %c2048_378 = arith.constant 2048 : index
    %415 = vector.load %arg9[%c12_377, %c2048_378] : memref<16x4096xf32, #tpu.memory_space<vmem>>, vector<1x256xf32>
    tpu.vector_store %arg9[%c12_377, %c2048_378], %414 {strides = array<i32>} : memref<16x4096xf32, #tpu.memory_space<vmem>>, vector<1x256xf32>,
    %416 = vector.extract_strided_slice %13 {offsets = [9, 3072], sizes = [1, 256], strides = [1, 1]} : vector<16x4096xf32> to vector<1x256xf32>
    %c12_379 = arith.constant 12 : index
    %c2304_380 = arith.constant 2304 : index
    %417 = vector.load %arg9[%c12_379, %c2304_380] : memref<16x4096xf32, #tpu.memory_space<vmem>>, vector<1x256xf32>
    tpu.vector_store %arg9[%c12_379, %c2304_380], %416 {strides = array<i32>} : memref<16x4096xf32, #tpu.memory_space<vmem>>, vector<1x256xf32>,
    %418 = vector.extract_strided_slice %13 {offsets = [10, 3072], sizes = [1, 256], strides = [1, 1]} : vector<16x4096xf32> to vector<1x256xf32>
    %c12_381 = arith.constant 12 : index
    %c2560_382 = arith.constant 2560 : index
    %419 = vector.load %arg9[%c12_381, %c2560_382] : memref<16x4096xf32, #tpu.memory_space<vmem>>, vector<1x256xf32>
    tpu.vector_store %arg9[%c12_381, %c2560_382], %418 {strides = array<i32>} : memref<16x4096xf32, #tpu.memory_space<vmem>>, vector<1x256xf32>,
    %420 = vector.extract_strided_slice %13 {offsets = [11, 3072], sizes = [1, 256], strides = [1, 1]} : vector<16x4096xf32> to vector<1x256xf32>
    %c12_383 = arith.constant 12 : index
    %c2816_384 = arith.constant 2816 : index
    %421 = vector.load %arg9[%c12_383, %c2816_384] : memref<16x4096xf32, #tpu.memory_space<vmem>>, vector<1x256xf32>
    tpu.vector_store %arg9[%c12_383, %c2816_384], %420 {strides = array<i32>} : memref<16x4096xf32, #tpu.memory_space<vmem>>, vector<1x256xf32>,
    %422 = vector.extract_strided_slice %13 {offsets = [12, 3072], sizes = [1, 256], strides = [1, 1]} : vector<16x4096xf32> to vector<1x256xf32>
    %c12_385 = arith.constant 12 : index
    %c3072_386 = arith.constant 3072 : index
    %423 = vector.load %arg9[%c12_385, %c3072_386] : memref<16x4096xf32, #tpu.memory_space<vmem>>, vector<1x256xf32>
    tpu.vector_store %arg9[%c12_385, %c3072_386], %422 {strides = array<i32>} : memref<16x4096xf32, #tpu.memory_space<vmem>>, vector<1x256xf32>,
    %424 = vector.extract_strided_slice %13 {offsets = [13, 3072], sizes = [1, 256], strides = [1, 1]} : vector<16x4096xf32> to vector<1x256xf32>
    %c12_387 = arith.constant 12 : index
    %c3328_388 = arith.constant 3328 : index
    %425 = vector.load %arg9[%c12_387, %c3328_388] : memref<16x4096xf32, #tpu.memory_space<vmem>>, vector<1x256xf32>
    tpu.vector_store %arg9[%c12_387, %c3328_388], %424 {strides = array<i32>} : memref<16x4096xf32, #tpu.memory_space<vmem>>, vector<1x256xf32>,
    %426 = vector.extract_strided_slice %13 {offsets = [14, 3072], sizes = [1, 256], strides = [1, 1]} : vector<16x4096xf32> to vector<1x256xf32>
    %c12_389 = arith.constant 12 : index
    %c3584_390 = arith.constant 3584 : index
    %427 = vector.load %arg9[%c12_389, %c3584_390] : memref<16x4096xf32, #tpu.memory_space<vmem>>, vector<1x256xf32>
    tpu.vector_store %arg9[%c12_389, %c3584_390], %426 {strides = array<i32>} : memref<16x4096xf32, #tpu.memory_space<vmem>>, vector<1x256xf32>,
    %428 = vector.extract_strided_slice %13 {offsets = [15, 3072], sizes = [1, 256], strides = [1, 1]} : vector<16x4096xf32> to vector<1x256xf32>
    %c12_391 = arith.constant 12 : index
    %c3840_392 = arith.constant 3840 : index
    %429 = vector.load %arg9[%c12_391, %c3840_392] : memref<16x4096xf32, #tpu.memory_space<vmem>>, vector<1x256xf32>
    tpu.vector_store %arg9[%c12_391, %c3840_392], %428 {strides = array<i32>} : memref<16x4096xf32, #tpu.memory_space<vmem>>, vector<1x256xf32>,
    %430 = vector.extract_strided_slice %13 {offsets = [0, 3328], sizes = [1, 256], strides = [1, 1]} : vector<16x4096xf32> to vector<1x256xf32>
    %c13 = arith.constant 13 : index
    %c0_393 = arith.constant 0 : index
    %431 = vector.load %arg9[%c13, %c0_393] : memref<16x4096xf32, #tpu.memory_space<vmem>>, vector<1x256xf32>
    tpu.vector_store %arg9[%c13, %c0_393], %430 {strides = array<i32>} : memref<16x4096xf32, #tpu.memory_space<vmem>>, vector<1x256xf32>,
    %432 = vector.extract_strided_slice %13 {offsets = [1, 3328], sizes = [1, 256], strides = [1, 1]} : vector<16x4096xf32> to vector<1x256xf32>
    %c13_394 = arith.constant 13 : index
    %c256_395 = arith.constant 256 : index
    %433 = vector.load %arg9[%c13_394, %c256_395] : memref<16x4096xf32, #tpu.memory_space<vmem>>, vector<1x256xf32>
    tpu.vector_store %arg9[%c13_394, %c256_395], %432 {strides = array<i32>} : memref<16x4096xf32, #tpu.memory_space<vmem>>, vector<1x256xf32>,
    %434 = vector.extract_strided_slice %13 {offsets = [2, 3328], sizes = [1, 256], strides = [1, 1]} : vector<16x4096xf32> to vector<1x256xf32>
    %c13_396 = arith.constant 13 : index
    %c512_397 = arith.constant 512 : index
    %435 = vector.load %arg9[%c13_396, %c512_397] : memref<16x4096xf32, #tpu.memory_space<vmem>>, vector<1x256xf32>
    tpu.vector_store %arg9[%c13_396, %c512_397], %434 {strides = array<i32>} : memref<16x4096xf32, #tpu.memory_space<vmem>>, vector<1x256xf32>,
    %436 = vector.extract_strided_slice %13 {offsets = [3, 3328], sizes = [1, 256], strides = [1, 1]} : vector<16x4096xf32> to vector<1x256xf32>
    %c13_398 = arith.constant 13 : index
    %c768_399 = arith.constant 768 : index
    %437 = vector.load %arg9[%c13_398, %c768_399] : memref<16x4096xf32, #tpu.memory_space<vmem>>, vector<1x256xf32>
    tpu.vector_store %arg9[%c13_398, %c768_399], %436 {strides = array<i32>} : memref<16x4096xf32, #tpu.memory_space<vmem>>, vector<1x256xf32>,
    %438 = vector.extract_strided_slice %13 {offsets = [4, 3328], sizes = [1, 256], strides = [1, 1]} : vector<16x4096xf32> to vector<1x256xf32>
    %c13_400 = arith.constant 13 : index
    %c1024_401 = arith.constant 1024 : index
    %439 = vector.load %arg9[%c13_400, %c1024_401] : memref<16x4096xf32, #tpu.memory_space<vmem>>, vector<1x256xf32>
    tpu.vector_store %arg9[%c13_400, %c1024_401], %438 {strides = array<i32>} : memref<16x4096xf32, #tpu.memory_space<vmem>>, vector<1x256xf32>,
    %440 = vector.extract_strided_slice %13 {offsets = [5, 3328], sizes = [1, 256], strides = [1, 1]} : vector<16x4096xf32> to vector<1x256xf32>
    %c13_402 = arith.constant 13 : index
    %c1280_403 = arith.constant 1280 : index
    %441 = vector.load %arg9[%c13_402, %c1280_403] : memref<16x4096xf32, #tpu.memory_space<vmem>>, vector<1x256xf32>
    tpu.vector_store %arg9[%c13_402, %c1280_403], %440 {strides = array<i32>} : memref<16x4096xf32, #tpu.memory_space<vmem>>, vector<1x256xf32>,
    %442 = vector.extract_strided_slice %13 {offsets = [6, 3328], sizes = [1, 256], strides = [1, 1]} : vector<16x4096xf32> to vector<1x256xf32>
    %c13_404 = arith.constant 13 : index
    %c1536_405 = arith.constant 1536 : index
    %443 = vector.load %arg9[%c13_404, %c1536_405] : memref<16x4096xf32, #tpu.memory_space<vmem>>, vector<1x256xf32>
    tpu.vector_store %arg9[%c13_404, %c1536_405], %442 {strides = array<i32>} : memref<16x4096xf32, #tpu.memory_space<vmem>>, vector<1x256xf32>,
    %444 = vector.extract_strided_slice %13 {offsets = [7, 3328], sizes = [1, 256], strides = [1, 1]} : vector<16x4096xf32> to vector<1x256xf32>
    %c13_406 = arith.constant 13 : index
    %c1792_407 = arith.constant 1792 : index
    %445 = vector.load %arg9[%c13_406, %c1792_407] : memref<16x4096xf32, #tpu.memory_space<vmem>>, vector<1x256xf32>
    tpu.vector_store %arg9[%c13_406, %c1792_407], %444 {strides = array<i32>} : memref<16x4096xf32, #tpu.memory_space<vmem>>, vector<1x256xf32>,
    %446 = vector.extract_strided_slice %13 {offsets = [8, 3328], sizes = [1, 256], strides = [1, 1]} : vector<16x4096xf32> to vector<1x256xf32>
    %c13_408 = arith.constant 13 : index
    %c2048_409 = arith.constant 2048 : index
    %447 = vector.load %arg9[%c13_408, %c2048_409] : memref<16x4096xf32, #tpu.memory_space<vmem>>, vector<1x256xf32>
    tpu.vector_store %arg9[%c13_408, %c2048_409], %446 {strides = array<i32>} : memref<16x4096xf32, #tpu.memory_space<vmem>>, vector<1x256xf32>,
    %448 = vector.extract_strided_slice %13 {offsets = [9, 3328], sizes = [1, 256], strides = [1, 1]} : vector<16x4096xf32> to vector<1x256xf32>
    %c13_410 = arith.constant 13 : index
    %c2304_411 = arith.constant 2304 : index
    %449 = vector.load %arg9[%c13_410, %c2304_411] : memref<16x4096xf32, #tpu.memory_space<vmem>>, vector<1x256xf32>
    tpu.vector_store %arg9[%c13_410, %c2304_411], %448 {strides = array<i32>} : memref<16x4096xf32, #tpu.memory_space<vmem>>, vector<1x256xf32>,
    %450 = vector.extract_strided_slice %13 {offsets = [10, 3328], sizes = [1, 256], strides = [1, 1]} : vector<16x4096xf32> to vector<1x256xf32>
    %c13_412 = arith.constant 13 : index
    %c2560_413 = arith.constant 2560 : index
    %451 = vector.load %arg9[%c13_412, %c2560_413] : memref<16x4096xf32, #tpu.memory_space<vmem>>, vector<1x256xf32>
    tpu.vector_store %arg9[%c13_412, %c2560_413], %450 {strides = array<i32>} : memref<16x4096xf32, #tpu.memory_space<vmem>>, vector<1x256xf32>,
    %452 = vector.extract_strided_slice %13 {offsets = [11, 3328], sizes = [1, 256], strides = [1, 1]} : vector<16x4096xf32> to vector<1x256xf32>
    %c13_414 = arith.constant 13 : index
    %c2816_415 = arith.constant 2816 : index
    %453 = vector.load %arg9[%c13_414, %c2816_415] : memref<16x4096xf32, #tpu.memory_space<vmem>>, vector<1x256xf32>
    tpu.vector_store %arg9[%c13_414, %c2816_415], %452 {strides = array<i32>} : memref<16x4096xf32, #tpu.memory_space<vmem>>, vector<1x256xf32>,
    %454 = vector.extract_strided_slice %13 {offsets = [12, 3328], sizes = [1, 256], strides = [1, 1]} : vector<16x4096xf32> to vector<1x256xf32>
    %c13_416 = arith.constant 13 : index
    %c3072_417 = arith.constant 3072 : index
    %455 = vector.load %arg9[%c13_416, %c3072_417] : memref<16x4096xf32, #tpu.memory_space<vmem>>, vector<1x256xf32>
    tpu.vector_store %arg9[%c13_416, %c3072_417], %454 {strides = array<i32>} : memref<16x4096xf32, #tpu.memory_space<vmem>>, vector<1x256xf32>,
    %456 = vector.extract_strided_slice %13 {offsets = [13, 3328], sizes = [1, 256], strides = [1, 1]} : vector<16x4096xf32> to vector<1x256xf32>
    %c13_418 = arith.constant 13 : index
    %c3328_419 = arith.constant 3328 : index
    %457 = vector.load %arg9[%c13_418, %c3328_419] : memref<16x4096xf32, #tpu.memory_space<vmem>>, vector<1x256xf32>
    tpu.vector_store %arg9[%c13_418, %c3328_419], %456 {strides = array<i32>} : memref<16x4096xf32, #tpu.memory_space<vmem>>, vector<1x256xf32>,
    %458 = vector.extract_strided_slice %13 {offsets = [14, 3328], sizes = [1, 256], strides = [1, 1]} : vector<16x4096xf32> to vector<1x256xf32>
    %c13_420 = arith.constant 13 : index
    %c3584_421 = arith.constant 3584 : index
    %459 = vector.load %arg9[%c13_420, %c3584_421] : memref<16x4096xf32, #tpu.memory_space<vmem>>, vector<1x256xf32>
    tpu.vector_store %arg9[%c13_420, %c3584_421], %458 {strides = array<i32>} : memref<16x4096xf32, #tpu.memory_space<vmem>>, vector<1x256xf32>,
    %460 = vector.extract_strided_slice %13 {offsets = [15, 3328], sizes = [1, 256], strides = [1, 1]} : vector<16x4096xf32> to vector<1x256xf32>
    %c13_422 = arith.constant 13 : index
    %c3840_423 = arith.constant 3840 : index
    %461 = vector.load %arg9[%c13_422, %c3840_423] : memref<16x4096xf32, #tpu.memory_space<vmem>>, vector<1x256xf32>
    tpu.vector_store %arg9[%c13_422, %c3840_423], %460 {strides = array<i32>} : memref<16x4096xf32, #tpu.memory_space<vmem>>, vector<1x256xf32>,
    %462 = vector.extract_strided_slice %13 {offsets = [0, 3584], sizes = [1, 256], strides = [1, 1]} : vector<16x4096xf32> to vector<1x256xf32>
    %c14 = arith.constant 14 : index
    %c0_424 = arith.constant 0 : index
    %463 = vector.load %arg9[%c14, %c0_424] : memref<16x4096xf32, #tpu.memory_space<vmem>>, vector<1x256xf32>
    tpu.vector_store %arg9[%c14, %c0_424], %462 {strides = array<i32>} : memref<16x4096xf32, #tpu.memory_space<vmem>>, vector<1x256xf32>,
    %464 = vector.extract_strided_slice %13 {offsets = [1, 3584], sizes = [1, 256], strides = [1, 1]} : vector<16x4096xf32> to vector<1x256xf32>
    %c14_425 = arith.constant 14 : index
    %c256_426 = arith.constant 256 : index
    %465 = vector.load %arg9[%c14_425, %c256_426] : memref<16x4096xf32, #tpu.memory_space<vmem>>, vector<1x256xf32>
    tpu.vector_store %arg9[%c14_425, %c256_426], %464 {strides = array<i32>} : memref<16x4096xf32, #tpu.memory_space<vmem>>, vector<1x256xf32>,
    %466 = vector.extract_strided_slice %13 {offsets = [2, 3584], sizes = [1, 256], strides = [1, 1]} : vector<16x4096xf32> to vector<1x256xf32>
    %c14_427 = arith.constant 14 : index
    %c512_428 = arith.constant 512 : index
    %467 = vector.load %arg9[%c14_427, %c512_428] : memref<16x4096xf32, #tpu.memory_space<vmem>>, vector<1x256xf32>
    tpu.vector_store %arg9[%c14_427, %c512_428], %466 {strides = array<i32>} : memref<16x4096xf32, #tpu.memory_space<vmem>>, vector<1x256xf32>,
    %468 = vector.extract_strided_slice %13 {offsets = [3, 3584], sizes = [1, 256], strides = [1, 1]} : vector<16x4096xf32> to vector<1x256xf32>
    %c14_429 = arith.constant 14 : index
    %c768_430 = arith.constant 768 : index
    %469 = vector.load %arg9[%c14_429, %c768_430] : memref<16x4096xf32, #tpu.memory_space<vmem>>, vector<1x256xf32>
    tpu.vector_store %arg9[%c14_429, %c768_430], %468 {strides = array<i32>} : memref<16x4096xf32, #tpu.memory_space<vmem>>, vector<1x256xf32>,
    %470 = vector.extract_strided_slice %13 {offsets = [4, 3584], sizes = [1, 256], strides = [1, 1]} : vector<16x4096xf32> to vector<1x256xf32>
    %c14_431 = arith.constant 14 : index
    %c1024_432 = arith.constant 1024 : index
    %471 = vector.load %arg9[%c14_431, %c1024_432] : memref<16x4096xf32, #tpu.memory_space<vmem>>, vector<1x256xf32>
    tpu.vector_store %arg9[%c14_431, %c1024_432], %470 {strides = array<i32>} : memref<16x4096xf32, #tpu.memory_space<vmem>>, vector<1x256xf32>,
    %472 = vector.extract_strided_slice %13 {offsets = [5, 3584], sizes = [1, 256], strides = [1, 1]} : vector<16x4096xf32> to vector<1x256xf32>
    %c14_433 = arith.constant 14 : index
    %c1280_434 = arith.constant 1280 : index
    %473 = vector.load %arg9[%c14_433, %c1280_434] : memref<16x4096xf32, #tpu.memory_space<vmem>>, vector<1x256xf32>
    tpu.vector_store %arg9[%c14_433, %c1280_434], %472 {strides = array<i32>} : memref<16x4096xf32, #tpu.memory_space<vmem>>, vector<1x256xf32>,
    %474 = vector.extract_strided_slice %13 {offsets = [6, 3584], sizes = [1, 256], strides = [1, 1]} : vector<16x4096xf32> to vector<1x256xf32>
    %c14_435 = arith.constant 14 : index
    %c1536_436 = arith.constant 1536 : index
    %475 = vector.load %arg9[%c14_435, %c1536_436] : memref<16x4096xf32, #tpu.memory_space<vmem>>, vector<1x256xf32>
    tpu.vector_store %arg9[%c14_435, %c1536_436], %474 {strides = array<i32>} : memref<16x4096xf32, #tpu.memory_space<vmem>>, vector<1x256xf32>,
    %476 = vector.extract_strided_slice %13 {offsets = [7, 3584], sizes = [1, 256], strides = [1, 1]} : vector<16x4096xf32> to vector<1x256xf32>
    %c14_437 = arith.constant 14 : index
    %c1792_438 = arith.constant 1792 : index
    %477 = vector.load %arg9[%c14_437, %c1792_438] : memref<16x4096xf32, #tpu.memory_space<vmem>>, vector<1x256xf32>
    tpu.vector_store %arg9[%c14_437, %c1792_438], %476 {strides = array<i32>} : memref<16x4096xf32, #tpu.memory_space<vmem>>, vector<1x256xf32>,
    %478 = vector.extract_strided_slice %13 {offsets = [8, 3584], sizes = [1, 256], strides = [1, 1]} : vector<16x4096xf32> to vector<1x256xf32>
    %c14_439 = arith.constant 14 : index
    %c2048_440 = arith.constant 2048 : index
    %479 = vector.load %arg9[%c14_439, %c2048_440] : memref<16x4096xf32, #tpu.memory_space<vmem>>, vector<1x256xf32>
    tpu.vector_store %arg9[%c14_439, %c2048_440], %478 {strides = array<i32>} : memref<16x4096xf32, #tpu.memory_space<vmem>>, vector<1x256xf32>,
    %480 = vector.extract_strided_slice %13 {offsets = [9, 3584], sizes = [1, 256], strides = [1, 1]} : vector<16x4096xf32> to vector<1x256xf32>
    %c14_441 = arith.constant 14 : index
    %c2304_442 = arith.constant 2304 : index
    %481 = vector.load %arg9[%c14_441, %c2304_442] : memref<16x4096xf32, #tpu.memory_space<vmem>>, vector<1x256xf32>
    tpu.vector_store %arg9[%c14_441, %c2304_442], %480 {strides = array<i32>} : memref<16x4096xf32, #tpu.memory_space<vmem>>, vector<1x256xf32>,
    %482 = vector.extract_strided_slice %13 {offsets = [10, 3584], sizes = [1, 256], strides = [1, 1]} : vector<16x4096xf32> to vector<1x256xf32>
    %c14_443 = arith.constant 14 : index
    %c2560_444 = arith.constant 2560 : index
    %483 = vector.load %arg9[%c14_443, %c2560_444] : memref<16x4096xf32, #tpu.memory_space<vmem>>, vector<1x256xf32>
    tpu.vector_store %arg9[%c14_443, %c2560_444], %482 {strides = array<i32>} : memref<16x4096xf32, #tpu.memory_space<vmem>>, vector<1x256xf32>,
    %484 = vector.extract_strided_slice %13 {offsets = [11, 3584], sizes = [1, 256], strides = [1, 1]} : vector<16x4096xf32> to vector<1x256xf32>
    %c14_445 = arith.constant 14 : index
    %c2816_446 = arith.constant 2816 : index
    %485 = vector.load %arg9[%c14_445, %c2816_446] : memref<16x4096xf32, #tpu.memory_space<vmem>>, vector<1x256xf32>
    tpu.vector_store %arg9[%c14_445, %c2816_446], %484 {strides = array<i32>} : memref<16x4096xf32, #tpu.memory_space<vmem>>, vector<1x256xf32>,
    %486 = vector.extract_strided_slice %13 {offsets = [12, 3584], sizes = [1, 256], strides = [1, 1]} : vector<16x4096xf32> to vector<1x256xf32>
    %c14_447 = arith.constant 14 : index
    %c3072_448 = arith.constant 3072 : index
    %487 = vector.load %arg9[%c14_447, %c3072_448] : memref<16x4096xf32, #tpu.memory_space<vmem>>, vector<1x256xf32>
    tpu.vector_store %arg9[%c14_447, %c3072_448], %486 {strides = array<i32>} : memref<16x4096xf32, #tpu.memory_space<vmem>>, vector<1x256xf32>,
    %488 = vector.extract_strided_slice %13 {offsets = [13, 3584], sizes = [1, 256], strides = [1, 1]} : vector<16x4096xf32> to vector<1x256xf32>
    %c14_449 = arith.constant 14 : index
    %c3328_450 = arith.constant 3328 : index
    %489 = vector.load %arg9[%c14_449, %c3328_450] : memref<16x4096xf32, #tpu.memory_space<vmem>>, vector<1x256xf32>
    tpu.vector_store %arg9[%c14_449, %c3328_450], %488 {strides = array<i32>} : memref<16x4096xf32, #tpu.memory_space<vmem>>, vector<1x256xf32>,
    %490 = vector.extract_strided_slice %13 {offsets = [14, 3584], sizes = [1, 256], strides = [1, 1]} : vector<16x4096xf32> to vector<1x256xf32>
    %c14_451 = arith.constant 14 : index
    %c3584_452 = arith.constant 3584 : index
    %491 = vector.load %arg9[%c14_451, %c3584_452] : memref<16x4096xf32, #tpu.memory_space<vmem>>, vector<1x256xf32>
    tpu.vector_store %arg9[%c14_451, %c3584_452], %490 {strides = array<i32>} : memref<16x4096xf32, #tpu.memory_space<vmem>>, vector<1x256xf32>,
    %492 = vector.extract_strided_slice %13 {offsets = [15, 3584], sizes = [1, 256], strides = [1, 1]} : vector<16x4096xf32> to vector<1x256xf32>
    %c14_453 = arith.constant 14 : index
    %c3840_454 = arith.constant 3840 : index
    %493 = vector.load %arg9[%c14_453, %c3840_454] : memref<16x4096xf32, #tpu.memory_space<vmem>>, vector<1x256xf32>
    tpu.vector_store %arg9[%c14_453, %c3840_454], %492 {strides = array<i32>} : memref<16x4096xf32, #tpu.memory_space<vmem>>, vector<1x256xf32>,
    %494 = vector.extract_strided_slice %13 {offsets = [0, 3840], sizes = [1, 256], strides = [1, 1]} : vector<16x4096xf32> to vector<1x256xf32>
    %c15 = arith.constant 15 : index
    %c0_455 = arith.constant 0 : index
    %495 = vector.load %arg9[%c15, %c0_455] : memref<16x4096xf32, #tpu.memory_space<vmem>>, vector<1x256xf32>
    tpu.vector_store %arg9[%c15, %c0_455], %494 {strides = array<i32>} : memref<16x4096xf32, #tpu.memory_space<vmem>>, vector<1x256xf32>,
    %496 = vector.extract_strided_slice %13 {offsets = [1, 3840], sizes = [1, 256], strides = [1, 1]} : vector<16x4096xf32> to vector<1x256xf32>
    %c15_456 = arith.constant 15 : index
    %c256_457 = arith.constant 256 : index
    %497 = vector.load %arg9[%c15_456, %c256_457] : memref<16x4096xf32, #tpu.memory_space<vmem>>, vector<1x256xf32>
    tpu.vector_store %arg9[%c15_456, %c256_457], %496 {strides = array<i32>} : memref<16x4096xf32, #tpu.memory_space<vmem>>, vector<1x256xf32>,
    %498 = vector.extract_strided_slice %13 {offsets = [2, 3840], sizes = [1, 256], strides = [1, 1]} : vector<16x4096xf32> to vector<1x256xf32>
    %c15_458 = arith.constant 15 : index
    %c512_459 = arith.constant 512 : index
    %499 = vector.load %arg9[%c15_458, %c512_459] : memref<16x4096xf32, #tpu.memory_space<vmem>>, vector<1x256xf32>
    tpu.vector_store %arg9[%c15_458, %c512_459], %498 {strides = array<i32>} : memref<16x4096xf32, #tpu.memory_space<vmem>>, vector<1x256xf32>,
    %500 = vector.extract_strided_slice %13 {offsets = [3, 3840], sizes = [1, 256], strides = [1, 1]} : vector<16x4096xf32> to vector<1x256xf32>
    %c15_460 = arith.constant 15 : index
    %c768_461 = arith.constant 768 : index
    %501 = vector.load %arg9[%c15_460, %c768_461] : memref<16x4096xf32, #tpu.memory_space<vmem>>, vector<1x256xf32>
    tpu.vector_store %arg9[%c15_460, %c768_461], %500 {strides = array<i32>} : memref<16x4096xf32, #tpu.memory_space<vmem>>, vector<1x256xf32>,
    %502 = vector.extract_strided_slice %13 {offsets = [4, 3840], sizes = [1, 256], strides = [1, 1]} : vector<16x4096xf32> to vector<1x256xf32>
    %c15_462 = arith.constant 15 : index
    %c1024_463 = arith.constant 1024 : index
    %503 = vector.load %arg9[%c15_462, %c1024_463] : memref<16x4096xf32, #tpu.memory_space<vmem>>, vector<1x256xf32>
    tpu.vector_store %arg9[%c15_462, %c1024_463], %502 {strides = array<i32>} : memref<16x4096xf32, #tpu.memory_space<vmem>>, vector<1x256xf32>,
    %504 = vector.extract_strided_slice %13 {offsets = [5, 3840], sizes = [1, 256], strides = [1, 1]} : vector<16x4096xf32> to vector<1x256xf32>
    %c15_464 = arith.constant 15 : index
    %c1280_465 = arith.constant 1280 : index
    %505 = vector.load %arg9[%c15_464, %c1280_465] : memref<16x4096xf32, #tpu.memory_space<vmem>>, vector<1x256xf32>
    tpu.vector_store %arg9[%c15_464, %c1280_465], %504 {strides = array<i32>} : memref<16x4096xf32, #tpu.memory_space<vmem>>, vector<1x256xf32>,
    %506 = vector.extract_strided_slice %13 {offsets = [6, 3840], sizes = [1, 256], strides = [1, 1]} : vector<16x4096xf32> to vector<1x256xf32>
    %c15_466 = arith.constant 15 : index
    %c1536_467 = arith.constant 1536 : index
    %507 = vector.load %arg9[%c15_466, %c1536_467] : memref<16x4096xf32, #tpu.memory_space<vmem>>, vector<1x256xf32>
    tpu.vector_store %arg9[%c15_466, %c1536_467], %506 {strides = array<i32>} : memref<16x4096xf32, #tpu.memory_space<vmem>>, vector<1x256xf32>,
    %508 = vector.extract_strided_slice %13 {offsets = [7, 3840], sizes = [1, 256], strides = [1, 1]} : vector<16x4096xf32> to vector<1x256xf32>
    %c15_468 = arith.constant 15 : index
    %c1792_469 = arith.constant 1792 : index
    %509 = vector.load %arg9[%c15_468, %c1792_469] : memref<16x4096xf32, #tpu.memory_space<vmem>>, vector<1x256xf32>
    tpu.vector_store %arg9[%c15_468, %c1792_469], %508 {strides = array<i32>} : memref<16x4096xf32, #tpu.memory_space<vmem>>, vector<1x256xf32>,
    %510 = vector.extract_strided_slice %13 {offsets = [8, 3840], sizes = [1, 256], strides = [1, 1]} : vector<16x4096xf32> to vector<1x256xf32>
    %c15_470 = arith.constant 15 : index
    %c2048_471 = arith.constant 2048 : index
    %511 = vector.load %arg9[%c15_470, %c2048_471] : memref<16x4096xf32, #tpu.memory_space<vmem>>, vector<1x256xf32>
    tpu.vector_store %arg9[%c15_470, %c2048_471], %510 {strides = array<i32>} : memref<16x4096xf32, #tpu.memory_space<vmem>>, vector<1x256xf32>,
    %512 = vector.extract_strided_slice %13 {offsets = [9, 3840], sizes = [1, 256], strides = [1, 1]} : vector<16x4096xf32> to vector<1x256xf32>
    %c15_472 = arith.constant 15 : index
    %c2304_473 = arith.constant 2304 : index
    %513 = vector.load %arg9[%c15_472, %c2304_473] : memref<16x4096xf32, #tpu.memory_space<vmem>>, vector<1x256xf32>
    tpu.vector_store %arg9[%c15_472, %c2304_473], %512 {strides = array<i32>} : memref<16x4096xf32, #tpu.memory_space<vmem>>, vector<1x256xf32>,
    %514 = vector.extract_strided_slice %13 {offsets = [10, 3840], sizes = [1, 256], strides = [1, 1]} : vector<16x4096xf32> to vector<1x256xf32>
    %c15_474 = arith.constant 15 : index
    %c2560_475 = arith.constant 2560 : index
    %515 = vector.load %arg9[%c15_474, %c2560_475] : memref<16x4096xf32, #tpu.memory_space<vmem>>, vector<1x256xf32>
    tpu.vector_store %arg9[%c15_474, %c2560_475], %514 {strides = array<i32>} : memref<16x4096xf32, #tpu.memory_space<vmem>>, vector<1x256xf32>,
    %516 = vector.extract_strided_slice %13 {offsets = [11, 3840], sizes = [1, 256], strides = [1, 1]} : vector<16x4096xf32> to vector<1x256xf32>
    %c15_476 = arith.constant 15 : index
    %c2816_477 = arith.constant 2816 : index
    %517 = vector.load %arg9[%c15_476, %c2816_477] : memref<16x4096xf32, #tpu.memory_space<vmem>>, vector<1x256xf32>
    tpu.vector_store %arg9[%c15_476, %c2816_477], %516 {strides = array<i32>} : memref<16x4096xf32, #tpu.memory_space<vmem>>, vector<1x256xf32>,
    %518 = vector.extract_strided_slice %13 {offsets = [12, 3840], sizes = [1, 256], strides = [1, 1]} : vector<16x4096xf32> to vector<1x256xf32>
    %c15_478 = arith.constant 15 : index
    %c3072_479 = arith.constant 3072 : index
    %519 = vector.load %arg9[%c15_478, %c3072_479] : memref<16x4096xf32, #tpu.memory_space<vmem>>, vector<1x256xf32>
    tpu.vector_store %arg9[%c15_478, %c3072_479], %518 {strides = array<i32>} : memref<16x4096xf32, #tpu.memory_space<vmem>>, vector<1x256xf32>,
    %520 = vector.extract_strided_slice %13 {offsets = [13, 3840], sizes = [1, 256], strides = [1, 1]} : vector<16x4096xf32> to vector<1x256xf32>
    %c15_480 = arith.constant 15 : index
    %c3328_481 = arith.constant 3328 : index
    %521 = vector.load %arg9[%c15_480, %c3328_481] : memref<16x4096xf32, #tpu.memory_space<vmem>>, vector<1x256xf32>
    tpu.vector_store %arg9[%c15_480, %c3328_481], %520 {strides = array<i32>} : memref<16x4096xf32, #tpu.memory_space<vmem>>, vector<1x256xf32>,
    %522 = vector.extract_strided_slice %13 {offsets = [14, 3840], sizes = [1, 256], strides = [1, 1]} : vector<16x4096xf32> to vector<1x256xf32>
    %c15_482 = arith.constant 15 : index
    %c3584_483 = arith.constant 3584 : index
    %523 = vector.load %arg9[%c15_482, %c3584_483] : memref<16x4096xf32, #tpu.memory_space<vmem>>, vector<1x256xf32>
    tpu.vector_store %arg9[%c15_482, %c3584_483], %522 {strides = array<i32>} : memref<16x4096xf32, #tpu.memory_space<vmem>>, vector<1x256xf32>,
    %524 = vector.extract_strided_slice %13 {offsets = [15, 3840], sizes = [1, 256], strides = [1, 1]} : vector<16x4096xf32> to vector<1x256xf32>
    %c15_484 = arith.constant 15 : index
    %c3840_485 = arith.constant 3840 : index
    %525 = vector.load %arg9[%c15_484, %c3840_485] : memref<16x4096xf32, #tpu.memory_space<vmem>>, vector<1x256xf32>
    tpu.vector_store %arg9[%c15_484, %c3840_485], %524 {strides = array<i32>} : memref<16x4096xf32, #tpu.memory_space<vmem>>, vector<1x256xf32>,
    %c16_i32 = arith.constant 16 : i32
    %526 = arith.muli %c0_i32, %c16_i32 : i32
    %527 = tpu.assume_multiple %526, 16 : i32
    %c0_486 = arith.constant 0 : index
    %c0_487 = arith.constant 0 : index
    %528 = vector.load %arg9[%c0_486, %c0_487] : memref<16x4096xf32, #tpu.memory_space<vmem>>, vector<16x4096xf32>
    %529 = arith.truncf %528 : vector<16x4096xf32> to vector<16x4096xbf16>
    %530 = arith.index_cast %527 : i32 to index
    %c0_488 = arith.constant 0 : index
    %531 = vector.load %arg8[%530, %c0_488] : memref<16x4096xbf16, #tpu.memory_space<vmem>>, vector<16x4096xbf16>
    tpu.vector_store %arg8[%530, %c0_488], %529 {strides = array<i32>} : memref<16x4096xbf16, #tpu.memory_space<vmem>>, vector<16x4096xbf16>,
    %c1_i32 = arith.constant 1 : i32
    %c0_489 = arith.constant 0 : index
    %c0_490 = arith.constant 0 : index
    %532 = vector.load %arg8[%c0_489, %c0_490] : memref<16x4096xbf16, #tpu.memory_space<vmem>>, vector<16x4096xbf16>
    %c0_491 = arith.constant 0 : index
    %c0_492 = arith.constant 0 : index
    %533 = vector.load %arg3[%c0_491, %c0_492] : memref<4096x64xbf16, #tpu.memory_space<vmem>>, vector<4096x64xbf16>
    %cst_493 = arith.constant dense<0.000000e+00> : vector<16x64xf32>
    %534 = tpu.matmul %532, %533, %cst_493 {dimension_numbers = #tpu.dot_dimension_numbers<[1], [0], [0], [1], [0, 0, 1, 1], [], []>} : vector<16x4096xbf16>, vector<4096x64xbf16>, vector<16x64xf32> -> vector<16x64xf32>
    %c0_494 = arith.constant 0 : index
    %c0_495 = arith.constant 0 : index
    %535 = vector.load %arg4[%c0_494, %c0_495] : memref<1x64xf32, #tpu.memory_space<vmem>>, vector<1x64xf32>
    %536 = vector.broadcast %535 : vector<1x64xf32> to vector<16x64xf32>
    %537 = arith.addf %534, %536 : vector<16x64xf32>
    %cst_496 = arith.constant 0.000000e+00 : f32
    %538 = vector.broadcast %cst_496 : f32 to vector<16x64xf32>
    %539 = arith.maximumf %537, %538 : vector<16x64xf32>
    %540 = arith.truncf %539 : vector<16x64xf32> to vector<16x64xbf16>
    %c0_497 = arith.constant 0 : index
    %c0_498 = arith.constant 0 : index
    %541 = vector.load %arg5[%c0_497, %c0_498] : memref<64x128xbf16, #tpu.memory_space<vmem>>, vector<64x128xbf16>
    %cst_499 = arith.constant dense<0.000000e+00> : vector<16x128xf32>
    %542 = tpu.matmul %540, %541, %cst_499 {dimension_numbers = #tpu.dot_dimension_numbers<[1], [0], [0], [1], [0, 0, 1, 1], [], []>} : vector<16x64xbf16>, vector<64x128xbf16>, vector<16x128xf32> -> vector<16x128xf32>
    %c0_500 = arith.constant 0 : index
    %c0_501 = arith.constant 0 : index
    %543 = vector.load %arg6[%c0_500, %c0_501] : memref<1x128xf32, #tpu.memory_space<vmem>>, vector<1x128xf32>
    %544 = vector.broadcast %543 : vector<1x128xf32> to vector<16x128xf32>
    %545 = arith.addf %542, %544 : vector<16x128xf32>
    %c0_502 = arith.constant 0 : index
    %c0_503 = arith.constant 0 : index
    %546 = vector.load %arg7[%c0_502, %c0_503] : memref<16x128xf32, #tpu.memory_space<vmem>>, vector<16x128xf32>
    tpu.vector_store %arg7[%c0_502, %c0_503], %545 {strides = array<i32>} : memref<16x128xf32, #tpu.memory_space<vmem>>, vector<16x128xf32>,
    return
  }
  func.func @transform_0(%arg0: i32) -> (i32, i32, i32) {
    %c0_i32 = arith.constant 0 : i32
    %c0_i32_0 = arith.constant 0 : i32
    %c0_i32_1 = arith.constant 0 : i32
    return %arg0, %c0_i32, %c0_i32_0 : i32, i32, i32
  }
  func.func @transform_1(%arg0: i32) -> (i32, i32) {
    %c0_i32 = arith.constant 0 : i32
    %c0_i32_0 = arith.constant 0 : i32
    %c0_i32_1 = arith.constant 0 : i32
    return %c0_i32, %c0_i32_0 : i32, i32
  }
  func.func @transform_2(%arg0: i32) -> (i32, i32) {
    %c0_i32 = arith.constant 0 : i32
    %c0_i32_0 = arith.constant 0 : i32
    %c0_i32_1 = arith.constant 0 : i32
    return %c0_i32, %c0_i32_0 : i32, i32
  }
  func.func @transform_3(%arg0: i32) -> (i32, i32) {
    %c0_i32 = arith.constant 0 : i32
    %c0_i32_0 = arith.constant 0 : i32
    %c0_i32_1 = arith.constant 0 : i32
    return %c0_i32, %c0_i32_0 : i32, i32
  }
  func.func @transform_4(%arg0: i32) -> (i32, i32) {
    %c0_i32 = arith.constant 0 : i32
    %c0_i32_0 = arith.constant 0 : i32
    %c0_i32_1 = arith.constant 0 : i32
    return %c0_i32, %c0_i32_0 : i32, i32
  }
  func.func @transform_5(%arg0: i32) -> (i32, i32) {
    %c0_i32 = arith.constant 0 : i32
    %c0_i32_0 = arith.constant 0 : i32
    %c0_i32_1 = arith.constant 0 : i32
    return %c0_i32, %c0_i32_0 : i32, i32
  }
  func.func @transform_6(%arg0: i32) -> (i32, i32) {
    %c0_i32 = arith.constant 0 : i32
    %c0_i32_0 = arith.constant 0 : i32
    return %arg0, %c0_i32 : i32, i32
  }
}

</mosaic_0001>

<llo_original>
// kernel: mul.4
$region0: #{mul.4}
  %s0 = inlined_call_operand.vmem [shape: f32[16,3,3], index: 0, kind: input, shape index: {}]
  %s1 = inlined_call_operand.vmem [shape: f32[16,9], index: 1, kind: output, shape index: {}]
  $region1: #{mul.4} parent=0
    #allocation0 [shape = 'u8[12288]{0}', space=vmem, size = 0x3000, scoped, tag = 'scoped mem for input reshape']
    %s3 = ssub.s32 16, 1
    %s4 = scalar_lea.vmem %s0, 8
    %v5 = vld [vmem:[%s4] sm:%s3]
    %s6 = scalar_lea.vmem [#allocation0], 16
    %7 = vst [vmem:[%s6] sm:%s3] %v5
    %s8 = scalar_lea.vmem %s0, 4
    %v9 = vld [vmem:[%s8] sm:%s3]
    %s10 = scalar_lea.vmem [#allocation0], 8
    %11 = vst [vmem:[%s10] sm:%s3] %v9
    %v12 = vld [vmem:[%s0] sm:%s3]
    %13 = vst [vmem:[#allocation0] sm:%s3] %v12
    %v14 = vld [vmem:[#allocation0] sm:$0x7]
    %vm15 = vcmask 130048
    %16 = vst.msk [vmem:[%s1] sm:$0x7] %vm15, %v14
    %s17 = scalar_lea.vmem [#allocation0], 8
    %v18 = vld [vmem:[%s17] sm:$0x7]
    %vm19 = vcmask 130048
    %s20 = scalar_lea.vmem %s1, 3
    %21 = vst.msk [vmem:[%s20] sm:$0x7] %vm19, %v18
    %s22 = scalar_lea.vmem [#allocation0], 16
    %v23 = vld [vmem:[%s22] sm:$0x7]
    %vm24 = vcmask 130048
    %s25 = scalar_lea.vmem %s1, 6
    %26 = vst.msk [vmem:[%s25] sm:$0x7] %vm24, %v23

// kernel: tile.1
$region0: #{tile.1}
  %s0 = inlined_call_operand.vmem [shape: bf16[4,16], index: 0, kind: input, shape index: {}]
  %s1 = inlined_call_operand.vmem [shape: bf16[64,1], index: 1, kind: output, shape index: {}]
  $region1: #{tile.1} parent=0
    #allocation0 [shape = 'u8[32768]{0}', space=vmem, size = 0x8000, scoped, tag = 'scoped mem for output reshape']
    #allocation1 [shape = 'u8[4096]{0}', space=vmem, size = 0x1000, scoped, tag = 'scoped mem for input reshape']
    %s3 = ssub.s32 16, 1
    %s4 = sshrl.u32 %s3, 1
    %s5 = sor.u32 %s3, %s4
    %s6 = sand.u32 %s5, 85
    %s7 = sshrl.u32 %s6, 1
    %s8 = sor.u32 %s6, %s7
    %s9 = sand.u32 51, %s8
    %s10 = sshrl.u32 %s9, 2
    %s11 = sor.u32 %s9, %s10
    %s12 = sand.u32 15, %s11
    %v13 = vld [vmem:[%s0] sm:%s12]
    %v14 = vunpack.c.l.bf16 %v13
    %v15 = vunpack.c.h.bf16 %v13
    %16 = vst [vmem:[#allocation1] sm:%s3] %v14
    %v17 = vld [vmem:[#allocation1] sm:$0xf]
    %vm18 = vcmask 7168
    %19 = vst.msk [vmem:[#allocation0] ss:$16 sm:$0x3] %vm18, %v17
    %20 = vst.msk [vmem:[#allocation0] ss:$16 sm:$0xc] %vm18, %v17
    %v21 = vld [vmem:[#allocation1] sm:$0xf]
    %22 = vrot.lane.b32.xlu0 %v21, 127
    %v23 = vpop.permute.xlu0 %22
    %vm24 = vcmask 7168
    %s25 = scalar_lea.vmem [#allocation0], 1
    %26 = vst.msk [vmem:[%s25] ss:$16 sm:$0x3] %vm24, %v23
    %s27 = scalar_lea.vmem [#allocation0], 1
    %28 = vst.msk [vmem:[%s27] ss:$16 sm:$0xc] %vm24, %v23
    %v29 = vld [vmem:[#allocation1] sm:$0xf]
    %30 = vrot.lane.b32.xlu0 %v29, 126
    %v31 = vpop.permute.xlu0 %30
    %vm32 = vcmask 7168
    %s33 = scalar_lea.vmem [#allocation0], 2
    %34 = vst.msk [vmem:[%s33] ss:$16 sm:$0x3] %vm32, %v31
    %s35 = scalar_lea.vmem [#allocation0], 2
    %36 = vst.msk [vmem:[%s35] ss:$16 sm:$0xc] %vm32, %v31
    %v37 = vld [vmem:[#allocation1] sm:$0xf]
    %38 = vrot.lane.b32.xlu0 %v37, 125
    %v39 = vpop.permute.xlu0 %38
    %vm40 = vcmask 7168
    %s41 = scalar_lea.vmem [#allocation0], 3
    %42 = vst.msk [vmem:[%s41] ss:$16 sm:$0x3] %vm40, %v39
    %s43 = scalar_lea.vmem [#allocation0], 3
    %44 = vst.msk [vmem:[%s43] ss:$16 sm:$0xc] %vm40, %v39
    %v45 = vld [vmem:[#allocation1] sm:$0xf]
    %46 = vrot.lane.b32.xlu0 %v45, 124
    %v47 = vpop.permute.xlu0 %46
    %vm48 = vcmask 7168
    %s49 = scalar_lea.vmem [#allocation0], 4
    %50 = vst.msk [vmem:[%s49] ss:$16 sm:$0x3] %vm48, %v47
    %s51 = scalar_lea.vmem [#allocation0], 4
    %52 = vst.msk [vmem:[%s51] ss:$16 sm:$0xc] %vm48, %v47
    %v53 = vld [vmem:[#allocation1] sm:$0xf]
    %54 = vrot.lane.b32.xlu0 %v53, 123
    %v55 = vpop.permute.xlu0 %54
    %vm56 = vcmask 7168
    %s57 = scalar_lea.vmem [#allocation0], 5
    %58 = vst.msk [vmem:[%s57] ss:$16 sm:$0x3] %vm56, %v55
    %s59 = scalar_lea.vmem [#allocation0], 5
    %60 = vst.msk [vmem:[%s59] ss:$16 sm:$0xc] %vm56, %v55
    %v61 = vld [vmem:[#allocation1] sm:$0xf]
    %62 = vrot.lane.b32.xlu0 %v61, 122
    %v63 = vpop.permute.xlu0 %62
    %vm64 = vcmask 7168
    %s65 = scalar_lea.vmem [#allocation0], 6
    %66 = vst.msk [vmem:[%s65] ss:$16 sm:$0x3] %vm64, %v63
    %s67 = scalar_lea.vmem [#allocation0], 6
    %68 = vst.msk [vmem:[%s67] ss:$16 sm:$0xc] %vm64, %v63
    %v69 = vld [vmem:[#allocation1] sm:$0xf]
    %70 = vrot.lane.b32.xlu0 %v69, 121
    %v71 = vpop.permute.xlu0 %70
    %vm72 = vcmask 7168
    %s73 = scalar_lea.vmem [#allocation0], 7
    %74 = vst.msk [vmem:[%s73] ss:$16 sm:$0x3] %vm72, %v71
    %s75 = scalar_lea.vmem [#allocation0], 7
    %76 = vst.msk [vmem:[%s75] ss:$16 sm:$0xc] %vm72, %v71
    %v77 = vld [vmem:[#allocation1] sm:$0xf]
    %78 = vrot.lane.b32.xlu0 %v77, 120
    %v79 = vpop.permute.xlu0 %78
    %vm80 = vcmask 7168
    %s81 = scalar_lea.vmem [#allocation0], 8
    %82 = vst.msk [vmem:[%s81] ss:$16 sm:$0x3] %vm80, %v79
    %s83 = scalar_lea.vmem [#allocation0], 8
    %84 = vst.msk [vmem:[%s83] ss:$16 sm:$0xc] %vm80, %v79
    %v85 = vld [vmem:[#allocation1] sm:$0xf]
    %86 = vrot.lane.b32.xlu0 %v85, 119
    %v87 = vpop.permute.xlu0 %86
    %vm88 = vcmask 7168
    %s89 = scalar_lea.vmem [#allocation0], 9
    %90 = vst.msk [vmem:[%s89] ss:$16 sm:$0x3] %vm88, %v87
    %s91 = scalar_lea.vmem [#allocation0], 9
    %92 = vst.msk [vmem:[%s91] ss:$16 sm:$0xc] %vm88, %v87
    %v93 = vld [vmem:[#allocation1] sm:$0xf]
    %94 = vrot.lane.b32.xlu0 %v93, 118
    %v95 = vpop.permute.xlu0 %94
    %vm96 = vcmask 7168
    %s97 = scalar_lea.vmem [#allocation0], 10
    %98 = vst.msk [vmem:[%s97] ss:$16 sm:$0x3] %vm96, %v95
    %s99 = scalar_lea.vmem [#allocation0], 10
    %100 = vst.msk [vmem:[%s99] ss:$16 sm:$0xc] %vm96, %v95
    %v101 = vld [vmem:[#allocation1] sm:$0xf]
    %102 = vrot.lane.b32.xlu0 %v101, 117
    %v103 = vpop.permute.xlu0 %102
    %vm104 = vcmask 7168
    %s105 = scalar_lea.vmem [#allocation0], 11
    %106 = vst.msk [vmem:[%s105] ss:$16 sm:$0x3] %vm104, %v103
    %s107 = scalar_lea.vmem [#allocation0], 11
    %108 = vst.msk [vmem:[%s107] ss:$16 sm:$0xc] %vm104, %v103
    %v109 = vld [vmem:[#allocation1] sm:$0xf]
    %110 = vrot.lane.b32.xlu0 %v109, 116
    %v111 = vpop.permute.xlu0 %110
    %vm112 = vcmask 7168
    %s113 = scalar_lea.vmem [#allocation0], 12
    %114 = vst.msk [vmem:[%s113] ss:$16 sm:$0x3] %vm112, %v111
    %s115 = scalar_lea.vmem [#allocation0], 12
    %116 = vst.msk [vmem:[%s115] ss:$16 sm:$0xc] %vm112, %v111
    %v117 = vld [vmem:[#allocation1] sm:$0xf]
    %118 = vrot.lane.b32.xlu0 %v117, 115
    %v119 = vpop.permute.xlu0 %118
    %vm120 = vcmask 7168
    %s121 = scalar_lea.vmem [#allocation0], 13
    %122 = vst.msk [vmem:[%s121] ss:$16 sm:$0x3] %vm120, %v119
    %s123 = scalar_lea.vmem [#allocation0], 13
    %124 = vst.msk [vmem:[%s123] ss:$16 sm:$0xc] %vm120, %v119
    %v125 = vld [vmem:[#allocation1] sm:$0xf]
    %126 = vrot.lane.b32.xlu0 %v125, 114
    %v127 = vpop.permute.xlu0 %126
    %vm128 = vcmask 7168
    %s129 = scalar_lea.vmem [#allocation0], 14
    %130 = vst.msk [vmem:[%s129] ss:$16 sm:$0x3] %vm128, %v127
    %s131 = scalar_lea.vmem [#allocation0], 14
    %132 = vst.msk [vmem:[%s131] ss:$16 sm:$0xc] %vm128, %v127
    %v133 = vld [vmem:[#allocation1] sm:$0xf]
    %134 = vrot.lane.b32.xlu0 %v133, 113
    %v135 = vpop.permute.xlu0 %134
    %vm136 = vcmask 7168
    %s137 = scalar_lea.vmem [#allocation0], 15
    %138 = vst.msk [vmem:[%s137] ss:$16 sm:$0x3] %vm136, %v135
    %s139 = scalar_lea.vmem [#allocation0], 15
    %140 = vst.msk [vmem:[%s139] ss:$16 sm:$0xc] %vm136, %v135
    %s142 = ssub.s32 256, 1
    %v143 = vld [vmem:[#allocation0] sm:%s142]
    %v144 = vpack.c.bf16 0.0, %v143
    %s146 = ssub.s32 16, 1
    %147 = vst [vmem:[%s1] sm:%s146] %v144
    %s148 = scalar_lea.vmem [#allocation0], 8
    %v149 = vld [vmem:[%s148] sm:%s142]
    %v150 = vpack.c.bf16 0.0, %v149
    %s152 = ssub.s32 16, 1
    %s153 = scalar_lea.vmem %s1, 4
    %154 = vst [vmem:[%s153] sm:%s152] %v150
    %s155 = scalar_lea.vmem [#allocation0], 16
    %v156 = vld [vmem:[%s155] sm:%s142]
    %v157 = vpack.c.bf16 0.0, %v156
    %s159 = ssub.s32 16, 1
    %s160 = scalar_lea.vmem %s1, 8
    %161 = vst [vmem:[%s160] sm:%s159] %v157
    %s162 = scalar_lea.vmem [#allocation0], 24
    %v163 = vld [vmem:[%s162] sm:%s142]
    %v164 = vpack.c.bf16 0.0, %v163
    %s166 = ssub.s32 16, 1
    %s167 = scalar_lea.vmem %s1, 12
    %168 = vst [vmem:[%s167] sm:%s166] %v164
    %s169 = scalar_lea.vmem [#allocation0], 32
    %v170 = vld [vmem:[%s169] sm:%s142]
    %v171 = vpack.c.bf16 0.0, %v170
    %s173 = ssub.s32 16, 1
    %s174 = scalar_lea.vmem %s1, 16
    %175 = vst [vmem:[%s174] sm:%s173] %v171
    %s176 = scalar_lea.vmem [#allocation0], 40
    %v177 = vld [vmem:[%s176] sm:%s142]
    %v178 = vpack.c.bf16 0.0, %v177
    %s180 = ssub.s32 16, 1
    %s181 = scalar_lea.vmem %s1, 20
    %182 = vst [vmem:[%s181] sm:%s180] %v178
    %s183 = scalar_lea.vmem [#allocation0], 48
    %v184 = vld [vmem:[%s183] sm:%s142]
    %v185 = vpack.c.bf16 0.0, %v184
    %s187 = ssub.s32 16, 1
    %s188 = scalar_lea.vmem %s1, 24
    %189 = vst [vmem:[%s188] sm:%s187] %v185
    %s190 = scalar_lea.vmem [#allocation0], 56
    %v191 = vld [vmem:[%s190] sm:%s142]
    %v192 = vpack.c.bf16 0.0, %v191
    %s194 = ssub.s32 16, 1
    %s195 = scalar_lea.vmem %s1, 28
    %196 = vst [vmem:[%s195] sm:%s194] %v192

// kernel: cnn_forward.1
$region0: #{cnn_forward.1}
  #allocation0 [shape = 'u32[]', space=smem, size = 0x4, offset = 0x4, fixed_abs, tag = 'smem constant byte address 0x4 - core index']
  #allocation1 [shape = 'u32[72,128]{1,0:T(1,128)}', space=vmem, size = 0x9000, scoped, tag = 'internal scratch']
  #allocation2 [shape = 'bf16[16,4096]{1,0:T(8,128)(2,1)}', space=vmem, size = 0x20000, scoped, tag = 'scratch operand']
  #allocation3 [shape = 'f32[16,4096]{1,0:T(8,128)}', space=vmem, size = 0x40000, scoped, tag = 'scratch operand']
  %s0 = inlined_call_operand.vmem [shape: bf16[1,37,4096], index: 0, kind: input, shape index: {}]
  %s1 = inlined_call_operand.vmem [shape: bf16[64,37], index: 1, kind: input, shape index: {}]
  %s2 = inlined_call_operand.vmem [shape: bf16[4096,64], index: 2, kind: input, shape index: {}]
  %s3 = inlined_call_operand.vmem [shape: f32[1,64], index: 3, kind: input, shape index: {}]
  %s4 = inlined_call_operand.vmem [shape: bf16[64,128], index: 4, kind: input, shape index: {}]
  %s5 = inlined_call_operand.vmem [shape: f32[1,128], index: 5, kind: input, shape index: {}]
  %s6 = inlined_call_operand.vmem [shape: f32[16,128], index: 6, kind: output, shape index: {}]
  %s7 = sld [smem:[#allocation0]]
  $region34: #{cnn_forward.1} parent=0
    _
  %s9 = ssub.s32 1, %s7
  %s10 = scalar_select 0, %s9, %s7
  // Predicated region
  $region2: #{cnn_forward.1} parent=0 // pred_check
    _
  $region3: #{cnn_forward.1} parent=0 // pred_check_branch
    %12 = sbr.rel (0) target = $region5
  $region4: #{cnn_forward.1} parent=0 // pred_region
    _
  $region5: #{cnn_forward.1} parent=0 // pred_fallthru
    _
  // Predicated region
  $region6: #{cnn_forward.1} parent=0 // pred_check
    _
  $region7: #{cnn_forward.1} parent=0 // pred_check_branch
    %14 = sbr.rel (0) target = $region9
  $region8: #{cnn_forward.1} parent=0 // pred_region
    _
  $region9: #{cnn_forward.1} parent=0 // pred_fallthru
    _
  // Predicated region
  $region10: #{cnn_forward.1} parent=0 // pred_check
    _
  $region11: #{cnn_forward.1} parent=0 // pred_check_branch
    %16 = sbr.rel (0) target = $region13
  $region12: #{cnn_forward.1} parent=0 // pred_region
    _
  $region13: #{cnn_forward.1} parent=0 // pred_fallthru
    _
  // Predicated region
  $region14: #{cnn_forward.1} parent=0 // pred_check
    _
  $region15: #{cnn_forward.1} parent=0 // pred_check_branch
    %18 = sbr.rel (0) target = $region17
  $region16: #{cnn_forward.1} parent=0 // pred_region
    _
  $region17: #{cnn_forward.1} parent=0 // pred_fallthru
    _
  // Predicated region
  $region18: #{cnn_forward.1} parent=0 // pred_check
    _
  $region19: #{cnn_forward.1} parent=0 // pred_check_branch
    %20 = sbr.rel (0) target = $region21
  $region20: #{cnn_forward.1} parent=0 // pred_region
    _
  $region21: #{cnn_forward.1} parent=0 // pred_fallthru
    _
  // Predicated region
  $region22: #{cnn_forward.1} parent=0 // pred_check
    _
  $region23: #{cnn_forward.1} parent=0 // pred_check_branch
    %22 = sbr.rel (0) target = $region25
  $region24: #{cnn_forward.1} parent=0 // pred_region
    _
  $region25: #{cnn_forward.1} parent=0 // pred_fallthru
    _
  %v24 = vld [vmem:[%s1] sm:$0xf]
  %v25 = vld [vmem:[%s1 + $0x4] sm:$0xf]
  %v26 = vld [vmem:[%s1 + $0x8] sm:$0xf]
  %v27 = vld [vmem:[%s1 + $0xc] sm:$0xf]
  %v28 = vld [vmem:[%s1 + $0x10] sm:$0xf]
  %v29 = vld [vmem:[%s1 + $0x14] sm:$0xf]
  %v30 = vld [vmem:[%s1 + $0x18] sm:$0xf]
  %v31 = vld [vmem:[%s1 + $0x1c] sm:$0xf]
  %v32 = vld [vmem:[%s0] sm:$0xff]
  %v33 = vld [vmem:[%s0 + $0x8] sm:$0xff]
  %v34 = vld [vmem:[%s0 + $0x10] sm:$0xff]
  %v35 = vld [vmem:[%s0 + $0x18] sm:$0xff]
  %v36 = vld [vmem:[%s0 + $0x20] sm:$0xff]
  %v37 = vld [vmem:[%s0 + $0x28] sm:$0xff]
  %v38 = vld [vmem:[%s0 + $0x30] sm:$0xff]
  %v39 = vld [vmem:[%s0 + $0x38] sm:$0xff]
  %v40 = vld [vmem:[%s0 + $0x40] sm:$0xff]
  %v41 = vld [vmem:[%s0 + $0x48] sm:$0xff]
  %v42 = vld [vmem:[%s0 + $0x50] sm:$0xff]
  %v43 = vld [vmem:[%s0 + $0x58] sm:$0xff]
  %v44 = vld [vmem:[%s0 + $0x60] sm:$0xff]
  %v45 = vld [vmem:[%s0 + $0x68] sm:$0xff]
  %v46 = vld [vmem:[%s0 + $0x70] sm:$0xff]
  %v47 = vld [vmem:[%s0 + $0x78] sm:$0xff]
  %v48 = vld [vmem:[%s0 + $0x80] sm:$0xff]
  %v49 = vld [vmem:[%s0 + $0x88] sm:$0xff]
  %v50 = vld [vmem:[%s0 + $0x90] sm:$0xff]
  %v51 = vld [vmem:[%s0 + $0x98] sm:$0xff]
  %v52 = vld [vmem:[%s0 + $0xa0] sm:$0xff]
  %v53 = vld [vmem:[%s0 + $0xa8] sm:$0xff]
  %v54 = vld [vmem:[%s0 + $0xb0] sm:$0xff]
  %v55 = vld [vmem:[%s0 + $0xb8] sm:$0xff]
  %v56 = vld [vmem:[%s0 + $0xc0] sm:$0xff]
  %v57 = vld [vmem:[%s0 + $0xc8] sm:$0xff]
  %v58 = vld [vmem:[%s0 + $0xd0] sm:$0xff]
  %v59 = vld [vmem:[%s0 + $0xd8] sm:$0xff]
  %v60 = vld [vmem:[%s0 + $0xe0] sm:$0xff]
  %v61 = vld [vmem:[%s0 + $0xe8] sm:$0xff]
  %v62 = vld [vmem:[%s0 + $0xf0] sm:$0xff]
  %v63 = vld [vmem:[%s0 + $0xf8] sm:$0xff]
  %v64 = vld [vmem:[%s0 + $0x100] sm:$0xff]
  %v65 = vld [vmem:[%s0 + $0x108] sm:$0xff]
  %v66 = vld [vmem:[%s0 + $0x110] sm:$0xff]
  %v67 = vld [vmem:[%s0 + $0x118] sm:$0xff]
  %v68 = vld [vmem:[%s0 + $0x120] sm:$0xff]
  %v69 = vld [vmem:[%s0 + $0x128] sm:$0xff]
  %v70 = vld [vmem:[%s0 + $0x130] sm:$0xff]
  %v71 = vld [vmem:[%s0 + $0x138] sm:$0xff]
  %v72 = vld [vmem:[%s0 + $0x140] sm:$0xff]
  %v73 = vld [vmem:[%s0 + $0x148] sm:$0xff]
  %v74 = vld [vmem:[%s0 + $0x150] sm:$0xff]
  %v75 = vld [vmem:[%s0 + $0x158] sm:$0xff]
  %v76 = vld [vmem:[%s0 + $0x160] sm:$0xff]
  %v77 = vld [vmem:[%s0 + $0x168] sm:$0xff]
  %v78 = vld [vmem:[%s0 + $0x170] sm:$0xff]
  %v79 = vld [vmem:[%s0 + $0x178] sm:$0xff]
  %v80 = vld [vmem:[%s0 + $0x180] sm:$0xff]
  %v81 = vld [vmem:[%s0 + $0x188] sm:$0xff]
  %v82 = vld [vmem:[%s0 + $0x190] sm:$0xff]
  %v83 = vld [vmem:[%s0 + $0x198] sm:$0xff]
  %v84 = vld [vmem:[%s0 + $0x1a0] sm:$0xff]
  %v85 = vld [vmem:[%s0 + $0x1a8] sm:$0xff]
  %v86 = vld [vmem:[%s0 + $0x1b0] sm:$0xff]
  %v87 = vld [vmem:[%s0 + $0x1b8] sm:$0xff]
  %v88 = vld [vmem:[%s0 + $0x1c0] sm:$0xff]
  %v89 = vld [vmem:[%s0 + $0x1c8] sm:$0xff]
  %v90 = vld [vmem:[%s0 + $0x1d0] sm:$0xff]
  %v91 = vld [vmem:[%s0 + $0x1d8] sm:$0xff]
  %v92 = vld [vmem:[%s0 + $0x1e0] sm:$0xff]
  %v93 = vld [vmem:[%s0 + $0x1e8] sm:$0xff]
  %v94 = vld [vmem:[%s0 + $0x1f0] sm:$0xff]
  %v95 = vld [vmem:[%s0 + $0x1f8] sm:$0xff]
  %v96 = vld [vmem:[%s0 + $0x200] sm:$0x77]
  %v97 = vld [vmem:[%s0 + $0x208] sm:$0x77]
  %v98 = vld [vmem:[%s0 + $0x210] sm:$0x77]
  %v99 = vld [vmem:[%s0 + $0x218] sm:$0x77]
  %v100 = vld [vmem:[%s0 + $0x220] sm:$0x77]
  %v101 = vld [vmem:[%s0 + $0x228] sm:$0x77]
  %v102 = vld [vmem:[%s0 + $0x230] sm:$0x77]
  %v103 = vld [vmem:[%s0 + $0x238] sm:$0x77]
  %v104 = vld [vmem:[%s0 + $0x240] sm:$0x77]
  %v105 = vld [vmem:[%s0 + $0x248] sm:$0x77]
  %v106 = vld [vmem:[%s0 + $0x250] sm:$0x77]
  %v107 = vld [vmem:[%s0 + $0x258] sm:$0x77]
  %v108 = vld [vmem:[%s0 + $0x260] sm:$0x77]
  %v109 = vld [vmem:[%s0 + $0x268] sm:$0x77]
  %v110 = vld [vmem:[%s0 + $0x270] sm:$0x77]
  %v111 = vld [vmem:[%s0 + $0x278] sm:$0x77]
  %v120 = vunpack.c.l.b16 %v24
  %v121 = vunpack.c.l.b16 %v25
  %v122 = vunpack.c.l.b16 %v26
  %v123 = vunpack.c.l.b16 %v27
  %v124 = vunpack.c.l.b16 %v28
  %v125 = vunpack.c.l.b16 %v29
  %v126 = vunpack.c.l.b16 %v30
  %v127 = vunpack.c.l.b16 %v31
  %v128 = vpack.c.b16 %v121, %v120
  %v129 = vpack.c.b16 %v123, %v122
  %v130 = vpack.c.b16 %v125, %v124
  %v131 = vpack.c.b16 %v127, %v126
  %v212 = vunpack.c.l.b16 %v32
  %v213 = vunpack.c.h.b16 %v32
  %v214 = vunpack.c.l.b16 %v33
  %v215 = vunpack.c.h.b16 %v33
  %v216 = vunpack.c.l.b16 %v34
  %v217 = vunpack.c.h.b16 %v34
  %v218 = vunpack.c.l.b16 %v35
  %v219 = vunpack.c.h.b16 %v35
  %v220 = vunpack.c.l.b16 %v36
  %v221 = vunpack.c.h.b16 %v36
  %v222 = vunpack.c.l.b16 %v37
  %v223 = vunpack.c.h.b16 %v37
  %v224 = vunpack.c.l.b16 %v38
  %v225 = vunpack.c.h.b16 %v38
  %v226 = vunpack.c.l.b16 %v39
  %v227 = vunpack.c.h.b16 %v39
  %v228 = vunpack.c.l.b16 %v40
  %v229 = vunpack.c.h.b16 %v40
  %v230 = vunpack.c.l.b16 %v41
  %v231 = vunpack.c.h.b16 %v41
  %v232 = vunpack.c.l.b16 %v42
  %v233 = vunpack.c.h.b16 %v42
  %v234 = vunpack.c.l.b16 %v43
  %v235 = vunpack.c.h.b16 %v43
  %v236 = vunpack.c.l.b16 %v44
  %v237 = vunpack.c.h.b16 %v44
  %v238 = vunpack.c.l.b16 %v45
  %v239 = vunpack.c.h.b16 %v45
  %v240 = vunpack.c.l.b16 %v46
  %v241 = vunpack.c.h.b16 %v46
  %v242 = vunpack.c.l.b16 %v47
  %v243 = vunpack.c.h.b16 %v47
  %v244 = vunpack.c.l.b16 %v48
  %v245 = vunpack.c.h.b16 %v48
  %v246 = vunpack.c.l.b16 %v49
  %v247 = vunpack.c.h.b16 %v49
  %v248 = vunpack.c.l.b16 %v50
  %v249 = vunpack.c.h.b16 %v50
  %v250 = vunpack.c.l.b16 %v51
  %v251 = vunpack.c.h.b16 %v51
  %v252 = vunpack.c.l.b16 %v52
  %v253 = vunpack.c.h.b16 %v52
  %v254 = vunpack.c.l.b16 %v53
  %v255 = vunpack.c.h.b16 %v53
  %v256 = vunpack.c.l.b16 %v54
  %v257 = vunpack.c.h.b16 %v54
  %v258 = vunpack.c.l.b16 %v55
  %v259 = vunpack.c.h.b16 %v55
  %v260 = vunpack.c.l.b16 %v56
  %v261 = vunpack.c.h.b16 %v56
  %v262 = vunpack.c.l.b16 %v57
  %v263 = vunpack.c.h.b16 %v57
  %v264 = vunpack.c.l.b16 %v58
  %v265 = vunpack.c.h.b16 %v58
  %v266 = vunpack.c.l.b16 %v59
  %v267 = vunpack.c.h.b16 %v59
  %v268 = vunpack.c.l.b16 %v60
  %v269 = vunpack.c.h.b16 %v60
  %v270 = vunpack.c.l.b16 %v61
  %v271 = vunpack.c.h.b16 %v61
  %v272 = vunpack.c.l.b16 %v62
  %v273 = vunpack.c.h.b16 %v62
  %v274 = vunpack.c.l.b16 %v63
  %v275 = vunpack.c.h.b16 %v63
  %v276 = vunpack.c.l.b16 %v64
  %v277 = vunpack.c.h.b16 %v64
  %v278 = vunpack.c.l.b16 %v65
  %v279 = vunpack.c.h.b16 %v65
  %v280 = vunpack.c.l.b16 %v66
  %v281 = vunpack.c.h.b16 %v66
  %v282 = vunpack.c.l.b16 %v67
  %v283 = vunpack.c.h.b16 %v67
  %v284 = vunpack.c.l.b16 %v68
  %v285 = vunpack.c.h.b16 %v68
  %v286 = vunpack.c.l.b16 %v69
  %v287 = vunpack.c.h.b16 %v69
  %v288 = vunpack.c.l.b16 %v70
  %v289 = vunpack.c.h.b16 %v70
  %v290 = vunpack.c.l.b16 %v71
  %v291 = vunpack.c.h.b16 %v71
  %v292 = vunpack.c.l.b16 %v72
  %v293 = vunpack.c.h.b16 %v72
  %v294 = vunpack.c.l.b16 %v73
  %v295 = vunpack.c.h.b16 %v73
  %v296 = vunpack.c.l.b16 %v74
  %v297 = vunpack.c.h.b16 %v74
  %v298 = vunpack.c.l.b16 %v75
  %v299 = vunpack.c.h.b16 %v75
  %v300 = vunpack.c.l.b16 %v76
  %v301 = vunpack.c.h.b16 %v76
  %v302 = vunpack.c.l.b16 %v77
  %v303 = vunpack.c.h.b16 %v77
  %v304 = vunpack.c.l.b16 %v78
  %v305 = vunpack.c.h.b16 %v78
  %v306 = vunpack.c.l.b16 %v79
  %v307 = vunpack.c.h.b16 %v79
  %v308 = vunpack.c.l.b16 %v80
  %v309 = vunpack.c.h.b16 %v80
  %v310 = vunpack.c.l.b16 %v81
  %v311 = vunpack.c.h.b16 %v81
  %v312 = vunpack.c.l.b16 %v82
  %v313 = vunpack.c.h.b16 %v82
  %v314 = vunpack.c.l.b16 %v83
  %v315 = vunpack.c.h.b16 %v83
  %v316 = vunpack.c.l.b16 %v84
  %v317 = vunpack.c.h.b16 %v84
  %v318 = vunpack.c.l.b16 %v85
  %v319 = vunpack.c.h.b16 %v85
  %v320 = vunpack.c.l.b16 %v86
  %v321 = vunpack.c.h.b16 %v86
  %v322 = vunpack.c.l.b16 %v87
  %v323 = vunpack.c.h.b16 %v87
  %v324 = vunpack.c.l.b16 %v88
  %v325 = vunpack.c.h.b16 %v88
  %v326 = vunpack.c.l.b16 %v89
  %v327 = vunpack.c.h.b16 %v89
  %v328 = vunpack.c.l.b16 %v90
  %v329 = vunpack.c.h.b16 %v90
  %v330 = vunpack.c.l.b16 %v91
  %v331 = vunpack.c.h.b16 %v91
  %v332 = vunpack.c.l.b16 %v92
  %v333 = vunpack.c.h.b16 %v92
  %v334 = vunpack.c.l.b16 %v93
  %v335 = vunpack.c.h.b16 %v93
  %v336 = vunpack.c.l.b16 %v94
  %v337 = vunpack.c.h.b16 %v94
  %v338 = vunpack.c.l.b16 %v95
  %v339 = vunpack.c.h.b16 %v95
  %v340 = vunpack.c.l.b16 %v96
  %v341 = vunpack.c.h.b16 %v96
  %v342 = vunpack.c.l.b16 %v97
  %v343 = vunpack.c.h.b16 %v97
  %v344 = vunpack.c.l.b16 %v98
  %v345 = vunpack.c.h.b16 %v98
  %v346 = vunpack.c.l.b16 %v99
  %v347 = vunpack.c.h.b16 %v99
  %v348 = vunpack.c.l.b16 %v100
  %v349 = vunpack.c.h.b16 %v100
  %v350 = vunpack.c.l.b16 %v101
  %v351 = vunpack.c.h.b16 %v101
  %v352 = vunpack.c.l.b16 %v102
  %v353 = vunpack.c.h.b16 %v102
  %v354 = vunpack.c.l.b16 %v103
  %v355 = vunpack.c.h.b16 %v103
  %v356 = vunpack.c.l.b16 %v104
  %v357 = vunpack.c.h.b16 %v104
  %v358 = vunpack.c.l.b16 %v105
  %v359 = vunpack.c.h.b16 %v105
  %v360 = vunpack.c.l.b16 %v106
  %v361 = vunpack.c.h.b16 %v106
  %v362 = vunpack.c.l.b16 %v107
  %v363 = vunpack.c.h.b16 %v107
  %v364 = vunpack.c.l.b16 %v108
  %v365 = vunpack.c.h.b16 %v108
  %v366 = vunpack.c.l.b16 %v109
  %v367 = vunpack.c.h.b16 %v109
  %v368 = vunpack.c.l.b16 %v110
  %v369 = vunpack.c.h.b16 %v110
  %v370 = vunpack.c.l.b16 %v111
  %v371 = vunpack.c.h.b16 %v111
  %v372 = vpack.c.b16 %v244, %v212
  %v373 = vpack.c.b16 %v245, %v213
  %v374 = vpack.c.b16 %v246, %v214
  %v375 = vpack.c.b16 %v247, %v215
  %v376 = vpack.c.b16 %v248, %v216
  %v377 = vpack.c.b16 %v249, %v217
  %v378 = vpack.c.b16 %v250, %v218
  %v379 = vpack.c.b16 %v251, %v219
  %v380 = vpack.c.b16 %v252, %v220
  %v381 = vpack.c.b16 %v253, %v221
  %v382 = vpack.c.b16 %v254, %v222
  %v383 = vpack.c.b16 %v255, %v223
  %v384 = vpack.c.b16 %v256, %v224
  %v385 = vpack.c.b16 %v257, %v225
  %v386 = vpack.c.b16 %v258, %v226
  %v387 = vpack.c.b16 %v259, %v227
  %v388 = vpack.c.b16 %v260, %v228
  %v389 = vpack.c.b16 %v261, %v229
  %v390 = vpack.c.b16 %v262, %v230
  %v391 = vpack.c.b16 %v263, %v231
  %v392 = vpack.c.b16 %v264, %v232
  %v393 = vpack.c.b16 %v265, %v233
  %v394 = vpack.c.b16 %v266, %v234
  %v395 = vpack.c.b16 %v267, %v235
  %v396 = vpack.c.b16 %v268, %v236
  %v397 = vpack.c.b16 %v269, %v237
  %v398 = vpack.c.b16 %v270, %v238
  %v399 = vpack.c.b16 %v271, %v239
  %v400 = vpack.c.b16 %v272, %v240
  %v401 = vpack.c.b16 %v273, %v241
  %v402 = vpack.c.b16 %v274, %v242
  %v403 = vpack.c.b16 %v275, %v243
  %v404 = vpack.c.b16 %v308, %v276
  %v405 = vpack.c.b16 %v309, %v277
  %v406 = vpack.c.b16 %v310, %v278
  %v407 = vpack.c.b16 %v311, %v279
  %v408 = vpack.c.b16 %v312, %v280
  %v409 = vpack.c.b16 %v313, %v281
  %v410 = vpack.c.b16 %v314, %v282
  %v411 = vpack.c.b16 %v315, %v283
  %v412 = vpack.c.b16 %v316, %v284
  %v413 = vpack.c.b16 %v317, %v285
  %v414 = vpack.c.b16 %v318, %v286
  %v415 = vpack.c.b16 %v319, %v287
  %v416 = vpack.c.b16 %v320, %v288
  %v417 = vpack.c.b16 %v321, %v289
  %v418 = vpack.c.b16 %v322, %v290
  %v419 = vpack.c.b16 %v323, %v291
  %v420 = vpack.c.b16 %v324, %v292
  %v421 = vpack.c.b16 %v325, %v293
  %v422 = vpack.c.b16 %v326, %v294
  %v423 = vpack.c.b16 %v327, %v295
  %v424 = vpack.c.b16 %v328, %v296
  %v425 = vpack.c.b16 %v329, %v297
  %v426 = vpack.c.b16 %v330, %v298
  %v427 = vpack.c.b16 %v331, %v299
  %v428 = vpack.c.b16 %v332, %v300
  %v429 = vpack.c.b16 %v333, %v301
  %v430 = vpack.c.b16 %v334, %v302
  %v431 = vpack.c.b16 %v335, %v303
  %v432 = vpack.c.b16 %v336, %v304
  %v433 = vpack.c.b16 %v337, %v305
  %v434 = vpack.c.b16 %v338, %v306
  %v435 = vpack.c.b16 %v339, %v307
  %v436 = vpack.c.b16 %v340, %v340
  %v437 = vpack.c.b16 %v341, %v341
  %v438 = vpack.c.b16 %v342, %v342
  %v439 = vpack.c.b16 %v343, %v343
  %v440 = vpack.c.b16 %v344, %v344
  %v441 = vpack.c.b16 %v345, %v345
  %v442 = vpack.c.b16 %v346, %v346
  %v443 = vpack.c.b16 %v347, %v347
  %v444 = vpack.c.b16 %v348, %v348
  %v445 = vpack.c.b16 %v349, %v349
  %v446 = vpack.c.b16 %v350, %v350
  %v447 = vpack.c.b16 %v351, %v351
  %v448 = vpack.c.b16 %v352, %v352
  %v449 = vpack.c.b16 %v353, %v353
  %v450 = vpack.c.b16 %v354, %v354
  %v451 = vpack.c.b16 %v355, %v355
  %v452 = vpack.c.b16 %v356, %v356
  %v453 = vpack.c.b16 %v357, %v357
  %v454 = vpack.c.b16 %v358, %v358
  %v455 = vpack.c.b16 %v359, %v359
  %v456 = vpack.c.b16 %v360, %v360
  %v457 = vpack.c.b16 %v361, %v361
  %v458 = vpack.c.b16 %v362, %v362
  %v459 = vpack.c.b16 %v363, %v363
  %v460 = vpack.c.b16 %v364, %v364
  %v461 = vpack.c.b16 %v365, %v365
  %v462 = vpack.c.b16 %v366, %v366
  %v463 = vpack.c.b16 %v367, %v367
  %v464 = vpack.c.b16 %v368, %v368
  %v465 = vpack.c.b16 %v369, %v369
  %v466 = vpack.c.b16 %v370, %v370
  %v467 = vpack.c.b16 %v371, %v371
  %vm532 = vcmask 302080
  %v534 = vsel %vm532, %v128, 0
  %v537 = vsel %vm532, %v129, 0
  %v540 = vsel %vm532, %v130, 0
  %v543 = vsel %vm532, %v131, 0
  %vm545 = vcmask 1041408
  %vm546 = vcmask 1042432
  %v547 = vsel %vm545, 4294967295, 65535
  %v548 = vsel %vm546, %v547, 0
  %v550 = vand.u32 %v436, %v548
  %v553 = vand.u32 %v437, %v548
  %v556 = vand.u32 %v438, %v548
  %v559 = vand.u32 %v439, %v548
  %v562 = vand.u32 %v440, %v548
  %v565 = vand.u32 %v441, %v548
  %v568 = vand.u32 %v442, %v548
  %v571 = vand.u32 %v443, %v548
  %v574 = vand.u32 %v444, %v548
  %v577 = vand.u32 %v445, %v548
  %v580 = vand.u32 %v446, %v548
  %v583 = vand.u32 %v447, %v548
  %v586 = vand.u32 %v448, %v548
  %v589 = vand.u32 %v449, %v548
  %v592 = vand.u32 %v450, %v548
  %v595 = vand.u32 %v451, %v548
  %v598 = vand.u32 %v452, %v548
  %v601 = vand.u32 %v453, %v548
  %v604 = vand.u32 %v454, %v548
  %v607 = vand.u32 %v455, %v548
  %v610 = vand.u32 %v456, %v548
  %v613 = vand.u32 %v457, %v548
  %v616 = vand.u32 %v458, %v548
  %v619 = vand.u32 %v459, %v548
  %v622 = vand.u32 %v460, %v548
  %v625 = vand.u32 %v461, %v548
  %v628 = vand.u32 %v462, %v548
  %v631 = vand.u32 %v463, %v548
  %v634 = vand.u32 %v464, %v548
  %v637 = vand.u32 %v465, %v548
  %v640 = vand.u32 %v466, %v548
  %v643 = vand.u32 %v467, %v548
  %645 = vmatpush.bf16.msra.mxu0 0
  %646 = vmatpush.bf16.msra.mxu0 0
  %647 = vmatpush.bf16.msra.mxu0 0
  %648 = vmatpush.bf16.msra.mxu0 0
  %649 = vmatpush.bf16.msra.mxu0 0
  %650 = vmatpush.bf16.msra.mxu0 %v550
  %651 = vmatpush.bf16.msra.mxu0 %v404
  %652 = vmatpush.bf16.msra.mxu0 %v372
  %653 = vmatmul.bf16.gmra.mxu0 %v534
  %v654 = vpop.f32.mrf.mxu0
  %v655 = vadd.f32 0.0, %v654
  %v656 = vpop.f32.mrf.mxu0
  %v657 = vadd.f32 0.0, %v656
  %658 = vmatmul.bf16.gmra.mxu0 %v537
  %v659 = vpop.f32.mrf.mxu0
  %v660 = vadd.f32 0.0, %v659
  %v661 = vpop.f32.mrf.mxu0
  %v662 = vadd.f32 0.0, %v661
  %663 = vmatmul.bf16.gmra.mxu0 %v540
  %v664 = vpop.f32.mrf.mxu0
  %v665 = vadd.f32 0.0, %v664
  %v666 = vpop.f32.mrf.mxu0
  %v667 = vadd.f32 0.0, %v666
  %668 = vmatmul.bf16.gmra.mxu0 %v543
  %v669 = vpop.f32.mrf.mxu0
  %v670 = vadd.f32 0.0, %v669
  %v671 = vpop.f32.mrf.mxu0
  %v672 = vadd.f32 0.0, %v671
  %673 = vdwg.mxu0
  %674 = vmatpush.bf16.msra.mxu0 0
  %675 = vmatpush.bf16.msra.mxu0 0
  %676 = vmatpush.bf16.msra.mxu0 0
  %677 = vmatpush.bf16.msra.mxu0 0
  %678 = vmatpush.bf16.msra.mxu0 0
  %679 = vmatpush.bf16.msra.mxu0 %v553
  %680 = vmatpush.bf16.msra.mxu0 %v405
  %681 = vmatpush.bf16.msra.mxu0 %v373
  %682 = vmatmul.bf16.gmra.mxu0 %v534
  %v683 = vpop.f32.mrf.mxu0
  %v684 = vadd.f32 0.0, %v683
  %v685 = vpop.f32.mrf.mxu0
  %v686 = vadd.f32 0.0, %v685
  %687 = vmatmul.bf16.gmra.mxu0 %v537
  %v688 = vpop.f32.mrf.mxu0
  %v689 = vadd.f32 0.0, %v688
  %v690 = vpop.f32.mrf.mxu0
  %v691 = vadd.f32 0.0, %v690
  %692 = vmatmul.bf16.gmra.mxu0 %v540
  %v693 = vpop.f32.mrf.mxu0
  %v694 = vadd.f32 0.0, %v693
  %v695 = vpop.f32.mrf.mxu0
  %v696 = vadd.f32 0.0, %v695
  %697 = vmatmul.bf16.gmra.mxu0 %v543
  %v698 = vpop.f32.mrf.mxu0
  %v699 = vadd.f32 0.0, %v698
  %v700 = vpop.f32.mrf.mxu0
  %v701 = vadd.f32 0.0, %v700
  %702 = vdwg.mxu0
  %703 = vmatpush.bf16.msra.mxu0 0
  %704 = vmatpush.bf16.msra.mxu0 0
  %705 = vmatpush.bf16.msra.mxu0 0
  %706 = vmatpush.bf16.msra.mxu0 0
  %707 = vmatpush.bf16.msra.mxu0 0
  %708 = vmatpush.bf16.msra.mxu0 %v556
  %709 = vmatpush.bf16.msra.mxu0 %v406
  %710 = vmatpush.bf16.msra.mxu0 %v374
  %711 = vmatmul.bf16.gmra.mxu0 %v534
  %v712 = vpop.f32.mrf.mxu0
  %v713 = vadd.f32 0.0, %v712
  %v714 = vpop.f32.mrf.mxu0
  %v715 = vadd.f32 0.0, %v714
  %716 = vmatmul.bf16.gmra.mxu0 %v537
  %v717 = vpop.f32.mrf.mxu0
  %v718 = vadd.f32 0.0, %v717
  %v719 = vpop.f32.mrf.mxu0
  %v720 = vadd.f32 0.0, %v719
  %721 = vmatmul.bf16.gmra.mxu0 %v540
  %v722 = vpop.f32.mrf.mxu0
  %v723 = vadd.f32 0.0, %v722
  %v724 = vpop.f32.mrf.mxu0
  %v725 = vadd.f32 0.0, %v724
  %726 = vmatmul.bf16.gmra.mxu0 %v543
  %v727 = vpop.f32.mrf.mxu0
  %v728 = vadd.f32 0.0, %v727
  %v729 = vpop.f32.mrf.mxu0
  %v730 = vadd.f32 0.0, %v729
  %731 = vdwg.mxu0
  %732 = vmatpush.bf16.msra.mxu0 0
  %733 = vmatpush.bf16.msra.mxu0 0
  %734 = vmatpush.bf16.msra.mxu0 0
  %735 = vmatpush.bf16.msra.mxu0 0
  %736 = vmatpush.bf16.msra.mxu0 0
  %737 = vmatpush.bf16.msra.mxu0 %v559
  %738 = vmatpush.bf16.msra.mxu0 %v407
  %739 = vmatpush.bf16.msra.mxu0 %v375
  %740 = vmatmul.bf16.gmra.mxu0 %v534
  %v741 = vpop.f32.mrf.mxu0
  %v742 = vadd.f32 0.0, %v741
  %v743 = vpop.f32.mrf.mxu0
  %v744 = vadd.f32 0.0, %v743
  %745 = vmatmul.bf16.gmra.mxu0 %v537
  %v746 = vpop.f32.mrf.mxu0
  %v747 = vadd.f32 0.0, %v746
  %v748 = vpop.f32.mrf.mxu0
  %v749 = vadd.f32 0.0, %v748
  %750 = vmatmul.bf16.gmra.mxu0 %v540
  %v751 = vpop.f32.mrf.mxu0
  %v752 = vadd.f32 0.0, %v751
  %v753 = vpop.f32.mrf.mxu0
  %v754 = vadd.f32 0.0, %v753
  %755 = vmatmul.bf16.gmra.mxu0 %v543
  %v756 = vpop.f32.mrf.mxu0
  %v757 = vadd.f32 0.0, %v756
  %v758 = vpop.f32.mrf.mxu0
  %v759 = vadd.f32 0.0, %v758
  %760 = vdwg.mxu0
  %761 = vmatpush.bf16.msra.mxu0 0
  %762 = vmatpush.bf16.msra.mxu0 0
  %763 = vmatpush.bf16.msra.mxu0 0
  %764 = vmatpush.bf16.msra.mxu0 0
  %765 = vmatpush.bf16.msra.mxu0 0
  %766 = vmatpush.bf16.msra.mxu0 %v562
  %767 = vmatpush.bf16.msra.mxu0 %v408
  %768 = vmatpush.bf16.msra.mxu0 %v376
  %769 = vmatmul.bf16.gmra.mxu0 %v534
  %v770 = vpop.f32.mrf.mxu0
  %v771 = vadd.f32 0.0, %v770
  %v772 = vpop.f32.mrf.mxu0
  %v773 = vadd.f32 0.0, %v772
  %774 = vmatmul.bf16.gmra.mxu0 %v537
  %v775 = vpop.f32.mrf.mxu0
  %v776 = vadd.f32 0.0, %v775
  %v777 = vpop.f32.mrf.mxu0
  %v778 = vadd.f32 0.0, %v777
  %779 = vmatmul.bf16.gmra.mxu0 %v540
  %v780 = vpop.f32.mrf.mxu0
  %v781 = vadd.f32 0.0, %v780
  %v782 = vpop.f32.mrf.mxu0
  %v783 = vadd.f32 0.0, %v782
  %784 = vmatmul.bf16.gmra.mxu0 %v543
  %v785 = vpop.f32.mrf.mxu0
  %v786 = vadd.f32 0.0, %v785
  %v787 = vpop.f32.mrf.mxu0
  %v788 = vadd.f32 0.0, %v787
  %789 = vdwg.mxu0
  %790 = vmatpush.bf16.msra.mxu0 0
  %791 = vmatpush.bf16.msra.mxu0 0
  %792 = vmatpush.bf16.msra.mxu0 0
  %793 = vmatpush.bf16.msra.mxu0 0
  %794 = vmatpush.bf16.msra.mxu0 0
  %795 = vmatpush.bf16.msra.mxu0 %v565
  %796 = vmatpush.bf16.msra.mxu0 %v409
  %797 = vmatpush.bf16.msra.mxu0 %v377
  %798 = vmatmul.bf16.gmra.mxu0 %v534
  %v799 = vpop.f32.mrf.mxu0
  %v800 = vadd.f32 0.0, %v799
  %v801 = vpop.f32.mrf.mxu0
  %v802 = vadd.f32 0.0, %v801
  %803 = vmatmul.bf16.gmra.mxu0 %v537
  %v804 = vpop.f32.mrf.mxu0
  %v805 = vadd.f32 0.0, %v804
  %v806 = vpop.f32.mrf.mxu0
  %v807 = vadd.f32 0.0, %v806
  %808 = vmatmul.bf16.gmra.mxu0 %v540
  %v809 = vpop.f32.mrf.mxu0
  %v810 = vadd.f32 0.0, %v809
  %v811 = vpop.f32.mrf.mxu0
  %v812 = vadd.f32 0.0, %v811
  %813 = vmatmul.bf16.gmra.mxu0 %v543
  %v814 = vpop.f32.mrf.mxu0
  %v815 = vadd.f32 0.0, %v814
  %v816 = vpop.f32.mrf.mxu0
  %v817 = vadd.f32 0.0, %v816
  %818 = vdwg.mxu0
  %819 = vmatpush.bf16.msra.mxu0 0
  %820 = vmatpush.bf16.msra.mxu0 0
  %821 = vmatpush.bf16.msra.mxu0 0
  %822 = vmatpush.bf16.msra.mxu0 0
  %823 = vmatpush.bf16.msra.mxu0 0
  %824 = vmatpush.bf16.msra.mxu0 %v568
  %825 = vmatpush.bf16.msra.mxu0 %v410
  %826 = vmatpush.bf16.msra.mxu0 %v378
  %827 = vmatmul.bf16.gmra.mxu0 %v534
  %v828 = vpop.f32.mrf.mxu0
  %v829 = vadd.f32 0.0, %v828
  %v830 = vpop.f32.mrf.mxu0
  %v831 = vadd.f32 0.0, %v830
  %832 = vmatmul.bf16.gmra.mxu0 %v537
  %v833 = vpop.f32.mrf.mxu0
  %v834 = vadd.f32 0.0, %v833
  %v835 = vpop.f32.mrf.mxu0
  %v836 = vadd.f32 0.0, %v835
  %837 = vmatmul.bf16.gmra.mxu0 %v540
  %v838 = vpop.f32.mrf.mxu0
  %v839 = vadd.f32 0.0, %v838
  %v840 = vpop.f32.mrf.mxu0
  %v841 = vadd.f32 0.0, %v840
  %842 = vmatmul.bf16.gmra.mxu0 %v543
  %v843 = vpop.f32.mrf.mxu0
  %v844 = vadd.f32 0.0, %v843
  %v845 = vpop.f32.mrf.mxu0
  %v846 = vadd.f32 0.0, %v845
  %847 = vdwg.mxu0
  %848 = vmatpush.bf16.msra.mxu0 0
  %849 = vmatpush.bf16.msra.mxu0 0
  %850 = vmatpush.bf16.msra.mxu0 0
  %851 = vmatpush.bf16.msra.mxu0 0
  %852 = vmatpush.bf16.msra.mxu0 0
  %853 = vmatpush.bf16.msra.mxu0 %v571
  %854 = vmatpush.bf16.msra.mxu0 %v411
  %855 = vmatpush.bf16.msra.mxu0 %v379
  %856 = vmatmul.bf16.gmra.mxu0 %v534
  %v857 = vpop.f32.mrf.mxu0
  %v858 = vadd.f32 0.0, %v857
  %v859 = vpop.f32.mrf.mxu0
  %v860 = vadd.f32 0.0, %v859
  %861 = vmatmul.bf16.gmra.mxu0 %v537
  %v862 = vpop.f32.mrf.mxu0
  %v863 = vadd.f32 0.0, %v862
  %v864 = vpop.f32.mrf.mxu0
  %v865 = vadd.f32 0.0, %v864
  %866 = vmatmul.bf16.gmra.mxu0 %v540
  %v867 = vpop.f32.mrf.mxu0
  %v868 = vadd.f32 0.0, %v867
  %v869 = vpop.f32.mrf.mxu0
  %v870 = vadd.f32 0.0, %v869
  %871 = vmatmul.bf16.gmra.mxu0 %v543
  %v872 = vpop.f32.mrf.mxu0
  %v873 = vadd.f32 0.0, %v872
  %v874 = vpop.f32.mrf.mxu0
  %v875 = vadd.f32 0.0, %v874
  %876 = vdwg.mxu0
  %877 = vmatpush.bf16.msra.mxu0 0
  %878 = vmatpush.bf16.msra.mxu0 0
  %879 = vmatpush.bf16.msra.mxu0 0
  %880 = vmatpush.bf16.msra.mxu0 0
  %881 = vmatpush.bf16.msra.mxu0 0
  %882 = vmatpush.bf16.msra.mxu0 %v574
  %883 = vmatpush.bf16.msra.mxu0 %v412
  %884 = vmatpush.bf16.msra.mxu0 %v380
  %885 = vmatmul.bf16.gmra.mxu0 %v534
  %v886 = vpop.f32.mrf.mxu0
  %v887 = vadd.f32 0.0, %v886
  %v888 = vpop.f32.mrf.mxu0
  %v889 = vadd.f32 0.0, %v888
  %890 = vmatmul.bf16.gmra.mxu0 %v537
  %v891 = vpop.f32.mrf.mxu0
  %v892 = vadd.f32 0.0, %v891
  %v893 = vpop.f32.mrf.mxu0
  %v894 = vadd.f32 0.0, %v893
  %895 = vmatmul.bf16.gmra.mxu0 %v540
  %v896 = vpop.f32.mrf.mxu0
  %v897 = vadd.f32 0.0, %v896
  %v898 = vpop.f32.mrf.mxu0
  %v899 = vadd.f32 0.0, %v898
  %900 = vmatmul.bf16.gmra.mxu0 %v543
  %v901 = vpop.f32.mrf.mxu0
  %v902 = vadd.f32 0.0, %v901
  %v903 = vpop.f32.mrf.mxu0
  %v904 = vadd.f32 0.0, %v903
  %905 = vdwg.mxu0
  %906 = vmatpush.bf16.msra.mxu0 0
  %907 = vmatpush.bf16.msra.mxu0 0
  %908 = vmatpush.bf16.msra.mxu0 0
  %909 = vmatpush.bf16.msra.mxu0 0
  %910 = vmatpush.bf16.msra.mxu0 0
  %911 = vmatpush.bf16.msra.mxu0 %v577
  %912 = vmatpush.bf16.msra.mxu0 %v413
  %913 = vmatpush.bf16.msra.mxu0 %v381
  %914 = vmatmul.bf16.gmra.mxu0 %v534
  %v915 = vpop.f32.mrf.mxu0
  %v916 = vadd.f32 0.0, %v915
  %v917 = vpop.f32.mrf.mxu0
  %v918 = vadd.f32 0.0, %v917
  %919 = vmatmul.bf16.gmra.mxu0 %v537
  %v920 = vpop.f32.mrf.mxu0
  %v921 = vadd.f32 0.0, %v920
  %v922 = vpop.f32.mrf.mxu0
  %v923 = vadd.f32 0.0, %v922
  %924 = vmatmul.bf16.gmra.mxu0 %v540
  %v925 = vpop.f32.mrf.mxu0
  %v926 = vadd.f32 0.0, %v925
  %v927 = vpop.f32.mrf.mxu0
  %v928 = vadd.f32 0.0, %v927
  %929 = vmatmul.bf16.gmra.mxu0 %v543
  %v930 = vpop.f32.mrf.mxu0
  %v931 = vadd.f32 0.0, %v930
  %v932 = vpop.f32.mrf.mxu0
  %v933 = vadd.f32 0.0, %v932
  %934 = vdwg.mxu0
  %935 = vmatpush.bf16.msra.mxu0 0
  %936 = vmatpush.bf16.msra.mxu0 0
  %937 = vmatpush.bf16.msra.mxu0 0
  %938 = vmatpush.bf16.msra.mxu0 0
  %939 = vmatpush.bf16.msra.mxu0 0
  %940 = vmatpush.bf16.msra.mxu0 %v580
  %941 = vmatpush.bf16.msra.mxu0 %v414
  %942 = vmatpush.bf16.msra.mxu0 %v382
  %943 = vmatmul.bf16.gmra.mxu0 %v534
  %v944 = vpop.f32.mrf.mxu0
  %v945 = vadd.f32 0.0, %v944
  %v946 = vpop.f32.mrf.mxu0
  %v947 = vadd.f32 0.0, %v946
  %948 = vmatmul.bf16.gmra.mxu0 %v537
  %v949 = vpop.f32.mrf.mxu0
  %v950 = vadd.f32 0.0, %v949
  %v951 = vpop.f32.mrf.mxu0
  %v952 = vadd.f32 0.0, %v951
  %953 = vmatmul.bf16.gmra.mxu0 %v540
  %v954 = vpop.f32.mrf.mxu0
  %v955 = vadd.f32 0.0, %v954
  %v956 = vpop.f32.mrf.mxu0
  %v957 = vadd.f32 0.0, %v956
  %958 = vmatmul.bf16.gmra.mxu0 %v543
  %v959 = vpop.f32.mrf.mxu0
  %v960 = vadd.f32 0.0, %v959
  %v961 = vpop.f32.mrf.mxu0
  %v962 = vadd.f32 0.0, %v961
  %963 = vdwg.mxu0
  %964 = vmatpush.bf16.msra.mxu0 0
  %965 = vmatpush.bf16.msra.mxu0 0
  %966 = vmatpush.bf16.msra.mxu0 0
  %967 = vmatpush.bf16.msra.mxu0 0
  %968 = vmatpush.bf16.msra.mxu0 0
  %969 = vmatpush.bf16.msra.mxu0 %v583
  %970 = vmatpush.bf16.msra.mxu0 %v415
  %971 = vmatpush.bf16.msra.mxu0 %v383
  %972 = vmatmul.bf16.gmra.mxu0 %v534
  %v973 = vpop.f32.mrf.mxu0
  %v974 = vadd.f32 0.0, %v973
  %v975 = vpop.f32.mrf.mxu0
  %v976 = vadd.f32 0.0, %v975
  %977 = vmatmul.bf16.gmra.mxu0 %v537
  %v978 = vpop.f32.mrf.mxu0
  %v979 = vadd.f32 0.0, %v978
  %v980 = vpop.f32.mrf.mxu0
  %v981 = vadd.f32 0.0, %v980
  %982 = vmatmul.bf16.gmra.mxu0 %v540
  %v983 = vpop.f32.mrf.mxu0
  %v984 = vadd.f32 0.0, %v983
  %v985 = vpop.f32.mrf.mxu0
  %v986 = vadd.f32 0.0, %v985
  %987 = vmatmul.bf16.gmra.mxu0 %v543
  %v988 = vpop.f32.mrf.mxu0
  %v989 = vadd.f32 0.0, %v988
  %v990 = vpop.f32.mrf.mxu0
  %v991 = vadd.f32 0.0, %v990
  %992 = vdwg.mxu0
  %993 = vmatpush.bf16.msra.mxu0 0
  %994 = vmatpush.bf16.msra.mxu0 0
  %995 = vmatpush.bf16.msra.mxu0 0
  %996 = vmatpush.bf16.msra.mxu0 0
  %997 = vmatpush.bf16.msra.mxu0 0
  %998 = vmatpush.bf16.msra.mxu0 %v586
  %999 = vmatpush.bf16.msra.mxu0 %v416
  %1000 = vmatpush.bf16.msra.mxu0 %v384
  %1001 = vmatmul.bf16.gmra.mxu0 %v534
  %v1002 = vpop.f32.mrf.mxu0
  %v1003 = vadd.f32 0.0, %v1002
  %v1004 = vpop.f32.mrf.mxu0
  %v1005 = vadd.f32 0.0, %v1004
  %1006 = vmatmul.bf16.gmra.mxu0 %v537
  %v1007 = vpop.f32.mrf.mxu0
  %v1008 = vadd.f32 0.0, %v1007
  %v1009 = vpop.f32.mrf.mxu0
  %v1010 = vadd.f32 0.0, %v1009
  %1011 = vmatmul.bf16.gmra.mxu0 %v540
  %v1012 = vpop.f32.mrf.mxu0
  %v1013 = vadd.f32 0.0, %v1012
  %v1014 = vpop.f32.mrf.mxu0
  %v1015 = vadd.f32 0.0, %v1014
  %1016 = vmatmul.bf16.gmra.mxu0 %v543
  %v1017 = vpop.f32.mrf.mxu0
  %v1018 = vadd.f32 0.0, %v1017
  %v1019 = vpop.f32.mrf.mxu0
  %v1020 = vadd.f32 0.0, %v1019
  %1021 = vdwg.mxu0
  %1022 = vmatpush.bf16.msra.mxu0 0
  %1023 = vmatpush.bf16.msra.mxu0 0
  %1024 = vmatpush.bf16.msra.mxu0 0
  %1025 = vmatpush.bf16.msra.mxu0 0
  %1026 = vmatpush.bf16.msra.mxu0 0
  %1027 = vmatpush.bf16.msra.mxu0 %v589
  %1028 = vmatpush.bf16.msra.mxu0 %v417
  %1029 = vmatpush.bf16.msra.mxu0 %v385
  %1030 = vmatmul.bf16.gmra.mxu0 %v534
  %v1031 = vpop.f32.mrf.mxu0
  %v1032 = vadd.f32 0.0, %v1031
  %v1033 = vpop.f32.mrf.mxu0
  %v1034 = vadd.f32 0.0, %v1033
  %1035 = vmatmul.bf16.gmra.mxu0 %v537
  %v1036 = vpop.f32.mrf.mxu0
  %v1037 = vadd.f32 0.0, %v1036
  %v1038 = vpop.f32.mrf.mxu0
  %v1039 = vadd.f32 0.0, %v1038
  %1040 = vmatmul.bf16.gmra.mxu0 %v540
  %v1041 = vpop.f32.mrf.mxu0
  %v1042 = vadd.f32 0.0, %v1041
  %v1043 = vpop.f32.mrf.mxu0
  %v1044 = vadd.f32 0.0, %v1043
  %1045 = vmatmul.bf16.gmra.mxu0 %v543
  %v1046 = vpop.f32.mrf.mxu0
  %v1047 = vadd.f32 0.0, %v1046
  %v1048 = vpop.f32.mrf.mxu0
  %v1049 = vadd.f32 0.0, %v1048
  %1050 = vdwg.mxu0
  %1051 = vmatpush.bf16.msra.mxu0 0
  %1052 = vmatpush.bf16.msra.mxu0 0
  %1053 = vmatpush.bf16.msra.mxu0 0
  %1054 = vmatpush.bf16.msra.mxu0 0
  %1055 = vmatpush.bf16.msra.mxu0 0
  %1056 = vmatpush.bf16.msra.mxu0 %v592
  %1057 = vmatpush.bf16.msra.mxu0 %v418
  %1058 = vmatpush.bf16.msra.mxu0 %v386
  %1059 = vmatmul.bf16.gmra.mxu0 %v534
  %v1060 = vpop.f32.mrf.mxu0
  %v1061 = vadd.f32 0.0, %v1060
  %v1062 = vpop.f32.mrf.mxu0
  %v1063 = vadd.f32 0.0, %v1062
  %1064 = vmatmul.bf16.gmra.mxu0 %v537
  %v1065 = vpop.f32.mrf.mxu0
  %v1066 = vadd.f32 0.0, %v1065
  %v1067 = vpop.f32.mrf.mxu0
  %v1068 = vadd.f32 0.0, %v1067
  %1069 = vmatmul.bf16.gmra.mxu0 %v540
  %v1070 = vpop.f32.mrf.mxu0
  %v1071 = vadd.f32 0.0, %v1070
  %v1072 = vpop.f32.mrf.mxu0
  %v1073 = vadd.f32 0.0, %v1072
  %1074 = vmatmul.bf16.gmra.mxu0 %v543
  %v1075 = vpop.f32.mrf.mxu0
  %v1076 = vadd.f32 0.0, %v1075
  %v1077 = vpop.f32.mrf.mxu0
  %v1078 = vadd.f32 0.0, %v1077
  %1079 = vdwg.mxu0
  %1080 = vmatpush.bf16.msra.mxu0 0
  %1081 = vmatpush.bf16.msra.mxu0 0
  %1082 = vmatpush.bf16.msra.mxu0 0
  %1083 = vmatpush.bf16.msra.mxu0 0
  %1084 = vmatpush.bf16.msra.mxu0 0
  %1085 = vmatpush.bf16.msra.mxu0 %v595
  %1086 = vmatpush.bf16.msra.mxu0 %v419
  %1087 = vmatpush.bf16.msra.mxu0 %v387
  %1088 = vmatmul.bf16.gmra.mxu0 %v534
  %v1089 = vpop.f32.mrf.mxu0
  %v1090 = vadd.f32 0.0, %v1089
  %v1091 = vpop.f32.mrf.mxu0
  %v1092 = vadd.f32 0.0, %v1091
  %1093 = vmatmul.bf16.gmra.mxu0 %v537
  %v1094 = vpop.f32.mrf.mxu0
  %v1095 = vadd.f32 0.0, %v1094
  %v1096 = vpop.f32.mrf.mxu0
  %v1097 = vadd.f32 0.0, %v1096
  %1098 = vmatmul.bf16.gmra.mxu0 %v540
  %v1099 = vpop.f32.mrf.mxu0
  %v1100 = vadd.f32 0.0, %v1099
  %v1101 = vpop.f32.mrf.mxu0
  %v1102 = vadd.f32 0.0, %v1101
  %1103 = vmatmul.bf16.gmra.mxu0 %v543
  %v1104 = vpop.f32.mrf.mxu0
  %v1105 = vadd.f32 0.0, %v1104
  %v1106 = vpop.f32.mrf.mxu0
  %v1107 = vadd.f32 0.0, %v1106
  %1108 = vdwg.mxu0
  %1109 = vmatpush.bf16.msra.mxu0 0
  %1110 = vmatpush.bf16.msra.mxu0 0
  %1111 = vmatpush.bf16.msra.mxu0 0
  %1112 = vmatpush.bf16.msra.mxu0 0
  %1113 = vmatpush.bf16.msra.mxu0 0
  %1114 = vmatpush.bf16.msra.mxu0 %v598
  %1115 = vmatpush.bf16.msra.mxu0 %v420
  %1116 = vmatpush.bf16.msra.mxu0 %v388
  %1117 = vmatmul.bf16.gmra.mxu0 %v534
  %v1118 = vpop.f32.mrf.mxu0
  %v1119 = vadd.f32 0.0, %v1118
  %v1120 = vpop.f32.mrf.mxu0
  %v1121 = vadd.f32 0.0, %v1120
  %1122 = vmatmul.bf16.gmra.mxu0 %v537
  %v1123 = vpop.f32.mrf.mxu0
  %v1124 = vadd.f32 0.0, %v1123
  %v1125 = vpop.f32.mrf.mxu0
  %v1126 = vadd.f32 0.0, %v1125
  %1127 = vmatmul.bf16.gmra.mxu0 %v540
  %v1128 = vpop.f32.mrf.mxu0
  %v1129 = vadd.f32 0.0, %v1128
  %v1130 = vpop.f32.mrf.mxu0
  %v1131 = vadd.f32 0.0, %v1130
  %1132 = vmatmul.bf16.gmra.mxu0 %v543
  %v1133 = vpop.f32.mrf.mxu0
  %v1134 = vadd.f32 0.0, %v1133
  %v1135 = vpop.f32.mrf.mxu0
  %v1136 = vadd.f32 0.0, %v1135
  %1137 = vdwg.mxu0
  %1138 = vmatpush.bf16.msra.mxu0 0
  %1139 = vmatpush.bf16.msra.mxu0 0
  %1140 = vmatpush.bf16.msra.mxu0 0
  %1141 = vmatpush.bf16.msra.mxu0 0
  %1142 = vmatpush.bf16.msra.mxu0 0
  %1143 = vmatpush.bf16.msra.mxu0 %v601
  %1144 = vmatpush.bf16.msra.mxu0 %v421
  %1145 = vmatpush.bf16.msra.mxu0 %v389
  %1146 = vmatmul.bf16.gmra.mxu0 %v534
  %v1147 = vpop.f32.mrf.mxu0
  %v1148 = vadd.f32 0.0, %v1147
  %v1149 = vpop.f32.mrf.mxu0
  %v1150 = vadd.f32 0.0, %v1149
  %1151 = vmatmul.bf16.gmra.mxu0 %v537
  %v1152 = vpop.f32.mrf.mxu0
  %v1153 = vadd.f32 0.0, %v1152
  %v1154 = vpop.f32.mrf.mxu0
  %v1155 = vadd.f32 0.0, %v1154
  %1156 = vmatmul.bf16.gmra.mxu0 %v540
  %v1157 = vpop.f32.mrf.mxu0
  %v1158 = vadd.f32 0.0, %v1157
  %v1159 = vpop.f32.mrf.mxu0
  %v1160 = vadd.f32 0.0, %v1159
  %1161 = vmatmul.bf16.gmra.mxu0 %v543
  %v1162 = vpop.f32.mrf.mxu0
  %v1163 = vadd.f32 0.0, %v1162
  %v1164 = vpop.f32.mrf.mxu0
  %v1165 = vadd.f32 0.0, %v1164
  %1166 = vdwg.mxu0
  %1167 = vmatpush.bf16.msra.mxu0 0
  %1168 = vmatpush.bf16.msra.mxu0 0
  %1169 = vmatpush.bf16.msra.mxu0 0
  %1170 = vmatpush.bf16.msra.mxu0 0
  %1171 = vmatpush.bf16.msra.mxu0 0
  %1172 = vmatpush.bf16.msra.mxu0 %v604
  %1173 = vmatpush.bf16.msra.mxu0 %v422
  %1174 = vmatpush.bf16.msra.mxu0 %v390
  %1175 = vmatmul.bf16.gmra.mxu0 %v534
  %v1176 = vpop.f32.mrf.mxu0
  %v1177 = vadd.f32 0.0, %v1176
  %v1178 = vpop.f32.mrf.mxu0
  %v1179 = vadd.f32 0.0, %v1178
  %1180 = vmatmul.bf16.gmra.mxu0 %v537
  %v1181 = vpop.f32.mrf.mxu0
  %v1182 = vadd.f32 0.0, %v1181
  %v1183 = vpop.f32.mrf.mxu0
  %v1184 = vadd.f32 0.0, %v1183
  %1185 = vmatmul.bf16.gmra.mxu0 %v540
  %v1186 = vpop.f32.mrf.mxu0
  %v1187 = vadd.f32 0.0, %v1186
  %v1188 = vpop.f32.mrf.mxu0
  %v1189 = vadd.f32 0.0, %v1188
  %1190 = vmatmul.bf16.gmra.mxu0 %v543
  %v1191 = vpop.f32.mrf.mxu0
  %v1192 = vadd.f32 0.0, %v1191
  %v1193 = vpop.f32.mrf.mxu0
  %v1194 = vadd.f32 0.0, %v1193
  %1195 = vdwg.mxu0
  %1196 = vmatpush.bf16.msra.mxu0 0
  %1197 = vmatpush.bf16.msra.mxu0 0
  %1198 = vmatpush.bf16.msra.mxu0 0
  %1199 = vmatpush.bf16.msra.mxu0 0
  %1200 = vmatpush.bf16.msra.mxu0 0
  %1201 = vmatpush.bf16.msra.mxu0 %v607
  %1202 = vmatpush.bf16.msra.mxu0 %v423
  %1203 = vmatpush.bf16.msra.mxu0 %v391
  %1204 = vmatmul.bf16.gmra.mxu0 %v534
  %v1205 = vpop.f32.mrf.mxu0
  %v1206 = vadd.f32 0.0, %v1205
  %v1207 = vpop.f32.mrf.mxu0
  %v1208 = vadd.f32 0.0, %v1207
  %1209 = vmatmul.bf16.gmra.mxu0 %v537
  %v1210 = vpop.f32.mrf.mxu0
  %v1211 = vadd.f32 0.0, %v1210
  %v1212 = vpop.f32.mrf.mxu0
  %v1213 = vadd.f32 0.0, %v1212
  %1214 = vmatmul.bf16.gmra.mxu0 %v540
  %v1215 = vpop.f32.mrf.mxu0
  %v1216 = vadd.f32 0.0, %v1215
  %v1217 = vpop.f32.mrf.mxu0
  %v1218 = vadd.f32 0.0, %v1217
  %1219 = vmatmul.bf16.gmra.mxu0 %v543
  %v1220 = vpop.f32.mrf.mxu0
  %v1221 = vadd.f32 0.0, %v1220
  %v1222 = vpop.f32.mrf.mxu0
  %v1223 = vadd.f32 0.0, %v1222
  %1224 = vdwg.mxu0
  %1225 = vmatpush.bf16.msra.mxu0 0
  %1226 = vmatpush.bf16.msra.mxu0 0
  %1227 = vmatpush.bf16.msra.mxu0 0
  %1228 = vmatpush.bf16.msra.mxu0 0
  %1229 = vmatpush.bf16.msra.mxu0 0
  %1230 = vmatpush.bf16.msra.mxu0 %v610
  %1231 = vmatpush.bf16.msra.mxu0 %v424
  %1232 = vmatpush.bf16.msra.mxu0 %v392
  %1233 = vmatmul.bf16.gmra.mxu0 %v534
  %v1234 = vpop.f32.mrf.mxu0
  %v1235 = vadd.f32 0.0, %v1234
  %v1236 = vpop.f32.mrf.mxu0
  %v1237 = vadd.f32 0.0, %v1236
  %1238 = vmatmul.bf16.gmra.mxu0 %v537
  %v1239 = vpop.f32.mrf.mxu0
  %v1240 = vadd.f32 0.0, %v1239
  %v1241 = vpop.f32.mrf.mxu0
  %v1242 = vadd.f32 0.0, %v1241
  %1243 = vmatmul.bf16.gmra.mxu0 %v540
  %v1244 = vpop.f32.mrf.mxu0
  %v1245 = vadd.f32 0.0, %v1244
  %v1246 = vpop.f32.mrf.mxu0
  %v1247 = vadd.f32 0.0, %v1246
  %1248 = vmatmul.bf16.gmra.mxu0 %v543
  %v1249 = vpop.f32.mrf.mxu0
  %v1250 = vadd.f32 0.0, %v1249
  %v1251 = vpop.f32.mrf.mxu0
  %v1252 = vadd.f32 0.0, %v1251
  %1253 = vdwg.mxu0
  %1254 = vmatpush.bf16.msra.mxu0 0
  %1255 = vmatpush.bf16.msra.mxu0 0
  %1256 = vmatpush.bf16.msra.mxu0 0
  %1257 = vmatpush.bf16.msra.mxu0 0
  %1258 = vmatpush.bf16.msra.mxu0 0
  %1259 = vmatpush.bf16.msra.mxu0 %v613
  %1260 = vmatpush.bf16.msra.mxu0 %v425
  %1261 = vmatpush.bf16.msra.mxu0 %v393
  %1262 = vmatmul.bf16.gmra.mxu0 %v534
  %v1263 = vpop.f32.mrf.mxu0
  %v1264 = vadd.f32 0.0, %v1263
  %v1265 = vpop.f32.mrf.mxu0
  %v1266 = vadd.f32 0.0, %v1265
  %1267 = vmatmul.bf16.gmra.mxu0 %v537
  %v1268 = vpop.f32.mrf.mxu0
  %v1269 = vadd.f32 0.0, %v1268
  %v1270 = vpop.f32.mrf.mxu0
  %v1271 = vadd.f32 0.0, %v1270
  %1272 = vmatmul.bf16.gmra.mxu0 %v540
  %v1273 = vpop.f32.mrf.mxu0
  %v1274 = vadd.f32 0.0, %v1273
  %v1275 = vpop.f32.mrf.mxu0
  %v1276 = vadd.f32 0.0, %v1275
  %1277 = vmatmul.bf16.gmra.mxu0 %v543
  %v1278 = vpop.f32.mrf.mxu0
  %v1279 = vadd.f32 0.0, %v1278
  %v1280 = vpop.f32.mrf.mxu0
  %v1281 = vadd.f32 0.0, %v1280
  %1282 = vdwg.mxu0
  %1283 = vmatpush.bf16.msra.mxu0 0
  %1284 = vmatpush.bf16.msra.mxu0 0
  %1285 = vmatpush.bf16.msra.mxu0 0
  %1286 = vmatpush.bf16.msra.mxu0 0
  %1287 = vmatpush.bf16.msra.mxu0 0
  %1288 = vmatpush.bf16.msra.mxu0 %v616
  %1289 = vmatpush.bf16.msra.mxu0 %v426
  %1290 = vmatpush.bf16.msra.mxu0 %v394
  %1291 = vmatmul.bf16.gmra.mxu0 %v534
  %v1292 = vpop.f32.mrf.mxu0
  %v1293 = vadd.f32 0.0, %v1292
  %v1294 = vpop.f32.mrf.mxu0
  %v1295 = vadd.f32 0.0, %v1294
  %1296 = vmatmul.bf16.gmra.mxu0 %v537
  %v1297 = vpop.f32.mrf.mxu0
  %v1298 = vadd.f32 0.0, %v1297
  %v1299 = vpop.f32.mrf.mxu0
  %v1300 = vadd.f32 0.0, %v1299
  %1301 = vmatmul.bf16.gmra.mxu0 %v540
  %v1302 = vpop.f32.mrf.mxu0
  %v1303 = vadd.f32 0.0, %v1302
  %v1304 = vpop.f32.mrf.mxu0
  %v1305 = vadd.f32 0.0, %v1304
  %1306 = vmatmul.bf16.gmra.mxu0 %v543
  %v1307 = vpop.f32.mrf.mxu0
  %v1308 = vadd.f32 0.0, %v1307
  %v1309 = vpop.f32.mrf.mxu0
  %v1310 = vadd.f32 0.0, %v1309
  %1311 = vdwg.mxu0
  %1312 = vmatpush.bf16.msra.mxu0 0
  %1313 = vmatpush.bf16.msra.mxu0 0
  %1314 = vmatpush.bf16.msra.mxu0 0
  %1315 = vmatpush.bf16.msra.mxu0 0
  %1316 = vmatpush.bf16.msra.mxu0 0
  %1317 = vmatpush.bf16.msra.mxu0 %v619
  %1318 = vmatpush.bf16.msra.mxu0 %v427
  %1319 = vmatpush.bf16.msra.mxu0 %v395
  %1320 = vmatmul.bf16.gmra.mxu0 %v534
  %v1321 = vpop.f32.mrf.mxu0
  %v1322 = vadd.f32 0.0, %v1321
  %v1323 = vpop.f32.mrf.mxu0
  %v1324 = vadd.f32 0.0, %v1323
  %1325 = vmatmul.bf16.gmra.mxu0 %v537
  %v1326 = vpop.f32.mrf.mxu0
  %v1327 = vadd.f32 0.0, %v1326
  %v1328 = vpop.f32.mrf.mxu0
  %v1329 = vadd.f32 0.0, %v1328
  %1330 = vmatmul.bf16.gmra.mxu0 %v540
  %v1331 = vpop.f32.mrf.mxu0
  %v1332 = vadd.f32 0.0, %v1331
  %v1333 = vpop.f32.mrf.mxu0
  %v1334 = vadd.f32 0.0, %v1333
  %1335 = vmatmul.bf16.gmra.mxu0 %v543
  %v1336 = vpop.f32.mrf.mxu0
  %v1337 = vadd.f32 0.0, %v1336
  %v1338 = vpop.f32.mrf.mxu0
  %v1339 = vadd.f32 0.0, %v1338
  %1340 = vdwg.mxu0
  %1341 = vmatpush.bf16.msra.mxu0 0
  %1342 = vmatpush.bf16.msra.mxu0 0
  %1343 = vmatpush.bf16.msra.mxu0 0
  %1344 = vmatpush.bf16.msra.mxu0 0
  %1345 = vmatpush.bf16.msra.mxu0 0
  %1346 = vmatpush.bf16.msra.mxu0 %v622
  %1347 = vmatpush.bf16.msra.mxu0 %v428
  %1348 = vmatpush.bf16.msra.mxu0 %v396
  %1349 = vmatmul.bf16.gmra.mxu0 %v534
  %v1350 = vpop.f32.mrf.mxu0
  %v1351 = vadd.f32 0.0, %v1350
  %v1352 = vpop.f32.mrf.mxu0
  %v1353 = vadd.f32 0.0, %v1352
  %1354 = vmatmul.bf16.gmra.mxu0 %v537
  %v1355 = vpop.f32.mrf.mxu0
  %v1356 = vadd.f32 0.0, %v1355
  %v1357 = vpop.f32.mrf.mxu0
  %v1358 = vadd.f32 0.0, %v1357
  %1359 = vmatmul.bf16.gmra.mxu0 %v540
  %v1360 = vpop.f32.mrf.mxu0
  %v1361 = vadd.f32 0.0, %v1360
  %v1362 = vpop.f32.mrf.mxu0
  %v1363 = vadd.f32 0.0, %v1362
  %1364 = vmatmul.bf16.gmra.mxu0 %v543
  %v1365 = vpop.f32.mrf.mxu0
  %v1366 = vadd.f32 0.0, %v1365
  %v1367 = vpop.f32.mrf.mxu0
  %v1368 = vadd.f32 0.0, %v1367
  %1369 = vdwg.mxu0
  %1370 = vmatpush.bf16.msra.mxu0 0
  %1371 = vmatpush.bf16.msra.mxu0 0
  %1372 = vmatpush.bf16.msra.mxu0 0
  %1373 = vmatpush.bf16.msra.mxu0 0
  %1374 = vmatpush.bf16.msra.mxu0 0
  %1375 = vmatpush.bf16.msra.mxu0 %v625
  %1376 = vmatpush.bf16.msra.mxu0 %v429
  %1377 = vmatpush.bf16.msra.mxu0 %v397
  %1378 = vmatmul.bf16.gmra.mxu0 %v534
  %v1379 = vpop.f32.mrf.mxu0
  %v1380 = vadd.f32 0.0, %v1379
  %v1381 = vpop.f32.mrf.mxu0
  %v1382 = vadd.f32 0.0, %v1381
  %1383 = vmatmul.bf16.gmra.mxu0 %v537
  %v1384 = vpop.f32.mrf.mxu0
  %v1385 = vadd.f32 0.0, %v1384
  %v1386 = vpop.f32.mrf.mxu0
  %v1387 = vadd.f32 0.0, %v1386
  %1388 = vmatmul.bf16.gmra.mxu0 %v540
  %v1389 = vpop.f32.mrf.mxu0
  %v1390 = vadd.f32 0.0, %v1389
  %v1391 = vpop.f32.mrf.mxu0
  %v1392 = vadd.f32 0.0, %v1391
  %1393 = vmatmul.bf16.gmra.mxu0 %v543
  %v1394 = vpop.f32.mrf.mxu0
  %v1395 = vadd.f32 0.0, %v1394
  %v1396 = vpop.f32.mrf.mxu0
  %v1397 = vadd.f32 0.0, %v1396
  %1398 = vdwg.mxu0
  %1399 = vmatpush.bf16.msra.mxu0 0
  %1400 = vmatpush.bf16.msra.mxu0 0
  %1401 = vmatpush.bf16.msra.mxu0 0
  %1402 = vmatpush.bf16.msra.mxu0 0
  %1403 = vmatpush.bf16.msra.mxu0 0
  %1404 = vmatpush.bf16.msra.mxu0 %v628
  %1405 = vmatpush.bf16.msra.mxu0 %v430
  %1406 = vmatpush.bf16.msra.mxu0 %v398
  %1407 = vmatmul.bf16.gmra.mxu0 %v534
  %v1408 = vpop.f32.mrf.mxu0
  %v1409 = vadd.f32 0.0, %v1408
  %v1410 = vpop.f32.mrf.mxu0
  %v1411 = vadd.f32 0.0, %v1410
  %1412 = vmatmul.bf16.gmra.mxu0 %v537
  %v1413 = vpop.f32.mrf.mxu0
  %v1414 = vadd.f32 0.0, %v1413
  %v1415 = vpop.f32.mrf.mxu0
  %v1416 = vadd.f32 0.0, %v1415
  %1417 = vmatmul.bf16.gmra.mxu0 %v540
  %v1418 = vpop.f32.mrf.mxu0
  %v1419 = vadd.f32 0.0, %v1418
  %v1420 = vpop.f32.mrf.mxu0
  %v1421 = vadd.f32 0.0, %v1420
  %1422 = vmatmul.bf16.gmra.mxu0 %v543
  %v1423 = vpop.f32.mrf.mxu0
  %v1424 = vadd.f32 0.0, %v1423
  %v1425 = vpop.f32.mrf.mxu0
  %v1426 = vadd.f32 0.0, %v1425
  %1427 = vdwg.mxu0
  %1428 = vmatpush.bf16.msra.mxu0 0
  %1429 = vmatpush.bf16.msra.mxu0 0
  %1430 = vmatpush.bf16.msra.mxu0 0
  %1431 = vmatpush.bf16.msra.mxu0 0
  %1432 = vmatpush.bf16.msra.mxu0 0
  %1433 = vmatpush.bf16.msra.mxu0 %v631
  %1434 = vmatpush.bf16.msra.mxu0 %v431
  %1435 = vmatpush.bf16.msra.mxu0 %v399
  %1436 = vmatmul.bf16.gmra.mxu0 %v534
  %v1437 = vpop.f32.mrf.mxu0
  %v1438 = vadd.f32 0.0, %v1437
  %v1439 = vpop.f32.mrf.mxu0
  %v1440 = vadd.f32 0.0, %v1439
  %1441 = vmatmul.bf16.gmra.mxu0 %v537
  %v1442 = vpop.f32.mrf.mxu0
  %v1443 = vadd.f32 0.0, %v1442
  %v1444 = vpop.f32.mrf.mxu0
  %v1445 = vadd.f32 0.0, %v1444
  %1446 = vmatmul.bf16.gmra.mxu0 %v540
  %v1447 = vpop.f32.mrf.mxu0
  %v1448 = vadd.f32 0.0, %v1447
  %v1449 = vpop.f32.mrf.mxu0
  %v1450 = vadd.f32 0.0, %v1449
  %1451 = vmatmul.bf16.gmra.mxu0 %v543
  %v1452 = vpop.f32.mrf.mxu0
  %v1453 = vadd.f32 0.0, %v1452
  %v1454 = vpop.f32.mrf.mxu0
  %v1455 = vadd.f32 0.0, %v1454
  %1456 = vdwg.mxu0
  %1457 = vmatpush.bf16.msra.mxu0 0
  %1458 = vmatpush.bf16.msra.mxu0 0
  %1459 = vmatpush.bf16.msra.mxu0 0
  %1460 = vmatpush.bf16.msra.mxu0 0
  %1461 = vmatpush.bf16.msra.mxu0 0
  %1462 = vmatpush.bf16.msra.mxu0 %v634
  %1463 = vmatpush.bf16.msra.mxu0 %v432
  %1464 = vmatpush.bf16.msra.mxu0 %v400
  %1465 = vmatmul.bf16.gmra.mxu0 %v534
  %v1466 = vpop.f32.mrf.mxu0
  %v1467 = vadd.f32 0.0, %v1466
  %v1468 = vpop.f32.mrf.mxu0
  %v1469 = vadd.f32 0.0, %v1468
  %1470 = vmatmul.bf16.gmra.mxu0 %v537
  %v1471 = vpop.f32.mrf.mxu0
  %v1472 = vadd.f32 0.0, %v1471
  %v1473 = vpop.f32.mrf.mxu0
  %v1474 = vadd.f32 0.0, %v1473
  %1475 = vmatmul.bf16.gmra.mxu0 %v540
  %v1476 = vpop.f32.mrf.mxu0
  %v1477 = vadd.f32 0.0, %v1476
  %v1478 = vpop.f32.mrf.mxu0
  %v1479 = vadd.f32 0.0, %v1478
  %1480 = vmatmul.bf16.gmra.mxu0 %v543
  %v1481 = vpop.f32.mrf.mxu0
  %v1482 = vadd.f32 0.0, %v1481
  %v1483 = vpop.f32.mrf.mxu0
  %v1484 = vadd.f32 0.0, %v1483
  %1485 = vdwg.mxu0
  %1486 = vmatpush.bf16.msra.mxu0 0
  %1487 = vmatpush.bf16.msra.mxu0 0
  %1488 = vmatpush.bf16.msra.mxu0 0
  %1489 = vmatpush.bf16.msra.mxu0 0
  %1490 = vmatpush.bf16.msra.mxu0 0
  %1491 = vmatpush.bf16.msra.mxu0 %v637
  %1492 = vmatpush.bf16.msra.mxu0 %v433
  %1493 = vmatpush.bf16.msra.mxu0 %v401
  %1494 = vmatmul.bf16.gmra.mxu0 %v534
  %v1495 = vpop.f32.mrf.mxu0
  %v1496 = vadd.f32 0.0, %v1495
  %v1497 = vpop.f32.mrf.mxu0
  %v1498 = vadd.f32 0.0, %v1497
  %1499 = vmatmul.bf16.gmra.mxu0 %v537
  %v1500 = vpop.f32.mrf.mxu0
  %v1501 = vadd.f32 0.0, %v1500
  %v1502 = vpop.f32.mrf.mxu0
  %v1503 = vadd.f32 0.0, %v1502
  %1504 = vmatmul.bf16.gmra.mxu0 %v540
  %v1505 = vpop.f32.mrf.mxu0
  %v1506 = vadd.f32 0.0, %v1505
  %v1507 = vpop.f32.mrf.mxu0
  %v1508 = vadd.f32 0.0, %v1507
  %1509 = vmatmul.bf16.gmra.mxu0 %v543
  %v1510 = vpop.f32.mrf.mxu0
  %v1511 = vadd.f32 0.0, %v1510
  %v1512 = vpop.f32.mrf.mxu0
  %v1513 = vadd.f32 0.0, %v1512
  %1514 = vdwg.mxu0
  %1515 = vmatpush.bf16.msra.mxu0 0
  %1516 = vmatpush.bf16.msra.mxu0 0
  %1517 = vmatpush.bf16.msra.mxu0 0
  %1518 = vmatpush.bf16.msra.mxu0 0
  %1519 = vmatpush.bf16.msra.mxu0 0
  %1520 = vmatpush.bf16.msra.mxu0 %v640
  %1521 = vmatpush.bf16.msra.mxu0 %v434
  %1522 = vmatpush.bf16.msra.mxu0 %v402
  %1523 = vmatmul.bf16.gmra.mxu0 %v534
  %v1524 = vpop.f32.mrf.mxu0
  %v1525 = vadd.f32 0.0, %v1524
  %v1526 = vpop.f32.mrf.mxu0
  %v1527 = vadd.f32 0.0, %v1526
  %1528 = vmatmul.bf16.gmra.mxu0 %v537
  %v1529 = vpop.f32.mrf.mxu0
  %v1530 = vadd.f32 0.0, %v1529
  %v1531 = vpop.f32.mrf.mxu0
  %v1532 = vadd.f32 0.0, %v1531
  %1533 = vmatmul.bf16.gmra.mxu0 %v540
  %v1534 = vpop.f32.mrf.mxu0
  %v1535 = vadd.f32 0.0, %v1534
  %v1536 = vpop.f32.mrf.mxu0
  %v1537 = vadd.f32 0.0, %v1536
  %1538 = vmatmul.bf16.gmra.mxu0 %v543
  %v1539 = vpop.f32.mrf.mxu0
  %v1540 = vadd.f32 0.0, %v1539
  %v1541 = vpop.f32.mrf.mxu0
  %v1542 = vadd.f32 0.0, %v1541
  %1543 = vdwg.mxu0
  %1544 = vmatpush.bf16.msra.mxu0 0
  %1545 = vmatpush.bf16.msra.mxu0 0
  %1546 = vmatpush.bf16.msra.mxu0 0
  %1547 = vmatpush.bf16.msra.mxu0 0
  %1548 = vmatpush.bf16.msra.mxu0 0
  %1549 = vmatpush.bf16.msra.mxu0 %v643
  %1550 = vmatpush.bf16.msra.mxu0 %v435
  %1551 = vmatpush.bf16.msra.mxu0 %v403
  %1552 = vmatmul.bf16.gmra.mxu0 %v534
  %v1553 = vpop.f32.mrf.mxu0
  %v1554 = vadd.f32 0.0, %v1553
  %v1555 = vpop.f32.mrf.mxu0
  %v1556 = vadd.f32 0.0, %v1555
  %1557 = vmatmul.bf16.gmra.mxu0 %v537
  %v1558 = vpop.f32.mrf.mxu0
  %v1559 = vadd.f32 0.0, %v1558
  %v1560 = vpop.f32.mrf.mxu0
  %v1561 = vadd.f32 0.0, %v1560
  %1562 = vmatmul.bf16.gmra.mxu0 %v540
  %v1563 = vpop.f32.mrf.mxu0
  %v1564 = vadd.f32 0.0, %v1563
  %v1565 = vpop.f32.mrf.mxu0
  %v1566 = vadd.f32 0.0, %v1565
  %1567 = vmatmul.bf16.gmra.mxu0 %v543
  %v1568 = vpop.f32.mrf.mxu0
  %v1569 = vadd.f32 0.0, %v1568
  %v1570 = vpop.f32.mrf.mxu0
  %v1571 = vadd.f32 0.0, %v1570
  %1572 = vdwg.mxu0
  %v1573 = vmax.f32 %v655, %v660
  %v1574 = vmax.f32 %v684, %v689
  %v1575 = vmax.f32 %v713, %v718
  %v1576 = vmax.f32 %v742, %v747
  %v1577 = vmax.f32 %v771, %v776
  %v1578 = vmax.f32 %v800, %v805
  %v1579 = vmax.f32 %v829, %v834
  %v1580 = vmax.f32 %v858, %v863
  %v1581 = vmax.f32 %v887, %v892
  %v1582 = vmax.f32 %v916, %v921
  %v1583 = vmax.f32 %v945, %v950
  %v1584 = vmax.f32 %v974, %v979
  %v1585 = vmax.f32 %v1003, %v1008
  %v1586 = vmax.f32 %v1032, %v1037
  %v1587 = vmax.f32 %v1061, %v1066
  %v1588 = vmax.f32 %v1090, %v1095
  %v1589 = vmax.f32 %v1119, %v1124
  %v1590 = vmax.f32 %v1148, %v1153
  %v1591 = vmax.f32 %v1177, %v1182
  %v1592 = vmax.f32 %v1206, %v1211
  %v1593 = vmax.f32 %v1235, %v1240
  %v1594 = vmax.f32 %v1264, %v1269
  %v1595 = vmax.f32 %v1293, %v1298
  %v1596 = vmax.f32 %v1322, %v1327
  %v1597 = vmax.f32 %v1351, %v1356
  %v1598 = vmax.f32 %v1380, %v1385
  %v1599 = vmax.f32 %v1409, %v1414
  %v1600 = vmax.f32 %v1438, %v1443
  %v1601 = vmax.f32 %v1467, %v1472
  %v1602 = vmax.f32 %v1496, %v1501
  %v1603 = vmax.f32 %v1525, %v1530
  %v1604 = vmax.f32 %v1554, %v1559
  %v1605 = vmax.f32 %v657, %v662
  %v1606 = vmax.f32 %v686, %v691
  %v1607 = vmax.f32 %v715, %v720
  %v1608 = vmax.f32 %v744, %v749
  %v1609 = vmax.f32 %v773, %v778
  %v1610 = vmax.f32 %v802, %v807
  %v1611 = vmax.f32 %v831, %v836
  %v1612 = vmax.f32 %v860, %v865
  %v1613 = vmax.f32 %v889, %v894
  %v1614 = vmax.f32 %v918, %v923
  %v1615 = vmax.f32 %v947, %v952
  %v1616 = vmax.f32 %v976, %v981
  %v1617 = vmax.f32 %v1005, %v1010
  %v1618 = vmax.f32 %v1034, %v1039
  %v1619 = vmax.f32 %v1063, %v1068
  %v1620 = vmax.f32 %v1092, %v1097
  %v1621 = vmax.f32 %v1121, %v1126
  %v1622 = vmax.f32 %v1150, %v1155
  %v1623 = vmax.f32 %v1179, %v1184
  %v1624 = vmax.f32 %v1208, %v1213
  %v1625 = vmax.f32 %v1237, %v1242
  %v1626 = vmax.f32 %v1266, %v1271
  %v1627 = vmax.f32 %v1295, %v1300
  %v1628 = vmax.f32 %v1324, %v1329
  %v1629 = vmax.f32 %v1353, %v1358
  %v1630 = vmax.f32 %v1382, %v1387
  %v1631 = vmax.f32 %v1411, %v1416
  %v1632 = vmax.f32 %v1440, %v1445
  %v1633 = vmax.f32 %v1469, %v1474
  %v1634 = vmax.f32 %v1498, %v1503
  %v1635 = vmax.f32 %v1527, %v1532
  %v1636 = vmax.f32 %v1556, %v1561
  %v1637 = vmax.f32 %v665, %v670
  %v1638 = vmax.f32 %v694, %v699
  %v1639 = vmax.f32 %v723, %v728
  %v1640 = vmax.f32 %v752, %v757
  %v1641 = vmax.f32 %v781, %v786
  %v1642 = vmax.f32 %v810, %v815
  %v1643 = vmax.f32 %v839, %v844
  %v1644 = vmax.f32 %v868, %v873
  %v1645 = vmax.f32 %v897, %v902
  %v1646 = vmax.f32 %v926, %v931
  %v1647 = vmax.f32 %v955, %v960
  %v1648 = vmax.f32 %v984, %v989
  %v1649 = vmax.f32 %v1013, %v1018
  %v1650 = vmax.f32 %v1042, %v1047
  %v1651 = vmax.f32 %v1071, %v1076
  %v1652 = vmax.f32 %v1100, %v1105
  %v1653 = vmax.f32 %v1129, %v1134
  %v1654 = vmax.f32 %v1158, %v1163
  %v1655 = vmax.f32 %v1187, %v1192
  %v1656 = vmax.f32 %v1216, %v1221
  %v1657 = vmax.f32 %v1245, %v1250
  %v1658 = vmax.f32 %v1274, %v1279
  %v1659 = vmax.f32 %v1303, %v1308
  %v1660 = vmax.f32 %v1332, %v1337
  %v1661 = vmax.f32 %v1361, %v1366
  %v1662 = vmax.f32 %v1390, %v1395
  %v1663 = vmax.f32 %v1419, %v1424
  %v1664 = vmax.f32 %v1448, %v1453
  %v1665 = vmax.f32 %v1477, %v1482
  %v1666 = vmax.f32 %v1506, %v1511
  %v1667 = vmax.f32 %v1535, %v1540
  %v1668 = vmax.f32 %v1564, %v1569
  %v1669 = vmax.f32 %v667, %v672
  %v1670 = vmax.f32 %v696, %v701
  %v1671 = vmax.f32 %v725, %v730
  %v1672 = vmax.f32 %v754, %v759
  %v1673 = vmax.f32 %v783, %v788
  %v1674 = vmax.f32 %v812, %v817
  %v1675 = vmax.f32 %v841, %v846
  %v1676 = vmax.f32 %v870, %v875
  %v1677 = vmax.f32 %v899, %v904
  %v1678 = vmax.f32 %v928, %v933
  %v1679 = vmax.f32 %v957, %v962
  %v1680 = vmax.f32 %v986, %v991
  %v1681 = vmax.f32 %v1015, %v1020
  %v1682 = vmax.f32 %v1044, %v1049
  %v1683 = vmax.f32 %v1073, %v1078
  %v1684 = vmax.f32 %v1102, %v1107
  %v1685 = vmax.f32 %v1131, %v1136
  %v1686 = vmax.f32 %v1160, %v1165
  %v1687 = vmax.f32 %v1189, %v1194
  %v1688 = vmax.f32 %v1218, %v1223
  %v1689 = vmax.f32 %v1247, %v1252
  %v1690 = vmax.f32 %v1276, %v1281
  %v1691 = vmax.f32 %v1305, %v1310
  %v1692 = vmax.f32 %v1334, %v1339
  %v1693 = vmax.f32 %v1363, %v1368
  %v1694 = vmax.f32 %v1392, %v1397
  %v1695 = vmax.f32 %v1421, %v1426
  %v1696 = vmax.f32 %v1450, %v1455
  %v1697 = vmax.f32 %v1479, %v1484
  %v1698 = vmax.f32 %v1508, %v1513
  %v1699 = vmax.f32 %v1537, %v1542
  %v1700 = vmax.f32 %v1566, %v1571
  %v1701 = vmax.f32 %v1573, %v1637
  %v1702 = vmax.f32 %v1574, %v1638
  %v1703 = vmax.f32 %v1575, %v1639
  %v1704 = vmax.f32 %v1576, %v1640
  %v1705 = vmax.f32 %v1577, %v1641
  %v1706 = vmax.f32 %v1578, %v1642
  %v1707 = vmax.f32 %v1579, %v1643
  %v1708 = vmax.f32 %v1580, %v1644
  %v1709 = vmax.f32 %v1581, %v1645
  %v1710 = vmax.f32 %v1582, %v1646
  %v1711 = vmax.f32 %v1583, %v1647
  %v1712 = vmax.f32 %v1584, %v1648
  %v1713 = vmax.f32 %v1585, %v1649
  %v1714 = vmax.f32 %v1586, %v1650
  %v1715 = vmax.f32 %v1587, %v1651
  %v1716 = vmax.f32 %v1588, %v1652
  %v1717 = vmax.f32 %v1589, %v1653
  %v1718 = vmax.f32 %v1590, %v1654
  %v1719 = vmax.f32 %v1591, %v1655
  %v1720 = vmax.f32 %v1592, %v1656
  %v1721 = vmax.f32 %v1593, %v1657
  %v1722 = vmax.f32 %v1594, %v1658
  %v1723 = vmax.f32 %v1595, %v1659
  %v1724 = vmax.f32 %v1596, %v1660
  %v1725 = vmax.f32 %v1597, %v1661
  %v1726 = vmax.f32 %v1598, %v1662
  %v1727 = vmax.f32 %v1599, %v1663
  %v1728 = vmax.f32 %v1600, %v1664
  %v1729 = vmax.f32 %v1601, %v1665
  %v1730 = vmax.f32 %v1602, %v1666
  %v1731 = vmax.f32 %v1603, %v1667
  %v1732 = vmax.f32 %v1604, %v1668
  %v1733 = vmax.f32 %v1605, %v1669
  %v1734 = vmax.f32 %v1606, %v1670
  %v1735 = vmax.f32 %v1607, %v1671
  %v1736 = vmax.f32 %v1608, %v1672
  %v1737 = vmax.f32 %v1609, %v1673
  %v1738 = vmax.f32 %v1610, %v1674
  %v1739 = vmax.f32 %v1611, %v1675
  %v1740 = vmax.f32 %v1612, %v1676
  %v1741 = vmax.f32 %v1613, %v1677
  %v1742 = vmax.f32 %v1614, %v1678
  %v1743 = vmax.f32 %v1615, %v1679
  %v1744 = vmax.f32 %v1616, %v1680
  %v1745 = vmax.f32 %v1617, %v1681
  %v1746 = vmax.f32 %v1618, %v1682
  %v1747 = vmax.f32 %v1619, %v1683
  %v1748 = vmax.f32 %v1620, %v1684
  %v1749 = vmax.f32 %v1621, %v1685
  %v1750 = vmax.f32 %v1622, %v1686
  %v1751 = vmax.f32 %v1623, %v1687
  %v1752 = vmax.f32 %v1624, %v1688
  %v1753 = vmax.f32 %v1625, %v1689
  %v1754 = vmax.f32 %v1626, %v1690
  %v1755 = vmax.f32 %v1627, %v1691
  %v1756 = vmax.f32 %v1628, %v1692
  %v1757 = vmax.f32 %v1629, %v1693
  %v1758 = vmax.f32 %v1630, %v1694
  %v1759 = vmax.f32 %v1631, %v1695
  %v1760 = vmax.f32 %v1632, %v1696
  %v1761 = vmax.f32 %v1633, %v1697
  %v1762 = vmax.f32 %v1634, %v1698
  %v1763 = vmax.f32 %v1635, %v1699
  %v1764 = vmax.f32 %v1636, %v1700
  %v1765 = vmax.f32 %v1701, 0.0
  %v1766 = vmax.f32 %v1702, 0.0
  %v1767 = vmax.f32 %v1703, 0.0
  %v1768 = vmax.f32 %v1704, 0.0
  %v1769 = vmax.f32 %v1705, 0.0
  %v1770 = vmax.f32 %v1706, 0.0
  %v1771 = vmax.f32 %v1707, 0.0
  %v1772 = vmax.f32 %v1708, 0.0
  %v1773 = vmax.f32 %v1709, 0.0
  %v1774 = vmax.f32 %v1710, 0.0
  %v1775 = vmax.f32 %v1711, 0.0
  %v1776 = vmax.f32 %v1712, 0.0
  %v1777 = vmax.f32 %v1713, 0.0
  %v1778 = vmax.f32 %v1714, 0.0
  %v1779 = vmax.f32 %v1715, 0.0
  %v1780 = vmax.f32 %v1716, 0.0
  %v1781 = vmax.f32 %v1717, 0.0
  %v1782 = vmax.f32 %v1718, 0.0
  %v1783 = vmax.f32 %v1719, 0.0
  %v1784 = vmax.f32 %v1720, 0.0
  %v1785 = vmax.f32 %v1721, 0.0
  %v1786 = vmax.f32 %v1722, 0.0
  %v1787 = vmax.f32 %v1723, 0.0
  %v1788 = vmax.f32 %v1724, 0.0
  %v1789 = vmax.f32 %v1725, 0.0
  %v1790 = vmax.f32 %v1726, 0.0
  %v1791 = vmax.f32 %v1727, 0.0
  %v1792 = vmax.f32 %v1728, 0.0
  %v1793 = vmax.f32 %v1729, 0.0
  %v1794 = vmax.f32 %v1730, 0.0
  %v1795 = vmax.f32 %v1731, 0.0
  %v1796 = vmax.f32 %v1732, 0.0
  %v1797 = vmax.f32 %v1733, 0.0
  %v1798 = vmax.f32 %v1734, 0.0
  %v1799 = vmax.f32 %v1735, 0.0
  %v1800 = vmax.f32 %v1736, 0.0
  %v1801 = vmax.f32 %v1737, 0.0
  %v1802 = vmax.f32 %v1738, 0.0
  %v1803 = vmax.f32 %v1739, 0.0
  %v1804 = vmax.f32 %v1740, 0.0
  %v1805 = vmax.f32 %v1741, 0.0
  %v1806 = vmax.f32 %v1742, 0.0
  %v1807 = vmax.f32 %v1743, 0.0
  %v1808 = vmax.f32 %v1744, 0.0
  %v1809 = vmax.f32 %v1745, 0.0
  %v1810 = vmax.f32 %v1746, 0.0
  %v1811 = vmax.f32 %v1747, 0.0
  %v1812 = vmax.f32 %v1748, 0.0
  %v1813 = vmax.f32 %v1749, 0.0
  %v1814 = vmax.f32 %v1750, 0.0
  %v1815 = vmax.f32 %v1751, 0.0
  %v1816 = vmax.f32 %v1752, 0.0
  %v1817 = vmax.f32 %v1753, 0.0
  %v1818 = vmax.f32 %v1754, 0.0
  %v1819 = vmax.f32 %v1755, 0.0
  %v1820 = vmax.f32 %v1756, 0.0
  %v1821 = vmax.f32 %v1757, 0.0
  %v1822 = vmax.f32 %v1758, 0.0
  %v1823 = vmax.f32 %v1759, 0.0
  %v1824 = vmax.f32 %v1760, 0.0
  %v1825 = vmax.f32 %v1761, 0.0
  %v1826 = vmax.f32 %v1762, 0.0
  %v1827 = vmax.f32 %v1763, 0.0
  %v1828 = vmax.f32 %v1764, 0.0
  %v1831 = vrot.slane %v1766, 7
  %vm1832 = vcmask 1040384
  %v1833 = vsel %vm1832, %v1765, %v1831
  %v1835 = vlaneseq
  %vm1836 = vcmp.ge.s32.totalorder %v1835, 0
  %vm1837 = vcmp.lt.s32.totalorder %v1835, 256
  %vm1838 = vmand %vm1836, %vm1837
  %1839 = vst.msk [vmem:[#allocation3] ss:$8 sm:$0x3] %vm1838, %v1833
  %1840 = vst.msk [vmem:[#allocation3] ss:$8 sm:$0x0] %vm1838, %v1833
  %1841 = vst [vmem:[#allocation1] sm:$0xff] %v1765
  %1842 = vst [vmem:[#allocation1 + $0x9] sm:$0xff] %v1766
  %s1843 = scalar_lea.vmem [#allocation1], 1
  %v1844 = vld [vmem:[%s1843] ss:$9 sm:$0xff]
  %s1846 = scalar_lea.vmem [#allocation3], 16
  %1847 = vst.msk [vmem:[%s1846] ss:$8 sm:$0x3] %vm1838, %v1844
  %1848 = vst.msk [vmem:[%s1846] ss:$8 sm:$0x0] %vm1838, %v1844
  %1849 = vst [vmem:[#allocation1] sm:$0xff] %v1765
  %1850 = vst [vmem:[#allocation1 + $0x9] sm:$0xff] %v1766
  %s1851 = scalar_lea.vmem [#allocation1], 2
  %v1852 = vld [vmem:[%s1851] ss:$9 sm:$0xff]
  %s1854 = scalar_lea.vmem [#allocation3], 32
  %1855 = vst.msk [vmem:[%s1854] ss:$8 sm:$0x3] %vm1838, %v1852
  %1856 = vst.msk [vmem:[%s1854] ss:$8 sm:$0x0] %vm1838, %v1852
  %1857 = vst [vmem:[#allocation1] sm:$0xff] %v1765
  %1858 = vst [vmem:[#allocation1 + $0x9] sm:$0xff] %v1766
  %s1859 = scalar_lea.vmem [#allocation1], 3
  %v1860 = vld [vmem:[%s1859] ss:$9 sm:$0xff]
  %s1862 = scalar_lea.vmem [#allocation3], 48
  %1863 = vst.msk [vmem:[%s1862] ss:$8 sm:$0x3] %vm1838, %v1860
  %1864 = vst.msk [vmem:[%s1862] ss:$8 sm:$0x0] %vm1838, %v1860
  %1865 = vst [vmem:[#allocation1] sm:$0xff] %v1765
  %1866 = vst [vmem:[#allocation1 + $0x9] sm:$0xff] %v1766
  %s1867 = scalar_lea.vmem [#allocation1], 4
  %v1868 = vld [vmem:[%s1867] ss:$9 sm:$0xff]
  %s1870 = scalar_lea.vmem [#allocation3], 64
  %1871 = vst.msk [vmem:[%s1870] ss:$8 sm:$0x3] %vm1838, %v1868
  %1872 = vst.msk [vmem:[%s1870] ss:$8 sm:$0x0] %vm1838, %v1868
  %1873 = vst [vmem:[#allocation1] sm:$0xff] %v1765
  %1874 = vst [vmem:[#allocation1 + $0x9] sm:$0xff] %v1766
  %s1875 = scalar_lea.vmem [#allocation1], 5
  %v1876 = vld [vmem:[%s1875] ss:$9 sm:$0xff]
  %s1878 = scalar_lea.vmem [#allocation3], 80
  %1879 = vst.msk [vmem:[%s1878] ss:$8 sm:$0x3] %vm1838, %v1876
  %1880 = vst.msk [vmem:[%s1878] ss:$8 sm:$0x0] %vm1838, %v1876
  %1881 = vst [vmem:[#allocation1] sm:$0xff] %v1765
  %1882 = vst [vmem:[#allocation1 + $0x9] sm:$0xff] %v1766
  %s1883 = scalar_lea.vmem [#allocation1], 6
  %v1884 = vld [vmem:[%s1883] ss:$9 sm:$0xff]
  %s1886 = scalar_lea.vmem [#allocation3], 96
  %1887 = vst.msk [vmem:[%s1886] ss:$8 sm:$0x3] %vm1838, %v1884
  %1888 = vst.msk [vmem:[%s1886] ss:$8 sm:$0x0] %vm1838, %v1884
  %1889 = vst [vmem:[#allocation1] sm:$0xff] %v1765
  %1890 = vst [vmem:[#allocation1 + $0x9] sm:$0xff] %v1766
  %s1891 = scalar_lea.vmem [#allocation1], 7
  %v1892 = vld [vmem:[%s1891] ss:$9 sm:$0xff]
  %s1894 = scalar_lea.vmem [#allocation3], 112
  %1895 = vst.msk [vmem:[%s1894] ss:$8 sm:$0x3] %vm1838, %v1892
  %1896 = vst.msk [vmem:[%s1894] ss:$8 sm:$0x0] %vm1838, %v1892
  %v1899 = vrot.slane %v1798, 7
  %v1900 = vsel %vm1832, %v1797, %v1899
  %s1902 = scalar_lea.vmem [#allocation3], 128
  %1903 = vst.msk [vmem:[%s1902] ss:$8 sm:$0x3] %vm1838, %v1900
  %1904 = vst.msk [vmem:[%s1902] ss:$8 sm:$0x0] %vm1838, %v1900
  %1905 = vst [vmem:[#allocation1] sm:$0xff] %v1797
  %1906 = vst [vmem:[#allocation1 + $0x9] sm:$0xff] %v1798
  %s1907 = scalar_lea.vmem [#allocation1], 1
  %v1908 = vld [vmem:[%s1907] ss:$9 sm:$0xff]
  %s1910 = scalar_lea.vmem [#allocation3], 144
  %1911 = vst.msk [vmem:[%s1910] ss:$8 sm:$0x3] %vm1838, %v1908
  %1912 = vst.msk [vmem:[%s1910] ss:$8 sm:$0x0] %vm1838, %v1908
  %1913 = vst [vmem:[#allocation1] sm:$0xff] %v1797
  %1914 = vst [vmem:[#allocation1 + $0x9] sm:$0xff] %v1798
  %s1915 = scalar_lea.vmem [#allocation1], 2
  %v1916 = vld [vmem:[%s1915] ss:$9 sm:$0xff]
  %s1918 = scalar_lea.vmem [#allocation3], 160
  %1919 = vst.msk [vmem:[%s1918] ss:$8 sm:$0x3] %vm1838, %v1916
  %1920 = vst.msk [vmem:[%s1918] ss:$8 sm:$0x0] %vm1838, %v1916
  %1921 = vst [vmem:[#allocation1] sm:$0xff] %v1797
  %1922 = vst [vmem:[#allocation1 + $0x9] sm:$0xff] %v1798
  %s1923 = scalar_lea.vmem [#allocation1], 3
  %v1924 = vld [vmem:[%s1923] ss:$9 sm:$0xff]
  %s1926 = scalar_lea.vmem [#allocation3], 176
  %1927 = vst.msk [vmem:[%s1926] ss:$8 sm:$0x3] %vm1838, %v1924
  %1928 = vst.msk [vmem:[%s1926] ss:$8 sm:$0x0] %vm1838, %v1924
  %1929 = vst [vmem:[#allocation1] sm:$0xff] %v1797
  %1930 = vst [vmem:[#allocation1 + $0x9] sm:$0xff] %v1798
  %s1931 = scalar_lea.vmem [#allocation1], 4
  %v1932 = vld [vmem:[%s1931] ss:$9 sm:$0xff]
  %s1934 = scalar_lea.vmem [#allocation3], 192
  %1935 = vst.msk [vmem:[%s1934] ss:$8 sm:$0x3] %vm1838, %v1932
  %1936 = vst.msk [vmem:[%s1934] ss:$8 sm:$0x0] %vm1838, %v1932
  %1937 = vst [vmem:[#allocation1] sm:$0xff] %v1797
  %1938 = vst [vmem:[#allocation1 + $0x9] sm:$0xff] %v1798
  %s1939 = scalar_lea.vmem [#allocation1], 5
  %v1940 = vld [vmem:[%s1939] ss:$9 sm:$0xff]
  %s1942 = scalar_lea.vmem [#allocation3], 208
  %1943 = vst.msk [vmem:[%s1942] ss:$8 sm:$0x3] %vm1838, %v1940
  %1944 = vst.msk [vmem:[%s1942] ss:$8 sm:$0x0] %vm1838, %v1940
  %1945 = vst [vmem:[#allocation1] sm:$0xff] %v1797
  %1946 = vst [vmem:[#allocation1 + $0x9] sm:$0xff] %v1798
  %s1947 = scalar_lea.vmem [#allocation1], 6
  %v1948 = vld [vmem:[%s1947] ss:$9 sm:$0xff]
  %s1950 = scalar_lea.vmem [#allocation3], 224
  %1951 = vst.msk [vmem:[%s1950] ss:$8 sm:$0x3] %vm1838, %v1948
  %1952 = vst.msk [vmem:[%s1950] ss:$8 sm:$0x0] %vm1838, %v1948
  %1953 = vst [vmem:[#allocation1] sm:$0xff] %v1797
  %1954 = vst [vmem:[#allocation1 + $0x9] sm:$0xff] %v1798
  %s1955 = scalar_lea.vmem [#allocation1], 7
  %v1956 = vld [vmem:[%s1955] ss:$9 sm:$0xff]
  %s1958 = scalar_lea.vmem [#allocation3], 240
  %1959 = vst.msk [vmem:[%s1958] ss:$8 sm:$0x3] %vm1838, %v1956
  %1960 = vst.msk [vmem:[%s1958] ss:$8 sm:$0x0] %vm1838, %v1956
  %v1963 = vrot.slane %v1768, 7
  %v1964 = vsel %vm1832, %v1767, %v1963
  %s1966 = scalar_lea.vmem [#allocation3], 1
  %1967 = vst.msk [vmem:[%s1966] ss:$8 sm:$0x3] %vm1838, %v1964
  %1968 = vst.msk [vmem:[%s1966] ss:$8 sm:$0x0] %vm1838, %v1964
  %1969 = vst [vmem:[#allocation1] sm:$0xff] %v1767
  %1970 = vst [vmem:[#allocation1 + $0x9] sm:$0xff] %v1768
  %s1971 = scalar_lea.vmem [#allocation1], 1
  %v1972 = vld [vmem:[%s1971] ss:$9 sm:$0xff]
  %s1974 = scalar_lea.vmem [#allocation3], 17
  %1975 = vst.msk [vmem:[%s1974] ss:$8 sm:$0x3] %vm1838, %v1972
  %1976 = vst.msk [vmem:[%s1974] ss:$8 sm:$0x0] %vm1838, %v1972
  %1977 = vst [vmem:[#allocation1] sm:$0xff] %v1767
  %1978 = vst [vmem:[#allocation1 + $0x9] sm:$0xff] %v1768
  %s1979 = scalar_lea.vmem [#allocation1], 2
  %v1980 = vld [vmem:[%s1979] ss:$9 sm:$0xff]
  %s1982 = scalar_lea.vmem [#allocation3], 33
  %1983 = vst.msk [vmem:[%s1982] ss:$8 sm:$0x3] %vm1838, %v1980
  %1984 = vst.msk [vmem:[%s1982] ss:$8 sm:$0x0] %vm1838, %v1980
  %1985 = vst [vmem:[#allocation1] sm:$0xff] %v1767
  %1986 = vst [vmem:[#allocation1 + $0x9] sm:$0xff] %v1768
  %s1987 = scalar_lea.vmem [#allocation1], 3
  %v1988 = vld [vmem:[%s1987] ss:$9 sm:$0xff]
  %s1990 = scalar_lea.vmem [#allocation3], 49
  %1991 = vst.msk [vmem:[%s1990] ss:$8 sm:$0x3] %vm1838, %v1988
  %1992 = vst.msk [vmem:[%s1990] ss:$8 sm:$0x0] %vm1838, %v1988
  %1993 = vst [vmem:[#allocation1] sm:$0xff] %v1767
  %1994 = vst [vmem:[#allocation1 + $0x9] sm:$0xff] %v1768
  %s1995 = scalar_lea.vmem [#allocation1], 4
  %v1996 = vld [vmem:[%s1995] ss:$9 sm:$0xff]
  %s1998 = scalar_lea.vmem [#allocation3], 65
  %1999 = vst.msk [vmem:[%s1998] ss:$8 sm:$0x3] %vm1838, %v1996
  %2000 = vst.msk [vmem:[%s1998] ss:$8 sm:$0x0] %vm1838, %v1996
  %2001 = vst [vmem:[#allocation1] sm:$0xff] %v1767
  %2002 = vst [vmem:[#allocation1 + $0x9] sm:$0xff] %v1768
  %s2003 = scalar_lea.vmem [#allocation1], 5
  %v2004 = vld [vmem:[%s2003] ss:$9 sm:$0xff]
  %s2006 = scalar_lea.vmem [#allocation3], 81
  %2007 = vst.msk [vmem:[%s2006] ss:$8 sm:$0x3] %vm1838, %v2004
  %2008 = vst.msk [vmem:[%s2006] ss:$8 sm:$0x0] %vm1838, %v2004
  %2009 = vst [vmem:[#allocation1] sm:$0xff] %v1767
  %2010 = vst [vmem:[#allocation1 + $0x9] sm:$0xff] %v1768
  %s2011 = scalar_lea.vmem [#allocation1], 6
  %v2012 = vld [vmem:[%s2011] ss:$9 sm:$0xff]
  %s2014 = scalar_lea.vmem [#allocation3], 97
  %2015 = vst.msk [vmem:[%s2014] ss:$8 sm:$0x3] %vm1838, %v2012
  %2016 = vst.msk [vmem:[%s2014] ss:$8 sm:$0x0] %vm1838, %v2012
  %2017 = vst [vmem:[#allocation1] sm:$0xff] %v1767
  %2018 = vst [vmem:[#allocation1 + $0x9] sm:$0xff] %v1768
  %s2019 = scalar_lea.vmem [#allocation1], 7
  %v2020 = vld [vmem:[%s2019] ss:$9 sm:$0xff]
  %s2022 = scalar_lea.vmem [#allocation3], 113
  %2023 = vst.msk [vmem:[%s2022] ss:$8 sm:$0x3] %vm1838, %v2020
  %2024 = vst.msk [vmem:[%s2022] ss:$8 sm:$0x0] %vm1838, %v2020
  %v2027 = vrot.slane %v1800, 7
  %v2028 = vsel %vm1832, %v1799, %v2027
  %s2030 = scalar_lea.vmem [#allocation3], 129
  %2031 = vst.msk [vmem:[%s2030] ss:$8 sm:$0x3] %vm1838, %v2028
  %2032 = vst.msk [vmem:[%s2030] ss:$8 sm:$0x0] %vm1838, %v2028
  %2033 = vst [vmem:[#allocation1] sm:$0xff] %v1799
  %2034 = vst [vmem:[#allocation1 + $0x9] sm:$0xff] %v1800
  %s2035 = scalar_lea.vmem [#allocation1], 1
  %v2036 = vld [vmem:[%s2035] ss:$9 sm:$0xff]
  %s2038 = scalar_lea.vmem [#allocation3], 145
  %2039 = vst.msk [vmem:[%s2038] ss:$8 sm:$0x3] %vm1838, %v2036
  %2040 = vst.msk [vmem:[%s2038] ss:$8 sm:$0x0] %vm1838, %v2036
  %2041 = vst [vmem:[#allocation1] sm:$0xff] %v1799
  %2042 = vst [vmem:[#allocation1 + $0x9] sm:$0xff] %v1800
  %s2043 = scalar_lea.vmem [#allocation1], 2
  %v2044 = vld [vmem:[%s2043] ss:$9 sm:$0xff]
  %s2046 = scalar_lea.vmem [#allocation3], 161
  %2047 = vst.msk [vmem:[%s2046] ss:$8 sm:$0x3] %vm1838, %v2044
  %2048 = vst.msk [vmem:[%s2046] ss:$8 sm:$0x0] %vm1838, %v2044
  %2049 = vst [vmem:[#allocation1] sm:$0xff] %v1799
  %2050 = vst [vmem:[#allocation1 + $0x9] sm:$0xff] %v1800
  %s2051 = scalar_lea.vmem [#allocation1], 3
  %v2052 = vld [vmem:[%s2051] ss:$9 sm:$0xff]
  %s2054 = scalar_lea.vmem [#allocation3], 177
  %2055 = vst.msk [vmem:[%s2054] ss:$8 sm:$0x3] %vm1838, %v2052
  %2056 = vst.msk [vmem:[%s2054] ss:$8 sm:$0x0] %vm1838, %v2052
  %2057 = vst [vmem:[#allocation1] sm:$0xff] %v1799
  %2058 = vst [vmem:[#allocation1 + $0x9] sm:$0xff] %v1800
  %s2059 = scalar_lea.vmem [#allocation1], 4
  %v2060 = vld [vmem:[%s2059] ss:$9 sm:$0xff]
  %s2062 = scalar_lea.vmem [#allocation3], 193
  %2063 = vst.msk [vmem:[%s2062] ss:$8 sm:$0x3] %vm1838, %v2060
  %2064 = vst.msk [vmem:[%s2062] ss:$8 sm:$0x0] %vm1838, %v2060
  %2065 = vst [vmem:[#allocation1] sm:$0xff] %v1799
  %2066 = vst [vmem:[#allocation1 + $0x9] sm:$0xff] %v1800
  %s2067 = scalar_lea.vmem [#allocation1], 5
  %v2068 = vld [vmem:[%s2067] ss:$9 sm:$0xff]
  %s2070 = scalar_lea.vmem [#allocation3], 209
  %2071 = vst.msk [vmem:[%s2070] ss:$8 sm:$0x3] %vm1838, %v2068
  %2072 = vst.msk [vmem:[%s2070] ss:$8 sm:$0x0] %vm1838, %v2068
  %2073 = vst [vmem:[#allocation1] sm:$0xff] %v1799
  %2074 = vst [vmem:[#allocation1 + $0x9] sm:$0xff] %v1800
  %s2075 = scalar_lea.vmem [#allocation1], 6
  %v2076 = vld [vmem:[%s2075] ss:$9 sm:$0xff]
  %s2078 = scalar_lea.vmem [#allocation3], 225
  %2079 = vst.msk [vmem:[%s2078] ss:$8 sm:$0x3] %vm1838, %v2076
  %2080 = vst.msk [vmem:[%s2078] ss:$8 sm:$0x0] %vm1838, %v2076
  %2081 = vst [vmem:[#allocation1] sm:$0xff] %v1799
  %2082 = vst [vmem:[#allocation1 + $0x9] sm:$0xff] %v1800
  %s2083 = scalar_lea.vmem [#allocation1], 7
  %v2084 = vld [vmem:[%s2083] ss:$9 sm:$0xff]
  %s2086 = scalar_lea.vmem [#allocation3], 241
  %2087 = vst.msk [vmem:[%s2086] ss:$8 sm:$0x3] %vm1838, %v2084
  %2088 = vst.msk [vmem:[%s2086] ss:$8 sm:$0x0] %vm1838, %v2084
  %v2091 = vrot.slane %v1770, 7
  %v2092 = vsel %vm1832, %v1769, %v2091
  %s2094 = scalar_lea.vmem [#allocation3], 2
  %2095 = vst.msk [vmem:[%s2094] ss:$8 sm:$0x3] %vm1838, %v2092
  %2096 = vst.msk [vmem:[%s2094] ss:$8 sm:$0x0] %vm1838, %v2092
  %2097 = vst [vmem:[#allocation1] sm:$0xff] %v1769
  %2098 = vst [vmem:[#allocation1 + $0x9] sm:$0xff] %v1770
  %s2099 = scalar_lea.vmem [#allocation1], 1
  %v2100 = vld [vmem:[%s2099] ss:$9 sm:$0xff]
  %s2102 = scalar_lea.vmem [#allocation3], 18
  %2103 = vst.msk [vmem:[%s2102] ss:$8 sm:$0x3] %vm1838, %v2100
  %2104 = vst.msk [vmem:[%s2102] ss:$8 sm:$0x0] %vm1838, %v2100
  %2105 = vst [vmem:[#allocation1] sm:$0xff] %v1769
  %2106 = vst [vmem:[#allocation1 + $0x9] sm:$0xff] %v1770
  %s2107 = scalar_lea.vmem [#allocation1], 2
  %v2108 = vld [vmem:[%s2107] ss:$9 sm:$0xff]
  %s2110 = scalar_lea.vmem [#allocation3], 34
  %2111 = vst.msk [vmem:[%s2110] ss:$8 sm:$0x3] %vm1838, %v2108
  %2112 = vst.msk [vmem:[%s2110] ss:$8 sm:$0x0] %vm1838, %v2108
  %2113 = vst [vmem:[#allocation1] sm:$0xff] %v1769
  %2114 = vst [vmem:[#allocation1 + $0x9] sm:$0xff] %v1770
  %s2115 = scalar_lea.vmem [#allocation1], 3
  %v2116 = vld [vmem:[%s2115] ss:$9 sm:$0xff]
  %s2118 = scalar_lea.vmem [#allocation3], 50
  %2119 = vst.msk [vmem:[%s2118] ss:$8 sm:$0x3] %vm1838, %v2116
  %2120 = vst.msk [vmem:[%s2118] ss:$8 sm:$0x0] %vm1838, %v2116
  %2121 = vst [vmem:[#allocation1] sm:$0xff] %v1769
  %2122 = vst [vmem:[#allocation1 + $0x9] sm:$0xff] %v1770
  %s2123 = scalar_lea.vmem [#allocation1], 4
  %v2124 = vld [vmem:[%s2123] ss:$9 sm:$0xff]
  %s2126 = scalar_lea.vmem [#allocation3], 66
  %2127 = vst.msk [vmem:[%s2126] ss:$8 sm:$0x3] %vm1838, %v2124
  %2128 = vst.msk [vmem:[%s2126] ss:$8 sm:$0x0] %vm1838, %v2124
  %2129 = vst [vmem:[#allocation1] sm:$0xff] %v1769
  %2130 = vst [vmem:[#allocation1 + $0x9] sm:$0xff] %v1770
  %s2131 = scalar_lea.vmem [#allocation1], 5
  %v2132 = vld [vmem:[%s2131] ss:$9 sm:$0xff]
  %s2134 = scalar_lea.vmem [#allocation3], 82
  %2135 = vst.msk [vmem:[%s2134] ss:$8 sm:$0x3] %vm1838, %v2132
  %2136 = vst.msk [vmem:[%s2134] ss:$8 sm:$0x0] %vm1838, %v2132
  %2137 = vst [vmem:[#allocation1] sm:$0xff] %v1769
  %2138 = vst [vmem:[#allocation1 + $0x9] sm:$0xff] %v1770
  %s2139 = scalar_lea.vmem [#allocation1], 6
  %v2140 = vld [vmem:[%s2139] ss:$9 sm:$0xff]
  %s2142 = scalar_lea.vmem [#allocation3], 98
  %2143 = vst.msk [vmem:[%s2142] ss:$8 sm:$0x3] %vm1838, %v2140
  %2144 = vst.msk [vmem:[%s2142] ss:$8 sm:$0x0] %vm1838, %v2140
  %2145 = vst [vmem:[#allocation1] sm:$0xff] %v1769
  %2146 = vst [vmem:[#allocation1 + $0x9] sm:$0xff] %v1770
  %s2147 = scalar_lea.vmem [#allocation1], 7
  %v2148 = vld [vmem:[%s2147] ss:$9 sm:$0xff]
  %s2150 = scalar_lea.vmem [#allocation3], 114
  %2151 = vst.msk [vmem:[%s2150] ss:$8 sm:$0x3] %vm1838, %v2148
  %2152 = vst.msk [vmem:[%s2150] ss:$8 sm:$0x0] %vm1838, %v2148
  %v2155 = vrot.slane %v1802, 7
  %v2156 = vsel %vm1832, %v1801, %v2155
  %s2158 = scalar_lea.vmem [#allocation3], 130
  %2159 = vst.msk [vmem:[%s2158] ss:$8 sm:$0x3] %vm1838, %v2156
  %2160 = vst.msk [vmem:[%s2158] ss:$8 sm:$0x0] %vm1838, %v2156
  %2161 = vst [vmem:[#allocation1] sm:$0xff] %v1801
  %2162 = vst [vmem:[#allocation1 + $0x9] sm:$0xff] %v1802
  %s2163 = scalar_lea.vmem [#allocation1], 1
  %v2164 = vld [vmem:[%s2163] ss:$9 sm:$0xff]
  %s2166 = scalar_lea.vmem [#allocation3], 146
  %2167 = vst.msk [vmem:[%s2166] ss:$8 sm:$0x3] %vm1838, %v2164
  %2168 = vst.msk [vmem:[%s2166] ss:$8 sm:$0x0] %vm1838, %v2164
  %2169 = vst [vmem:[#allocation1] sm:$0xff] %v1801
  %2170 = vst [vmem:[#allocation1 + $0x9] sm:$0xff] %v1802
  %s2171 = scalar_lea.vmem [#allocation1], 2
  %v2172 = vld [vmem:[%s2171] ss:$9 sm:$0xff]
  %s2174 = scalar_lea.vmem [#allocation3], 162
  %2175 = vst.msk [vmem:[%s2174] ss:$8 sm:$0x3] %vm1838, %v2172
  %2176 = vst.msk [vmem:[%s2174] ss:$8 sm:$0x0] %vm1838, %v2172
  %2177 = vst [vmem:[#allocation1] sm:$0xff] %v1801
  %2178 = vst [vmem:[#allocation1 + $0x9] sm:$0xff] %v1802
  %s2179 = scalar_lea.vmem [#allocation1], 3
  %v2180 = vld [vmem:[%s2179] ss:$9 sm:$0xff]
  %s2182 = scalar_lea.vmem [#allocation3], 178
  %2183 = vst.msk [vmem:[%s2182] ss:$8 sm:$0x3] %vm1838, %v2180
  %2184 = vst.msk [vmem:[%s2182] ss:$8 sm:$0x0] %vm1838, %v2180
  %2185 = vst [vmem:[#allocation1] sm:$0xff] %v1801
  %2186 = vst [vmem:[#allocation1 + $0x9] sm:$0xff] %v1802
  %s2187 = scalar_lea.vmem [#allocation1], 4
  %v2188 = vld [vmem:[%s2187] ss:$9 sm:$0xff]
  %s2190 = scalar_lea.vmem [#allocation3], 194
  %2191 = vst.msk [vmem:[%s2190] ss:$8 sm:$0x3] %vm1838, %v2188
  %2192 = vst.msk [vmem:[%s2190] ss:$8 sm:$0x0] %vm1838, %v2188
  %2193 = vst [vmem:[#allocation1] sm:$0xff] %v1801
  %2194 = vst [vmem:[#allocation1 + $0x9] sm:$0xff] %v1802
  %s2195 = scalar_lea.vmem [#allocation1], 5
  %v2196 = vld [vmem:[%s2195] ss:$9 sm:$0xff]
  %s2198 = scalar_lea.vmem [#allocation3], 210
  %2199 = vst.msk [vmem:[%s2198] ss:$8 sm:$0x3] %vm1838, %v2196
  %2200 = vst.msk [vmem:[%s2198] ss:$8 sm:$0x0] %vm1838, %v2196
  %2201 = vst [vmem:[#allocation1] sm:$0xff] %v1801
  %2202 = vst [vmem:[#allocation1 + $0x9] sm:$0xff] %v1802
  %s2203 = scalar_lea.vmem [#allocation1], 6
  %v2204 = vld [vmem:[%s2203] ss:$9 sm:$0xff]
  %s2206 = scalar_lea.vmem [#allocation3], 226
  %2207 = vst.msk [vmem:[%s2206] ss:$8 sm:$0x3] %vm1838, %v2204
  %2208 = vst.msk [vmem:[%s2206] ss:$8 sm:$0x0] %vm1838, %v2204
  %2209 = vst [vmem:[#allocation1] sm:$0xff] %v1801
  %2210 = vst [vmem:[#allocation1 + $0x9] sm:$0xff] %v1802
  %s2211 = scalar_lea.vmem [#allocation1], 7
  %v2212 = vld [vmem:[%s2211] ss:$9 sm:$0xff]
  %s2214 = scalar_lea.vmem [#allocation3], 242
  %2215 = vst.msk [vmem:[%s2214] ss:$8 sm:$0x3] %vm1838, %v2212
  %2216 = vst.msk [vmem:[%s2214] ss:$8 sm:$0x0] %vm1838, %v2212
  %v2219 = vrot.slane %v1772, 7
  %v2220 = vsel %vm1832, %v1771, %v2219
  %s2222 = scalar_lea.vmem [#allocation3], 3
  %2223 = vst.msk [vmem:[%s2222] ss:$8 sm:$0x3] %vm1838, %v2220
  %2224 = vst.msk [vmem:[%s2222] ss:$8 sm:$0x0] %vm1838, %v2220
  %2225 = vst [vmem:[#allocation1] sm:$0xff] %v1771
  %2226 = vst [vmem:[#allocation1 + $0x9] sm:$0xff] %v1772
  %s2227 = scalar_lea.vmem [#allocation1], 1
  %v2228 = vld [vmem:[%s2227] ss:$9 sm:$0xff]
  %s2230 = scalar_lea.vmem [#allocation3], 19
  %2231 = vst.msk [vmem:[%s2230] ss:$8 sm:$0x3] %vm1838, %v2228
  %2232 = vst.msk [vmem:[%s2230] ss:$8 sm:$0x0] %vm1838, %v2228
  %2233 = vst [vmem:[#allocation1] sm:$0xff] %v1771
  %2234 = vst [vmem:[#allocation1 + $0x9] sm:$0xff] %v1772
  %s2235 = scalar_lea.vmem [#allocation1], 2
  %v2236 = vld [vmem:[%s2235] ss:$9 sm:$0xff]
  %s2238 = scalar_lea.vmem [#allocation3], 35
  %2239 = vst.msk [vmem:[%s2238] ss:$8 sm:$0x3] %vm1838, %v2236
  %2240 = vst.msk [vmem:[%s2238] ss:$8 sm:$0x0] %vm1838, %v2236
  %2241 = vst [vmem:[#allocation1] sm:$0xff] %v1771
  %2242 = vst [vmem:[#allocation1 + $0x9] sm:$0xff] %v1772
  %s2243 = scalar_lea.vmem [#allocation1], 3
  %v2244 = vld [vmem:[%s2243] ss:$9 sm:$0xff]
  %s2246 = scalar_lea.vmem [#allocation3], 51
  %2247 = vst.msk [vmem:[%s2246] ss:$8 sm:$0x3] %vm1838, %v2244
  %2248 = vst.msk [vmem:[%s2246] ss:$8 sm:$0x0] %vm1838, %v2244
  %2249 = vst [vmem:[#allocation1] sm:$0xff] %v1771
  %2250 = vst [vmem:[#allocation1 + $0x9] sm:$0xff] %v1772
  %s2251 = scalar_lea.vmem [#allocation1], 4
  %v2252 = vld [vmem:[%s2251] ss:$9 sm:$0xff]
  %s2254 = scalar_lea.vmem [#allocation3], 67
  %2255 = vst.msk [vmem:[%s2254] ss:$8 sm:$0x3] %vm1838, %v2252
  %2256 = vst.msk [vmem:[%s2254] ss:$8 sm:$0x0] %vm1838, %v2252
  %2257 = vst [vmem:[#allocation1] sm:$0xff] %v1771
  %2258 = vst [vmem:[#allocation1 + $0x9] sm:$0xff] %v1772
  %s2259 = scalar_lea.vmem [#allocation1], 5
  %v2260 = vld [vmem:[%s2259] ss:$9 sm:$0xff]
  %s2262 = scalar_lea.vmem [#allocation3], 83
  %2263 = vst.msk [vmem:[%s2262] ss:$8 sm:$0x3] %vm1838, %v2260
  %2264 = vst.msk [vmem:[%s2262] ss:$8 sm:$0x0] %vm1838, %v2260
  %2265 = vst [vmem:[#allocation1] sm:$0xff] %v1771
  %2266 = vst [vmem:[#allocation1 + $0x9] sm:$0xff] %v1772
  %s2267 = scalar_lea.vmem [#allocation1], 6
  %v2268 = vld [vmem:[%s2267] ss:$9 sm:$0xff]
  %s2270 = scalar_lea.vmem [#allocation3], 99
  %2271 = vst.msk [vmem:[%s2270] ss:$8 sm:$0x3] %vm1838, %v2268
  %2272 = vst.msk [vmem:[%s2270] ss:$8 sm:$0x0] %vm1838, %v2268
  %2273 = vst [vmem:[#allocation1] sm:$0xff] %v1771
  %2274 = vst [vmem:[#allocation1 + $0x9] sm:$0xff] %v1772
  %s2275 = scalar_lea.vmem [#allocation1], 7
  %v2276 = vld [vmem:[%s2275] ss:$9 sm:$0xff]
  %s2278 = scalar_lea.vmem [#allocation3], 115
  %2279 = vst.msk [vmem:[%s2278] ss:$8 sm:$0x3] %vm1838, %v2276
  %2280 = vst.msk [vmem:[%s2278] ss:$8 sm:$0x0] %vm1838, %v2276
  %v2283 = vrot.slane %v1804, 7
  %v2284 = vsel %vm1832, %v1803, %v2283
  %s2286 = scalar_lea.vmem [#allocation3], 131
  %2287 = vst.msk [vmem:[%s2286] ss:$8 sm:$0x3] %vm1838, %v2284
  %2288 = vst.msk [vmem:[%s2286] ss:$8 sm:$0x0] %vm1838, %v2284
  %2289 = vst [vmem:[#allocation1] sm:$0xff] %v1803
  %2290 = vst [vmem:[#allocation1 + $0x9] sm:$0xff] %v1804
  %s2291 = scalar_lea.vmem [#allocation1], 1
  %v2292 = vld [vmem:[%s2291] ss:$9 sm:$0xff]
  %s2294 = scalar_lea.vmem [#allocation3], 147
  %2295 = vst.msk [vmem:[%s2294] ss:$8 sm:$0x3] %vm1838, %v2292
  %2296 = vst.msk [vmem:[%s2294] ss:$8 sm:$0x0] %vm1838, %v2292
  %2297 = vst [vmem:[#allocation1] sm:$0xff] %v1803
  %2298 = vst [vmem:[#allocation1 + $0x9] sm:$0xff] %v1804
  %s2299 = scalar_lea.vmem [#allocation1], 2
  %v2300 = vld [vmem:[%s2299] ss:$9 sm:$0xff]
  %s2302 = scalar_lea.vmem [#allocation3], 163
  %2303 = vst.msk [vmem:[%s2302] ss:$8 sm:$0x3] %vm1838, %v2300
  %2304 = vst.msk [vmem:[%s2302] ss:$8 sm:$0x0] %vm1838, %v2300
  %2305 = vst [vmem:[#allocation1] sm:$0xff] %v1803
  %2306 = vst [vmem:[#allocation1 + $0x9] sm:$0xff] %v1804
  %s2307 = scalar_lea.vmem [#allocation1], 3
  %v2308 = vld [vmem:[%s2307] ss:$9 sm:$0xff]
  %s2310 = scalar_lea.vmem [#allocation3], 179
  %2311 = vst.msk [vmem:[%s2310] ss:$8 sm:$0x3] %vm1838, %v2308
  %2312 = vst.msk [vmem:[%s2310] ss:$8 sm:$0x0] %vm1838, %v2308
  %2313 = vst [vmem:[#allocation1] sm:$0xff] %v1803
  %2314 = vst [vmem:[#allocation1 + $0x9] sm:$0xff] %v1804
  %s2315 = scalar_lea.vmem [#allocation1], 4
  %v2316 = vld [vmem:[%s2315] ss:$9 sm:$0xff]
  %s2318 = scalar_lea.vmem [#allocation3], 195
  %2319 = vst.msk [vmem:[%s2318] ss:$8 sm:$0x3] %vm1838, %v2316
  %2320 = vst.msk [vmem:[%s2318] ss:$8 sm:$0x0] %vm1838, %v2316
  %2321 = vst [vmem:[#allocation1] sm:$0xff] %v1803
  %2322 = vst [vmem:[#allocation1 + $0x9] sm:$0xff] %v1804
  %s2323 = scalar_lea.vmem [#allocation1], 5
  %v2324 = vld [vmem:[%s2323] ss:$9 sm:$0xff]
  %s2326 = scalar_lea.vmem [#allocation3], 211
  %2327 = vst.msk [vmem:[%s2326] ss:$8 sm:$0x3] %vm1838, %v2324
  %2328 = vst.msk [vmem:[%s2326] ss:$8 sm:$0x0] %vm1838, %v2324
  %2329 = vst [vmem:[#allocation1] sm:$0xff] %v1803
  %2330 = vst [vmem:[#allocation1 + $0x9] sm:$0xff] %v1804
  %s2331 = scalar_lea.vmem [#allocation1], 6
  %v2332 = vld [vmem:[%s2331] ss:$9 sm:$0xff]
  %s2334 = scalar_lea.vmem [#allocation3], 227
  %2335 = vst.msk [vmem:[%s2334] ss:$8 sm:$0x3] %vm1838, %v2332
  %2336 = vst.msk [vmem:[%s2334] ss:$8 sm:$0x0] %vm1838, %v2332
  %2337 = vst [vmem:[#allocation1] sm:$0xff] %v1803
  %2338 = vst [vmem:[#allocation1 + $0x9] sm:$0xff] %v1804
  %s2339 = scalar_lea.vmem [#allocation1], 7
  %v2340 = vld [vmem:[%s2339] ss:$9 sm:$0xff]
  %s2342 = scalar_lea.vmem [#allocation3], 243
  %2343 = vst.msk [vmem:[%s2342] ss:$8 sm:$0x3] %vm1838, %v2340
  %2344 = vst.msk [vmem:[%s2342] ss:$8 sm:$0x0] %vm1838, %v2340
  %v2347 = vrot.slane %v1774, 7
  %v2348 = vsel %vm1832, %v1773, %v2347
  %s2350 = scalar_lea.vmem [#allocation3], 4
  %2351 = vst.msk [vmem:[%s2350] ss:$8 sm:$0x3] %vm1838, %v2348
  %2352 = vst.msk [vmem:[%s2350] ss:$8 sm:$0x0] %vm1838, %v2348
  %2353 = vst [vmem:[#allocation1] sm:$0xff] %v1773
  %2354 = vst [vmem:[#allocation1 + $0x9] sm:$0xff] %v1774
  %s2355 = scalar_lea.vmem [#allocation1], 1
  %v2356 = vld [vmem:[%s2355] ss:$9 sm:$0xff]
  %s2358 = scalar_lea.vmem [#allocation3], 20
  %2359 = vst.msk [vmem:[%s2358] ss:$8 sm:$0x3] %vm1838, %v2356
  %2360 = vst.msk [vmem:[%s2358] ss:$8 sm:$0x0] %vm1838, %v2356
  %2361 = vst [vmem:[#allocation1] sm:$0xff] %v1773
  %2362 = vst [vmem:[#allocation1 + $0x9] sm:$0xff] %v1774
  %s2363 = scalar_lea.vmem [#allocation1], 2
  %v2364 = vld [vmem:[%s2363] ss:$9 sm:$0xff]
  %s2366 = scalar_lea.vmem [#allocation3], 36
  %2367 = vst.msk [vmem:[%s2366] ss:$8 sm:$0x3] %vm1838, %v2364
  %2368 = vst.msk [vmem:[%s2366] ss:$8 sm:$0x0] %vm1838, %v2364
  %2369 = vst [vmem:[#allocation1] sm:$0xff] %v1773
  %2370 = vst [vmem:[#allocation1 + $0x9] sm:$0xff] %v1774
  %s2371 = scalar_lea.vmem [#allocation1], 3
  %v2372 = vld [vmem:[%s2371] ss:$9 sm:$0xff]
  %s2374 = scalar_lea.vmem [#allocation3], 52
  %2375 = vst.msk [vmem:[%s2374] ss:$8 sm:$0x3] %vm1838, %v2372
  %2376 = vst.msk [vmem:[%s2374] ss:$8 sm:$0x0] %vm1838, %v2372
  %2377 = vst [vmem:[#allocation1] sm:$0xff] %v1773
  %2378 = vst [vmem:[#allocation1 + $0x9] sm:$0xff] %v1774
  %s2379 = scalar_lea.vmem [#allocation1], 4
  %v2380 = vld [vmem:[%s2379] ss:$9 sm:$0xff]
  %s2382 = scalar_lea.vmem [#allocation3], 68
  %2383 = vst.msk [vmem:[%s2382] ss:$8 sm:$0x3] %vm1838, %v2380
  %2384 = vst.msk [vmem:[%s2382] ss:$8 sm:$0x0] %vm1838, %v2380
  %2385 = vst [vmem:[#allocation1] sm:$0xff] %v1773
  %2386 = vst [vmem:[#allocation1 + $0x9] sm:$0xff] %v1774
  %s2387 = scalar_lea.vmem [#allocation1], 5
  %v2388 = vld [vmem:[%s2387] ss:$9 sm:$0xff]
  %s2390 = scalar_lea.vmem [#allocation3], 84
  %2391 = vst.msk [vmem:[%s2390] ss:$8 sm:$0x3] %vm1838, %v2388
  %2392 = vst.msk [vmem:[%s2390] ss:$8 sm:$0x0] %vm1838, %v2388
  %2393 = vst [vmem:[#allocation1] sm:$0xff] %v1773
  %2394 = vst [vmem:[#allocation1 + $0x9] sm:$0xff] %v1774
  %s2395 = scalar_lea.vmem [#allocation1], 6
  %v2396 = vld [vmem:[%s2395] ss:$9 sm:$0xff]
  %s2398 = scalar_lea.vmem [#allocation3], 100
  %2399 = vst.msk [vmem:[%s2398] ss:$8 sm:$0x3] %vm1838, %v2396
  %2400 = vst.msk [vmem:[%s2398] ss:$8 sm:$0x0] %vm1838, %v2396
  %2401 = vst [vmem:[#allocation1] sm:$0xff] %v1773
  %2402 = vst [vmem:[#allocation1 + $0x9] sm:$0xff] %v1774
  %s2403 = scalar_lea.vmem [#allocation1], 7
  %v2404 = vld [vmem:[%s2403] ss:$9 sm:$0xff]
  %s2406 = scalar_lea.vmem [#allocation3], 116
  %2407 = vst.msk [vmem:[%s2406] ss:$8 sm:$0x3] %vm1838, %v2404
  %2408 = vst.msk [vmem:[%s2406] ss:$8 sm:$0x0] %vm1838, %v2404
  %v2411 = vrot.slane %v1806, 7
  %v2412 = vsel %vm1832, %v1805, %v2411
  %s2414 = scalar_lea.vmem [#allocation3], 132
  %2415 = vst.msk [vmem:[%s2414] ss:$8 sm:$0x3] %vm1838, %v2412
  %2416 = vst.msk [vmem:[%s2414] ss:$8 sm:$0x0] %vm1838, %v2412
  %2417 = vst [vmem:[#allocation1] sm:$0xff] %v1805
  %2418 = vst [vmem:[#allocation1 + $0x9] sm:$0xff] %v1806
  %s2419 = scalar_lea.vmem [#allocation1], 1
  %v2420 = vld [vmem:[%s2419] ss:$9 sm:$0xff]
  %s2422 = scalar_lea.vmem [#allocation3], 148
  %2423 = vst.msk [vmem:[%s2422] ss:$8 sm:$0x3] %vm1838, %v2420
  %2424 = vst.msk [vmem:[%s2422] ss:$8 sm:$0x0] %vm1838, %v2420
  %2425 = vst [vmem:[#allocation1] sm:$0xff] %v1805
  %2426 = vst [vmem:[#allocation1 + $0x9] sm:$0xff] %v1806
  %s2427 = scalar_lea.vmem [#allocation1], 2
  %v2428 = vld [vmem:[%s2427] ss:$9 sm:$0xff]
  %s2430 = scalar_lea.vmem [#allocation3], 164
  %2431 = vst.msk [vmem:[%s2430] ss:$8 sm:$0x3] %vm1838, %v2428
  %2432 = vst.msk [vmem:[%s2430] ss:$8 sm:$0x0] %vm1838, %v2428
  %2433 = vst [vmem:[#allocation1] sm:$0xff] %v1805
  %2434 = vst [vmem:[#allocation1 + $0x9] sm:$0xff] %v1806
  %s2435 = scalar_lea.vmem [#allocation1], 3
  %v2436 = vld [vmem:[%s2435] ss:$9 sm:$0xff]
  %s2438 = scalar_lea.vmem [#allocation3], 180
  %2439 = vst.msk [vmem:[%s2438] ss:$8 sm:$0x3] %vm1838, %v2436
  %2440 = vst.msk [vmem:[%s2438] ss:$8 sm:$0x0] %vm1838, %v2436
  %2441 = vst [vmem:[#allocation1] sm:$0xff] %v1805
  %2442 = vst [vmem:[#allocation1 + $0x9] sm:$0xff] %v1806
  %s2443 = scalar_lea.vmem [#allocation1], 4
  %v2444 = vld [vmem:[%s2443] ss:$9 sm:$0xff]
  %s2446 = scalar_lea.vmem [#allocation3], 196
  %2447 = vst.msk [vmem:[%s2446] ss:$8 sm:$0x3] %vm1838, %v2444
  %2448 = vst.msk [vmem:[%s2446] ss:$8 sm:$0x0] %vm1838, %v2444
  %2449 = vst [vmem:[#allocation1] sm:$0xff] %v1805
  %2450 = vst [vmem:[#allocation1 + $0x9] sm:$0xff] %v1806
  %s2451 = scalar_lea.vmem [#allocation1], 5
  %v2452 = vld [vmem:[%s2451] ss:$9 sm:$0xff]
  %s2454 = scalar_lea.vmem [#allocation3], 212
  %2455 = vst.msk [vmem:[%s2454] ss:$8 sm:$0x3] %vm1838, %v2452
  %2456 = vst.msk [vmem:[%s2454] ss:$8 sm:$0x0] %vm1838, %v2452
  %2457 = vst [vmem:[#allocation1] sm:$0xff] %v1805
  %2458 = vst [vmem:[#allocation1 + $0x9] sm:$0xff] %v1806
  %s2459 = scalar_lea.vmem [#allocation1], 6
  %v2460 = vld [vmem:[%s2459] ss:$9 sm:$0xff]
  %s2462 = scalar_lea.vmem [#allocation3], 228
  %2463 = vst.msk [vmem:[%s2462] ss:$8 sm:$0x3] %vm1838, %v2460
  %2464 = vst.msk [vmem:[%s2462] ss:$8 sm:$0x0] %vm1838, %v2460
  %2465 = vst [vmem:[#allocation1] sm:$0xff] %v1805
  %2466 = vst [vmem:[#allocation1 + $0x9] sm:$0xff] %v1806
  %s2467 = scalar_lea.vmem [#allocation1], 7
  %v2468 = vld [vmem:[%s2467] ss:$9 sm:$0xff]
  %s2470 = scalar_lea.vmem [#allocation3], 244
  %2471 = vst.msk [vmem:[%s2470] ss:$8 sm:$0x3] %vm1838, %v2468
  %2472 = vst.msk [vmem:[%s2470] ss:$8 sm:$0x0] %vm1838, %v2468
  %v2475 = vrot.slane %v1776, 7
  %v2476 = vsel %vm1832, %v1775, %v2475
  %s2478 = scalar_lea.vmem [#allocation3], 5
  %2479 = vst.msk [vmem:[%s2478] ss:$8 sm:$0x3] %vm1838, %v2476
  %2480 = vst.msk [vmem:[%s2478] ss:$8 sm:$0x0] %vm1838, %v2476
  %2481 = vst [vmem:[#allocation1] sm:$0xff] %v1775
  %2482 = vst [vmem:[#allocation1 + $0x9] sm:$0xff] %v1776
  %s2483 = scalar_lea.vmem [#allocation1], 1
  %v2484 = vld [vmem:[%s2483] ss:$9 sm:$0xff]
  %s2486 = scalar_lea.vmem [#allocation3], 21
  %2487 = vst.msk [vmem:[%s2486] ss:$8 sm:$0x3] %vm1838, %v2484
  %2488 = vst.msk [vmem:[%s2486] ss:$8 sm:$0x0] %vm1838, %v2484
  %2489 = vst [vmem:[#allocation1] sm:$0xff] %v1775
  %2490 = vst [vmem:[#allocation1 + $0x9] sm:$0xff] %v1776
  %s2491 = scalar_lea.vmem [#allocation1], 2
  %v2492 = vld [vmem:[%s2491] ss:$9 sm:$0xff]
  %s2494 = scalar_lea.vmem [#allocation3], 37
  %2495 = vst.msk [vmem:[%s2494] ss:$8 sm:$0x3] %vm1838, %v2492
  %2496 = vst.msk [vmem:[%s2494] ss:$8 sm:$0x0] %vm1838, %v2492
  %2497 = vst [vmem:[#allocation1] sm:$0xff] %v1775
  %2498 = vst [vmem:[#allocation1 + $0x9] sm:$0xff] %v1776
  %s2499 = scalar_lea.vmem [#allocation1], 3
  %v2500 = vld [vmem:[%s2499] ss:$9 sm:$0xff]
  %s2502 = scalar_lea.vmem [#allocation3], 53
  %2503 = vst.msk [vmem:[%s2502] ss:$8 sm:$0x3] %vm1838, %v2500
  %2504 = vst.msk [vmem:[%s2502] ss:$8 sm:$0x0] %vm1838, %v2500
  %2505 = vst [vmem:[#allocation1] sm:$0xff] %v1775
  %2506 = vst [vmem:[#allocation1 + $0x9] sm:$0xff] %v1776
  %s2507 = scalar_lea.vmem [#allocation1], 4
  %v2508 = vld [vmem:[%s2507] ss:$9 sm:$0xff]
  %s2510 = scalar_lea.vmem [#allocation3], 69
  %2511 = vst.msk [vmem:[%s2510] ss:$8 sm:$0x3] %vm1838, %v2508
  %2512 = vst.msk [vmem:[%s2510] ss:$8 sm:$0x0] %vm1838, %v2508
  %2513 = vst [vmem:[#allocation1] sm:$0xff] %v1775
  %2514 = vst [vmem:[#allocation1 + $0x9] sm:$0xff] %v1776
  %s2515 = scalar_lea.vmem [#allocation1], 5
  %v2516 = vld [vmem:[%s2515] ss:$9 sm:$0xff]
  %s2518 = scalar_lea.vmem [#allocation3], 85
  %2519 = vst.msk [vmem:[%s2518] ss:$8 sm:$0x3] %vm1838, %v2516
  %2520 = vst.msk [vmem:[%s2518] ss:$8 sm:$0x0] %vm1838, %v2516
  %2521 = vst [vmem:[#allocation1] sm:$0xff] %v1775
  %2522 = vst [vmem:[#allocation1 + $0x9] sm:$0xff] %v1776
  %s2523 = scalar_lea.vmem [#allocation1], 6
  %v2524 = vld [vmem:[%s2523] ss:$9 sm:$0xff]
  %s2526 = scalar_lea.vmem [#allocation3], 101
  %2527 = vst.msk [vmem:[%s2526] ss:$8 sm:$0x3] %vm1838, %v2524
  %2528 = vst.msk [vmem:[%s2526] ss:$8 sm:$0x0] %vm1838, %v2524
  %2529 = vst [vmem:[#allocation1] sm:$0xff] %v1775
  %2530 = vst [vmem:[#allocation1 + $0x9] sm:$0xff] %v1776
  %s2531 = scalar_lea.vmem [#allocation1], 7
  %v2532 = vld [vmem:[%s2531] ss:$9 sm:$0xff]
  %s2534 = scalar_lea.vmem [#allocation3], 117
  %2535 = vst.msk [vmem:[%s2534] ss:$8 sm:$0x3] %vm1838, %v2532
  %2536 = vst.msk [vmem:[%s2534] ss:$8 sm:$0x0] %vm1838, %v2532
  %v2539 = vrot.slane %v1808, 7
  %v2540 = vsel %vm1832, %v1807, %v2539
  %s2542 = scalar_lea.vmem [#allocation3], 133
  %2543 = vst.msk [vmem:[%s2542] ss:$8 sm:$0x3] %vm1838, %v2540
  %2544 = vst.msk [vmem:[%s2542] ss:$8 sm:$0x0] %vm1838, %v2540
  %2545 = vst [vmem:[#allocation1] sm:$0xff] %v1807
  %2546 = vst [vmem:[#allocation1 + $0x9] sm:$0xff] %v1808
  %s2547 = scalar_lea.vmem [#allocation1], 1
  %v2548 = vld [vmem:[%s2547] ss:$9 sm:$0xff]
  %s2550 = scalar_lea.vmem [#allocation3], 149
  %2551 = vst.msk [vmem:[%s2550] ss:$8 sm:$0x3] %vm1838, %v2548
  %2552 = vst.msk [vmem:[%s2550] ss:$8 sm:$0x0] %vm1838, %v2548
  %2553 = vst [vmem:[#allocation1] sm:$0xff] %v1807
  %2554 = vst [vmem:[#allocation1 + $0x9] sm:$0xff] %v1808
  %s2555 = scalar_lea.vmem [#allocation1], 2
  %v2556 = vld [vmem:[%s2555] ss:$9 sm:$0xff]
  %s2558 = scalar_lea.vmem [#allocation3], 165
  %2559 = vst.msk [vmem:[%s2558] ss:$8 sm:$0x3] %vm1838, %v2556
  %2560 = vst.msk [vmem:[%s2558] ss:$8 sm:$0x0] %vm1838, %v2556
  %2561 = vst [vmem:[#allocation1] sm:$0xff] %v1807
  %2562 = vst [vmem:[#allocation1 + $0x9] sm:$0xff] %v1808
  %s2563 = scalar_lea.vmem [#allocation1], 3
  %v2564 = vld [vmem:[%s2563] ss:$9 sm:$0xff]
  %s2566 = scalar_lea.vmem [#allocation3], 181
  %2567 = vst.msk [vmem:[%s2566] ss:$8 sm:$0x3] %vm1838, %v2564
  %2568 = vst.msk [vmem:[%s2566] ss:$8 sm:$0x0] %vm1838, %v2564
  %2569 = vst [vmem:[#allocation1] sm:$0xff] %v1807
  %2570 = vst [vmem:[#allocation1 + $0x9] sm:$0xff] %v1808
  %s2571 = scalar_lea.vmem [#allocation1], 4
  %v2572 = vld [vmem:[%s2571] ss:$9 sm:$0xff]
  %s2574 = scalar_lea.vmem [#allocation3], 197
  %2575 = vst.msk [vmem:[%s2574] ss:$8 sm:$0x3] %vm1838, %v2572
  %2576 = vst.msk [vmem:[%s2574] ss:$8 sm:$0x0] %vm1838, %v2572
  %2577 = vst [vmem:[#allocation1] sm:$0xff] %v1807
  %2578 = vst [vmem:[#allocation1 + $0x9] sm:$0xff] %v1808
  %s2579 = scalar_lea.vmem [#allocation1], 5
  %v2580 = vld [vmem:[%s2579] ss:$9 sm:$0xff]
  %s2582 = scalar_lea.vmem [#allocation3], 213
  %2583 = vst.msk [vmem:[%s2582] ss:$8 sm:$0x3] %vm1838, %v2580
  %2584 = vst.msk [vmem:[%s2582] ss:$8 sm:$0x0] %vm1838, %v2580
  %2585 = vst [vmem:[#allocation1] sm:$0xff] %v1807
  %2586 = vst [vmem:[#allocation1 + $0x9] sm:$0xff] %v1808
  %s2587 = scalar_lea.vmem [#allocation1], 6
  %v2588 = vld [vmem:[%s2587] ss:$9 sm:$0xff]
  %s2590 = scalar_lea.vmem [#allocation3], 229
  %2591 = vst.msk [vmem:[%s2590] ss:$8 sm:$0x3] %vm1838, %v2588
  %2592 = vst.msk [vmem:[%s2590] ss:$8 sm:$0x0] %vm1838, %v2588
  %2593 = vst [vmem:[#allocation1] sm:$0xff] %v1807
  %2594 = vst [vmem:[#allocation1 + $0x9] sm:$0xff] %v1808
  %s2595 = scalar_lea.vmem [#allocation1], 7
  %v2596 = vld [vmem:[%s2595] ss:$9 sm:$0xff]
  %s2598 = scalar_lea.vmem [#allocation3], 245
  %2599 = vst.msk [vmem:[%s2598] ss:$8 sm:$0x3] %vm1838, %v2596
  %2600 = vst.msk [vmem:[%s2598] ss:$8 sm:$0x0] %vm1838, %v2596
  %v2603 = vrot.slane %v1778, 7
  %v2604 = vsel %vm1832, %v1777, %v2603
  %s2606 = scalar_lea.vmem [#allocation3], 6
  %2607 = vst.msk [vmem:[%s2606] ss:$8 sm:$0x3] %vm1838, %v2604
  %2608 = vst.msk [vmem:[%s2606] ss:$8 sm:$0x0] %vm1838, %v2604
  %2609 = vst [vmem:[#allocation1] sm:$0xff] %v1777
  %2610 = vst [vmem:[#allocation1 + $0x9] sm:$0xff] %v1778
  %s2611 = scalar_lea.vmem [#allocation1], 1
  %v2612 = vld [vmem:[%s2611] ss:$9 sm:$0xff]
  %s2614 = scalar_lea.vmem [#allocation3], 22
  %2615 = vst.msk [vmem:[%s2614] ss:$8 sm:$0x3] %vm1838, %v2612
  %2616 = vst.msk [vmem:[%s2614] ss:$8 sm:$0x0] %vm1838, %v2612
  %2617 = vst [vmem:[#allocation1] sm:$0xff] %v1777
  %2618 = vst [vmem:[#allocation1 + $0x9] sm:$0xff] %v1778
  %s2619 = scalar_lea.vmem [#allocation1], 2
  %v2620 = vld [vmem:[%s2619] ss:$9 sm:$0xff]
  %s2622 = scalar_lea.vmem [#allocation3], 38
  %2623 = vst.msk [vmem:[%s2622] ss:$8 sm:$0x3] %vm1838, %v2620
  %2624 = vst.msk [vmem:[%s2622] ss:$8 sm:$0x0] %vm1838, %v2620
  %2625 = vst [vmem:[#allocation1] sm:$0xff] %v1777
  %2626 = vst [vmem:[#allocation1 + $0x9] sm:$0xff] %v1778
  %s2627 = scalar_lea.vmem [#allocation1], 3
  %v2628 = vld [vmem:[%s2627] ss:$9 sm:$0xff]
  %s2630 = scalar_lea.vmem [#allocation3], 54
  %2631 = vst.msk [vmem:[%s2630] ss:$8 sm:$0x3] %vm1838, %v2628
  %2632 = vst.msk [vmem:[%s2630] ss:$8 sm:$0x0] %vm1838, %v2628
  %2633 = vst [vmem:[#allocation1] sm:$0xff] %v1777
  %2634 = vst [vmem:[#allocation1 + $0x9] sm:$0xff] %v1778
  %s2635 = scalar_lea.vmem [#allocation1], 4
  %v2636 = vld [vmem:[%s2635] ss:$9 sm:$0xff]
  %s2638 = scalar_lea.vmem [#allocation3], 70
  %2639 = vst.msk [vmem:[%s2638] ss:$8 sm:$0x3] %vm1838, %v2636
  %2640 = vst.msk [vmem:[%s2638] ss:$8 sm:$0x0] %vm1838, %v2636
  %2641 = vst [vmem:[#allocation1] sm:$0xff] %v1777
  %2642 = vst [vmem:[#allocation1 + $0x9] sm:$0xff] %v1778
  %s2643 = scalar_lea.vmem [#allocation1], 5
  %v2644 = vld [vmem:[%s2643] ss:$9 sm:$0xff]
  %s2646 = scalar_lea.vmem [#allocation3], 86
  %2647 = vst.msk [vmem:[%s2646] ss:$8 sm:$0x3] %vm1838, %v2644
  %2648 = vst.msk [vmem:[%s2646] ss:$8 sm:$0x0] %vm1838, %v2644
  %2649 = vst [vmem:[#allocation1] sm:$0xff] %v1777
  %2650 = vst [vmem:[#allocation1 + $0x9] sm:$0xff] %v1778
  %s2651 = scalar_lea.vmem [#allocation1], 6
  %v2652 = vld [vmem:[%s2651] ss:$9 sm:$0xff]
  %s2654 = scalar_lea.vmem [#allocation3], 102
  %2655 = vst.msk [vmem:[%s2654] ss:$8 sm:$0x3] %vm1838, %v2652
  %2656 = vst.msk [vmem:[%s2654] ss:$8 sm:$0x0] %vm1838, %v2652
  %2657 = vst [vmem:[#allocation1] sm:$0xff] %v1777
  %2658 = vst [vmem:[#allocation1 + $0x9] sm:$0xff] %v1778
  %s2659 = scalar_lea.vmem [#allocation1], 7
  %v2660 = vld [vmem:[%s2659] ss:$9 sm:$0xff]
  %s2662 = scalar_lea.vmem [#allocation3], 118
  %2663 = vst.msk [vmem:[%s2662] ss:$8 sm:$0x3] %vm1838, %v2660
  %2664 = vst.msk [vmem:[%s2662] ss:$8 sm:$0x0] %vm1838, %v2660
  %v2667 = vrot.slane %v1810, 7
  %v2668 = vsel %vm1832, %v1809, %v2667
  %s2670 = scalar_lea.vmem [#allocation3], 134
  %2671 = vst.msk [vmem:[%s2670] ss:$8 sm:$0x3] %vm1838, %v2668
  %2672 = vst.msk [vmem:[%s2670] ss:$8 sm:$0x0] %vm1838, %v2668
  %2673 = vst [vmem:[#allocation1] sm:$0xff] %v1809
  %2674 = vst [vmem:[#allocation1 + $0x9] sm:$0xff] %v1810
  %s2675 = scalar_lea.vmem [#allocation1], 1
  %v2676 = vld [vmem:[%s2675] ss:$9 sm:$0xff]
  %s2678 = scalar_lea.vmem [#allocation3], 150
  %2679 = vst.msk [vmem:[%s2678] ss:$8 sm:$0x3] %vm1838, %v2676
  %2680 = vst.msk [vmem:[%s2678] ss:$8 sm:$0x0] %vm1838, %v2676
  %2681 = vst [vmem:[#allocation1] sm:$0xff] %v1809
  %2682 = vst [vmem:[#allocation1 + $0x9] sm:$0xff] %v1810
  %s2683 = scalar_lea.vmem [#allocation1], 2
  %v2684 = vld [vmem:[%s2683] ss:$9 sm:$0xff]
  %s2686 = scalar_lea.vmem [#allocation3], 166
  %2687 = vst.msk [vmem:[%s2686] ss:$8 sm:$0x3] %vm1838, %v2684
  %2688 = vst.msk [vmem:[%s2686] ss:$8 sm:$0x0] %vm1838, %v2684
  %2689 = vst [vmem:[#allocation1] sm:$0xff] %v1809
  %2690 = vst [vmem:[#allocation1 + $0x9] sm:$0xff] %v1810
  %s2691 = scalar_lea.vmem [#allocation1], 3
  %v2692 = vld [vmem:[%s2691] ss:$9 sm:$0xff]
  %s2694 = scalar_lea.vmem [#allocation3], 182
  %2695 = vst.msk [vmem:[%s2694] ss:$8 sm:$0x3] %vm1838, %v2692
  %2696 = vst.msk [vmem:[%s2694] ss:$8 sm:$0x0] %vm1838, %v2692
  %2697 = vst [vmem:[#allocation1] sm:$0xff] %v1809
  %2698 = vst [vmem:[#allocation1 + $0x9] sm:$0xff] %v1810
  %s2699 = scalar_lea.vmem [#allocation1], 4
  %v2700 = vld [vmem:[%s2699] ss:$9 sm:$0xff]
  %s2702 = scalar_lea.vmem [#allocation3], 198
  %2703 = vst.msk [vmem:[%s2702] ss:$8 sm:$0x3] %vm1838, %v2700
  %2704 = vst.msk [vmem:[%s2702] ss:$8 sm:$0x0] %vm1838, %v2700
  %2705 = vst [vmem:[#allocation1] sm:$0xff] %v1809
  %2706 = vst [vmem:[#allocation1 + $0x9] sm:$0xff] %v1810
  %s2707 = scalar_lea.vmem [#allocation1], 5
  %v2708 = vld [vmem:[%s2707] ss:$9 sm:$0xff]
  %s2710 = scalar_lea.vmem [#allocation3], 214
  %2711 = vst.msk [vmem:[%s2710] ss:$8 sm:$0x3] %vm1838, %v2708
  %2712 = vst.msk [vmem:[%s2710] ss:$8 sm:$0x0] %vm1838, %v2708
  %2713 = vst [vmem:[#allocation1] sm:$0xff] %v1809
  %2714 = vst [vmem:[#allocation1 + $0x9] sm:$0xff] %v1810
  %s2715 = scalar_lea.vmem [#allocation1], 6
  %v2716 = vld [vmem:[%s2715] ss:$9 sm:$0xff]
  %s2718 = scalar_lea.vmem [#allocation3], 230
  %2719 = vst.msk [vmem:[%s2718] ss:$8 sm:$0x3] %vm1838, %v2716
  %2720 = vst.msk [vmem:[%s2718] ss:$8 sm:$0x0] %vm1838, %v2716
  %2721 = vst [vmem:[#allocation1] sm:$0xff] %v1809
  %2722 = vst [vmem:[#allocation1 + $0x9] sm:$0xff] %v1810
  %s2723 = scalar_lea.vmem [#allocation1], 7
  %v2724 = vld [vmem:[%s2723] ss:$9 sm:$0xff]
  %s2726 = scalar_lea.vmem [#allocation3], 246
  %2727 = vst.msk [vmem:[%s2726] ss:$8 sm:$0x3] %vm1838, %v2724
  %2728 = vst.msk [vmem:[%s2726] ss:$8 sm:$0x0] %vm1838, %v2724
  %v2731 = vrot.slane %v1780, 7
  %v2732 = vsel %vm1832, %v1779, %v2731
  %s2734 = scalar_lea.vmem [#allocation3], 7
  %2735 = vst.msk [vmem:[%s2734] ss:$8 sm:$0x3] %vm1838, %v2732
  %2736 = vst.msk [vmem:[%s2734] ss:$8 sm:$0x0] %vm1838, %v2732
  %2737 = vst [vmem:[#allocation1] sm:$0xff] %v1779
  %2738 = vst [vmem:[#allocation1 + $0x9] sm:$0xff] %v1780
  %s2739 = scalar_lea.vmem [#allocation1], 1
  %v2740 = vld [vmem:[%s2739] ss:$9 sm:$0xff]
  %s2742 = scalar_lea.vmem [#allocation3], 23
  %2743 = vst.msk [vmem:[%s2742] ss:$8 sm:$0x3] %vm1838, %v2740
  %2744 = vst.msk [vmem:[%s2742] ss:$8 sm:$0x0] %vm1838, %v2740
  %2745 = vst [vmem:[#allocation1] sm:$0xff] %v1779
  %2746 = vst [vmem:[#allocation1 + $0x9] sm:$0xff] %v1780
  %s2747 = scalar_lea.vmem [#allocation1], 2
  %v2748 = vld [vmem:[%s2747] ss:$9 sm:$0xff]
  %s2750 = scalar_lea.vmem [#allocation3], 39
  %2751 = vst.msk [vmem:[%s2750] ss:$8 sm:$0x3] %vm1838, %v2748
  %2752 = vst.msk [vmem:[%s2750] ss:$8 sm:$0x0] %vm1838, %v2748
  %2753 = vst [vmem:[#allocation1] sm:$0xff] %v1779
  %2754 = vst [vmem:[#allocation1 + $0x9] sm:$0xff] %v1780
  %s2755 = scalar_lea.vmem [#allocation1], 3
  %v2756 = vld [vmem:[%s2755] ss:$9 sm:$0xff]
  %s2758 = scalar_lea.vmem [#allocation3], 55
  %2759 = vst.msk [vmem:[%s2758] ss:$8 sm:$0x3] %vm1838, %v2756
  %2760 = vst.msk [vmem:[%s2758] ss:$8 sm:$0x0] %vm1838, %v2756
  %2761 = vst [vmem:[#allocation1] sm:$0xff] %v1779
  %2762 = vst [vmem:[#allocation1 + $0x9] sm:$0xff] %v1780
  %s2763 = scalar_lea.vmem [#allocation1], 4
  %v2764 = vld [vmem:[%s2763] ss:$9 sm:$0xff]
  %s2766 = scalar_lea.vmem [#allocation3], 71
  %2767 = vst.msk [vmem:[%s2766] ss:$8 sm:$0x3] %vm1838, %v2764
  %2768 = vst.msk [vmem:[%s2766] ss:$8 sm:$0x0] %vm1838, %v2764
  %2769 = vst [vmem:[#allocation1] sm:$0xff] %v1779
  %2770 = vst [vmem:[#allocation1 + $0x9] sm:$0xff] %v1780
  %s2771 = scalar_lea.vmem [#allocation1], 5
  %v2772 = vld [vmem:[%s2771] ss:$9 sm:$0xff]
  %s2774 = scalar_lea.vmem [#allocation3], 87
  %2775 = vst.msk [vmem:[%s2774] ss:$8 sm:$0x3] %vm1838, %v2772
  %2776 = vst.msk [vmem:[%s2774] ss:$8 sm:$0x0] %vm1838, %v2772
  %2777 = vst [vmem:[#allocation1] sm:$0xff] %v1779
  %2778 = vst [vmem:[#allocation1 + $0x9] sm:$0xff] %v1780
  %s2779 = scalar_lea.vmem [#allocation1], 6
  %v2780 = vld [vmem:[%s2779] ss:$9 sm:$0xff]
  %s2782 = scalar_lea.vmem [#allocation3], 103
  %2783 = vst.msk [vmem:[%s2782] ss:$8 sm:$0x3] %vm1838, %v2780
  %2784 = vst.msk [vmem:[%s2782] ss:$8 sm:$0x0] %vm1838, %v2780
  %2785 = vst [vmem:[#allocation1] sm:$0xff] %v1779
  %2786 = vst [vmem:[#allocation1 + $0x9] sm:$0xff] %v1780
  %s2787 = scalar_lea.vmem [#allocation1], 7
  %v2788 = vld [vmem:[%s2787] ss:$9 sm:$0xff]
  %s2790 = scalar_lea.vmem [#allocation3], 119
  %2791 = vst.msk [vmem:[%s2790] ss:$8 sm:$0x3] %vm1838, %v2788
  %2792 = vst.msk [vmem:[%s2790] ss:$8 sm:$0x0] %vm1838, %v2788
  %v2795 = vrot.slane %v1812, 7
  %v2796 = vsel %vm1832, %v1811, %v2795
  %s2798 = scalar_lea.vmem [#allocation3], 135
  %2799 = vst.msk [vmem:[%s2798] ss:$8 sm:$0x3] %vm1838, %v2796
  %2800 = vst.msk [vmem:[%s2798] ss:$8 sm:$0x0] %vm1838, %v2796
  %2801 = vst [vmem:[#allocation1] sm:$0xff] %v1811
  %2802 = vst [vmem:[#allocation1 + $0x9] sm:$0xff] %v1812
  %s2803 = scalar_lea.vmem [#allocation1], 1
  %v2804 = vld [vmem:[%s2803] ss:$9 sm:$0xff]
  %s2806 = scalar_lea.vmem [#allocation3], 151
  %2807 = vst.msk [vmem:[%s2806] ss:$8 sm:$0x3] %vm1838, %v2804
  %2808 = vst.msk [vmem:[%s2806] ss:$8 sm:$0x0] %vm1838, %v2804
  %2809 = vst [vmem:[#allocation1] sm:$0xff] %v1811
  %2810 = vst [vmem:[#allocation1 + $0x9] sm:$0xff] %v1812
  %s2811 = scalar_lea.vmem [#allocation1], 2
  %v2812 = vld [vmem:[%s2811] ss:$9 sm:$0xff]
  %s2814 = scalar_lea.vmem [#allocation3], 167
  %2815 = vst.msk [vmem:[%s2814] ss:$8 sm:$0x3] %vm1838, %v2812
  %2816 = vst.msk [vmem:[%s2814] ss:$8 sm:$0x0] %vm1838, %v2812
  %2817 = vst [vmem:[#allocation1] sm:$0xff] %v1811
  %2818 = vst [vmem:[#allocation1 + $0x9] sm:$0xff] %v1812
  %s2819 = scalar_lea.vmem [#allocation1], 3
  %v2820 = vld [vmem:[%s2819] ss:$9 sm:$0xff]
  %s2822 = scalar_lea.vmem [#allocation3], 183
  %2823 = vst.msk [vmem:[%s2822] ss:$8 sm:$0x3] %vm1838, %v2820
  %2824 = vst.msk [vmem:[%s2822] ss:$8 sm:$0x0] %vm1838, %v2820
  %2825 = vst [vmem:[#allocation1] sm:$0xff] %v1811
  %2826 = vst [vmem:[#allocation1 + $0x9] sm:$0xff] %v1812
  %s2827 = scalar_lea.vmem [#allocation1], 4
  %v2828 = vld [vmem:[%s2827] ss:$9 sm:$0xff]
  %s2830 = scalar_lea.vmem [#allocation3], 199
  %2831 = vst.msk [vmem:[%s2830] ss:$8 sm:$0x3] %vm1838, %v2828
  %2832 = vst.msk [vmem:[%s2830] ss:$8 sm:$0x0] %vm1838, %v2828
  %2833 = vst [vmem:[#allocation1] sm:$0xff] %v1811
  %2834 = vst [vmem:[#allocation1 + $0x9] sm:$0xff] %v1812
  %s2835 = scalar_lea.vmem [#allocation1], 5
  %v2836 = vld [vmem:[%s2835] ss:$9 sm:$0xff]
  %s2838 = scalar_lea.vmem [#allocation3], 215
  %2839 = vst.msk [vmem:[%s2838] ss:$8 sm:$0x3] %vm1838, %v2836
  %2840 = vst.msk [vmem:[%s2838] ss:$8 sm:$0x0] %vm1838, %v2836
  %2841 = vst [vmem:[#allocation1] sm:$0xff] %v1811
  %2842 = vst [vmem:[#allocation1 + $0x9] sm:$0xff] %v1812
  %s2843 = scalar_lea.vmem [#allocation1], 6
  %v2844 = vld [vmem:[%s2843] ss:$9 sm:$0xff]
  %s2846 = scalar_lea.vmem [#allocation3], 231
  %2847 = vst.msk [vmem:[%s2846] ss:$8 sm:$0x3] %vm1838, %v2844
  %2848 = vst.msk [vmem:[%s2846] ss:$8 sm:$0x0] %vm1838, %v2844
  %2849 = vst [vmem:[#allocation1] sm:$0xff] %v1811
  %2850 = vst [vmem:[#allocation1 + $0x9] sm:$0xff] %v1812
  %s2851 = scalar_lea.vmem [#allocation1], 7
  %v2852 = vld [vmem:[%s2851] ss:$9 sm:$0xff]
  %s2854 = scalar_lea.vmem [#allocation3], 247
  %2855 = vst.msk [vmem:[%s2854] ss:$8 sm:$0x3] %vm1838, %v2852
  %2856 = vst.msk [vmem:[%s2854] ss:$8 sm:$0x0] %vm1838, %v2852
  %v2859 = vrot.slane %v1782, 7
  %v2860 = vsel %vm1832, %v1781, %v2859
  %s2862 = scalar_lea.vmem [#allocation3], 256
  %2863 = vst.msk [vmem:[%s2862] ss:$8 sm:$0x3] %vm1838, %v2860
  %2864 = vst.msk [vmem:[%s2862] ss:$8 sm:$0x0] %vm1838, %v2860
  %2865 = vst [vmem:[#allocation1] sm:$0xff] %v1781
  %2866 = vst [vmem:[#allocation1 + $0x9] sm:$0xff] %v1782
  %s2867 = scalar_lea.vmem [#allocation1], 1
  %v2868 = vld [vmem:[%s2867] ss:$9 sm:$0xff]
  %s2870 = scalar_lea.vmem [#allocation3], 272
  %2871 = vst.msk [vmem:[%s2870] ss:$8 sm:$0x3] %vm1838, %v2868
  %2872 = vst.msk [vmem:[%s2870] ss:$8 sm:$0x0] %vm1838, %v2868
  %2873 = vst [vmem:[#allocation1] sm:$0xff] %v1781
  %2874 = vst [vmem:[#allocation1 + $0x9] sm:$0xff] %v1782
  %s2875 = scalar_lea.vmem [#allocation1], 2
  %v2876 = vld [vmem:[%s2875] ss:$9 sm:$0xff]
  %s2878 = scalar_lea.vmem [#allocation3], 288
  %2879 = vst.msk [vmem:[%s2878] ss:$8 sm:$0x3] %vm1838, %v2876
  %2880 = vst.msk [vmem:[%s2878] ss:$8 sm:$0x0] %vm1838, %v2876
  %2881 = vst [vmem:[#allocation1] sm:$0xff] %v1781
  %2882 = vst [vmem:[#allocation1 + $0x9] sm:$0xff] %v1782
  %s2883 = scalar_lea.vmem [#allocation1], 3
  %v2884 = vld [vmem:[%s2883] ss:$9 sm:$0xff]
  %s2886 = scalar_lea.vmem [#allocation3], 304
  %2887 = vst.msk [vmem:[%s2886] ss:$8 sm:$0x3] %vm1838, %v2884
  %2888 = vst.msk [vmem:[%s2886] ss:$8 sm:$0x0] %vm1838, %v2884
  %2889 = vst [vmem:[#allocation1] sm:$0xff] %v1781
  %2890 = vst [vmem:[#allocation1 + $0x9] sm:$0xff] %v1782
  %s2891 = scalar_lea.vmem [#allocation1], 4
  %v2892 = vld [vmem:[%s2891] ss:$9 sm:$0xff]
  %s2894 = scalar_lea.vmem [#allocation3], 320
  %2895 = vst.msk [vmem:[%s2894] ss:$8 sm:$0x3] %vm1838, %v2892
  %2896 = vst.msk [vmem:[%s2894] ss:$8 sm:$0x0] %vm1838, %v2892
  %2897 = vst [vmem:[#allocation1] sm:$0xff] %v1781
  %2898 = vst [vmem:[#allocation1 + $0x9] sm:$0xff] %v1782
  %s2899 = scalar_lea.vmem [#allocation1], 5
  %v2900 = vld [vmem:[%s2899] ss:$9 sm:$0xff]
  %s2902 = scalar_lea.vmem [#allocation3], 336
  %2903 = vst.msk [vmem:[%s2902] ss:$8 sm:$0x3] %vm1838, %v2900
  %2904 = vst.msk [vmem:[%s2902] ss:$8 sm:$0x0] %vm1838, %v2900
  %2905 = vst [vmem:[#allocation1] sm:$0xff] %v1781
  %2906 = vst [vmem:[#allocation1 + $0x9] sm:$0xff] %v1782
  %s2907 = scalar_lea.vmem [#allocation1], 6
  %v2908 = vld [vmem:[%s2907] ss:$9 sm:$0xff]
  %s2910 = scalar_lea.vmem [#allocation3], 352
  %2911 = vst.msk [vmem:[%s2910] ss:$8 sm:$0x3] %vm1838, %v2908
  %2912 = vst.msk [vmem:[%s2910] ss:$8 sm:$0x0] %vm1838, %v2908
  %2913 = vst [vmem:[#allocation1] sm:$0xff] %v1781
  %2914 = vst [vmem:[#allocation1 + $0x9] sm:$0xff] %v1782
  %s2915 = scalar_lea.vmem [#allocation1], 7
  %v2916 = vld [vmem:[%s2915] ss:$9 sm:$0xff]
  %s2918 = scalar_lea.vmem [#allocation3], 368
  %2919 = vst.msk [vmem:[%s2918] ss:$8 sm:$0x3] %vm1838, %v2916
  %2920 = vst.msk [vmem:[%s2918] ss:$8 sm:$0x0] %vm1838, %v2916
  %v2923 = vrot.slane %v1814, 7
  %v2924 = vsel %vm1832, %v1813, %v2923
  %s2926 = scalar_lea.vmem [#allocation3], 384
  %2927 = vst.msk [vmem:[%s2926] ss:$8 sm:$0x3] %vm1838, %v2924
  %2928 = vst.msk [vmem:[%s2926] ss:$8 sm:$0x0] %vm1838, %v2924
  %2929 = vst [vmem:[#allocation1] sm:$0xff] %v1813
  %2930 = vst [vmem:[#allocation1 + $0x9] sm:$0xff] %v1814
  %s2931 = scalar_lea.vmem [#allocation1], 1
  %v2932 = vld [vmem:[%s2931] ss:$9 sm:$0xff]
  %s2934 = scalar_lea.vmem [#allocation3], 400
  %2935 = vst.msk [vmem:[%s2934] ss:$8 sm:$0x3] %vm1838, %v2932
  %2936 = vst.msk [vmem:[%s2934] ss:$8 sm:$0x0] %vm1838, %v2932
  %2937 = vst [vmem:[#allocation1] sm:$0xff] %v1813
  %2938 = vst [vmem:[#allocation1 + $0x9] sm:$0xff] %v1814
  %s2939 = scalar_lea.vmem [#allocation1], 2
  %v2940 = vld [vmem:[%s2939] ss:$9 sm:$0xff]
  %s2942 = scalar_lea.vmem [#allocation3], 416
  %2943 = vst.msk [vmem:[%s2942] ss:$8 sm:$0x3] %vm1838, %v2940
  %2944 = vst.msk [vmem:[%s2942] ss:$8 sm:$0x0] %vm1838, %v2940
  %2945 = vst [vmem:[#allocation1] sm:$0xff] %v1813
  %2946 = vst [vmem:[#allocation1 + $0x9] sm:$0xff] %v1814
  %s2947 = scalar_lea.vmem [#allocation1], 3
  %v2948 = vld [vmem:[%s2947] ss:$9 sm:$0xff]
  %s2950 = scalar_lea.vmem [#allocation3], 432
  %2951 = vst.msk [vmem:[%s2950] ss:$8 sm:$0x3] %vm1838, %v2948
  %2952 = vst.msk [vmem:[%s2950] ss:$8 sm:$0x0] %vm1838, %v2948
  %2953 = vst [vmem:[#allocation1] sm:$0xff] %v1813
  %2954 = vst [vmem:[#allocation1 + $0x9] sm:$0xff] %v1814
  %s2955 = scalar_lea.vmem [#allocation1], 4
  %v2956 = vld [vmem:[%s2955] ss:$9 sm:$0xff]
  %s2958 = scalar_lea.vmem [#allocation3], 448
  %2959 = vst.msk [vmem:[%s2958] ss:$8 sm:$0x3] %vm1838, %v2956
  %2960 = vst.msk [vmem:[%s2958] ss:$8 sm:$0x0] %vm1838, %v2956
  %2961 = vst [vmem:[#allocation1] sm:$0xff] %v1813
  %2962 = vst [vmem:[#allocation1 + $0x9] sm:$0xff] %v1814
  %s2963 = scalar_lea.vmem [#allocation1], 5
  %v2964 = vld [vmem:[%s2963] ss:$9 sm:$0xff]
  %s2966 = scalar_lea.vmem [#allocation3], 464
  %2967 = vst.msk [vmem:[%s2966] ss:$8 sm:$0x3] %vm1838, %v2964
  %2968 = vst.msk [vmem:[%s2966] ss:$8 sm:$0x0] %vm1838, %v2964
  %2969 = vst [vmem:[#allocation1] sm:$0xff] %v1813
  %2970 = vst [vmem:[#allocation1 + $0x9] sm:$0xff] %v1814
  %s2971 = scalar_lea.vmem [#allocation1], 6
  %v2972 = vld [vmem:[%s2971] ss:$9 sm:$0xff]
  %s2974 = scalar_lea.vmem [#allocation3], 480
  %2975 = vst.msk [vmem:[%s2974] ss:$8 sm:$0x3] %vm1838, %v2972
  %2976 = vst.msk [vmem:[%s2974] ss:$8 sm:$0x0] %vm1838, %v2972
  %2977 = vst [vmem:[#allocation1] sm:$0xff] %v1813
  %2978 = vst [vmem:[#allocation1 + $0x9] sm:$0xff] %v1814
  %s2979 = scalar_lea.vmem [#allocation1], 7
  %v2980 = vld [vmem:[%s2979] ss:$9 sm:$0xff]
  %s2982 = scalar_lea.vmem [#allocation3], 496
  %2983 = vst.msk [vmem:[%s2982] ss:$8 sm:$0x3] %vm1838, %v2980
  %2984 = vst.msk [vmem:[%s2982] ss:$8 sm:$0x0] %vm1838, %v2980
  %v2987 = vrot.slane %v1784, 7
  %v2988 = vsel %vm1832, %v1783, %v2987
  %s2990 = scalar_lea.vmem [#allocation3], 257
  %2991 = vst.msk [vmem:[%s2990] ss:$8 sm:$0x3] %vm1838, %v2988
  %2992 = vst.msk [vmem:[%s2990] ss:$8 sm:$0x0] %vm1838, %v2988
  %2993 = vst [vmem:[#allocation1] sm:$0xff] %v1783
  %2994 = vst [vmem:[#allocation1 + $0x9] sm:$0xff] %v1784
  %s2995 = scalar_lea.vmem [#allocation1], 1
  %v2996 = vld [vmem:[%s2995] ss:$9 sm:$0xff]
  %s2998 = scalar_lea.vmem [#allocation3], 273
  %2999 = vst.msk [vmem:[%s2998] ss:$8 sm:$0x3] %vm1838, %v2996
  %3000 = vst.msk [vmem:[%s2998] ss:$8 sm:$0x0] %vm1838, %v2996
  %3001 = vst [vmem:[#allocation1] sm:$0xff] %v1783
  %3002 = vst [vmem:[#allocation1 + $0x9] sm:$0xff] %v1784
  %s3003 = scalar_lea.vmem [#allocation1], 2
  %v3004 = vld [vmem:[%s3003] ss:$9 sm:$0xff]
  %s3006 = scalar_lea.vmem [#allocation3], 289
  %3007 = vst.msk [vmem:[%s3006] ss:$8 sm:$0x3] %vm1838, %v3004
  %3008 = vst.msk [vmem:[%s3006] ss:$8 sm:$0x0] %vm1838, %v3004
  %3009 = vst [vmem:[#allocation1] sm:$0xff] %v1783
  %3010 = vst [vmem:[#allocation1 + $0x9] sm:$0xff] %v1784
  %s3011 = scalar_lea.vmem [#allocation1], 3
  %v3012 = vld [vmem:[%s3011] ss:$9 sm:$0xff]
  %s3014 = scalar_lea.vmem [#allocation3], 305
  %3015 = vst.msk [vmem:[%s3014] ss:$8 sm:$0x3] %vm1838, %v3012
  %3016 = vst.msk [vmem:[%s3014] ss:$8 sm:$0x0] %vm1838, %v3012
  %3017 = vst [vmem:[#allocation1] sm:$0xff] %v1783
  %3018 = vst [vmem:[#allocation1 + $0x9] sm:$0xff] %v1784
  %s3019 = scalar_lea.vmem [#allocation1], 4
  %v3020 = vld [vmem:[%s3019] ss:$9 sm:$0xff]
  %s3022 = scalar_lea.vmem [#allocation3], 321
  %3023 = vst.msk [vmem:[%s3022] ss:$8 sm:$0x3] %vm1838, %v3020
  %3024 = vst.msk [vmem:[%s3022] ss:$8 sm:$0x0] %vm1838, %v3020
  %3025 = vst [vmem:[#allocation1] sm:$0xff] %v1783
  %3026 = vst [vmem:[#allocation1 + $0x9] sm:$0xff] %v1784
  %s3027 = scalar_lea.vmem [#allocation1], 5
  %v3028 = vld [vmem:[%s3027] ss:$9 sm:$0xff]
  %s3030 = scalar_lea.vmem [#allocation3], 337
  %3031 = vst.msk [vmem:[%s3030] ss:$8 sm:$0x3] %vm1838, %v3028
  %3032 = vst.msk [vmem:[%s3030] ss:$8 sm:$0x0] %vm1838, %v3028
  %3033 = vst [vmem:[#allocation1] sm:$0xff] %v1783
  %3034 = vst [vmem:[#allocation1 + $0x9] sm:$0xff] %v1784
  %s3035 = scalar_lea.vmem [#allocation1], 6
  %v3036 = vld [vmem:[%s3035] ss:$9 sm:$0xff]
  %s3038 = scalar_lea.vmem [#allocation3], 353
  %3039 = vst.msk [vmem:[%s3038] ss:$8 sm:$0x3] %vm1838, %v3036
  %3040 = vst.msk [vmem:[%s3038] ss:$8 sm:$0x0] %vm1838, %v3036
  %3041 = vst [vmem:[#allocation1] sm:$0xff] %v1783
  %3042 = vst [vmem:[#allocation1 + $0x9] sm:$0xff] %v1784
  %s3043 = scalar_lea.vmem [#allocation1], 7
  %v3044 = vld [vmem:[%s3043] ss:$9 sm:$0xff]
  %s3046 = scalar_lea.vmem [#allocation3], 369
  %3047 = vst.msk [vmem:[%s3046] ss:$8 sm:$0x3] %vm1838, %v3044
  %3048 = vst.msk [vmem:[%s3046] ss:$8 sm:$0x0] %vm1838, %v3044
  %v3051 = vrot.slane %v1816, 7
  %v3052 = vsel %vm1832, %v1815, %v3051
  %s3054 = scalar_lea.vmem [#allocation3], 385
  %3055 = vst.msk [vmem:[%s3054] ss:$8 sm:$0x3] %vm1838, %v3052
  %3056 = vst.msk [vmem:[%s3054] ss:$8 sm:$0x0] %vm1838, %v3052
  %3057 = vst [vmem:[#allocation1] sm:$0xff] %v1815
  %3058 = vst [vmem:[#allocation1 + $0x9] sm:$0xff] %v1816
  %s3059 = scalar_lea.vmem [#allocation1], 1
  %v3060 = vld [vmem:[%s3059] ss:$9 sm:$0xff]
  %s3062 = scalar_lea.vmem [#allocation3], 401
  %3063 = vst.msk [vmem:[%s3062] ss:$8 sm:$0x3] %vm1838, %v3060
  %3064 = vst.msk [vmem:[%s3062] ss:$8 sm:$0x0] %vm1838, %v3060
  %3065 = vst [vmem:[#allocation1] sm:$0xff] %v1815
  %3066 = vst [vmem:[#allocation1 + $0x9] sm:$0xff] %v1816
  %s3067 = scalar_lea.vmem [#allocation1], 2
  %v3068 = vld [vmem:[%s3067] ss:$9 sm:$0xff]
  %s3070 = scalar_lea.vmem [#allocation3], 417
  %3071 = vst.msk [vmem:[%s3070] ss:$8 sm:$0x3] %vm1838, %v3068
  %3072 = vst.msk [vmem:[%s3070] ss:$8 sm:$0x0] %vm1838, %v3068
  %3073 = vst [vmem:[#allocation1] sm:$0xff] %v1815
  %3074 = vst [vmem:[#allocation1 + $0x9] sm:$0xff] %v1816
  %s3075 = scalar_lea.vmem [#allocation1], 3
  %v3076 = vld [vmem:[%s3075] ss:$9 sm:$0xff]
  %s3078 = scalar_lea.vmem [#allocation3], 433
  %3079 = vst.msk [vmem:[%s3078] ss:$8 sm:$0x3] %vm1838, %v3076
  %3080 = vst.msk [vmem:[%s3078] ss:$8 sm:$0x0] %vm1838, %v3076
  %3081 = vst [vmem:[#allocation1] sm:$0xff] %v1815
  %3082 = vst [vmem:[#allocation1 + $0x9] sm:$0xff] %v1816
  %s3083 = scalar_lea.vmem [#allocation1], 4
  %v3084 = vld [vmem:[%s3083] ss:$9 sm:$0xff]
  %s3086 = scalar_lea.vmem [#allocation3], 449
  %3087 = vst.msk [vmem:[%s3086] ss:$8 sm:$0x3] %vm1838, %v3084
  %3088 = vst.msk [vmem:[%s3086] ss:$8 sm:$0x0] %vm1838, %v3084
  %3089 = vst [vmem:[#allocation1] sm:$0xff] %v1815
  %3090 = vst [vmem:[#allocation1 + $0x9] sm:$0xff] %v1816
  %s3091 = scalar_lea.vmem [#allocation1], 5
  %v3092 = vld [vmem:[%s3091] ss:$9 sm:$0xff]
  %s3094 = scalar_lea.vmem [#allocation3], 465
  %3095 = vst.msk [vmem:[%s3094] ss:$8 sm:$0x3] %vm1838, %v3092
  %3096 = vst.msk [vmem:[%s3094] ss:$8 sm:$0x0] %vm1838, %v3092
  %3097 = vst [vmem:[#allocation1] sm:$0xff] %v1815
  %3098 = vst [vmem:[#allocation1 + $0x9] sm:$0xff] %v1816
  %s3099 = scalar_lea.vmem [#allocation1], 6
  %v3100 = vld [vmem:[%s3099] ss:$9 sm:$0xff]
  %s3102 = scalar_lea.vmem [#allocation3], 481
  %3103 = vst.msk [vmem:[%s3102] ss:$8 sm:$0x3] %vm1838, %v3100
  %3104 = vst.msk [vmem:[%s3102] ss:$8 sm:$0x0] %vm1838, %v3100
  %3105 = vst [vmem:[#allocation1] sm:$0xff] %v1815
  %3106 = vst [vmem:[#allocation1 + $0x9] sm:$0xff] %v1816
  %s3107 = scalar_lea.vmem [#allocation1], 7
  %v3108 = vld [vmem:[%s3107] ss:$9 sm:$0xff]
  %s3110 = scalar_lea.vmem [#allocation3], 497
  %3111 = vst.msk [vmem:[%s3110] ss:$8 sm:$0x3] %vm1838, %v3108
  %3112 = vst.msk [vmem:[%s3110] ss:$8 sm:$0x0] %vm1838, %v3108
  %v3115 = vrot.slane %v1786, 7
  %v3116 = vsel %vm1832, %v1785, %v3115
  %s3118 = scalar_lea.vmem [#allocation3], 258
  %3119 = vst.msk [vmem:[%s3118] ss:$8 sm:$0x3] %vm1838, %v3116
  %3120 = vst.msk [vmem:[%s3118] ss:$8 sm:$0x0] %vm1838, %v3116
  %3121 = vst [vmem:[#allocation1] sm:$0xff] %v1785
  %3122 = vst [vmem:[#allocation1 + $0x9] sm:$0xff] %v1786
  %s3123 = scalar_lea.vmem [#allocation1], 1
  %v3124 = vld [vmem:[%s3123] ss:$9 sm:$0xff]
  %s3126 = scalar_lea.vmem [#allocation3], 274
  %3127 = vst.msk [vmem:[%s3126] ss:$8 sm:$0x3] %vm1838, %v3124
  %3128 = vst.msk [vmem:[%s3126] ss:$8 sm:$0x0] %vm1838, %v3124
  %3129 = vst [vmem:[#allocation1] sm:$0xff] %v1785
  %3130 = vst [vmem:[#allocation1 + $0x9] sm:$0xff] %v1786
  %s3131 = scalar_lea.vmem [#allocation1], 2
  %v3132 = vld [vmem:[%s3131] ss:$9 sm:$0xff]
  %s3134 = scalar_lea.vmem [#allocation3], 290
  %3135 = vst.msk [vmem:[%s3134] ss:$8 sm:$0x3] %vm1838, %v3132
  %3136 = vst.msk [vmem:[%s3134] ss:$8 sm:$0x0] %vm1838, %v3132
  %3137 = vst [vmem:[#allocation1] sm:$0xff] %v1785
  %3138 = vst [vmem:[#allocation1 + $0x9] sm:$0xff] %v1786
  %s3139 = scalar_lea.vmem [#allocation1], 3
  %v3140 = vld [vmem:[%s3139] ss:$9 sm:$0xff]
  %s3142 = scalar_lea.vmem [#allocation3], 306
  %3143 = vst.msk [vmem:[%s3142] ss:$8 sm:$0x3] %vm1838, %v3140
  %3144 = vst.msk [vmem:[%s3142] ss:$8 sm:$0x0] %vm1838, %v3140
  %3145 = vst [vmem:[#allocation1] sm:$0xff] %v1785
  %3146 = vst [vmem:[#allocation1 + $0x9] sm:$0xff] %v1786
  %s3147 = scalar_lea.vmem [#allocation1], 4
  %v3148 = vld [vmem:[%s3147] ss:$9 sm:$0xff]
  %s3150 = scalar_lea.vmem [#allocation3], 322
  %3151 = vst.msk [vmem:[%s3150] ss:$8 sm:$0x3] %vm1838, %v3148
  %3152 = vst.msk [vmem:[%s3150] ss:$8 sm:$0x0] %vm1838, %v3148
  %3153 = vst [vmem:[#allocation1] sm:$0xff] %v1785
  %3154 = vst [vmem:[#allocation1 + $0x9] sm:$0xff] %v1786
  %s3155 = scalar_lea.vmem [#allocation1], 5
  %v3156 = vld [vmem:[%s3155] ss:$9 sm:$0xff]
  %s3158 = scalar_lea.vmem [#allocation3], 338
  %3159 = vst.msk [vmem:[%s3158] ss:$8 sm:$0x3] %vm1838, %v3156
  %3160 = vst.msk [vmem:[%s3158] ss:$8 sm:$0x0] %vm1838, %v3156
  %3161 = vst [vmem:[#allocation1] sm:$0xff] %v1785
  %3162 = vst [vmem:[#allocation1 + $0x9] sm:$0xff] %v1786
  %s3163 = scalar_lea.vmem [#allocation1], 6
  %v3164 = vld [vmem:[%s3163] ss:$9 sm:$0xff]
  %s3166 = scalar_lea.vmem [#allocation3], 354
  %3167 = vst.msk [vmem:[%s3166] ss:$8 sm:$0x3] %vm1838, %v3164
  %3168 = vst.msk [vmem:[%s3166] ss:$8 sm:$0x0] %vm1838, %v3164
  %3169 = vst [vmem:[#allocation1] sm:$0xff] %v1785
  %3170 = vst [vmem:[#allocation1 + $0x9] sm:$0xff] %v1786
  %s3171 = scalar_lea.vmem [#allocation1], 7
  %v3172 = vld [vmem:[%s3171] ss:$9 sm:$0xff]
  %s3174 = scalar_lea.vmem [#allocation3], 370
  %3175 = vst.msk [vmem:[%s3174] ss:$8 sm:$0x3] %vm1838, %v3172
  %3176 = vst.msk [vmem:[%s3174] ss:$8 sm:$0x0] %vm1838, %v3172
  %v3179 = vrot.slane %v1818, 7
  %v3180 = vsel %vm1832, %v1817, %v3179
  %s3182 = scalar_lea.vmem [#allocation3], 386
  %3183 = vst.msk [vmem:[%s3182] ss:$8 sm:$0x3] %vm1838, %v3180
  %3184 = vst.msk [vmem:[%s3182] ss:$8 sm:$0x0] %vm1838, %v3180
  %3185 = vst [vmem:[#allocation1] sm:$0xff] %v1817
  %3186 = vst [vmem:[#allocation1 + $0x9] sm:$0xff] %v1818
  %s3187 = scalar_lea.vmem [#allocation1], 1
  %v3188 = vld [vmem:[%s3187] ss:$9 sm:$0xff]
  %s3190 = scalar_lea.vmem [#allocation3], 402
  %3191 = vst.msk [vmem:[%s3190] ss:$8 sm:$0x3] %vm1838, %v3188
  %3192 = vst.msk [vmem:[%s3190] ss:$8 sm:$0x0] %vm1838, %v3188
  %3193 = vst [vmem:[#allocation1] sm:$0xff] %v1817
  %3194 = vst [vmem:[#allocation1 + $0x9] sm:$0xff] %v1818
  %s3195 = scalar_lea.vmem [#allocation1], 2
  %v3196 = vld [vmem:[%s3195] ss:$9 sm:$0xff]
  %s3198 = scalar_lea.vmem [#allocation3], 418
  %3199 = vst.msk [vmem:[%s3198] ss:$8 sm:$0x3] %vm1838, %v3196
  %3200 = vst.msk [vmem:[%s3198] ss:$8 sm:$0x0] %vm1838, %v3196
  %3201 = vst [vmem:[#allocation1] sm:$0xff] %v1817
  %3202 = vst [vmem:[#allocation1 + $0x9] sm:$0xff] %v1818
  %s3203 = scalar_lea.vmem [#allocation1], 3
  %v3204 = vld [vmem:[%s3203] ss:$9 sm:$0xff]
  %s3206 = scalar_lea.vmem [#allocation3], 434
  %3207 = vst.msk [vmem:[%s3206] ss:$8 sm:$0x3] %vm1838, %v3204
  %3208 = vst.msk [vmem:[%s3206] ss:$8 sm:$0x0] %vm1838, %v3204
  %3209 = vst [vmem:[#allocation1] sm:$0xff] %v1817
  %3210 = vst [vmem:[#allocation1 + $0x9] sm:$0xff] %v1818
  %s3211 = scalar_lea.vmem [#allocation1], 4
  %v3212 = vld [vmem:[%s3211] ss:$9 sm:$0xff]
  %s3214 = scalar_lea.vmem [#allocation3], 450
  %3215 = vst.msk [vmem:[%s3214] ss:$8 sm:$0x3] %vm1838, %v3212
  %3216 = vst.msk [vmem:[%s3214] ss:$8 sm:$0x0] %vm1838, %v3212
  %3217 = vst [vmem:[#allocation1] sm:$0xff] %v1817
  %3218 = vst [vmem:[#allocation1 + $0x9] sm:$0xff] %v1818
  %s3219 = scalar_lea.vmem [#allocation1], 5
  %v3220 = vld [vmem:[%s3219] ss:$9 sm:$0xff]
  %s3222 = scalar_lea.vmem [#allocation3], 466
  %3223 = vst.msk [vmem:[%s3222] ss:$8 sm:$0x3] %vm1838, %v3220
  %3224 = vst.msk [vmem:[%s3222] ss:$8 sm:$0x0] %vm1838, %v3220
  %3225 = vst [vmem:[#allocation1] sm:$0xff] %v1817
  %3226 = vst [vmem:[#allocation1 + $0x9] sm:$0xff] %v1818
  %s3227 = scalar_lea.vmem [#allocation1], 6
  %v3228 = vld [vmem:[%s3227] ss:$9 sm:$0xff]
  %s3230 = scalar_lea.vmem [#allocation3], 482
  %3231 = vst.msk [vmem:[%s3230] ss:$8 sm:$0x3] %vm1838, %v3228
  %3232 = vst.msk [vmem:[%s3230] ss:$8 sm:$0x0] %vm1838, %v3228
  %3233 = vst [vmem:[#allocation1] sm:$0xff] %v1817
  %3234 = vst [vmem:[#allocation1 + $0x9] sm:$0xff] %v1818
  %s3235 = scalar_lea.vmem [#allocation1], 7
  %v3236 = vld [vmem:[%s3235] ss:$9 sm:$0xff]
  %s3238 = scalar_lea.vmem [#allocation3], 498
  %3239 = vst.msk [vmem:[%s3238] ss:$8 sm:$0x3] %vm1838, %v3236
  %3240 = vst.msk [vmem:[%s3238] ss:$8 sm:$0x0] %vm1838, %v3236
  %v3243 = vrot.slane %v1788, 7
  %v3244 = vsel %vm1832, %v1787, %v3243
  %s3246 = scalar_lea.vmem [#allocation3], 259
  %3247 = vst.msk [vmem:[%s3246] ss:$8 sm:$0x3] %vm1838, %v3244
  %3248 = vst.msk [vmem:[%s3246] ss:$8 sm:$0x0] %vm1838, %v3244
  %3249 = vst [vmem:[#allocation1] sm:$0xff] %v1787
  %3250 = vst [vmem:[#allocation1 + $0x9] sm:$0xff] %v1788
  %s3251 = scalar_lea.vmem [#allocation1], 1
  %v3252 = vld [vmem:[%s3251] ss:$9 sm:$0xff]
  %s3254 = scalar_lea.vmem [#allocation3], 275
  %3255 = vst.msk [vmem:[%s3254] ss:$8 sm:$0x3] %vm1838, %v3252
  %3256 = vst.msk [vmem:[%s3254] ss:$8 sm:$0x0] %vm1838, %v3252
  %3257 = vst [vmem:[#allocation1] sm:$0xff] %v1787
  %3258 = vst [vmem:[#allocation1 + $0x9] sm:$0xff] %v1788
  %s3259 = scalar_lea.vmem [#allocation1], 2
  %v3260 = vld [vmem:[%s3259] ss:$9 sm:$0xff]
  %s3262 = scalar_lea.vmem [#allocation3], 291
  %3263 = vst.msk [vmem:[%s3262] ss:$8 sm:$0x3] %vm1838, %v3260
  %3264 = vst.msk [vmem:[%s3262] ss:$8 sm:$0x0] %vm1838, %v3260
  %3265 = vst [vmem:[#allocation1] sm:$0xff] %v1787
  %3266 = vst [vmem:[#allocation1 + $0x9] sm:$0xff] %v1788
  %s3267 = scalar_lea.vmem [#allocation1], 3
  %v3268 = vld [vmem:[%s3267] ss:$9 sm:$0xff]
  %s3270 = scalar_lea.vmem [#allocation3], 307
  %3271 = vst.msk [vmem:[%s3270] ss:$8 sm:$0x3] %vm1838, %v3268
  %3272 = vst.msk [vmem:[%s3270] ss:$8 sm:$0x0] %vm1838, %v3268
  %3273 = vst [vmem:[#allocation1] sm:$0xff] %v1787
  %3274 = vst [vmem:[#allocation1 + $0x9] sm:$0xff] %v1788
  %s3275 = scalar_lea.vmem [#allocation1], 4
  %v3276 = vld [vmem:[%s3275] ss:$9 sm:$0xff]
  %s3278 = scalar_lea.vmem [#allocation3], 323
  %3279 = vst.msk [vmem:[%s3278] ss:$8 sm:$0x3] %vm1838, %v3276
  %3280 = vst.msk [vmem:[%s3278] ss:$8 sm:$0x0] %vm1838, %v3276
  %3281 = vst [vmem:[#allocation1] sm:$0xff] %v1787
  %3282 = vst [vmem:[#allocation1 + $0x9] sm:$0xff] %v1788
  %s3283 = scalar_lea.vmem [#allocation1], 5
  %v3284 = vld [vmem:[%s3283] ss:$9 sm:$0xff]
  %s3286 = scalar_lea.vmem [#allocation3], 339
  %3287 = vst.msk [vmem:[%s3286] ss:$8 sm:$0x3] %vm1838, %v3284
  %3288 = vst.msk [vmem:[%s3286] ss:$8 sm:$0x0] %vm1838, %v3284
  %3289 = vst [vmem:[#allocation1] sm:$0xff] %v1787
  %3290 = vst [vmem:[#allocation1 + $0x9] sm:$0xff] %v1788
  %s3291 = scalar_lea.vmem [#allocation1], 6
  %v3292 = vld [vmem:[%s3291] ss:$9 sm:$0xff]
  %s3294 = scalar_lea.vmem [#allocation3], 355
  %3295 = vst.msk [vmem:[%s3294] ss:$8 sm:$0x3] %vm1838, %v3292
  %3296 = vst.msk [vmem:[%s3294] ss:$8 sm:$0x0] %vm1838, %v3292
  %3297 = vst [vmem:[#allocation1] sm:$0xff] %v1787
  %3298 = vst [vmem:[#allocation1 + $0x9] sm:$0xff] %v1788
  %s3299 = scalar_lea.vmem [#allocation1], 7
  %v3300 = vld [vmem:[%s3299] ss:$9 sm:$0xff]
  %s3302 = scalar_lea.vmem [#allocation3], 371
  %3303 = vst.msk [vmem:[%s3302] ss:$8 sm:$0x3] %vm1838, %v3300
  %3304 = vst.msk [vmem:[%s3302] ss:$8 sm:$0x0] %vm1838, %v3300
  %v3307 = vrot.slane %v1820, 7
  %v3308 = vsel %vm1832, %v1819, %v3307
  %s3310 = scalar_lea.vmem [#allocation3], 387
  %3311 = vst.msk [vmem:[%s3310] ss:$8 sm:$0x3] %vm1838, %v3308
  %3312 = vst.msk [vmem:[%s3310] ss:$8 sm:$0x0] %vm1838, %v3308
  %3313 = vst [vmem:[#allocation1] sm:$0xff] %v1819
  %3314 = vst [vmem:[#allocation1 + $0x9] sm:$0xff] %v1820
  %s3315 = scalar_lea.vmem [#allocation1], 1
  %v3316 = vld [vmem:[%s3315] ss:$9 sm:$0xff]
  %s3318 = scalar_lea.vmem [#allocation3], 403
  %3319 = vst.msk [vmem:[%s3318] ss:$8 sm:$0x3] %vm1838, %v3316
  %3320 = vst.msk [vmem:[%s3318] ss:$8 sm:$0x0] %vm1838, %v3316
  %3321 = vst [vmem:[#allocation1] sm:$0xff] %v1819
  %3322 = vst [vmem:[#allocation1 + $0x9] sm:$0xff] %v1820
  %s3323 = scalar_lea.vmem [#allocation1], 2
  %v3324 = vld [vmem:[%s3323] ss:$9 sm:$0xff]
  %s3326 = scalar_lea.vmem [#allocation3], 419
  %3327 = vst.msk [vmem:[%s3326] ss:$8 sm:$0x3] %vm1838, %v3324
  %3328 = vst.msk [vmem:[%s3326] ss:$8 sm:$0x0] %vm1838, %v3324
  %3329 = vst [vmem:[#allocation1] sm:$0xff] %v1819
  %3330 = vst [vmem:[#allocation1 + $0x9] sm:$0xff] %v1820
  %s3331 = scalar_lea.vmem [#allocation1], 3
  %v3332 = vld [vmem:[%s3331] ss:$9 sm:$0xff]
  %s3334 = scalar_lea.vmem [#allocation3], 435
  %3335 = vst.msk [vmem:[%s3334] ss:$8 sm:$0x3] %vm1838, %v3332
  %3336 = vst.msk [vmem:[%s3334] ss:$8 sm:$0x0] %vm1838, %v3332
  %3337 = vst [vmem:[#allocation1] sm:$0xff] %v1819
  %3338 = vst [vmem:[#allocation1 + $0x9] sm:$0xff] %v1820
  %s3339 = scalar_lea.vmem [#allocation1], 4
  %v3340 = vld [vmem:[%s3339] ss:$9 sm:$0xff]
  %s3342 = scalar_lea.vmem [#allocation3], 451
  %3343 = vst.msk [vmem:[%s3342] ss:$8 sm:$0x3] %vm1838, %v3340
  %3344 = vst.msk [vmem:[%s3342] ss:$8 sm:$0x0] %vm1838, %v3340
  %3345 = vst [vmem:[#allocation1] sm:$0xff] %v1819
  %3346 = vst [vmem:[#allocation1 + $0x9] sm:$0xff] %v1820
  %s3347 = scalar_lea.vmem [#allocation1], 5
  %v3348 = vld [vmem:[%s3347] ss:$9 sm:$0xff]
  %s3350 = scalar_lea.vmem [#allocation3], 467
  %3351 = vst.msk [vmem:[%s3350] ss:$8 sm:$0x3] %vm1838, %v3348
  %3352 = vst.msk [vmem:[%s3350] ss:$8 sm:$0x0] %vm1838, %v3348
  %3353 = vst [vmem:[#allocation1] sm:$0xff] %v1819
  %3354 = vst [vmem:[#allocation1 + $0x9] sm:$0xff] %v1820
  %s3355 = scalar_lea.vmem [#allocation1], 6
  %v3356 = vld [vmem:[%s3355] ss:$9 sm:$0xff]
  %s3358 = scalar_lea.vmem [#allocation3], 483
  %3359 = vst.msk [vmem:[%s3358] ss:$8 sm:$0x3] %vm1838, %v3356
  %3360 = vst.msk [vmem:[%s3358] ss:$8 sm:$0x0] %vm1838, %v3356
  %3361 = vst [vmem:[#allocation1] sm:$0xff] %v1819
  %3362 = vst [vmem:[#allocation1 + $0x9] sm:$0xff] %v1820
  %s3363 = scalar_lea.vmem [#allocation1], 7
  %v3364 = vld [vmem:[%s3363] ss:$9 sm:$0xff]
  %s3366 = scalar_lea.vmem [#allocation3], 499
  %3367 = vst.msk [vmem:[%s3366] ss:$8 sm:$0x3] %vm1838, %v3364
  %3368 = vst.msk [vmem:[%s3366] ss:$8 sm:$0x0] %vm1838, %v3364
  %v3371 = vrot.slane %v1790, 7
  %v3372 = vsel %vm1832, %v1789, %v3371
  %s3374 = scalar_lea.vmem [#allocation3], 260
  %3375 = vst.msk [vmem:[%s3374] ss:$8 sm:$0x3] %vm1838, %v3372
  %3376 = vst.msk [vmem:[%s3374] ss:$8 sm:$0x0] %vm1838, %v3372
  %3377 = vst [vmem:[#allocation1] sm:$0xff] %v1789
  %3378 = vst [vmem:[#allocation1 + $0x9] sm:$0xff] %v1790
  %s3379 = scalar_lea.vmem [#allocation1], 1
  %v3380 = vld [vmem:[%s3379] ss:$9 sm:$0xff]
  %s3382 = scalar_lea.vmem [#allocation3], 276
  %3383 = vst.msk [vmem:[%s3382] ss:$8 sm:$0x3] %vm1838, %v3380
  %3384 = vst.msk [vmem:[%s3382] ss:$8 sm:$0x0] %vm1838, %v3380
  %3385 = vst [vmem:[#allocation1] sm:$0xff] %v1789
  %3386 = vst [vmem:[#allocation1 + $0x9] sm:$0xff] %v1790
  %s3387 = scalar_lea.vmem [#allocation1], 2
  %v3388 = vld [vmem:[%s3387] ss:$9 sm:$0xff]
  %s3390 = scalar_lea.vmem [#allocation3], 292
  %3391 = vst.msk [vmem:[%s3390] ss:$8 sm:$0x3] %vm1838, %v3388
  %3392 = vst.msk [vmem:[%s3390] ss:$8 sm:$0x0] %vm1838, %v3388
  %3393 = vst [vmem:[#allocation1] sm:$0xff] %v1789
  %3394 = vst [vmem:[#allocation1 + $0x9] sm:$0xff] %v1790
  %s3395 = scalar_lea.vmem [#allocation1], 3
  %v3396 = vld [vmem:[%s3395] ss:$9 sm:$0xff]
  %s3398 = scalar_lea.vmem [#allocation3], 308
  %3399 = vst.msk [vmem:[%s3398] ss:$8 sm:$0x3] %vm1838, %v3396
  %3400 = vst.msk [vmem:[%s3398] ss:$8 sm:$0x0] %vm1838, %v3396
  %3401 = vst [vmem:[#allocation1] sm:$0xff] %v1789
  %3402 = vst [vmem:[#allocation1 + $0x9] sm:$0xff] %v1790
  %s3403 = scalar_lea.vmem [#allocation1], 4
  %v3404 = vld [vmem:[%s3403] ss:$9 sm:$0xff]
  %s3406 = scalar_lea.vmem [#allocation3], 324
  %3407 = vst.msk [vmem:[%s3406] ss:$8 sm:$0x3] %vm1838, %v3404
  %3408 = vst.msk [vmem:[%s3406] ss:$8 sm:$0x0] %vm1838, %v3404
  %3409 = vst [vmem:[#allocation1] sm:$0xff] %v1789
  %3410 = vst [vmem:[#allocation1 + $0x9] sm:$0xff] %v1790
  %s3411 = scalar_lea.vmem [#allocation1], 5
  %v3412 = vld [vmem:[%s3411] ss:$9 sm:$0xff]
  %s3414 = scalar_lea.vmem [#allocation3], 340
  %3415 = vst.msk [vmem:[%s3414] ss:$8 sm:$0x3] %vm1838, %v3412
  %3416 = vst.msk [vmem:[%s3414] ss:$8 sm:$0x0] %vm1838, %v3412
  %3417 = vst [vmem:[#allocation1] sm:$0xff] %v1789
  %3418 = vst [vmem:[#allocation1 + $0x9] sm:$0xff] %v1790
  %s3419 = scalar_lea.vmem [#allocation1], 6
  %v3420 = vld [vmem:[%s3419] ss:$9 sm:$0xff]
  %s3422 = scalar_lea.vmem [#allocation3], 356
  %3423 = vst.msk [vmem:[%s3422] ss:$8 sm:$0x3] %vm1838, %v3420
  %3424 = vst.msk [vmem:[%s3422] ss:$8 sm:$0x0] %vm1838, %v3420
  %3425 = vst [vmem:[#allocation1] sm:$0xff] %v1789
  %3426 = vst [vmem:[#allocation1 + $0x9] sm:$0xff] %v1790
  %s3427 = scalar_lea.vmem [#allocation1], 7
  %v3428 = vld [vmem:[%s3427] ss:$9 sm:$0xff]
  %s3430 = scalar_lea.vmem [#allocation3], 372
  %3431 = vst.msk [vmem:[%s3430] ss:$8 sm:$0x3] %vm1838, %v3428
  %3432 = vst.msk [vmem:[%s3430] ss:$8 sm:$0x0] %vm1838, %v3428
  %v3435 = vrot.slane %v1822, 7
  %v3436 = vsel %vm1832, %v1821, %v3435
  %s3438 = scalar_lea.vmem [#allocation3], 388
  %3439 = vst.msk [vmem:[%s3438] ss:$8 sm:$0x3] %vm1838, %v3436
  %3440 = vst.msk [vmem:[%s3438] ss:$8 sm:$0x0] %vm1838, %v3436
  %3441 = vst [vmem:[#allocation1] sm:$0xff] %v1821
  %3442 = vst [vmem:[#allocation1 + $0x9] sm:$0xff] %v1822
  %s3443 = scalar_lea.vmem [#allocation1], 1
  %v3444 = vld [vmem:[%s3443] ss:$9 sm:$0xff]
  %s3446 = scalar_lea.vmem [#allocation3], 404
  %3447 = vst.msk [vmem:[%s3446] ss:$8 sm:$0x3] %vm1838, %v3444
  %3448 = vst.msk [vmem:[%s3446] ss:$8 sm:$0x0] %vm1838, %v3444
  %3449 = vst [vmem:[#allocation1] sm:$0xff] %v1821
  %3450 = vst [vmem:[#allocation1 + $0x9] sm:$0xff] %v1822
  %s3451 = scalar_lea.vmem [#allocation1], 2
  %v3452 = vld [vmem:[%s3451] ss:$9 sm:$0xff]
  %s3454 = scalar_lea.vmem [#allocation3], 420
  %3455 = vst.msk [vmem:[%s3454] ss:$8 sm:$0x3] %vm1838, %v3452
  %3456 = vst.msk [vmem:[%s3454] ss:$8 sm:$0x0] %vm1838, %v3452
  %3457 = vst [vmem:[#allocation1] sm:$0xff] %v1821
  %3458 = vst [vmem:[#allocation1 + $0x9] sm:$0xff] %v1822
  %s3459 = scalar_lea.vmem [#allocation1], 3
  %v3460 = vld [vmem:[%s3459] ss:$9 sm:$0xff]
  %s3462 = scalar_lea.vmem [#allocation3], 436
  %3463 = vst.msk [vmem:[%s3462] ss:$8 sm:$0x3] %vm1838, %v3460
  %3464 = vst.msk [vmem:[%s3462] ss:$8 sm:$0x0] %vm1838, %v3460
  %3465 = vst [vmem:[#allocation1] sm:$0xff] %v1821
  %3466 = vst [vmem:[#allocation1 + $0x9] sm:$0xff] %v1822
  %s3467 = scalar_lea.vmem [#allocation1], 4
  %v3468 = vld [vmem:[%s3467] ss:$9 sm:$0xff]
  %s3470 = scalar_lea.vmem [#allocation3], 452
  %3471 = vst.msk [vmem:[%s3470] ss:$8 sm:$0x3] %vm1838, %v3468
  %3472 = vst.msk [vmem:[%s3470] ss:$8 sm:$0x0] %vm1838, %v3468
  %3473 = vst [vmem:[#allocation1] sm:$0xff] %v1821
  %3474 = vst [vmem:[#allocation1 + $0x9] sm:$0xff] %v1822
  %s3475 = scalar_lea.vmem [#allocation1], 5
  %v3476 = vld [vmem:[%s3475] ss:$9 sm:$0xff]
  %s3478 = scalar_lea.vmem [#allocation3], 468
  %3479 = vst.msk [vmem:[%s3478] ss:$8 sm:$0x3] %vm1838, %v3476
  %3480 = vst.msk [vmem:[%s3478] ss:$8 sm:$0x0] %vm1838, %v3476
  %3481 = vst [vmem:[#allocation1] sm:$0xff] %v1821
  %3482 = vst [vmem:[#allocation1 + $0x9] sm:$0xff] %v1822
  %s3483 = scalar_lea.vmem [#allocation1], 6
  %v3484 = vld [vmem:[%s3483] ss:$9 sm:$0xff]
  %s3486 = scalar_lea.vmem [#allocation3], 484
  %3487 = vst.msk [vmem:[%s3486] ss:$8 sm:$0x3] %vm1838, %v3484
  %3488 = vst.msk [vmem:[%s3486] ss:$8 sm:$0x0] %vm1838, %v3484
  %3489 = vst [vmem:[#allocation1] sm:$0xff] %v1821
  %3490 = vst [vmem:[#allocation1 + $0x9] sm:$0xff] %v1822
  %s3491 = scalar_lea.vmem [#allocation1], 7
  %v3492 = vld [vmem:[%s3491] ss:$9 sm:$0xff]
  %s3494 = scalar_lea.vmem [#allocation3], 500
  %3495 = vst.msk [vmem:[%s3494] ss:$8 sm:$0x3] %vm1838, %v3492
  %3496 = vst.msk [vmem:[%s3494] ss:$8 sm:$0x0] %vm1838, %v3492
  %v3499 = vrot.slane %v1792, 7
  %v3500 = vsel %vm1832, %v1791, %v3499
  %s3502 = scalar_lea.vmem [#allocation3], 261
  %3503 = vst.msk [vmem:[%s3502] ss:$8 sm:$0x3] %vm1838, %v3500
  %3504 = vst.msk [vmem:[%s3502] ss:$8 sm:$0x0] %vm1838, %v3500
  %3505 = vst [vmem:[#allocation1] sm:$0xff] %v1791
  %3506 = vst [vmem:[#allocation1 + $0x9] sm:$0xff] %v1792
  %s3507 = scalar_lea.vmem [#allocation1], 1
  %v3508 = vld [vmem:[%s3507] ss:$9 sm:$0xff]
  %s3510 = scalar_lea.vmem [#allocation3], 277
  %3511 = vst.msk [vmem:[%s3510] ss:$8 sm:$0x3] %vm1838, %v3508
  %3512 = vst.msk [vmem:[%s3510] ss:$8 sm:$0x0] %vm1838, %v3508
  %3513 = vst [vmem:[#allocation1] sm:$0xff] %v1791
  %3514 = vst [vmem:[#allocation1 + $0x9] sm:$0xff] %v1792
  %s3515 = scalar_lea.vmem [#allocation1], 2
  %v3516 = vld [vmem:[%s3515] ss:$9 sm:$0xff]
  %s3518 = scalar_lea.vmem [#allocation3], 293
  %3519 = vst.msk [vmem:[%s3518] ss:$8 sm:$0x3] %vm1838, %v3516
  %3520 = vst.msk [vmem:[%s3518] ss:$8 sm:$0x0] %vm1838, %v3516
  %3521 = vst [vmem:[#allocation1] sm:$0xff] %v1791
  %3522 = vst [vmem:[#allocation1 + $0x9] sm:$0xff] %v1792
  %s3523 = scalar_lea.vmem [#allocation1], 3
  %v3524 = vld [vmem:[%s3523] ss:$9 sm:$0xff]
  %s3526 = scalar_lea.vmem [#allocation3], 309
  %3527 = vst.msk [vmem:[%s3526] ss:$8 sm:$0x3] %vm1838, %v3524
  %3528 = vst.msk [vmem:[%s3526] ss:$8 sm:$0x0] %vm1838, %v3524
  %3529 = vst [vmem:[#allocation1] sm:$0xff] %v1791
  %3530 = vst [vmem:[#allocation1 + $0x9] sm:$0xff] %v1792
  %s3531 = scalar_lea.vmem [#allocation1], 4
  %v3532 = vld [vmem:[%s3531] ss:$9 sm:$0xff]
  %s3534 = scalar_lea.vmem [#allocation3], 325
  %3535 = vst.msk [vmem:[%s3534] ss:$8 sm:$0x3] %vm1838, %v3532
  %3536 = vst.msk [vmem:[%s3534] ss:$8 sm:$0x0] %vm1838, %v3532
  %3537 = vst [vmem:[#allocation1] sm:$0xff] %v1791
  %3538 = vst [vmem:[#allocation1 + $0x9] sm:$0xff] %v1792
  %s3539 = scalar_lea.vmem [#allocation1], 5
  %v3540 = vld [vmem:[%s3539] ss:$9 sm:$0xff]
  %s3542 = scalar_lea.vmem [#allocation3], 341
  %3543 = vst.msk [vmem:[%s3542] ss:$8 sm:$0x3] %vm1838, %v3540
  %3544 = vst.msk [vmem:[%s3542] ss:$8 sm:$0x0] %vm1838, %v3540
  %3545 = vst [vmem:[#allocation1] sm:$0xff] %v1791
  %3546 = vst [vmem:[#allocation1 + $0x9] sm:$0xff] %v1792
  %s3547 = scalar_lea.vmem [#allocation1], 6
  %v3548 = vld [vmem:[%s3547] ss:$9 sm:$0xff]
  %s3550 = scalar_lea.vmem [#allocation3], 357
  %3551 = vst.msk [vmem:[%s3550] ss:$8 sm:$0x3] %vm1838, %v3548
  %3552 = vst.msk [vmem:[%s3550] ss:$8 sm:$0x0] %vm1838, %v3548
  %3553 = vst [vmem:[#allocation1] sm:$0xff] %v1791
  %3554 = vst [vmem:[#allocation1 + $0x9] sm:$0xff] %v1792
  %s3555 = scalar_lea.vmem [#allocation1], 7
  %v3556 = vld [vmem:[%s3555] ss:$9 sm:$0xff]
  %s3558 = scalar_lea.vmem [#allocation3], 373
  %3559 = vst.msk [vmem:[%s3558] ss:$8 sm:$0x3] %vm1838, %v3556
  %3560 = vst.msk [vmem:[%s3558] ss:$8 sm:$0x0] %vm1838, %v3556
  %v3563 = vrot.slane %v1824, 7
  %v3564 = vsel %vm1832, %v1823, %v3563
  %s3566 = scalar_lea.vmem [#allocation3], 389
  %3567 = vst.msk [vmem:[%s3566] ss:$8 sm:$0x3] %vm1838, %v3564
  %3568 = vst.msk [vmem:[%s3566] ss:$8 sm:$0x0] %vm1838, %v3564
  %3569 = vst [vmem:[#allocation1] sm:$0xff] %v1823
  %3570 = vst [vmem:[#allocation1 + $0x9] sm:$0xff] %v1824
  %s3571 = scalar_lea.vmem [#allocation1], 1
  %v3572 = vld [vmem:[%s3571] ss:$9 sm:$0xff]
  %s3574 = scalar_lea.vmem [#allocation3], 405
  %3575 = vst.msk [vmem:[%s3574] ss:$8 sm:$0x3] %vm1838, %v3572
  %3576 = vst.msk [vmem:[%s3574] ss:$8 sm:$0x0] %vm1838, %v3572
  %3577 = vst [vmem:[#allocation1] sm:$0xff] %v1823
  %3578 = vst [vmem:[#allocation1 + $0x9] sm:$0xff] %v1824
  %s3579 = scalar_lea.vmem [#allocation1], 2
  %v3580 = vld [vmem:[%s3579] ss:$9 sm:$0xff]
  %s3582 = scalar_lea.vmem [#allocation3], 421
  %3583 = vst.msk [vmem:[%s3582] ss:$8 sm:$0x3] %vm1838, %v3580
  %3584 = vst.msk [vmem:[%s3582] ss:$8 sm:$0x0] %vm1838, %v3580
  %3585 = vst [vmem:[#allocation1] sm:$0xff] %v1823
  %3586 = vst [vmem:[#allocation1 + $0x9] sm:$0xff] %v1824
  %s3587 = scalar_lea.vmem [#allocation1], 3
  %v3588 = vld [vmem:[%s3587] ss:$9 sm:$0xff]
  %s3590 = scalar_lea.vmem [#allocation3], 437
  %3591 = vst.msk [vmem:[%s3590] ss:$8 sm:$0x3] %vm1838, %v3588
  %3592 = vst.msk [vmem:[%s3590] ss:$8 sm:$0x0] %vm1838, %v3588
  %3593 = vst [vmem:[#allocation1] sm:$0xff] %v1823
  %3594 = vst [vmem:[#allocation1 + $0x9] sm:$0xff] %v1824
  %s3595 = scalar_lea.vmem [#allocation1], 4
  %v3596 = vld [vmem:[%s3595] ss:$9 sm:$0xff]
  %s3598 = scalar_lea.vmem [#allocation3], 453
  %3599 = vst.msk [vmem:[%s3598] ss:$8 sm:$0x3] %vm1838, %v3596
  %3600 = vst.msk [vmem:[%s3598] ss:$8 sm:$0x0] %vm1838, %v3596
  %3601 = vst [vmem:[#allocation1] sm:$0xff] %v1823
  %3602 = vst [vmem:[#allocation1 + $0x9] sm:$0xff] %v1824
  %s3603 = scalar_lea.vmem [#allocation1], 5
  %v3604 = vld [vmem:[%s3603] ss:$9 sm:$0xff]
  %s3606 = scalar_lea.vmem [#allocation3], 469
  %3607 = vst.msk [vmem:[%s3606] ss:$8 sm:$0x3] %vm1838, %v3604
  %3608 = vst.msk [vmem:[%s3606] ss:$8 sm:$0x0] %vm1838, %v3604
  %3609 = vst [vmem:[#allocation1] sm:$0xff] %v1823
  %3610 = vst [vmem:[#allocation1 + $0x9] sm:$0xff] %v1824
  %s3611 = scalar_lea.vmem [#allocation1], 6
  %v3612 = vld [vmem:[%s3611] ss:$9 sm:$0xff]
  %s3614 = scalar_lea.vmem [#allocation3], 485
  %3615 = vst.msk [vmem:[%s3614] ss:$8 sm:$0x3] %vm1838, %v3612
  %3616 = vst.msk [vmem:[%s3614] ss:$8 sm:$0x0] %vm1838, %v3612
  %3617 = vst [vmem:[#allocation1] sm:$0xff] %v1823
  %3618 = vst [vmem:[#allocation1 + $0x9] sm:$0xff] %v1824
  %s3619 = scalar_lea.vmem [#allocation1], 7
  %v3620 = vld [vmem:[%s3619] ss:$9 sm:$0xff]
  %s3622 = scalar_lea.vmem [#allocation3], 501
  %3623 = vst.msk [vmem:[%s3622] ss:$8 sm:$0x3] %vm1838, %v3620
  %3624 = vst.msk [vmem:[%s3622] ss:$8 sm:$0x0] %vm1838, %v3620
  %v3627 = vrot.slane %v1794, 7
  %v3628 = vsel %vm1832, %v1793, %v3627
  %s3630 = scalar_lea.vmem [#allocation3], 262
  %3631 = vst.msk [vmem:[%s3630] ss:$8 sm:$0x3] %vm1838, %v3628
  %3632 = vst.msk [vmem:[%s3630] ss:$8 sm:$0x0] %vm1838, %v3628
  %3633 = vst [vmem:[#allocation1] sm:$0xff] %v1793
  %3634 = vst [vmem:[#allocation1 + $0x9] sm:$0xff] %v1794
  %s3635 = scalar_lea.vmem [#allocation1], 1
  %v3636 = vld [vmem:[%s3635] ss:$9 sm:$0xff]
  %s3638 = scalar_lea.vmem [#allocation3], 278
  %3639 = vst.msk [vmem:[%s3638] ss:$8 sm:$0x3] %vm1838, %v3636
  %3640 = vst.msk [vmem:[%s3638] ss:$8 sm:$0x0] %vm1838, %v3636
  %3641 = vst [vmem:[#allocation1] sm:$0xff] %v1793
  %3642 = vst [vmem:[#allocation1 + $0x9] sm:$0xff] %v1794
  %s3643 = scalar_lea.vmem [#allocation1], 2
  %v3644 = vld [vmem:[%s3643] ss:$9 sm:$0xff]
  %s3646 = scalar_lea.vmem [#allocation3], 294
  %3647 = vst.msk [vmem:[%s3646] ss:$8 sm:$0x3] %vm1838, %v3644
  %3648 = vst.msk [vmem:[%s3646] ss:$8 sm:$0x0] %vm1838, %v3644
  %3649 = vst [vmem:[#allocation1] sm:$0xff] %v1793
  %3650 = vst [vmem:[#allocation1 + $0x9] sm:$0xff] %v1794
  %s3651 = scalar_lea.vmem [#allocation1], 3
  %v3652 = vld [vmem:[%s3651] ss:$9 sm:$0xff]
  %s3654 = scalar_lea.vmem [#allocation3], 310
  %3655 = vst.msk [vmem:[%s3654] ss:$8 sm:$0x3] %vm1838, %v3652
  %3656 = vst.msk [vmem:[%s3654] ss:$8 sm:$0x0] %vm1838, %v3652
  %3657 = vst [vmem:[#allocation1] sm:$0xff] %v1793
  %3658 = vst [vmem:[#allocation1 + $0x9] sm:$0xff] %v1794
  %s3659 = scalar_lea.vmem [#allocation1], 4
  %v3660 = vld [vmem:[%s3659] ss:$9 sm:$0xff]
  %s3662 = scalar_lea.vmem [#allocation3], 326
  %3663 = vst.msk [vmem:[%s3662] ss:$8 sm:$0x3] %vm1838, %v3660
  %3664 = vst.msk [vmem:[%s3662] ss:$8 sm:$0x0] %vm1838, %v3660
  %3665 = vst [vmem:[#allocation1] sm:$0xff] %v1793
  %3666 = vst [vmem:[#allocation1 + $0x9] sm:$0xff] %v1794
  %s3667 = scalar_lea.vmem [#allocation1], 5
  %v3668 = vld [vmem:[%s3667] ss:$9 sm:$0xff]
  %s3670 = scalar_lea.vmem [#allocation3], 342
  %3671 = vst.msk [vmem:[%s3670] ss:$8 sm:$0x3] %vm1838, %v3668
  %3672 = vst.msk [vmem:[%s3670] ss:$8 sm:$0x0] %vm1838, %v3668
  %3673 = vst [vmem:[#allocation1] sm:$0xff] %v1793
  %3674 = vst [vmem:[#allocation1 + $0x9] sm:$0xff] %v1794
  %s3675 = scalar_lea.vmem [#allocation1], 6
  %v3676 = vld [vmem:[%s3675] ss:$9 sm:$0xff]
  %s3678 = scalar_lea.vmem [#allocation3], 358
  %3679 = vst.msk [vmem:[%s3678] ss:$8 sm:$0x3] %vm1838, %v3676
  %3680 = vst.msk [vmem:[%s3678] ss:$8 sm:$0x0] %vm1838, %v3676
  %3681 = vst [vmem:[#allocation1] sm:$0xff] %v1793
  %3682 = vst [vmem:[#allocation1 + $0x9] sm:$0xff] %v1794
  %s3683 = scalar_lea.vmem [#allocation1], 7
  %v3684 = vld [vmem:[%s3683] ss:$9 sm:$0xff]
  %s3686 = scalar_lea.vmem [#allocation3], 374
  %3687 = vst.msk [vmem:[%s3686] ss:$8 sm:$0x3] %vm1838, %v3684
  %3688 = vst.msk [vmem:[%s3686] ss:$8 sm:$0x0] %vm1838, %v3684
  %v3691 = vrot.slane %v1826, 7
  %v3692 = vsel %vm1832, %v1825, %v3691
  %s3694 = scalar_lea.vmem [#allocation3], 390
  %3695 = vst.msk [vmem:[%s3694] ss:$8 sm:$0x3] %vm1838, %v3692
  %3696 = vst.msk [vmem:[%s3694] ss:$8 sm:$0x0] %vm1838, %v3692
  %3697 = vst [vmem:[#allocation1] sm:$0xff] %v1825
  %3698 = vst [vmem:[#allocation1 + $0x9] sm:$0xff] %v1826
  %s3699 = scalar_lea.vmem [#allocation1], 1
  %v3700 = vld [vmem:[%s3699] ss:$9 sm:$0xff]
  %s3702 = scalar_lea.vmem [#allocation3], 406
  %3703 = vst.msk [vmem:[%s3702] ss:$8 sm:$0x3] %vm1838, %v3700
  %3704 = vst.msk [vmem:[%s3702] ss:$8 sm:$0x0] %vm1838, %v3700
  %3705 = vst [vmem:[#allocation1] sm:$0xff] %v1825
  %3706 = vst [vmem:[#allocation1 + $0x9] sm:$0xff] %v1826
  %s3707 = scalar_lea.vmem [#allocation1], 2
  %v3708 = vld [vmem:[%s3707] ss:$9 sm:$0xff]
  %s3710 = scalar_lea.vmem [#allocation3], 422
  %3711 = vst.msk [vmem:[%s3710] ss:$8 sm:$0x3] %vm1838, %v3708
  %3712 = vst.msk [vmem:[%s3710] ss:$8 sm:$0x0] %vm1838, %v3708
  %3713 = vst [vmem:[#allocation1] sm:$0xff] %v1825
  %3714 = vst [vmem:[#allocation1 + $0x9] sm:$0xff] %v1826
  %s3715 = scalar_lea.vmem [#allocation1], 3
  %v3716 = vld [vmem:[%s3715] ss:$9 sm:$0xff]
  %s3718 = scalar_lea.vmem [#allocation3], 438
  %3719 = vst.msk [vmem:[%s3718] ss:$8 sm:$0x3] %vm1838, %v3716
  %3720 = vst.msk [vmem:[%s3718] ss:$8 sm:$0x0] %vm1838, %v3716
  %3721 = vst [vmem:[#allocation1] sm:$0xff] %v1825
  %3722 = vst [vmem:[#allocation1 + $0x9] sm:$0xff] %v1826
  %s3723 = scalar_lea.vmem [#allocation1], 4
  %v3724 = vld [vmem:[%s3723] ss:$9 sm:$0xff]
  %s3726 = scalar_lea.vmem [#allocation3], 454
  %3727 = vst.msk [vmem:[%s3726] ss:$8 sm:$0x3] %vm1838, %v3724
  %3728 = vst.msk [vmem:[%s3726] ss:$8 sm:$0x0] %vm1838, %v3724
  %3729 = vst [vmem:[#allocation1] sm:$0xff] %v1825
  %3730 = vst [vmem:[#allocation1 + $0x9] sm:$0xff] %v1826
  %s3731 = scalar_lea.vmem [#allocation1], 5
  %v3732 = vld [vmem:[%s3731] ss:$9 sm:$0xff]
  %s3734 = scalar_lea.vmem [#allocation3], 470
  %3735 = vst.msk [vmem:[%s3734] ss:$8 sm:$0x3] %vm1838, %v3732
  %3736 = vst.msk [vmem:[%s3734] ss:$8 sm:$0x0] %vm1838, %v3732
  %3737 = vst [vmem:[#allocation1] sm:$0xff] %v1825
  %3738 = vst [vmem:[#allocation1 + $0x9] sm:$0xff] %v1826
  %s3739 = scalar_lea.vmem [#allocation1], 6
  %v3740 = vld [vmem:[%s3739] ss:$9 sm:$0xff]
  %s3742 = scalar_lea.vmem [#allocation3], 486
  %3743 = vst.msk [vmem:[%s3742] ss:$8 sm:$0x3] %vm1838, %v3740
  %3744 = vst.msk [vmem:[%s3742] ss:$8 sm:$0x0] %vm1838, %v3740
  %3745 = vst [vmem:[#allocation1] sm:$0xff] %v1825
  %3746 = vst [vmem:[#allocation1 + $0x9] sm:$0xff] %v1826
  %s3747 = scalar_lea.vmem [#allocation1], 7
  %v3748 = vld [vmem:[%s3747] ss:$9 sm:$0xff]
  %s3750 = scalar_lea.vmem [#allocation3], 502
  %3751 = vst.msk [vmem:[%s3750] ss:$8 sm:$0x3] %vm1838, %v3748
  %3752 = vst.msk [vmem:[%s3750] ss:$8 sm:$0x0] %vm1838, %v3748
  %v3755 = vrot.slane %v1796, 7
  %v3756 = vsel %vm1832, %v1795, %v3755
  %s3758 = scalar_lea.vmem [#allocation3], 263
  %3759 = vst.msk [vmem:[%s3758] ss:$8 sm:$0x3] %vm1838, %v3756
  %3760 = vst.msk [vmem:[%s3758] ss:$8 sm:$0x0] %vm1838, %v3756
  %3761 = vst [vmem:[#allocation1] sm:$0xff] %v1795
  %3762 = vst [vmem:[#allocation1 + $0x9] sm:$0xff] %v1796
  %s3763 = scalar_lea.vmem [#allocation1], 1
  %v3764 = vld [vmem:[%s3763] ss:$9 sm:$0xff]
  %s3766 = scalar_lea.vmem [#allocation3], 279
  %3767 = vst.msk [vmem:[%s3766] ss:$8 sm:$0x3] %vm1838, %v3764
  %3768 = vst.msk [vmem:[%s3766] ss:$8 sm:$0x0] %vm1838, %v3764
  %3769 = vst [vmem:[#allocation1] sm:$0xff] %v1795
  %3770 = vst [vmem:[#allocation1 + $0x9] sm:$0xff] %v1796
  %s3771 = scalar_lea.vmem [#allocation1], 2
  %v3772 = vld [vmem:[%s3771] ss:$9 sm:$0xff]
  %s3774 = scalar_lea.vmem [#allocation3], 295
  %3775 = vst.msk [vmem:[%s3774] ss:$8 sm:$0x3] %vm1838, %v3772
  %3776 = vst.msk [vmem:[%s3774] ss:$8 sm:$0x0] %vm1838, %v3772
  %3777 = vst [vmem:[#allocation1] sm:$0xff] %v1795
  %3778 = vst [vmem:[#allocation1 + $0x9] sm:$0xff] %v1796
  %s3779 = scalar_lea.vmem [#allocation1], 3
  %v3780 = vld [vmem:[%s3779] ss:$9 sm:$0xff]
  %s3782 = scalar_lea.vmem [#allocation3], 311
  %3783 = vst.msk [vmem:[%s3782] ss:$8 sm:$0x3] %vm1838, %v3780
  %3784 = vst.msk [vmem:[%s3782] ss:$8 sm:$0x0] %vm1838, %v3780
  %3785 = vst [vmem:[#allocation1] sm:$0xff] %v1795
  %3786 = vst [vmem:[#allocation1 + $0x9] sm:$0xff] %v1796
  %s3787 = scalar_lea.vmem [#allocation1], 4
  %v3788 = vld [vmem:[%s3787] ss:$9 sm:$0xff]
  %s3790 = scalar_lea.vmem [#allocation3], 327
  %3791 = vst.msk [vmem:[%s3790] ss:$8 sm:$0x3] %vm1838, %v3788
  %3792 = vst.msk [vmem:[%s3790] ss:$8 sm:$0x0] %vm1838, %v3788
  %3793 = vst [vmem:[#allocation1] sm:$0xff] %v1795
  %3794 = vst [vmem:[#allocation1 + $0x9] sm:$0xff] %v1796
  %s3795 = scalar_lea.vmem [#allocation1], 5
  %v3796 = vld [vmem:[%s3795] ss:$9 sm:$0xff]
  %s3798 = scalar_lea.vmem [#allocation3], 343
  %3799 = vst.msk [vmem:[%s3798] ss:$8 sm:$0x3] %vm1838, %v3796
  %3800 = vst.msk [vmem:[%s3798] ss:$8 sm:$0x0] %vm1838, %v3796
  %3801 = vst [vmem:[#allocation1] sm:$0xff] %v1795
  %3802 = vst [vmem:[#allocation1 + $0x9] sm:$0xff] %v1796
  %s3803 = scalar_lea.vmem [#allocation1], 6
  %v3804 = vld [vmem:[%s3803] ss:$9 sm:$0xff]
  %s3806 = scalar_lea.vmem [#allocation3], 359
  %3807 = vst.msk [vmem:[%s3806] ss:$8 sm:$0x3] %vm1838, %v3804
  %3808 = vst.msk [vmem:[%s3806] ss:$8 sm:$0x0] %vm1838, %v3804
  %3809 = vst [vmem:[#allocation1] sm:$0xff] %v1795
  %3810 = vst [vmem:[#allocation1 + $0x9] sm:$0xff] %v1796
  %s3811 = scalar_lea.vmem [#allocation1], 7
  %v3812 = vld [vmem:[%s3811] ss:$9 sm:$0xff]
  %s3814 = scalar_lea.vmem [#allocation3], 375
  %3815 = vst.msk [vmem:[%s3814] ss:$8 sm:$0x3] %vm1838, %v3812
  %3816 = vst.msk [vmem:[%s3814] ss:$8 sm:$0x0] %vm1838, %v3812
  %v3819 = vrot.slane %v1828, 7
  %v3820 = vsel %vm1832, %v1827, %v3819
  %s3822 = scalar_lea.vmem [#allocation3], 391
  %3823 = vst.msk [vmem:[%s3822] ss:$8 sm:$0x3] %vm1838, %v3820
  %3824 = vst.msk [vmem:[%s3822] ss:$8 sm:$0x0] %vm1838, %v3820
  %3825 = vst [vmem:[#allocation1] sm:$0xff] %v1827
  %3826 = vst [vmem:[#allocation1 + $0x9] sm:$0xff] %v1828
  %s3827 = scalar_lea.vmem [#allocation1], 1
  %v3828 = vld [vmem:[%s3827] ss:$9 sm:$0xff]
  %s3830 = scalar_lea.vmem [#allocation3], 407
  %3831 = vst.msk [vmem:[%s3830] ss:$8 sm:$0x3] %vm1838, %v3828
  %3832 = vst.msk [vmem:[%s3830] ss:$8 sm:$0x0] %vm1838, %v3828
  %3833 = vst [vmem:[#allocation1] sm:$0xff] %v1827
  %3834 = vst [vmem:[#allocation1 + $0x9] sm:$0xff] %v1828
  %s3835 = scalar_lea.vmem [#allocation1], 2
  %v3836 = vld [vmem:[%s3835] ss:$9 sm:$0xff]
  %s3838 = scalar_lea.vmem [#allocation3], 423
  %3839 = vst.msk [vmem:[%s3838] ss:$8 sm:$0x3] %vm1838, %v3836
  %3840 = vst.msk [vmem:[%s3838] ss:$8 sm:$0x0] %vm1838, %v3836
  %3841 = vst [vmem:[#allocation1] sm:$0xff] %v1827
  %3842 = vst [vmem:[#allocation1 + $0x9] sm:$0xff] %v1828
  %s3843 = scalar_lea.vmem [#allocation1], 3
  %v3844 = vld [vmem:[%s3843] ss:$9 sm:$0xff]
  %s3846 = scalar_lea.vmem [#allocation3], 439
  %3847 = vst.msk [vmem:[%s3846] ss:$8 sm:$0x3] %vm1838, %v3844
  %3848 = vst.msk [vmem:[%s3846] ss:$8 sm:$0x0] %vm1838, %v3844
  %3849 = vst [vmem:[#allocation1] sm:$0xff] %v1827
  %3850 = vst [vmem:[#allocation1 + $0x9] sm:$0xff] %v1828
  %s3851 = scalar_lea.vmem [#allocation1], 4
  %v3852 = vld [vmem:[%s3851] ss:$9 sm:$0xff]
  %s3854 = scalar_lea.vmem [#allocation3], 455
  %3855 = vst.msk [vmem:[%s3854] ss:$8 sm:$0x3] %vm1838, %v3852
  %3856 = vst.msk [vmem:[%s3854] ss:$8 sm:$0x0] %vm1838, %v3852
  %3857 = vst [vmem:[#allocation1] sm:$0xff] %v1827
  %3858 = vst [vmem:[#allocation1 + $0x9] sm:$0xff] %v1828
  %s3859 = scalar_lea.vmem [#allocation1], 5
  %v3860 = vld [vmem:[%s3859] ss:$9 sm:$0xff]
  %s3862 = scalar_lea.vmem [#allocation3], 471
  %3863 = vst.msk [vmem:[%s3862] ss:$8 sm:$0x3] %vm1838, %v3860
  %3864 = vst.msk [vmem:[%s3862] ss:$8 sm:$0x0] %vm1838, %v3860
  %3865 = vst [vmem:[#allocation1] sm:$0xff] %v1827
  %3866 = vst [vmem:[#allocation1 + $0x9] sm:$0xff] %v1828
  %s3867 = scalar_lea.vmem [#allocation1], 6
  %v3868 = vld [vmem:[%s3867] ss:$9 sm:$0xff]
  %s3870 = scalar_lea.vmem [#allocation3], 487
  %3871 = vst.msk [vmem:[%s3870] ss:$8 sm:$0x3] %vm1838, %v3868
  %3872 = vst.msk [vmem:[%s3870] ss:$8 sm:$0x0] %vm1838, %v3868
  %3873 = vst [vmem:[#allocation1] sm:$0xff] %v1827
  %3874 = vst [vmem:[#allocation1 + $0x9] sm:$0xff] %v1828
  %s3875 = scalar_lea.vmem [#allocation1], 7
  %v3876 = vld [vmem:[%s3875] ss:$9 sm:$0xff]
  %s3878 = scalar_lea.vmem [#allocation3], 503
  %3879 = vst.msk [vmem:[%s3878] ss:$8 sm:$0x3] %vm1838, %v3876
  %3880 = vst.msk [vmem:[%s3878] ss:$8 sm:$0x0] %vm1838, %v3876
  %v3881 = vld [vmem:[#allocation3] sm:$0xff]
  %v3882 = vld [vmem:[#allocation3 + $0x8] sm:$0xff]
  %v3883 = vld [vmem:[#allocation3 + $0x10] sm:$0xff]
  %v3884 = vld [vmem:[#allocation3 + $0x18] sm:$0xff]
  %v3885 = vld [vmem:[#allocation3 + $0x20] sm:$0xff]
  %v3886 = vld [vmem:[#allocation3 + $0x28] sm:$0xff]
  %v3887 = vld [vmem:[#allocation3 + $0x30] sm:$0xff]
  %v3888 = vld [vmem:[#allocation3 + $0x38] sm:$0xff]
  %v3889 = vld [vmem:[#allocation3 + $0x40] sm:$0xff]
  %v3890 = vld [vmem:[#allocation3 + $0x48] sm:$0xff]
  %v3891 = vld [vmem:[#allocation3 + $0x50] sm:$0xff]
  %v3892 = vld [vmem:[#allocation3 + $0x58] sm:$0xff]
  %v3893 = vld [vmem:[#allocation3 + $0x60] sm:$0xff]
  %v3894 = vld [vmem:[#allocation3 + $0x68] sm:$0xff]
  %v3895 = vld [vmem:[#allocation3 + $0x70] sm:$0xff]
  %v3896 = vld [vmem:[#allocation3 + $0x78] sm:$0xff]
  %v3897 = vld [vmem:[#allocation3 + $0x80] sm:$0xff]
  %v3898 = vld [vmem:[#allocation3 + $0x88] sm:$0xff]
  %v3899 = vld [vmem:[#allocation3 + $0x90] sm:$0xff]
  %v3900 = vld [vmem:[#allocation3 + $0x98] sm:$0xff]
  %v3901 = vld [vmem:[#allocation3 + $0xa0] sm:$0xff]
  %v3902 = vld [vmem:[#allocation3 + $0xa8] sm:$0xff]
  %v3903 = vld [vmem:[#allocation3 + $0xb0] sm:$0xff]
  %v3904 = vld [vmem:[#allocation3 + $0xb8] sm:$0xff]
  %v3905 = vld [vmem:[#allocation3 + $0xc0] sm:$0xff]
  %v3906 = vld [vmem:[#allocation3 + $0xc8] sm:$0xff]
  %v3907 = vld [vmem:[#allocation3 + $0xd0] sm:$0xff]
  %v3908 = vld [vmem:[#allocation3 + $0xd8] sm:$0xff]
  %v3909 = vld [vmem:[#allocation3 + $0xe0] sm:$0xff]
  %v3910 = vld [vmem:[#allocation3 + $0xe8] sm:$0xff]
  %v3911 = vld [vmem:[#allocation3 + $0xf0] sm:$0xff]
  %v3912 = vld [vmem:[#allocation3 + $0xf8] sm:$0xff]
  %v3913 = vld [vmem:[#allocation3 + $0x100] sm:$0xff]
  %v3914 = vld [vmem:[#allocation3 + $0x108] sm:$0xff]
  %v3915 = vld [vmem:[#allocation3 + $0x110] sm:$0xff]
  %v3916 = vld [vmem:[#allocation3 + $0x118] sm:$0xff]
  %v3917 = vld [vmem:[#allocation3 + $0x120] sm:$0xff]
  %v3918 = vld [vmem:[#allocation3 + $0x128] sm:$0xff]
  %v3919 = vld [vmem:[#allocation3 + $0x130] sm:$0xff]
  %v3920 = vld [vmem:[#allocation3 + $0x138] sm:$0xff]
  %v3921 = vld [vmem:[#allocation3 + $0x140] sm:$0xff]
  %v3922 = vld [vmem:[#allocation3 + $0x148] sm:$0xff]
  %v3923 = vld [vmem:[#allocation3 + $0x150] sm:$0xff]
  %v3924 = vld [vmem:[#allocation3 + $0x158] sm:$0xff]
  %v3925 = vld [vmem:[#allocation3 + $0x160] sm:$0xff]
  %v3926 = vld [vmem:[#allocation3 + $0x168] sm:$0xff]
  %v3927 = vld [vmem:[#allocation3 + $0x170] sm:$0xff]
  %v3928 = vld [vmem:[#allocation3 + $0x178] sm:$0xff]
  %v3929 = vld [vmem:[#allocation3 + $0x180] sm:$0xff]
  %v3930 = vld [vmem:[#allocation3 + $0x188] sm:$0xff]
  %v3931 = vld [vmem:[#allocation3 + $0x190] sm:$0xff]
  %v3932 = vld [vmem:[#allocation3 + $0x198] sm:$0xff]
  %v3933 = vld [vmem:[#allocation3 + $0x1a0] sm:$0xff]
  %v3934 = vld [vmem:[#allocation3 + $0x1a8] sm:$0xff]
  %v3935 = vld [vmem:[#allocation3 + $0x1b0] sm:$0xff]
  %v3936 = vld [vmem:[#allocation3 + $0x1b8] sm:$0xff]
  %v3937 = vld [vmem:[#allocation3 + $0x1c0] sm:$0xff]
  %v3938 = vld [vmem:[#allocation3 + $0x1c8] sm:$0xff]
  %v3939 = vld [vmem:[#allocation3 + $0x1d0] sm:$0xff]
  %v3940 = vld [vmem:[#allocation3 + $0x1d8] sm:$0xff]
  %v3941 = vld [vmem:[#allocation3 + $0x1e0] sm:$0xff]
  %v3942 = vld [vmem:[#allocation3 + $0x1e8] sm:$0xff]
  %v3943 = vld [vmem:[#allocation3 + $0x1f0] sm:$0xff]
  %v3944 = vld [vmem:[#allocation3 + $0x1f8] sm:$0xff]
  %v3945 = vpack.c.bf16 %v3882, %v3881
  %v3946 = vpack.c.bf16 %v3884, %v3883
  %v3947 = vpack.c.bf16 %v3886, %v3885
  %v3948 = vpack.c.bf16 %v3888, %v3887
  %v3949 = vpack.c.bf16 %v3890, %v3889
  %v3950 = vpack.c.bf16 %v3892, %v3891
  %v3951 = vpack.c.bf16 %v3894, %v3893
  %v3952 = vpack.c.bf16 %v3896, %v3895
  %v3953 = vpack.c.bf16 %v3898, %v3897
  %v3954 = vpack.c.bf16 %v3900, %v3899
  %v3955 = vpack.c.bf16 %v3902, %v3901
  %v3956 = vpack.c.bf16 %v3904, %v3903
  %v3957 = vpack.c.bf16 %v3906, %v3905
  %v3958 = vpack.c.bf16 %v3908, %v3907
  %v3959 = vpack.c.bf16 %v3910, %v3909
  %v3960 = vpack.c.bf16 %v3912, %v3911
  %v3961 = vpack.c.bf16 %v3914, %v3913
  %v3962 = vpack.c.bf16 %v3916, %v3915
  %v3963 = vpack.c.bf16 %v3918, %v3917
  %v3964 = vpack.c.bf16 %v3920, %v3919
  %v3965 = vpack.c.bf16 %v3922, %v3921
  %v3966 = vpack.c.bf16 %v3924, %v3923
  %v3967 = vpack.c.bf16 %v3926, %v3925
  %v3968 = vpack.c.bf16 %v3928, %v3927
  %v3969 = vpack.c.bf16 %v3930, %v3929
  %v3970 = vpack.c.bf16 %v3932, %v3931
  %v3971 = vpack.c.bf16 %v3934, %v3933
  %v3972 = vpack.c.bf16 %v3936, %v3935
  %v3973 = vpack.c.bf16 %v3938, %v3937
  %v3974 = vpack.c.bf16 %v3940, %v3939
  %v3975 = vpack.c.bf16 %v3942, %v3941
  %v3976 = vpack.c.bf16 %v3944, %v3943
  %s3977 = smul.u32 0, 32
  %s3978 = smul.addr %s3977, 4
  %s3979 = scalar_lea.vmem [#allocation2], %s3978
  %3980 = vst [vmem:[%s3979] sm:$0xff] %v3945
  %3981 = vst [vmem:[%s3979 + $0x8] sm:$0xff] %v3946
  %3982 = vst [vmem:[%s3979 + $0x10] sm:$0xff] %v3947
  %3983 = vst [vmem:[%s3979 + $0x18] sm:$0xff] %v3948
  %3984 = vst [vmem:[%s3979 + $0x20] sm:$0xff] %v3949
  %3985 = vst [vmem:[%s3979 + $0x28] sm:$0xff] %v3950
  %3986 = vst [vmem:[%s3979 + $0x30] sm:$0xff] %v3951
  %3987 = vst [vmem:[%s3979 + $0x38] sm:$0xff] %v3952
  %3988 = vst [vmem:[%s3979 + $0x40] sm:$0xff] %v3953
  %3989 = vst [vmem:[%s3979 + $0x48] sm:$0xff] %v3954
  %3990 = vst [vmem:[%s3979 + $0x50] sm:$0xff] %v3955
  %3991 = vst [vmem:[%s3979 + $0x58] sm:$0xff] %v3956
  %3992 = vst [vmem:[%s3979 + $0x60] sm:$0xff] %v3957
  %3993 = vst [vmem:[%s3979 + $0x68] sm:$0xff] %v3958
  %3994 = vst [vmem:[%s3979 + $0x70] sm:$0xff] %v3959
  %3995 = vst [vmem:[%s3979 + $0x78] sm:$0xff] %v3960
  %3996 = vst [vmem:[%s3979 + $0x80] sm:$0xff] %v3961
  %3997 = vst [vmem:[%s3979 + $0x88] sm:$0xff] %v3962
  %3998 = vst [vmem:[%s3979 + $0x90] sm:$0xff] %v3963
  %3999 = vst [vmem:[%s3979 + $0x98] sm:$0xff] %v3964
  %4000 = vst [vmem:[%s3979 + $0xa0] sm:$0xff] %v3965
  %4001 = vst [vmem:[%s3979 + $0xa8] sm:$0xff] %v3966
  %4002 = vst [vmem:[%s3979 + $0xb0] sm:$0xff] %v3967
  %4003 = vst [vmem:[%s3979 + $0xb8] sm:$0xff] %v3968
  %4004 = vst [vmem:[%s3979 + $0xc0] sm:$0xff] %v3969
  %4005 = vst [vmem:[%s3979 + $0xc8] sm:$0xff] %v3970
  %4006 = vst [vmem:[%s3979 + $0xd0] sm:$0xff] %v3971
  %4007 = vst [vmem:[%s3979 + $0xd8] sm:$0xff] %v3972
  %4008 = vst [vmem:[%s3979 + $0xe0] sm:$0xff] %v3973
  %4009 = vst [vmem:[%s3979 + $0xe8] sm:$0xff] %v3974
  %4010 = vst [vmem:[%s3979 + $0xf0] sm:$0xff] %v3975
  %4011 = vst [vmem:[%s3979 + $0xf8] sm:$0xff] %v3976
  %v4012 = vld [vmem:[#allocation2] sm:$0xff]
  %v4013 = vld [vmem:[#allocation2 + $0x8] sm:$0xff]
  %v4014 = vld [vmem:[#allocation2 + $0x10] sm:$0xff]
  %v4015 = vld [vmem:[#allocation2 + $0x18] sm:$0xff]
  %v4016 = vld [vmem:[#allocation2 + $0x20] sm:$0xff]
  %v4017 = vld [vmem:[#allocation2 + $0x28] sm:$0xff]
  %v4018 = vld [vmem:[#allocation2 + $0x30] sm:$0xff]
  %v4019 = vld [vmem:[#allocation2 + $0x38] sm:$0xff]
  %v4020 = vld [vmem:[#allocation2 + $0x40] sm:$0xff]
  %v4021 = vld [vmem:[#allocation2 + $0x48] sm:$0xff]
  %v4022 = vld [vmem:[#allocation2 + $0x50] sm:$0xff]
  %v4023 = vld [vmem:[#allocation2 + $0x58] sm:$0xff]
  %v4024 = vld [vmem:[#allocation2 + $0x60] sm:$0xff]
  %v4025 = vld [vmem:[#allocation2 + $0x68] sm:$0xff]
  %v4026 = vld [vmem:[#allocation2 + $0x70] sm:$0xff]
  %v4027 = vld [vmem:[#allocation2 + $0x78] sm:$0xff]
  %v4028 = vld [vmem:[#allocation2 + $0x80] sm:$0xff]
  %v4029 = vld [vmem:[#allocation2 + $0x88] sm:$0xff]
  %v4030 = vld [vmem:[#allocation2 + $0x90] sm:$0xff]
  %v4031 = vld [vmem:[#allocation2 + $0x98] sm:$0xff]
  %v4032 = vld [vmem:[#allocation2 + $0xa0] sm:$0xff]
  %v4033 = vld [vmem:[#allocation2 + $0xa8] sm:$0xff]
  %v4034 = vld [vmem:[#allocation2 + $0xb0] sm:$0xff]
  %v4035 = vld [vmem:[#allocation2 + $0xb8] sm:$0xff]
  %v4036 = vld [vmem:[#allocation2 + $0xc0] sm:$0xff]
  %v4037 = vld [vmem:[#allocation2 + $0xc8] sm:$0xff]
  %v4038 = vld [vmem:[#allocation2 + $0xd0] sm:$0xff]
  %v4039 = vld [vmem:[#allocation2 + $0xd8] sm:$0xff]
  %v4040 = vld [vmem:[#allocation2 + $0xe0] sm:$0xff]
  %v4041 = vld [vmem:[#allocation2 + $0xe8] sm:$0xff]
  %v4042 = vld [vmem:[#allocation2 + $0xf0] sm:$0xff]
  %v4043 = vld [vmem:[#allocation2 + $0xf8] sm:$0xff]
  %v4044 = vld [vmem:[%s2] sm:$0xf]
  %v4045 = vld [vmem:[%s2 + $0x4] sm:$0xf]
  %v4046 = vld [vmem:[%s2 + $0x8] sm:$0xf]
  %v4047 = vld [vmem:[%s2 + $0xc] sm:$0xf]
  %v4048 = vld [vmem:[%s2 + $0x10] sm:$0xf]
  %v4049 = vld [vmem:[%s2 + $0x14] sm:$0xf]
  %v4050 = vld [vmem:[%s2 + $0x18] sm:$0xf]
  %v4051 = vld [vmem:[%s2 + $0x1c] sm:$0xf]
  %v4052 = vld [vmem:[%s2 + $0x20] sm:$0xf]
  %v4053 = vld [vmem:[%s2 + $0x24] sm:$0xf]
  %v4054 = vld [vmem:[%s2 + $0x28] sm:$0xf]
  %v4055 = vld [vmem:[%s2 + $0x2c] sm:$0xf]
  %v4056 = vld [vmem:[%s2 + $0x30] sm:$0xf]
  %v4057 = vld [vmem:[%s2 + $0x34] sm:$0xf]
  %v4058 = vld [vmem:[%s2 + $0x38] sm:$0xf]
  %v4059 = vld [vmem:[%s2 + $0x3c] sm:$0xf]
  %v4060 = vld [vmem:[%s2 + $0x40] sm:$0xf]
  %v4061 = vld [vmem:[%s2 + $0x44] sm:$0xf]
  %v4062 = vld [vmem:[%s2 + $0x48] sm:$0xf]
  %v4063 = vld [vmem:[%s2 + $0x4c] sm:$0xf]
  %v4064 = vld [vmem:[%s2 + $0x50] sm:$0xf]
  %v4065 = vld [vmem:[%s2 + $0x54] sm:$0xf]
  %v4066 = vld [vmem:[%s2 + $0x58] sm:$0xf]
  %v4067 = vld [vmem:[%s2 + $0x5c] sm:$0xf]
  %v4068 = vld [vmem:[%s2 + $0x60] sm:$0xf]
  %v4069 = vld [vmem:[%s2 + $0x64] sm:$0xf]
  %v4070 = vld [vmem:[%s2 + $0x68] sm:$0xf]
  %v4071 = vld [vmem:[%s2 + $0x6c] sm:$0xf]
  %v4072 = vld [vmem:[%s2 + $0x70] sm:$0xf]
  %v4073 = vld [vmem:[%s2 + $0x74] sm:$0xf]
  %v4074 = vld [vmem:[%s2 + $0x78] sm:$0xf]
  %v4075 = vld [vmem:[%s2 + $0x7c] sm:$0xf]
  %v4076 = vld [vmem:[%s2 + $0x80] sm:$0xf]
  %v4077 = vld [vmem:[%s2 + $0x84] sm:$0xf]
  %v4078 = vld [vmem:[%s2 + $0x88] sm:$0xf]
  %v4079 = vld [vmem:[%s2 + $0x8c] sm:$0xf]
  %v4080 = vld [vmem:[%s2 + $0x90] sm:$0xf]
  %v4081 = vld [vmem:[%s2 + $0x94] sm:$0xf]
  %v4082 = vld [vmem:[%s2 + $0x98] sm:$0xf]
  %v4083 = vld [vmem:[%s2 + $0x9c] sm:$0xf]
  %v4084 = vld [vmem:[%s2 + $0xa0] sm:$0xf]
  %v4085 = vld [vmem:[%s2 + $0xa4] sm:$0xf]
  %v4086 = vld [vmem:[%s2 + $0xa8] sm:$0xf]
  %v4087 = vld [vmem:[%s2 + $0xac] sm:$0xf]
  %v4088 = vld [vmem:[%s2 + $0xb0] sm:$0xf]
  %v4089 = vld [vmem:[%s2 + $0xb4] sm:$0xf]
  %v4090 = vld [vmem:[%s2 + $0xb8] sm:$0xf]
  %v4091 = vld [vmem:[%s2 + $0xbc] sm:$0xf]
  %v4092 = vld [vmem:[%s2 + $0xc0] sm:$0xf]
  %v4093 = vld [vmem:[%s2 + $0xc4] sm:$0xf]
  %v4094 = vld [vmem:[%s2 + $0xc8] sm:$0xf]
  %v4095 = vld [vmem:[%s2 + $0xcc] sm:$0xf]
  %v4096 = vld [vmem:[%s2 + $0xd0] sm:$0xf]
  %v4097 = vld [vmem:[%s2 + $0xd4] sm:$0xf]
  %v4098 = vld [vmem:[%s2 + $0xd8] sm:$0xf]
  %v4099 = vld [vmem:[%s2 + $0xdc] sm:$0xf]
  %v4100 = vld [vmem:[%s2 + $0xe0] sm:$0xf]
  %v4101 = vld [vmem:[%s2 + $0xe4] sm:$0xf]
  %v4102 = vld [vmem:[%s2 + $0xe8] sm:$0xf]
  %v4103 = vld [vmem:[%s2 + $0xec] sm:$0xf]
  %v4104 = vld [vmem:[%s2 + $0xf0] sm:$0xf]
  %v4105 = vld [vmem:[%s2 + $0xf4] sm:$0xf]
  %v4106 = vld [vmem:[%s2 + $0xf8] sm:$0xf]
  %v4107 = vld [vmem:[%s2 + $0xfc] sm:$0xf]
  %v4108 = vld [vmem:[%s2 + $0x100] sm:$0xf]
  %v4109 = vld [vmem:[%s2 + $0x104] sm:$0xf]
  %v4110 = vld [vmem:[%s2 + $0x108] sm:$0xf]
  %v4111 = vld [vmem:[%s2 + $0x10c] sm:$0xf]
  %v4112 = vld [vmem:[%s2 + $0x110] sm:$0xf]
  %v4113 = vld [vmem:[%s2 + $0x114] sm:$0xf]
  %v4114 = vld [vmem:[%s2 + $0x118] sm:$0xf]
  %v4115 = vld [vmem:[%s2 + $0x11c] sm:$0xf]
  %v4116 = vld [vmem:[%s2 + $0x120] sm:$0xf]
  %v4117 = vld [vmem:[%s2 + $0x124] sm:$0xf]
  %v4118 = vld [vmem:[%s2 + $0x128] sm:$0xf]
  %v4119 = vld [vmem:[%s2 + $0x12c] sm:$0xf]
  %v4120 = vld [vmem:[%s2 + $0x130] sm:$0xf]
  %v4121 = vld [vmem:[%s2 + $0x134] sm:$0xf]
  %v4122 = vld [vmem:[%s2 + $0x138] sm:$0xf]
  %v4123 = vld [vmem:[%s2 + $0x13c] sm:$0xf]
  %v4124 = vld [vmem:[%s2 + $0x140] sm:$0xf]
  %v4125 = vld [vmem:[%s2 + $0x144] sm:$0xf]
  %v4126 = vld [vmem:[%s2 + $0x148] sm:$0xf]
  %v4127 = vld [vmem:[%s2 + $0x14c] sm:$0xf]
  %v4128 = vld [vmem:[%s2 + $0x150] sm:$0xf]
  %v4129 = vld [vmem:[%s2 + $0x154] sm:$0xf]
  %v4130 = vld [vmem:[%s2 + $0x158] sm:$0xf]
  %v4131 = vld [vmem:[%s2 + $0x15c] sm:$0xf]
  %v4132 = vld [vmem:[%s2 + $0x160] sm:$0xf]
  %v4133 = vld [vmem:[%s2 + $0x164] sm:$0xf]
  %v4134 = vld [vmem:[%s2 + $0x168] sm:$0xf]
  %v4135 = vld [vmem:[%s2 + $0x16c] sm:$0xf]
  %v4136 = vld [vmem:[%s2 + $0x170] sm:$0xf]
  %v4137 = vld [vmem:[%s2 + $0x174] sm:$0xf]
  %v4138 = vld [vmem:[%s2 + $0x178] sm:$0xf]
  %v4139 = vld [vmem:[%s2 + $0x17c] sm:$0xf]
  %v4140 = vld [vmem:[%s2 + $0x180] sm:$0xf]
  %v4141 = vld [vmem:[%s2 + $0x184] sm:$0xf]
  %v4142 = vld [vmem:[%s2 + $0x188] sm:$0xf]
  %v4143 = vld [vmem:[%s2 + $0x18c] sm:$0xf]
  %v4144 = vld [vmem:[%s2 + $0x190] sm:$0xf]
  %v4145 = vld [vmem:[%s2 + $0x194] sm:$0xf]
  %v4146 = vld [vmem:[%s2 + $0x198] sm:$0xf]
  %v4147 = vld [vmem:[%s2 + $0x19c] sm:$0xf]
  %v4148 = vld [vmem:[%s2 + $0x1a0] sm:$0xf]
  %v4149 = vld [vmem:[%s2 + $0x1a4] sm:$0xf]
  %v4150 = vld [vmem:[%s2 + $0x1a8] sm:$0xf]
  %v4151 = vld [vmem:[%s2 + $0x1ac] sm:$0xf]
  %v4152 = vld [vmem:[%s2 + $0x1b0] sm:$0xf]
  %v4153 = vld [vmem:[%s2 + $0x1b4] sm:$0xf]
  %v4154 = vld [vmem:[%s2 + $0x1b8] sm:$0xf]
  %v4155 = vld [vmem:[%s2 + $0x1bc] sm:$0xf]
  %v4156 = vld [vmem:[%s2 + $0x1c0] sm:$0xf]
  %v4157 = vld [vmem:[%s2 + $0x1c4] sm:$0xf]
  %v4158 = vld [vmem:[%s2 + $0x1c8] sm:$0xf]
  %v4159 = vld [vmem:[%s2 + $0x1cc] sm:$0xf]
  %v4160 = vld [vmem:[%s2 + $0x1d0] sm:$0xf]
  %v4161 = vld [vmem:[%s2 + $0x1d4] sm:$0xf]
  %v4162 = vld [vmem:[%s2 + $0x1d8] sm:$0xf]
  %v4163 = vld [vmem:[%s2 + $0x1dc] sm:$0xf]
  %v4164 = vld [vmem:[%s2 + $0x1e0] sm:$0xf]
  %v4165 = vld [vmem:[%s2 + $0x1e4] sm:$0xf]
  %v4166 = vld [vmem:[%s2 + $0x1e8] sm:$0xf]
  %v4167 = vld [vmem:[%s2 + $0x1ec] sm:$0xf]
  %v4168 = vld [vmem:[%s2 + $0x1f0] sm:$0xf]
  %v4169 = vld [vmem:[%s2 + $0x1f4] sm:$0xf]
  %v4170 = vld [vmem:[%s2 + $0x1f8] sm:$0xf]
  %v4171 = vld [vmem:[%s2 + $0x1fc] sm:$0xf]
  %v4172 = vld [vmem:[%s2 + $0x200] sm:$0xf]
  %v4173 = vld [vmem:[%s2 + $0x204] sm:$0xf]
  %v4174 = vld [vmem:[%s2 + $0x208] sm:$0xf]
  %v4175 = vld [vmem:[%s2 + $0x20c] sm:$0xf]
  %v4176 = vld [vmem:[%s2 + $0x210] sm:$0xf]
  %v4177 = vld [vmem:[%s2 + $0x214] sm:$0xf]
  %v4178 = vld [vmem:[%s2 + $0x218] sm:$0xf]
  %v4179 = vld [vmem:[%s2 + $0x21c] sm:$0xf]
  %v4180 = vld [vmem:[%s2 + $0x220] sm:$0xf]
  %v4181 = vld [vmem:[%s2 + $0x224] sm:$0xf]
  %v4182 = vld [vmem:[%s2 + $0x228] sm:$0xf]
  %v4183 = vld [vmem:[%s2 + $0x22c] sm:$0xf]
  %v4184 = vld [vmem:[%s2 + $0x230] sm:$0xf]
  %v4185 = vld [vmem:[%s2 + $0x234] sm:$0xf]
  %v4186 = vld [vmem:[%s2 + $0x238] sm:$0xf]
  %v4187 = vld [vmem:[%s2 + $0x23c] sm:$0xf]
  %v4188 = vld [vmem:[%s2 + $0x240] sm:$0xf]
  %v4189 = vld [vmem:[%s2 + $0x244] sm:$0xf]
  %v4190 = vld [vmem:[%s2 + $0x248] sm:$0xf]
  %v4191 = vld [vmem:[%s2 + $0x24c] sm:$0xf]
  %v4192 = vld [vmem:[%s2 + $0x250] sm:$0xf]
  %v4193 = vld [vmem:[%s2 + $0x254] sm:$0xf]
  %v4194 = vld [vmem:[%s2 + $0x258] sm:$0xf]
  %v4195 = vld [vmem:[%s2 + $0x25c] sm:$0xf]
  %v4196 = vld [vmem:[%s2 + $0x260] sm:$0xf]
  %v4197 = vld [vmem:[%s2 + $0x264] sm:$0xf]
  %v4198 = vld [vmem:[%s2 + $0x268] sm:$0xf]
  %v4199 = vld [vmem:[%s2 + $0x26c] sm:$0xf]
  %v4200 = vld [vmem:[%s2 + $0x270] sm:$0xf]
  %v4201 = vld [vmem:[%s2 + $0x274] sm:$0xf]
  %v4202 = vld [vmem:[%s2 + $0x278] sm:$0xf]
  %v4203 = vld [vmem:[%s2 + $0x27c] sm:$0xf]
  %v4204 = vld [vmem:[%s2 + $0x280] sm:$0xf]
  %v4205 = vld [vmem:[%s2 + $0x284] sm:$0xf]
  %v4206 = vld [vmem:[%s2 + $0x288] sm:$0xf]
  %v4207 = vld [vmem:[%s2 + $0x28c] sm:$0xf]
  %v4208 = vld [vmem:[%s2 + $0x290] sm:$0xf]
  %v4209 = vld [vmem:[%s2 + $0x294] sm:$0xf]
  %v4210 = vld [vmem:[%s2 + $0x298] sm:$0xf]
  %v4211 = vld [vmem:[%s2 + $0x29c] sm:$0xf]
  %v4212 = vld [vmem:[%s2 + $0x2a0] sm:$0xf]
  %v4213 = vld [vmem:[%s2 + $0x2a4] sm:$0xf]
  %v4214 = vld [vmem:[%s2 + $0x2a8] sm:$0xf]
  %v4215 = vld [vmem:[%s2 + $0x2ac] sm:$0xf]
  %v4216 = vld [vmem:[%s2 + $0x2b0] sm:$0xf]
  %v4217 = vld [vmem:[%s2 + $0x2b4] sm:$0xf]
  %v4218 = vld [vmem:[%s2 + $0x2b8] sm:$0xf]
  %v4219 = vld [vmem:[%s2 + $0x2bc] sm:$0xf]
  %v4220 = vld [vmem:[%s2 + $0x2c0] sm:$0xf]
  %v4221 = vld [vmem:[%s2 + $0x2c4] sm:$0xf]
  %v4222 = vld [vmem:[%s2 + $0x2c8] sm:$0xf]
  %v4223 = vld [vmem:[%s2 + $0x2cc] sm:$0xf]
  %v4224 = vld [vmem:[%s2 + $0x2d0] sm:$0xf]
  %v4225 = vld [vmem:[%s2 + $0x2d4] sm:$0xf]
  %v4226 = vld [vmem:[%s2 + $0x2d8] sm:$0xf]
  %v4227 = vld [vmem:[%s2 + $0x2dc] sm:$0xf]
  %v4228 = vld [vmem:[%s2 + $0x2e0] sm:$0xf]
  %v4229 = vld [vmem:[%s2 + $0x2e4] sm:$0xf]
  %v4230 = vld [vmem:[%s2 + $0x2e8] sm:$0xf]
  %v4231 = vld [vmem:[%s2 + $0x2ec] sm:$0xf]
  %v4232 = vld [vmem:[%s2 + $0x2f0] sm:$0xf]
  %v4233 = vld [vmem:[%s2 + $0x2f4] sm:$0xf]
  %v4234 = vld [vmem:[%s2 + $0x2f8] sm:$0xf]
  %v4235 = vld [vmem:[%s2 + $0x2fc] sm:$0xf]
  %v4236 = vld [vmem:[%s2 + $0x300] sm:$0xf]
  %v4237 = vld [vmem:[%s2 + $0x304] sm:$0xf]
  %v4238 = vld [vmem:[%s2 + $0x308] sm:$0xf]
  %v4239 = vld [vmem:[%s2 + $0x30c] sm:$0xf]
  %v4240 = vld [vmem:[%s2 + $0x310] sm:$0xf]
  %v4241 = vld [vmem:[%s2 + $0x314] sm:$0xf]
  %v4242 = vld [vmem:[%s2 + $0x318] sm:$0xf]
  %v4243 = vld [vmem:[%s2 + $0x31c] sm:$0xf]
  %v4244 = vld [vmem:[%s2 + $0x320] sm:$0xf]
  %v4245 = vld [vmem:[%s2 + $0x324] sm:$0xf]
  %v4246 = vld [vmem:[%s2 + $0x328] sm:$0xf]
  %v4247 = vld [vmem:[%s2 + $0x32c] sm:$0xf]
  %v4248 = vld [vmem:[%s2 + $0x330] sm:$0xf]
  %v4249 = vld [vmem:[%s2 + $0x334] sm:$0xf]
  %v4250 = vld [vmem:[%s2 + $0x338] sm:$0xf]
  %v4251 = vld [vmem:[%s2 + $0x33c] sm:$0xf]
  %v4252 = vld [vmem:[%s2 + $0x340] sm:$0xf]
  %v4253 = vld [vmem:[%s2 + $0x344] sm:$0xf]
  %v4254 = vld [vmem:[%s2 + $0x348] sm:$0xf]
  %v4255 = vld [vmem:[%s2 + $0x34c] sm:$0xf]
  %v4256 = vld [vmem:[%s2 + $0x350] sm:$0xf]
  %v4257 = vld [vmem:[%s2 + $0x354] sm:$0xf]
  %v4258 = vld [vmem:[%s2 + $0x358] sm:$0xf]
  %v4259 = vld [vmem:[%s2 + $0x35c] sm:$0xf]
  %v4260 = vld [vmem:[%s2 + $0x360] sm:$0xf]
  %v4261 = vld [vmem:[%s2 + $0x364] sm:$0xf]
  %v4262 = vld [vmem:[%s2 + $0x368] sm:$0xf]
  %v4263 = vld [vmem:[%s2 + $0x36c] sm:$0xf]
  %v4264 = vld [vmem:[%s2 + $0x370] sm:$0xf]
  %v4265 = vld [vmem:[%s2 + $0x374] sm:$0xf]
  %v4266 = vld [vmem:[%s2 + $0x378] sm:$0xf]
  %v4267 = vld [vmem:[%s2 + $0x37c] sm:$0xf]
  %v4268 = vld [vmem:[%s2 + $0x380] sm:$0xf]
  %v4269 = vld [vmem:[%s2 + $0x384] sm:$0xf]
  %v4270 = vld [vmem:[%s2 + $0x388] sm:$0xf]
  %v4271 = vld [vmem:[%s2 + $0x38c] sm:$0xf]
  %v4272 = vld [vmem:[%s2 + $0x390] sm:$0xf]
  %v4273 = vld [vmem:[%s2 + $0x394] sm:$0xf]
  %v4274 = vld [vmem:[%s2 + $0x398] sm:$0xf]
  %v4275 = vld [vmem:[%s2 + $0x39c] sm:$0xf]
  %v4276 = vld [vmem:[%s2 + $0x3a0] sm:$0xf]
  %v4277 = vld [vmem:[%s2 + $0x3a4] sm:$0xf]
  %v4278 = vld [vmem:[%s2 + $0x3a8] sm:$0xf]
  %v4279 = vld [vmem:[%s2 + $0x3ac] sm:$0xf]
  %v4280 = vld [vmem:[%s2 + $0x3b0] sm:$0xf]
  %v4281 = vld [vmem:[%s2 + $0x3b4] sm:$0xf]
  %v4282 = vld [vmem:[%s2 + $0x3b8] sm:$0xf]
  %v4283 = vld [vmem:[%s2 + $0x3bc] sm:$0xf]
  %v4284 = vld [vmem:[%s2 + $0x3c0] sm:$0xf]
  %v4285 = vld [vmem:[%s2 + $0x3c4] sm:$0xf]
  %v4286 = vld [vmem:[%s2 + $0x3c8] sm:$0xf]
  %v4287 = vld [vmem:[%s2 + $0x3cc] sm:$0xf]
  %v4288 = vld [vmem:[%s2 + $0x3d0] sm:$0xf]
  %v4289 = vld [vmem:[%s2 + $0x3d4] sm:$0xf]
  %v4290 = vld [vmem:[%s2 + $0x3d8] sm:$0xf]
  %v4291 = vld [vmem:[%s2 + $0x3dc] sm:$0xf]
  %v4292 = vld [vmem:[%s2 + $0x3e0] sm:$0xf]
  %v4293 = vld [vmem:[%s2 + $0x3e4] sm:$0xf]
  %v4294 = vld [vmem:[%s2 + $0x3e8] sm:$0xf]
  %v4295 = vld [vmem:[%s2 + $0x3ec] sm:$0xf]
  %v4296 = vld [vmem:[%s2 + $0x3f0] sm:$0xf]
  %v4297 = vld [vmem:[%s2 + $0x3f4] sm:$0xf]
  %v4298 = vld [vmem:[%s2 + $0x3f8] sm:$0xf]
  %v4299 = vld [vmem:[%s2 + $0x3fc] sm:$0xf]
  %v4300 = vld [vmem:[%s2 + $0x400] sm:$0xf]
  %v4301 = vld [vmem:[%s2 + $0x404] sm:$0xf]
  %v4302 = vld [vmem:[%s2 + $0x408] sm:$0xf]
  %v4303 = vld [vmem:[%s2 + $0x40c] sm:$0xf]
  %v4304 = vld [vmem:[%s2 + $0x410] sm:$0xf]
  %v4305 = vld [vmem:[%s2 + $0x414] sm:$0xf]
  %v4306 = vld [vmem:[%s2 + $0x418] sm:$0xf]
  %v4307 = vld [vmem:[%s2 + $0x41c] sm:$0xf]
  %v4308 = vld [vmem:[%s2 + $0x420] sm:$0xf]
  %v4309 = vld [vmem:[%s2 + $0x424] sm:$0xf]
  %v4310 = vld [vmem:[%s2 + $0x428] sm:$0xf]
  %v4311 = vld [vmem:[%s2 + $0x42c] sm:$0xf]
  %v4312 = vld [vmem:[%s2 + $0x430] sm:$0xf]
  %v4313 = vld [vmem:[%s2 + $0x434] sm:$0xf]
  %v4314 = vld [vmem:[%s2 + $0x438] sm:$0xf]
  %v4315 = vld [vmem:[%s2 + $0x43c] sm:$0xf]
  %v4316 = vld [vmem:[%s2 + $0x440] sm:$0xf]
  %v4317 = vld [vmem:[%s2 + $0x444] sm:$0xf]
  %v4318 = vld [vmem:[%s2 + $0x448] sm:$0xf]
  %v4319 = vld [vmem:[%s2 + $0x44c] sm:$0xf]
  %v4320 = vld [vmem:[%s2 + $0x450] sm:$0xf]
  %v4321 = vld [vmem:[%s2 + $0x454] sm:$0xf]
  %v4322 = vld [vmem:[%s2 + $0x458] sm:$0xf]
  %v4323 = vld [vmem:[%s2 + $0x45c] sm:$0xf]
  %v4324 = vld [vmem:[%s2 + $0x460] sm:$0xf]
  %v4325 = vld [vmem:[%s2 + $0x464] sm:$0xf]
  %v4326 = vld [vmem:[%s2 + $0x468] sm:$0xf]
  %v4327 = vld [vmem:[%s2 + $0x46c] sm:$0xf]
  %v4328 = vld [vmem:[%s2 + $0x470] sm:$0xf]
  %v4329 = vld [vmem:[%s2 + $0x474] sm:$0xf]
  %v4330 = vld [vmem:[%s2 + $0x478] sm:$0xf]
  %v4331 = vld [vmem:[%s2 + $0x47c] sm:$0xf]
  %v4332 = vld [vmem:[%s2 + $0x480] sm:$0xf]
  %v4333 = vld [vmem:[%s2 + $0x484] sm:$0xf]
  %v4334 = vld [vmem:[%s2 + $0x488] sm:$0xf]
  %v4335 = vld [vmem:[%s2 + $0x48c] sm:$0xf]
  %v4336 = vld [vmem:[%s2 + $0x490] sm:$0xf]
  %v4337 = vld [vmem:[%s2 + $0x494] sm:$0xf]
  %v4338 = vld [vmem:[%s2 + $0x498] sm:$0xf]
  %v4339 = vld [vmem:[%s2 + $0x49c] sm:$0xf]
  %v4340 = vld [vmem:[%s2 + $0x4a0] sm:$0xf]
  %v4341 = vld [vmem:[%s2 + $0x4a4] sm:$0xf]
  %v4342 = vld [vmem:[%s2 + $0x4a8] sm:$0xf]
  %v4343 = vld [vmem:[%s2 + $0x4ac] sm:$0xf]
  %v4344 = vld [vmem:[%s2 + $0x4b0] sm:$0xf]
  %v4345 = vld [vmem:[%s2 + $0x4b4] sm:$0xf]
  %v4346 = vld [vmem:[%s2 + $0x4b8] sm:$0xf]
  %v4347 = vld [vmem:[%s2 + $0x4bc] sm:$0xf]
  %v4348 = vld [vmem:[%s2 + $0x4c0] sm:$0xf]
  %v4349 = vld [vmem:[%s2 + $0x4c4] sm:$0xf]
  %v4350 = vld [vmem:[%s2 + $0x4c8] sm:$0xf]
  %v4351 = vld [vmem:[%s2 + $0x4cc] sm:$0xf]
  %v4352 = vld [vmem:[%s2 + $0x4d0] sm:$0xf]
  %v4353 = vld [vmem:[%s2 + $0x4d4] sm:$0xf]
  %v4354 = vld [vmem:[%s2 + $0x4d8] sm:$0xf]
  %v4355 = vld [vmem:[%s2 + $0x4dc] sm:$0xf]
  %v4356 = vld [vmem:[%s2 + $0x4e0] sm:$0xf]
  %v4357 = vld [vmem:[%s2 + $0x4e4] sm:$0xf]
  %v4358 = vld [vmem:[%s2 + $0x4e8] sm:$0xf]
  %v4359 = vld [vmem:[%s2 + $0x4ec] sm:$0xf]
  %v4360 = vld [vmem:[%s2 + $0x4f0] sm:$0xf]
  %v4361 = vld [vmem:[%s2 + $0x4f4] sm:$0xf]
  %v4362 = vld [vmem:[%s2 + $0x4f8] sm:$0xf]
  %v4363 = vld [vmem:[%s2 + $0x4fc] sm:$0xf]
  %v4364 = vld [vmem:[%s2 + $0x500] sm:$0xf]
  %v4365 = vld [vmem:[%s2 + $0x504] sm:$0xf]
  %v4366 = vld [vmem:[%s2 + $0x508] sm:$0xf]
  %v4367 = vld [vmem:[%s2 + $0x50c] sm:$0xf]
  %v4368 = vld [vmem:[%s2 + $0x510] sm:$0xf]
  %v4369 = vld [vmem:[%s2 + $0x514] sm:$0xf]
  %v4370 = vld [vmem:[%s2 + $0x518] sm:$0xf]
  %v4371 = vld [vmem:[%s2 + $0x51c] sm:$0xf]
  %v4372 = vld [vmem:[%s2 + $0x520] sm:$0xf]
  %v4373 = vld [vmem:[%s2 + $0x524] sm:$0xf]
  %v4374 = vld [vmem:[%s2 + $0x528] sm:$0xf]
  %v4375 = vld [vmem:[%s2 + $0x52c] sm:$0xf]
  %v4376 = vld [vmem:[%s2 + $0x530] sm:$0xf]
  %v4377 = vld [vmem:[%s2 + $0x534] sm:$0xf]
  %v4378 = vld [vmem:[%s2 + $0x538] sm:$0xf]
  %v4379 = vld [vmem:[%s2 + $0x53c] sm:$0xf]
  %v4380 = vld [vmem:[%s2 + $0x540] sm:$0xf]
  %v4381 = vld [vmem:[%s2 + $0x544] sm:$0xf]
  %v4382 = vld [vmem:[%s2 + $0x548] sm:$0xf]
  %v4383 = vld [vmem:[%s2 + $0x54c] sm:$0xf]
  %v4384 = vld [vmem:[%s2 + $0x550] sm:$0xf]
  %v4385 = vld [vmem:[%s2 + $0x554] sm:$0xf]
  %v4386 = vld [vmem:[%s2 + $0x558] sm:$0xf]
  %v4387 = vld [vmem:[%s2 + $0x55c] sm:$0xf]
  %v4388 = vld [vmem:[%s2 + $0x560] sm:$0xf]
  %v4389 = vld [vmem:[%s2 + $0x564] sm:$0xf]
  %v4390 = vld [vmem:[%s2 + $0x568] sm:$0xf]
  %v4391 = vld [vmem:[%s2 + $0x56c] sm:$0xf]
  %v4392 = vld [vmem:[%s2 + $0x570] sm:$0xf]
  %v4393 = vld [vmem:[%s2 + $0x574] sm:$0xf]
  %v4394 = vld [vmem:[%s2 + $0x578] sm:$0xf]
  %v4395 = vld [vmem:[%s2 + $0x57c] sm:$0xf]
  %v4396 = vld [vmem:[%s2 + $0x580] sm:$0xf]
  %v4397 = vld [vmem:[%s2 + $0x584] sm:$0xf]
  %v4398 = vld [vmem:[%s2 + $0x588] sm:$0xf]
  %v4399 = vld [vmem:[%s2 + $0x58c] sm:$0xf]
  %v4400 = vld [vmem:[%s2 + $0x590] sm:$0xf]
  %v4401 = vld [vmem:[%s2 + $0x594] sm:$0xf]
  %v4402 = vld [vmem:[%s2 + $0x598] sm:$0xf]
  %v4403 = vld [vmem:[%s2 + $0x59c] sm:$0xf]
  %v4404 = vld [vmem:[%s2 + $0x5a0] sm:$0xf]
  %v4405 = vld [vmem:[%s2 + $0x5a4] sm:$0xf]
  %v4406 = vld [vmem:[%s2 + $0x5a8] sm:$0xf]
  %v4407 = vld [vmem:[%s2 + $0x5ac] sm:$0xf]
  %v4408 = vld [vmem:[%s2 + $0x5b0] sm:$0xf]
  %v4409 = vld [vmem:[%s2 + $0x5b4] sm:$0xf]
  %v4410 = vld [vmem:[%s2 + $0x5b8] sm:$0xf]
  %v4411 = vld [vmem:[%s2 + $0x5bc] sm:$0xf]
  %v4412 = vld [vmem:[%s2 + $0x5c0] sm:$0xf]
  %v4413 = vld [vmem:[%s2 + $0x5c4] sm:$0xf]
  %v4414 = vld [vmem:[%s2 + $0x5c8] sm:$0xf]
  %v4415 = vld [vmem:[%s2 + $0x5cc] sm:$0xf]
  %v4416 = vld [vmem:[%s2 + $0x5d0] sm:$0xf]
  %v4417 = vld [vmem:[%s2 + $0x5d4] sm:$0xf]
  %v4418 = vld [vmem:[%s2 + $0x5d8] sm:$0xf]
  %v4419 = vld [vmem:[%s2 + $0x5dc] sm:$0xf]
  %v4420 = vld [vmem:[%s2 + $0x5e0] sm:$0xf]
  %v4421 = vld [vmem:[%s2 + $0x5e4] sm:$0xf]
  %v4422 = vld [vmem:[%s2 + $0x5e8] sm:$0xf]
  %v4423 = vld [vmem:[%s2 + $0x5ec] sm:$0xf]
  %v4424 = vld [vmem:[%s2 + $0x5f0] sm:$0xf]
  %v4425 = vld [vmem:[%s2 + $0x5f4] sm:$0xf]
  %v4426 = vld [vmem:[%s2 + $0x5f8] sm:$0xf]
  %v4427 = vld [vmem:[%s2 + $0x5fc] sm:$0xf]
  %v4428 = vld [vmem:[%s2 + $0x600] sm:$0xf]
  %v4429 = vld [vmem:[%s2 + $0x604] sm:$0xf]
  %v4430 = vld [vmem:[%s2 + $0x608] sm:$0xf]
  %v4431 = vld [vmem:[%s2 + $0x60c] sm:$0xf]
  %v4432 = vld [vmem:[%s2 + $0x610] sm:$0xf]
  %v4433 = vld [vmem:[%s2 + $0x614] sm:$0xf]
  %v4434 = vld [vmem:[%s2 + $0x618] sm:$0xf]
  %v4435 = vld [vmem:[%s2 + $0x61c] sm:$0xf]
  %v4436 = vld [vmem:[%s2 + $0x620] sm:$0xf]
  %v4437 = vld [vmem:[%s2 + $0x624] sm:$0xf]
  %v4438 = vld [vmem:[%s2 + $0x628] sm:$0xf]
  %v4439 = vld [vmem:[%s2 + $0x62c] sm:$0xf]
  %v4440 = vld [vmem:[%s2 + $0x630] sm:$0xf]
  %v4441 = vld [vmem:[%s2 + $0x634] sm:$0xf]
  %v4442 = vld [vmem:[%s2 + $0x638] sm:$0xf]
  %v4443 = vld [vmem:[%s2 + $0x63c] sm:$0xf]
  %v4444 = vld [vmem:[%s2 + $0x640] sm:$0xf]
  %v4445 = vld [vmem:[%s2 + $0x644] sm:$0xf]
  %v4446 = vld [vmem:[%s2 + $0x648] sm:$0xf]
  %v4447 = vld [vmem:[%s2 + $0x64c] sm:$0xf]
  %v4448 = vld [vmem:[%s2 + $0x650] sm:$0xf]
  %v4449 = vld [vmem:[%s2 + $0x654] sm:$0xf]
  %v4450 = vld [vmem:[%s2 + $0x658] sm:$0xf]
  %v4451 = vld [vmem:[%s2 + $0x65c] sm:$0xf]
  %v4452 = vld [vmem:[%s2 + $0x660] sm:$0xf]
  %v4453 = vld [vmem:[%s2 + $0x664] sm:$0xf]
  %v4454 = vld [vmem:[%s2 + $0x668] sm:$0xf]
  %v4455 = vld [vmem:[%s2 + $0x66c] sm:$0xf]
  %v4456 = vld [vmem:[%s2 + $0x670] sm:$0xf]
  %v4457 = vld [vmem:[%s2 + $0x674] sm:$0xf]
  %v4458 = vld [vmem:[%s2 + $0x678] sm:$0xf]
  %v4459 = vld [vmem:[%s2 + $0x67c] sm:$0xf]
  %v4460 = vld [vmem:[%s2 + $0x680] sm:$0xf]
  %v4461 = vld [vmem:[%s2 + $0x684] sm:$0xf]
  %v4462 = vld [vmem:[%s2 + $0x688] sm:$0xf]
  %v4463 = vld [vmem:[%s2 + $0x68c] sm:$0xf]
  %v4464 = vld [vmem:[%s2 + $0x690] sm:$0xf]
  %v4465 = vld [vmem:[%s2 + $0x694] sm:$0xf]
  %v4466 = vld [vmem:[%s2 + $0x698] sm:$0xf]
  %v4467 = vld [vmem:[%s2 + $0x69c] sm:$0xf]
  %v4468 = vld [vmem:[%s2 + $0x6a0] sm:$0xf]
  %v4469 = vld [vmem:[%s2 + $0x6a4] sm:$0xf]
  %v4470 = vld [vmem:[%s2 + $0x6a8] sm:$0xf]
  %v4471 = vld [vmem:[%s2 + $0x6ac] sm:$0xf]
  %v4472 = vld [vmem:[%s2 + $0x6b0] sm:$0xf]
  %v4473 = vld [vmem:[%s2 + $0x6b4] sm:$0xf]
  %v4474 = vld [vmem:[%s2 + $0x6b8] sm:$0xf]
  %v4475 = vld [vmem:[%s2 + $0x6bc] sm:$0xf]
  %v4476 = vld [vmem:[%s2 + $0x6c0] sm:$0xf]
  %v4477 = vld [vmem:[%s2 + $0x6c4] sm:$0xf]
  %v4478 = vld [vmem:[%s2 + $0x6c8] sm:$0xf]
  %v4479 = vld [vmem:[%s2 + $0x6cc] sm:$0xf]
  %v4480 = vld [vmem:[%s2 + $0x6d0] sm:$0xf]
  %v4481 = vld [vmem:[%s2 + $0x6d4] sm:$0xf]
  %v4482 = vld [vmem:[%s2 + $0x6d8] sm:$0xf]
  %v4483 = vld [vmem:[%s2 + $0x6dc] sm:$0xf]
  %v4484 = vld [vmem:[%s2 + $0x6e0] sm:$0xf]
  %v4485 = vld [vmem:[%s2 + $0x6e4] sm:$0xf]
  %v4486 = vld [vmem:[%s2 + $0x6e8] sm:$0xf]
  %v4487 = vld [vmem:[%s2 + $0x6ec] sm:$0xf]
  %v4488 = vld [vmem:[%s2 + $0x6f0] sm:$0xf]
  %v4489 = vld [vmem:[%s2 + $0x6f4] sm:$0xf]
  %v4490 = vld [vmem:[%s2 + $0x6f8] sm:$0xf]
  %v4491 = vld [vmem:[%s2 + $0x6fc] sm:$0xf]
  %v4492 = vld [vmem:[%s2 + $0x700] sm:$0xf]
  %v4493 = vld [vmem:[%s2 + $0x704] sm:$0xf]
  %v4494 = vld [vmem:[%s2 + $0x708] sm:$0xf]
  %v4495 = vld [vmem:[%s2 + $0x70c] sm:$0xf]
  %v4496 = vld [vmem:[%s2 + $0x710] sm:$0xf]
  %v4497 = vld [vmem:[%s2 + $0x714] sm:$0xf]
  %v4498 = vld [vmem:[%s2 + $0x718] sm:$0xf]
  %v4499 = vld [vmem:[%s2 + $0x71c] sm:$0xf]
  %v4500 = vld [vmem:[%s2 + $0x720] sm:$0xf]
  %v4501 = vld [vmem:[%s2 + $0x724] sm:$0xf]
  %v4502 = vld [vmem:[%s2 + $0x728] sm:$0xf]
  %v4503 = vld [vmem:[%s2 + $0x72c] sm:$0xf]
  %v4504 = vld [vmem:[%s2 + $0x730] sm:$0xf]
  %v4505 = vld [vmem:[%s2 + $0x734] sm:$0xf]
  %v4506 = vld [vmem:[%s2 + $0x738] sm:$0xf]
  %v4507 = vld [vmem:[%s2 + $0x73c] sm:$0xf]
  %v4508 = vld [vmem:[%s2 + $0x740] sm:$0xf]
  %v4509 = vld [vmem:[%s2 + $0x744] sm:$0xf]
  %v4510 = vld [vmem:[%s2 + $0x748] sm:$0xf]
  %v4511 = vld [vmem:[%s2 + $0x74c] sm:$0xf]
  %v4512 = vld [vmem:[%s2 + $0x750] sm:$0xf]
  %v4513 = vld [vmem:[%s2 + $0x754] sm:$0xf]
  %v4514 = vld [vmem:[%s2 + $0x758] sm:$0xf]
  %v4515 = vld [vmem:[%s2 + $0x75c] sm:$0xf]
  %v4516 = vld [vmem:[%s2 + $0x760] sm:$0xf]
  %v4517 = vld [vmem:[%s2 + $0x764] sm:$0xf]
  %v4518 = vld [vmem:[%s2 + $0x768] sm:$0xf]
  %v4519 = vld [vmem:[%s2 + $0x76c] sm:$0xf]
  %v4520 = vld [vmem:[%s2 + $0x770] sm:$0xf]
  %v4521 = vld [vmem:[%s2 + $0x774] sm:$0xf]
  %v4522 = vld [vmem:[%s2 + $0x778] sm:$0xf]
  %v4523 = vld [vmem:[%s2 + $0x77c] sm:$0xf]
  %v4524 = vld [vmem:[%s2 + $0x780] sm:$0xf]
  %v4525 = vld [vmem:[%s2 + $0x784] sm:$0xf]
  %v4526 = vld [vmem:[%s2 + $0x788] sm:$0xf]
  %v4527 = vld [vmem:[%s2 + $0x78c] sm:$0xf]
  %v4528 = vld [vmem:[%s2 + $0x790] sm:$0xf]
  %v4529 = vld [vmem:[%s2 + $0x794] sm:$0xf]
  %v4530 = vld [vmem:[%s2 + $0x798] sm:$0xf]
  %v4531 = vld [vmem:[%s2 + $0x79c] sm:$0xf]
  %v4532 = vld [vmem:[%s2 + $0x7a0] sm:$0xf]
  %v4533 = vld [vmem:[%s2 + $0x7a4] sm:$0xf]
  %v4534 = vld [vmem:[%s2 + $0x7a8] sm:$0xf]
  %v4535 = vld [vmem:[%s2 + $0x7ac] sm:$0xf]
  %v4536 = vld [vmem:[%s2 + $0x7b0] sm:$0xf]
  %v4537 = vld [vmem:[%s2 + $0x7b4] sm:$0xf]
  %v4538 = vld [vmem:[%s2 + $0x7b8] sm:$0xf]
  %v4539 = vld [vmem:[%s2 + $0x7bc] sm:$0xf]
  %v4540 = vld [vmem:[%s2 + $0x7c0] sm:$0xf]
  %v4541 = vld [vmem:[%s2 + $0x7c4] sm:$0xf]
  %v4542 = vld [vmem:[%s2 + $0x7c8] sm:$0xf]
  %v4543 = vld [vmem:[%s2 + $0x7cc] sm:$0xf]
  %v4544 = vld [vmem:[%s2 + $0x7d0] sm:$0xf]
  %v4545 = vld [vmem:[%s2 + $0x7d4] sm:$0xf]
  %v4546 = vld [vmem:[%s2 + $0x7d8] sm:$0xf]
  %v4547 = vld [vmem:[%s2 + $0x7dc] sm:$0xf]
  %v4548 = vld [vmem:[%s2 + $0x7e0] sm:$0xf]
  %v4549 = vld [vmem:[%s2 + $0x7e4] sm:$0xf]
  %v4550 = vld [vmem:[%s2 + $0x7e8] sm:$0xf]
  %v4551 = vld [vmem:[%s2 + $0x7ec] sm:$0xf]
  %v4552 = vld [vmem:[%s2 + $0x7f0] sm:$0xf]
  %v4553 = vld [vmem:[%s2 + $0x7f4] sm:$0xf]
  %v4554 = vld [vmem:[%s2 + $0x7f8] sm:$0xf]
  %v4555 = vld [vmem:[%s2 + $0x7fc] sm:$0xf]
  %v4556 = vld [vmem:[%s3] sm:$0x1]
  %v4558 = vperm.slane %v4556, 0
  %v4592 = vunpack.c.l.b16 %v4012
  %v4593 = vunpack.c.h.b16 %v4012
  %v4594 = vunpack.c.l.b16 %v4013
  %v4595 = vunpack.c.h.b16 %v4013
  %v4596 = vunpack.c.l.b16 %v4014
  %v4597 = vunpack.c.h.b16 %v4014
  %v4598 = vunpack.c.l.b16 %v4015
  %v4599 = vunpack.c.h.b16 %v4015
  %v4600 = vunpack.c.l.b16 %v4016
  %v4601 = vunpack.c.h.b16 %v4016
  %v4602 = vunpack.c.l.b16 %v4017
  %v4603 = vunpack.c.h.b16 %v4017
  %v4604 = vunpack.c.l.b16 %v4018
  %v4605 = vunpack.c.h.b16 %v4018
  %v4606 = vunpack.c.l.b16 %v4019
  %v4607 = vunpack.c.h.b16 %v4019
  %v4608 = vunpack.c.l.b16 %v4020
  %v4609 = vunpack.c.h.b16 %v4020
  %v4610 = vunpack.c.l.b16 %v4021
  %v4611 = vunpack.c.h.b16 %v4021
  %v4612 = vunpack.c.l.b16 %v4022
  %v4613 = vunpack.c.h.b16 %v4022
  %v4614 = vunpack.c.l.b16 %v4023
  %v4615 = vunpack.c.h.b16 %v4023
  %v4616 = vunpack.c.l.b16 %v4024
  %v4617 = vunpack.c.h.b16 %v4024
  %v4618 = vunpack.c.l.b16 %v4025
  %v4619 = vunpack.c.h.b16 %v4025
  %v4620 = vunpack.c.l.b16 %v4026
  %v4621 = vunpack.c.h.b16 %v4026
  %v4622 = vunpack.c.l.b16 %v4027
  %v4623 = vunpack.c.h.b16 %v4027
  %v4624 = vunpack.c.l.b16 %v4028
  %v4625 = vunpack.c.h.b16 %v4028
  %v4626 = vunpack.c.l.b16 %v4029
  %v4627 = vunpack.c.h.b16 %v4029
  %v4628 = vunpack.c.l.b16 %v4030
  %v4629 = vunpack.c.h.b16 %v4030
  %v4630 = vunpack.c.l.b16 %v4031
  %v4631 = vunpack.c.h.b16 %v4031
  %v4632 = vunpack.c.l.b16 %v4032
  %v4633 = vunpack.c.h.b16 %v4032
  %v4634 = vunpack.c.l.b16 %v4033
  %v4635 = vunpack.c.h.b16 %v4033
  %v4636 = vunpack.c.l.b16 %v4034
  %v4637 = vunpack.c.h.b16 %v4034
  %v4638 = vunpack.c.l.b16 %v4035
  %v4639 = vunpack.c.h.b16 %v4035
  %v4640 = vunpack.c.l.b16 %v4036
  %v4641 = vunpack.c.h.b16 %v4036
  %v4642 = vunpack.c.l.b16 %v4037
  %v4643 = vunpack.c.h.b16 %v4037
  %v4644 = vunpack.c.l.b16 %v4038
  %v4645 = vunpack.c.h.b16 %v4038
  %v4646 = vunpack.c.l.b16 %v4039
  %v4647 = vunpack.c.h.b16 %v4039
  %v4648 = vunpack.c.l.b16 %v4040
  %v4649 = vunpack.c.h.b16 %v4040
  %v4650 = vunpack.c.l.b16 %v4041
  %v4651 = vunpack.c.h.b16 %v4041
  %v4652 = vunpack.c.l.b16 %v4042
  %v4653 = vunpack.c.h.b16 %v4042
  %v4654 = vunpack.c.l.b16 %v4043
  %v4655 = vunpack.c.h.b16 %v4043
  %v4656 = vpack.c.b16 %v4624, %v4592
  %v4657 = vpack.c.b16 %v4625, %v4593
  %v4658 = vpack.c.b16 %v4626, %v4594
  %v4659 = vpack.c.b16 %v4627, %v4595
  %v4660 = vpack.c.b16 %v4628, %v4596
  %v4661 = vpack.c.b16 %v4629, %v4597
  %v4662 = vpack.c.b16 %v4630, %v4598
  %v4663 = vpack.c.b16 %v4631, %v4599
  %v4664 = vpack.c.b16 %v4632, %v4600
  %v4665 = vpack.c.b16 %v4633, %v4601
  %v4666 = vpack.c.b16 %v4634, %v4602
  %v4667 = vpack.c.b16 %v4635, %v4603
  %v4668 = vpack.c.b16 %v4636, %v4604
  %v4669 = vpack.c.b16 %v4637, %v4605
  %v4670 = vpack.c.b16 %v4638, %v4606
  %v4671 = vpack.c.b16 %v4639, %v4607
  %v4672 = vpack.c.b16 %v4640, %v4608
  %v4673 = vpack.c.b16 %v4641, %v4609
  %v4674 = vpack.c.b16 %v4642, %v4610
  %v4675 = vpack.c.b16 %v4643, %v4611
  %v4676 = vpack.c.b16 %v4644, %v4612
  %v4677 = vpack.c.b16 %v4645, %v4613
  %v4678 = vpack.c.b16 %v4646, %v4614
  %v4679 = vpack.c.b16 %v4647, %v4615
  %v4680 = vpack.c.b16 %v4648, %v4616
  %v4681 = vpack.c.b16 %v4649, %v4617
  %v4682 = vpack.c.b16 %v4650, %v4618
  %v4683 = vpack.c.b16 %v4651, %v4619
  %v4684 = vpack.c.b16 %v4652, %v4620
  %v4685 = vpack.c.b16 %v4653, %v4621
  %v4686 = vpack.c.b16 %v4654, %v4622
  %v4687 = vpack.c.b16 %v4655, %v4623
  %v5232 = vunpack.c.l.b16 %v4044
  %v5233 = vunpack.c.l.b16 %v4045
  %v5234 = vunpack.c.l.b16 %v4046
  %v5235 = vunpack.c.l.b16 %v4047
  %v5236 = vunpack.c.l.b16 %v4048
  %v5237 = vunpack.c.l.b16 %v4049
  %v5238 = vunpack.c.l.b16 %v4050
  %v5239 = vunpack.c.l.b16 %v4051
  %v5240 = vunpack.c.l.b16 %v4052
  %v5241 = vunpack.c.l.b16 %v4053
  %v5242 = vunpack.c.l.b16 %v4054
  %v5243 = vunpack.c.l.b16 %v4055
  %v5244 = vunpack.c.l.b16 %v4056
  %v5245 = vunpack.c.l.b16 %v4057
  %v5246 = vunpack.c.l.b16 %v4058
  %v5247 = vunpack.c.l.b16 %v4059
  %v5248 = vunpack.c.l.b16 %v4060
  %v5249 = vunpack.c.l.b16 %v4061
  %v5250 = vunpack.c.l.b16 %v4062
  %v5251 = vunpack.c.l.b16 %v4063
  %v5252 = vunpack.c.l.b16 %v4064
  %v5253 = vunpack.c.l.b16 %v4065
  %v5254 = vunpack.c.l.b16 %v4066
  %v5255 = vunpack.c.l.b16 %v4067
  %v5256 = vunpack.c.l.b16 %v4068
  %v5257 = vunpack.c.l.b16 %v4069
  %v5258 = vunpack.c.l.b16 %v4070
  %v5259 = vunpack.c.l.b16 %v4071
  %v5260 = vunpack.c.l.b16 %v4072
  %v5261 = vunpack.c.l.b16 %v4073
  %v5262 = vunpack.c.l.b16 %v4074
  %v5263 = vunpack.c.l.b16 %v4075
  %v5264 = vunpack.c.l.b16 %v4076
  %v5265 = vunpack.c.l.b16 %v4077
  %v5266 = vunpack.c.l.b16 %v4078
  %v5267 = vunpack.c.l.b16 %v4079
  %v5268 = vunpack.c.l.b16 %v4080
  %v5269 = vunpack.c.l.b16 %v4081
  %v5270 = vunpack.c.l.b16 %v4082
  %v5271 = vunpack.c.l.b16 %v4083
  %v5272 = vunpack.c.l.b16 %v4084
  %v5273 = vunpack.c.l.b16 %v4085
  %v5274 = vunpack.c.l.b16 %v4086
  %v5275 = vunpack.c.l.b16 %v4087
  %v5276 = vunpack.c.l.b16 %v4088
  %v5277 = vunpack.c.l.b16 %v4089
  %v5278 = vunpack.c.l.b16 %v4090
  %v5279 = vunpack.c.l.b16 %v4091
  %v5280 = vunpack.c.l.b16 %v4092
  %v5281 = vunpack.c.l.b16 %v4093
  %v5282 = vunpack.c.l.b16 %v4094
  %v5283 = vunpack.c.l.b16 %v4095
  %v5284 = vunpack.c.l.b16 %v4096
  %v5285 = vunpack.c.l.b16 %v4097
  %v5286 = vunpack.c.l.b16 %v4098
  %v5287 = vunpack.c.l.b16 %v4099
  %v5288 = vunpack.c.l.b16 %v4100
  %v5289 = vunpack.c.l.b16 %v4101
  %v5290 = vunpack.c.l.b16 %v4102
  %v5291 = vunpack.c.l.b16 %v4103
  %v5292 = vunpack.c.l.b16 %v4104
  %v5293 = vunpack.c.l.b16 %v4105
  %v5294 = vunpack.c.l.b16 %v4106
  %v5295 = vunpack.c.l.b16 %v4107
  %v5296 = vunpack.c.l.b16 %v4108
  %v5297 = vunpack.c.l.b16 %v4109
  %v5298 = vunpack.c.l.b16 %v4110
  %v5299 = vunpack.c.l.b16 %v4111
  %v5300 = vunpack.c.l.b16 %v4112
  %v5301 = vunpack.c.l.b16 %v4113
  %v5302 = vunpack.c.l.b16 %v4114
  %v5303 = vunpack.c.l.b16 %v4115
  %v5304 = vunpack.c.l.b16 %v4116
  %v5305 = vunpack.c.l.b16 %v4117
  %v5306 = vunpack.c.l.b16 %v4118
  %v5307 = vunpack.c.l.b16 %v4119
  %v5308 = vunpack.c.l.b16 %v4120
  %v5309 = vunpack.c.l.b16 %v4121
  %v5310 = vunpack.c.l.b16 %v4122
  %v5311 = vunpack.c.l.b16 %v4123
  %v5312 = vunpack.c.l.b16 %v4124
  %v5313 = vunpack.c.l.b16 %v4125
  %v5314 = vunpack.c.l.b16 %v4126
  %v5315 = vunpack.c.l.b16 %v4127
  %v5316 = vunpack.c.l.b16 %v4128
  %v5317 = vunpack.c.l.b16 %v4129
  %v5318 = vunpack.c.l.b16 %v4130
  %v5319 = vunpack.c.l.b16 %v4131
  %v5320 = vunpack.c.l.b16 %v4132
  %v5321 = vunpack.c.l.b16 %v4133
  %v5322 = vunpack.c.l.b16 %v4134
  %v5323 = vunpack.c.l.b16 %v4135
  %v5324 = vunpack.c.l.b16 %v4136
  %v5325 = vunpack.c.l.b16 %v4137
  %v5326 = vunpack.c.l.b16 %v4138
  %v5327 = vunpack.c.l.b16 %v4139
  %v5328 = vunpack.c.l.b16 %v4140
  %v5329 = vunpack.c.l.b16 %v4141
  %v5330 = vunpack.c.l.b16 %v4142
  %v5331 = vunpack.c.l.b16 %v4143
  %v5332 = vunpack.c.l.b16 %v4144
  %v5333 = vunpack.c.l.b16 %v4145
  %v5334 = vunpack.c.l.b16 %v4146
  %v5335 = vunpack.c.l.b16 %v4147
  %v5336 = vunpack.c.l.b16 %v4148
  %v5337 = vunpack.c.l.b16 %v4149
  %v5338 = vunpack.c.l.b16 %v4150
  %v5339 = vunpack.c.l.b16 %v4151
  %v5340 = vunpack.c.l.b16 %v4152
  %v5341 = vunpack.c.l.b16 %v4153
  %v5342 = vunpack.c.l.b16 %v4154
  %v5343 = vunpack.c.l.b16 %v4155
  %v5344 = vunpack.c.l.b16 %v4156
  %v5345 = vunpack.c.l.b16 %v4157
  %v5346 = vunpack.c.l.b16 %v4158
  %v5347 = vunpack.c.l.b16 %v4159
  %v5348 = vunpack.c.l.b16 %v4160
  %v5349 = vunpack.c.l.b16 %v4161
  %v5350 = vunpack.c.l.b16 %v4162
  %v5351 = vunpack.c.l.b16 %v4163
  %v5352 = vunpack.c.l.b16 %v4164
  %v5353 = vunpack.c.l.b16 %v4165
  %v5354 = vunpack.c.l.b16 %v4166
  %v5355 = vunpack.c.l.b16 %v4167
  %v5356 = vunpack.c.l.b16 %v4168
  %v5357 = vunpack.c.l.b16 %v4169
  %v5358 = vunpack.c.l.b16 %v4170
  %v5359 = vunpack.c.l.b16 %v4171
  %v5360 = vunpack.c.l.b16 %v4172
  %v5361 = vunpack.c.l.b16 %v4173
  %v5362 = vunpack.c.l.b16 %v4174
  %v5363 = vunpack.c.l.b16 %v4175
  %v5364 = vunpack.c.l.b16 %v4176
  %v5365 = vunpack.c.l.b16 %v4177
  %v5366 = vunpack.c.l.b16 %v4178
  %v5367 = vunpack.c.l.b16 %v4179
  %v5368 = vunpack.c.l.b16 %v4180
  %v5369 = vunpack.c.l.b16 %v4181
  %v5370 = vunpack.c.l.b16 %v4182
  %v5371 = vunpack.c.l.b16 %v4183
  %v5372 = vunpack.c.l.b16 %v4184
  %v5373 = vunpack.c.l.b16 %v4185
  %v5374 = vunpack.c.l.b16 %v4186
  %v5375 = vunpack.c.l.b16 %v4187
  %v5376 = vunpack.c.l.b16 %v4188
  %v5377 = vunpack.c.l.b16 %v4189
  %v5378 = vunpack.c.l.b16 %v4190
  %v5379 = vunpack.c.l.b16 %v4191
  %v5380 = vunpack.c.l.b16 %v4192
  %v5381 = vunpack.c.l.b16 %v4193
  %v5382 = vunpack.c.l.b16 %v4194
  %v5383 = vunpack.c.l.b16 %v4195
  %v5384 = vunpack.c.l.b16 %v4196
  %v5385 = vunpack.c.l.b16 %v4197
  %v5386 = vunpack.c.l.b16 %v4198
  %v5387 = vunpack.c.l.b16 %v4199
  %v5388 = vunpack.c.l.b16 %v4200
  %v5389 = vunpack.c.l.b16 %v4201
  %v5390 = vunpack.c.l.b16 %v4202
  %v5391 = vunpack.c.l.b16 %v4203
  %v5392 = vunpack.c.l.b16 %v4204
  %v5393 = vunpack.c.l.b16 %v4205
  %v5394 = vunpack.c.l.b16 %v4206
  %v5395 = vunpack.c.l.b16 %v4207
  %v5396 = vunpack.c.l.b16 %v4208
  %v5397 = vunpack.c.l.b16 %v4209
  %v5398 = vunpack.c.l.b16 %v4210
  %v5399 = vunpack.c.l.b16 %v4211
  %v5400 = vunpack.c.l.b16 %v4212
  %v5401 = vunpack.c.l.b16 %v4213
  %v5402 = vunpack.c.l.b16 %v4214
  %v5403 = vunpack.c.l.b16 %v4215
  %v5404 = vunpack.c.l.b16 %v4216
  %v5405 = vunpack.c.l.b16 %v4217
  %v5406 = vunpack.c.l.b16 %v4218
  %v5407 = vunpack.c.l.b16 %v4219
  %v5408 = vunpack.c.l.b16 %v4220
  %v5409 = vunpack.c.l.b16 %v4221
  %v5410 = vunpack.c.l.b16 %v4222
  %v5411 = vunpack.c.l.b16 %v4223
  %v5412 = vunpack.c.l.b16 %v4224
  %v5413 = vunpack.c.l.b16 %v4225
  %v5414 = vunpack.c.l.b16 %v4226
  %v5415 = vunpack.c.l.b16 %v4227
  %v5416 = vunpack.c.l.b16 %v4228
  %v5417 = vunpack.c.l.b16 %v4229
  %v5418 = vunpack.c.l.b16 %v4230
  %v5419 = vunpack.c.l.b16 %v4231
  %v5420 = vunpack.c.l.b16 %v4232
  %v5421 = vunpack.c.l.b16 %v4233
  %v5422 = vunpack.c.l.b16 %v4234
  %v5423 = vunpack.c.l.b16 %v4235
  %v5424 = vunpack.c.l.b16 %v4236
  %v5425 = vunpack.c.l.b16 %v4237
  %v5426 = vunpack.c.l.b16 %v4238
  %v5427 = vunpack.c.l.b16 %v4239
  %v5428 = vunpack.c.l.b16 %v4240
  %v5429 = vunpack.c.l.b16 %v4241
  %v5430 = vunpack.c.l.b16 %v4242
  %v5431 = vunpack.c.l.b16 %v4243
  %v5432 = vunpack.c.l.b16 %v4244
  %v5433 = vunpack.c.l.b16 %v4245
  %v5434 = vunpack.c.l.b16 %v4246
  %v5435 = vunpack.c.l.b16 %v4247
  %v5436 = vunpack.c.l.b16 %v4248
  %v5437 = vunpack.c.l.b16 %v4249
  %v5438 = vunpack.c.l.b16 %v4250
  %v5439 = vunpack.c.l.b16 %v4251
  %v5440 = vunpack.c.l.b16 %v4252
  %v5441 = vunpack.c.l.b16 %v4253
  %v5442 = vunpack.c.l.b16 %v4254
  %v5443 = vunpack.c.l.b16 %v4255
  %v5444 = vunpack.c.l.b16 %v4256
  %v5445 = vunpack.c.l.b16 %v4257
  %v5446 = vunpack.c.l.b16 %v4258
  %v5447 = vunpack.c.l.b16 %v4259
  %v5448 = vunpack.c.l.b16 %v4260
  %v5449 = vunpack.c.l.b16 %v4261
  %v5450 = vunpack.c.l.b16 %v4262
  %v5451 = vunpack.c.l.b16 %v4263
  %v5452 = vunpack.c.l.b16 %v4264
  %v5453 = vunpack.c.l.b16 %v4265
  %v5454 = vunpack.c.l.b16 %v4266
  %v5455 = vunpack.c.l.b16 %v4267
  %v5456 = vunpack.c.l.b16 %v4268
  %v5457 = vunpack.c.l.b16 %v4269
  %v5458 = vunpack.c.l.b16 %v4270
  %v5459 = vunpack.c.l.b16 %v4271
  %v5460 = vunpack.c.l.b16 %v4272
  %v5461 = vunpack.c.l.b16 %v4273
  %v5462 = vunpack.c.l.b16 %v4274
  %v5463 = vunpack.c.l.b16 %v4275
  %v5464 = vunpack.c.l.b16 %v4276
  %v5465 = vunpack.c.l.b16 %v4277
  %v5466 = vunpack.c.l.b16 %v4278
  %v5467 = vunpack.c.l.b16 %v4279
  %v5468 = vunpack.c.l.b16 %v4280
  %v5469 = vunpack.c.l.b16 %v4281
  %v5470 = vunpack.c.l.b16 %v4282
  %v5471 = vunpack.c.l.b16 %v4283
  %v5472 = vunpack.c.l.b16 %v4284
  %v5473 = vunpack.c.l.b16 %v4285
  %v5474 = vunpack.c.l.b16 %v4286
  %v5475 = vunpack.c.l.b16 %v4287
  %v5476 = vunpack.c.l.b16 %v4288
  %v5477 = vunpack.c.l.b16 %v4289
  %v5478 = vunpack.c.l.b16 %v4290
  %v5479 = vunpack.c.l.b16 %v4291
  %v5480 = vunpack.c.l.b16 %v4292
  %v5481 = vunpack.c.l.b16 %v4293
  %v5482 = vunpack.c.l.b16 %v4294
  %v5483 = vunpack.c.l.b16 %v4295
  %v5484 = vunpack.c.l.b16 %v4296
  %v5485 = vunpack.c.l.b16 %v4297
  %v5486 = vunpack.c.l.b16 %v4298
  %v5487 = vunpack.c.l.b16 %v4299
  %v5488 = vunpack.c.l.b16 %v4300
  %v5489 = vunpack.c.l.b16 %v4301
  %v5490 = vunpack.c.l.b16 %v4302
  %v5491 = vunpack.c.l.b16 %v4303
  %v5492 = vunpack.c.l.b16 %v4304
  %v5493 = vunpack.c.l.b16 %v4305
  %v5494 = vunpack.c.l.b16 %v4306
  %v5495 = vunpack.c.l.b16 %v4307
  %v5496 = vunpack.c.l.b16 %v4308
  %v5497 = vunpack.c.l.b16 %v4309
  %v5498 = vunpack.c.l.b16 %v4310
  %v5499 = vunpack.c.l.b16 %v4311
  %v5500 = vunpack.c.l.b16 %v4312
  %v5501 = vunpack.c.l.b16 %v4313
  %v5502 = vunpack.c.l.b16 %v4314
  %v5503 = vunpack.c.l.b16 %v4315
  %v5504 = vunpack.c.l.b16 %v4316
  %v5505 = vunpack.c.l.b16 %v4317
  %v5506 = vunpack.c.l.b16 %v4318
  %v5507 = vunpack.c.l.b16 %v4319
  %v5508 = vunpack.c.l.b16 %v4320
  %v5509 = vunpack.c.l.b16 %v4321
  %v5510 = vunpack.c.l.b16 %v4322
  %v5511 = vunpack.c.l.b16 %v4323
  %v5512 = vunpack.c.l.b16 %v4324
  %v5513 = vunpack.c.l.b16 %v4325
  %v5514 = vunpack.c.l.b16 %v4326
  %v5515 = vunpack.c.l.b16 %v4327
  %v5516 = vunpack.c.l.b16 %v4328
  %v5517 = vunpack.c.l.b16 %v4329
  %v5518 = vunpack.c.l.b16 %v4330
  %v5519 = vunpack.c.l.b16 %v4331
  %v5520 = vunpack.c.l.b16 %v4332
  %v5521 = vunpack.c.l.b16 %v4333
  %v5522 = vunpack.c.l.b16 %v4334
  %v5523 = vunpack.c.l.b16 %v4335
  %v5524 = vunpack.c.l.b16 %v4336
  %v5525 = vunpack.c.l.b16 %v4337
  %v5526 = vunpack.c.l.b16 %v4338
  %v5527 = vunpack.c.l.b16 %v4339
  %v5528 = vunpack.c.l.b16 %v4340
  %v5529 = vunpack.c.l.b16 %v4341
  %v5530 = vunpack.c.l.b16 %v4342
  %v5531 = vunpack.c.l.b16 %v4343
  %v5532 = vunpack.c.l.b16 %v4344
  %v5533 = vunpack.c.l.b16 %v4345
  %v5534 = vunpack.c.l.b16 %v4346
  %v5535 = vunpack.c.l.b16 %v4347
  %v5536 = vunpack.c.l.b16 %v4348
  %v5537 = vunpack.c.l.b16 %v4349
  %v5538 = vunpack.c.l.b16 %v4350
  %v5539 = vunpack.c.l.b16 %v4351
  %v5540 = vunpack.c.l.b16 %v4352
  %v5541 = vunpack.c.l.b16 %v4353
  %v5542 = vunpack.c.l.b16 %v4354
  %v5543 = vunpack.c.l.b16 %v4355
  %v5544 = vunpack.c.l.b16 %v4356
  %v5545 = vunpack.c.l.b16 %v4357
  %v5546 = vunpack.c.l.b16 %v4358
  %v5547 = vunpack.c.l.b16 %v4359
  %v5548 = vunpack.c.l.b16 %v4360
  %v5549 = vunpack.c.l.b16 %v4361
  %v5550 = vunpack.c.l.b16 %v4362
  %v5551 = vunpack.c.l.b16 %v4363
  %v5552 = vunpack.c.l.b16 %v4364
  %v5553 = vunpack.c.l.b16 %v4365
  %v5554 = vunpack.c.l.b16 %v4366
  %v5555 = vunpack.c.l.b16 %v4367
  %v5556 = vunpack.c.l.b16 %v4368
  %v5557 = vunpack.c.l.b16 %v4369
  %v5558 = vunpack.c.l.b16 %v4370
  %v5559 = vunpack.c.l.b16 %v4371
  %v5560 = vunpack.c.l.b16 %v4372
  %v5561 = vunpack.c.l.b16 %v4373
  %v5562 = vunpack.c.l.b16 %v4374
  %v5563 = vunpack.c.l.b16 %v4375
  %v5564 = vunpack.c.l.b16 %v4376
  %v5565 = vunpack.c.l.b16 %v4377
  %v5566 = vunpack.c.l.b16 %v4378
  %v5567 = vunpack.c.l.b16 %v4379
  %v5568 = vunpack.c.l.b16 %v4380
  %v5569 = vunpack.c.l.b16 %v4381
  %v5570 = vunpack.c.l.b16 %v4382
  %v5571 = vunpack.c.l.b16 %v4383
  %v5572 = vunpack.c.l.b16 %v4384
  %v5573 = vunpack.c.l.b16 %v4385
  %v5574 = vunpack.c.l.b16 %v4386
  %v5575 = vunpack.c.l.b16 %v4387
  %v5576 = vunpack.c.l.b16 %v4388
  %v5577 = vunpack.c.l.b16 %v4389
  %v5578 = vunpack.c.l.b16 %v4390
  %v5579 = vunpack.c.l.b16 %v4391
  %v5580 = vunpack.c.l.b16 %v4392
  %v5581 = vunpack.c.l.b16 %v4393
  %v5582 = vunpack.c.l.b16 %v4394
  %v5583 = vunpack.c.l.b16 %v4395
  %v5584 = vunpack.c.l.b16 %v4396
  %v5585 = vunpack.c.l.b16 %v4397
  %v5586 = vunpack.c.l.b16 %v4398
  %v5587 = vunpack.c.l.b16 %v4399
  %v5588 = vunpack.c.l.b16 %v4400
  %v5589 = vunpack.c.l.b16 %v4401
  %v5590 = vunpack.c.l.b16 %v4402
  %v5591 = vunpack.c.l.b16 %v4403
  %v5592 = vunpack.c.l.b16 %v4404
  %v5593 = vunpack.c.l.b16 %v4405
  %v5594 = vunpack.c.l.b16 %v4406
  %v5595 = vunpack.c.l.b16 %v4407
  %v5596 = vunpack.c.l.b16 %v4408
  %v5597 = vunpack.c.l.b16 %v4409
  %v5598 = vunpack.c.l.b16 %v4410
  %v5599 = vunpack.c.l.b16 %v4411
  %v5600 = vunpack.c.l.b16 %v4412
  %v5601 = vunpack.c.l.b16 %v4413
  %v5602 = vunpack.c.l.b16 %v4414
  %v5603 = vunpack.c.l.b16 %v4415
  %v5604 = vunpack.c.l.b16 %v4416
  %v5605 = vunpack.c.l.b16 %v4417
  %v5606 = vunpack.c.l.b16 %v4418
  %v5607 = vunpack.c.l.b16 %v4419
  %v5608 = vunpack.c.l.b16 %v4420
  %v5609 = vunpack.c.l.b16 %v4421
  %v5610 = vunpack.c.l.b16 %v4422
  %v5611 = vunpack.c.l.b16 %v4423
  %v5612 = vunpack.c.l.b16 %v4424
  %v5613 = vunpack.c.l.b16 %v4425
  %v5614 = vunpack.c.l.b16 %v4426
  %v5615 = vunpack.c.l.b16 %v4427
  %v5616 = vunpack.c.l.b16 %v4428
  %v5617 = vunpack.c.l.b16 %v4429
  %v5618 = vunpack.c.l.b16 %v4430
  %v5619 = vunpack.c.l.b16 %v4431
  %v5620 = vunpack.c.l.b16 %v4432
  %v5621 = vunpack.c.l.b16 %v4433
  %v5622 = vunpack.c.l.b16 %v4434
  %v5623 = vunpack.c.l.b16 %v4435
  %v5624 = vunpack.c.l.b16 %v4436
  %v5625 = vunpack.c.l.b16 %v4437
  %v5626 = vunpack.c.l.b16 %v4438
  %v5627 = vunpack.c.l.b16 %v4439
  %v5628 = vunpack.c.l.b16 %v4440
  %v5629 = vunpack.c.l.b16 %v4441
  %v5630 = vunpack.c.l.b16 %v4442
  %v5631 = vunpack.c.l.b16 %v4443
  %v5632 = vunpack.c.l.b16 %v4444
  %v5633 = vunpack.c.l.b16 %v4445
  %v5634 = vunpack.c.l.b16 %v4446
  %v5635 = vunpack.c.l.b16 %v4447
  %v5636 = vunpack.c.l.b16 %v4448
  %v5637 = vunpack.c.l.b16 %v4449
  %v5638 = vunpack.c.l.b16 %v4450
  %v5639 = vunpack.c.l.b16 %v4451
  %v5640 = vunpack.c.l.b16 %v4452
  %v5641 = vunpack.c.l.b16 %v4453
  %v5642 = vunpack.c.l.b16 %v4454
  %v5643 = vunpack.c.l.b16 %v4455
  %v5644 = vunpack.c.l.b16 %v4456
  %v5645 = vunpack.c.l.b16 %v4457
  %v5646 = vunpack.c.l.b16 %v4458
  %v5647 = vunpack.c.l.b16 %v4459
  %v5648 = vunpack.c.l.b16 %v4460
  %v5649 = vunpack.c.l.b16 %v4461
  %v5650 = vunpack.c.l.b16 %v4462
  %v5651 = vunpack.c.l.b16 %v4463
  %v5652 = vunpack.c.l.b16 %v4464
  %v5653 = vunpack.c.l.b16 %v4465
  %v5654 = vunpack.c.l.b16 %v4466
  %v5655 = vunpack.c.l.b16 %v4467
  %v5656 = vunpack.c.l.b16 %v4468
  %v5657 = vunpack.c.l.b16 %v4469
  %v5658 = vunpack.c.l.b16 %v4470
  %v5659 = vunpack.c.l.b16 %v4471
  %v5660 = vunpack.c.l.b16 %v4472
  %v5661 = vunpack.c.l.b16 %v4473
  %v5662 = vunpack.c.l.b16 %v4474
  %v5663 = vunpack.c.l.b16 %v4475
  %v5664 = vunpack.c.l.b16 %v4476
  %v5665 = vunpack.c.l.b16 %v4477
  %v5666 = vunpack.c.l.b16 %v4478
  %v5667 = vunpack.c.l.b16 %v4479
  %v5668 = vunpack.c.l.b16 %v4480
  %v5669 = vunpack.c.l.b16 %v4481
  %v5670 = vunpack.c.l.b16 %v4482
  %v5671 = vunpack.c.l.b16 %v4483
  %v5672 = vunpack.c.l.b16 %v4484
  %v5673 = vunpack.c.l.b16 %v4485
  %v5674 = vunpack.c.l.b16 %v4486
  %v5675 = vunpack.c.l.b16 %v4487
  %v5676 = vunpack.c.l.b16 %v4488
  %v5677 = vunpack.c.l.b16 %v4489
  %v5678 = vunpack.c.l.b16 %v4490
  %v5679 = vunpack.c.l.b16 %v4491
  %v5680 = vunpack.c.l.b16 %v4492
  %v5681 = vunpack.c.l.b16 %v4493
  %v5682 = vunpack.c.l.b16 %v4494
  %v5683 = vunpack.c.l.b16 %v4495
  %v5684 = vunpack.c.l.b16 %v4496
  %v5685 = vunpack.c.l.b16 %v4497
  %v5686 = vunpack.c.l.b16 %v4498
  %v5687 = vunpack.c.l.b16 %v4499
  %v5688 = vunpack.c.l.b16 %v4500
  %v5689 = vunpack.c.l.b16 %v4501
  %v5690 = vunpack.c.l.b16 %v4502
  %v5691 = vunpack.c.l.b16 %v4503
  %v5692 = vunpack.c.l.b16 %v4504
  %v5693 = vunpack.c.l.b16 %v4505
  %v5694 = vunpack.c.l.b16 %v4506
  %v5695 = vunpack.c.l.b16 %v4507
  %v5696 = vunpack.c.l.b16 %v4508
  %v5697 = vunpack.c.l.b16 %v4509
  %v5698 = vunpack.c.l.b16 %v4510
  %v5699 = vunpack.c.l.b16 %v4511
  %v5700 = vunpack.c.l.b16 %v4512
  %v5701 = vunpack.c.l.b16 %v4513
  %v5702 = vunpack.c.l.b16 %v4514
  %v5703 = vunpack.c.l.b16 %v4515
  %v5704 = vunpack.c.l.b16 %v4516
  %v5705 = vunpack.c.l.b16 %v4517
  %v5706 = vunpack.c.l.b16 %v4518
  %v5707 = vunpack.c.l.b16 %v4519
  %v5708 = vunpack.c.l.b16 %v4520
  %v5709 = vunpack.c.l.b16 %v4521
  %v5710 = vunpack.c.l.b16 %v4522
  %v5711 = vunpack.c.l.b16 %v4523
  %v5712 = vunpack.c.l.b16 %v4524
  %v5713 = vunpack.c.l.b16 %v4525
  %v5714 = vunpack.c.l.b16 %v4526
  %v5715 = vunpack.c.l.b16 %v4527
  %v5716 = vunpack.c.l.b16 %v4528
  %v5717 = vunpack.c.l.b16 %v4529
  %v5718 = vunpack.c.l.b16 %v4530
  %v5719 = vunpack.c.l.b16 %v4531
  %v5720 = vunpack.c.l.b16 %v4532
  %v5721 = vunpack.c.l.b16 %v4533
  %v5722 = vunpack.c.l.b16 %v4534
  %v5723 = vunpack.c.l.b16 %v4535
  %v5724 = vunpack.c.l.b16 %v4536
  %v5725 = vunpack.c.l.b16 %v4537
  %v5726 = vunpack.c.l.b16 %v4538
  %v5727 = vunpack.c.l.b16 %v4539
  %v5728 = vunpack.c.l.b16 %v4540
  %v5729 = vunpack.c.l.b16 %v4541
  %v5730 = vunpack.c.l.b16 %v4542
  %v5731 = vunpack.c.l.b16 %v4543
  %v5732 = vunpack.c.l.b16 %v4544
  %v5733 = vunpack.c.l.b16 %v4545
  %v5734 = vunpack.c.l.b16 %v4546
  %v5735 = vunpack.c.l.b16 %v4547
  %v5736 = vunpack.c.l.b16 %v4548
  %v5737 = vunpack.c.l.b16 %v4549
  %v5738 = vunpack.c.l.b16 %v4550
  %v5739 = vunpack.c.l.b16 %v4551
  %v5740 = vunpack.c.l.b16 %v4552
  %v5741 = vunpack.c.l.b16 %v4553
  %v5742 = vunpack.c.l.b16 %v4554
  %v5743 = vunpack.c.l.b16 %v4555
  %v5744 = vpack.c.b16 %v5233, %v5232
  %v5745 = vpack.c.b16 %v5235, %v5234
  %v5746 = vpack.c.b16 %v5237, %v5236
  %v5747 = vpack.c.b16 %v5239, %v5238
  %v5748 = vpack.c.b16 %v5241, %v5240
  %v5749 = vpack.c.b16 %v5243, %v5242
  %v5750 = vpack.c.b16 %v5245, %v5244
  %v5751 = vpack.c.b16 %v5247, %v5246
  %v5752 = vpack.c.b16 %v5249, %v5248
  %v5753 = vpack.c.b16 %v5251, %v5250
  %v5754 = vpack.c.b16 %v5253, %v5252
  %v5755 = vpack.c.b16 %v5255, %v5254
  %v5756 = vpack.c.b16 %v5257, %v5256
  %v5757 = vpack.c.b16 %v5259, %v5258
  %v5758 = vpack.c.b16 %v5261, %v5260
  %v5759 = vpack.c.b16 %v5263, %v5262
  %v5760 = vpack.c.b16 %v5265, %v5264
  %v5761 = vpack.c.b16 %v5267, %v5266
  %v5762 = vpack.c.b16 %v5269, %v5268
  %v5763 = vpack.c.b16 %v5271, %v5270
  %v5764 = vpack.c.b16 %v5273, %v5272
  %v5765 = vpack.c.b16 %v5275, %v5274
  %v5766 = vpack.c.b16 %v5277, %v5276
  %v5767 = vpack.c.b16 %v5279, %v5278
  %v5768 = vpack.c.b16 %v5281, %v5280
  %v5769 = vpack.c.b16 %v5283, %v5282
  %v5770 = vpack.c.b16 %v5285, %v5284
  %v5771 = vpack.c.b16 %v5287, %v5286
  %v5772 = vpack.c.b16 %v5289, %v5288
  %v5773 = vpack.c.b16 %v5291, %v5290
  %v5774 = vpack.c.b16 %v5293, %v5292
  %v5775 = vpack.c.b16 %v5295, %v5294
  %v5776 = vpack.c.b16 %v5297, %v5296
  %v5777 = vpack.c.b16 %v5299, %v5298
  %v5778 = vpack.c.b16 %v5301, %v5300
  %v5779 = vpack.c.b16 %v5303, %v5302
  %v5780 = vpack.c.b16 %v5305, %v5304
  %v5781 = vpack.c.b16 %v5307, %v5306
  %v5782 = vpack.c.b16 %v5309, %v5308
  %v5783 = vpack.c.b16 %v5311, %v5310
  %v5784 = vpack.c.b16 %v5313, %v5312
  %v5785 = vpack.c.b16 %v5315, %v5314
  %v5786 = vpack.c.b16 %v5317, %v5316
  %v5787 = vpack.c.b16 %v5319, %v5318
  %v5788 = vpack.c.b16 %v5321, %v5320
  %v5789 = vpack.c.b16 %v5323, %v5322
  %v5790 = vpack.c.b16 %v5325, %v5324
  %v5791 = vpack.c.b16 %v5327, %v5326
  %v5792 = vpack.c.b16 %v5329, %v5328
  %v5793 = vpack.c.b16 %v5331, %v5330
  %v5794 = vpack.c.b16 %v5333, %v5332
  %v5795 = vpack.c.b16 %v5335, %v5334
  %v5796 = vpack.c.b16 %v5337, %v5336
  %v5797 = vpack.c.b16 %v5339, %v5338
  %v5798 = vpack.c.b16 %v5341, %v5340
  %v5799 = vpack.c.b16 %v5343, %v5342
  %v5800 = vpack.c.b16 %v5345, %v5344
  %v5801 = vpack.c.b16 %v5347, %v5346
  %v5802 = vpack.c.b16 %v5349, %v5348
  %v5803 = vpack.c.b16 %v5351, %v5350
  %v5804 = vpack.c.b16 %v5353, %v5352
  %v5805 = vpack.c.b16 %v5355, %v5354
  %v5806 = vpack.c.b16 %v5357, %v5356
  %v5807 = vpack.c.b16 %v5359, %v5358
  %v5808 = vpack.c.b16 %v5361, %v5360
  %v5809 = vpack.c.b16 %v5363, %v5362
  %v5810 = vpack.c.b16 %v5365, %v5364
  %v5811 = vpack.c.b16 %v5367, %v5366
  %v5812 = vpack.c.b16 %v5369, %v5368
  %v5813 = vpack.c.b16 %v5371, %v5370
  %v5814 = vpack.c.b16 %v5373, %v5372
  %v5815 = vpack.c.b16 %v5375, %v5374
  %v5816 = vpack.c.b16 %v5377, %v5376
  %v5817 = vpack.c.b16 %v5379, %v5378
  %v5818 = vpack.c.b16 %v5381, %v5380
  %v5819 = vpack.c.b16 %v5383, %v5382
  %v5820 = vpack.c.b16 %v5385, %v5384
  %v5821 = vpack.c.b16 %v5387, %v5386
  %v5822 = vpack.c.b16 %v5389, %v5388
  %v5823 = vpack.c.b16 %v5391, %v5390
  %v5824 = vpack.c.b16 %v5393, %v5392
  %v5825 = vpack.c.b16 %v5395, %v5394
  %v5826 = vpack.c.b16 %v5397, %v5396
  %v5827 = vpack.c.b16 %v5399, %v5398
  %v5828 = vpack.c.b16 %v5401, %v5400
  %v5829 = vpack.c.b16 %v5403, %v5402
  %v5830 = vpack.c.b16 %v5405, %v5404
  %v5831 = vpack.c.b16 %v5407, %v5406
  %v5832 = vpack.c.b16 %v5409, %v5408
  %v5833 = vpack.c.b16 %v5411, %v5410
  %v5834 = vpack.c.b16 %v5413, %v5412
  %v5835 = vpack.c.b16 %v5415, %v5414
  %v5836 = vpack.c.b16 %v5417, %v5416
  %v5837 = vpack.c.b16 %v5419, %v5418
  %v5838 = vpack.c.b16 %v5421, %v5420
  %v5839 = vpack.c.b16 %v5423, %v5422
  %v5840 = vpack.c.b16 %v5425, %v5424
  %v5841 = vpack.c.b16 %v5427, %v5426
  %v5842 = vpack.c.b16 %v5429, %v5428
  %v5843 = vpack.c.b16 %v5431, %v5430
  %v5844 = vpack.c.b16 %v5433, %v5432
  %v5845 = vpack.c.b16 %v5435, %v5434
  %v5846 = vpack.c.b16 %v5437, %v5436
  %v5847 = vpack.c.b16 %v5439, %v5438
  %v5848 = vpack.c.b16 %v5441, %v5440
  %v5849 = vpack.c.b16 %v5443, %v5442
  %v5850 = vpack.c.b16 %v5445, %v5444
  %v5851 = vpack.c.b16 %v5447, %v5446
  %v5852 = vpack.c.b16 %v5449, %v5448
  %v5853 = vpack.c.b16 %v5451, %v5450
  %v5854 = vpack.c.b16 %v5453, %v5452
  %v5855 = vpack.c.b16 %v5455, %v5454
  %v5856 = vpack.c.b16 %v5457, %v5456
  %v5857 = vpack.c.b16 %v5459, %v5458
  %v5858 = vpack.c.b16 %v5461, %v5460
  %v5859 = vpack.c.b16 %v5463, %v5462
  %v5860 = vpack.c.b16 %v5465, %v5464
  %v5861 = vpack.c.b16 %v5467, %v5466
  %v5862 = vpack.c.b16 %v5469, %v5468
  %v5863 = vpack.c.b16 %v5471, %v5470
  %v5864 = vpack.c.b16 %v5473, %v5472
  %v5865 = vpack.c.b16 %v5475, %v5474
  %v5866 = vpack.c.b16 %v5477, %v5476
  %v5867 = vpack.c.b16 %v5479, %v5478
  %v5868 = vpack.c.b16 %v5481, %v5480
  %v5869 = vpack.c.b16 %v5483, %v5482
  %v5870 = vpack.c.b16 %v5485, %v5484
  %v5871 = vpack.c.b16 %v5487, %v5486
  %v5872 = vpack.c.b16 %v5489, %v5488
  %v5873 = vpack.c.b16 %v5491, %v5490
  %v5874 = vpack.c.b16 %v5493, %v5492
  %v5875 = vpack.c.b16 %v5495, %v5494
  %v5876 = vpack.c.b16 %v5497, %v5496
  %v5877 = vpack.c.b16 %v5499, %v5498
  %v5878 = vpack.c.b16 %v5501, %v5500
  %v5879 = vpack.c.b16 %v5503, %v5502
  %v5880 = vpack.c.b16 %v5505, %v5504
  %v5881 = vpack.c.b16 %v5507, %v5506
  %v5882 = vpack.c.b16 %v5509, %v5508
  %v5883 = vpack.c.b16 %v5511, %v5510
  %v5884 = vpack.c.b16 %v5513, %v5512
  %v5885 = vpack.c.b16 %v5515, %v5514
  %v5886 = vpack.c.b16 %v5517, %v5516
  %v5887 = vpack.c.b16 %v5519, %v5518
  %v5888 = vpack.c.b16 %v5521, %v5520
  %v5889 = vpack.c.b16 %v5523, %v5522
  %v5890 = vpack.c.b16 %v5525, %v5524
  %v5891 = vpack.c.b16 %v5527, %v5526
  %v5892 = vpack.c.b16 %v5529, %v5528
  %v5893 = vpack.c.b16 %v5531, %v5530
  %v5894 = vpack.c.b16 %v5533, %v5532
  %v5895 = vpack.c.b16 %v5535, %v5534
  %v5896 = vpack.c.b16 %v5537, %v5536
  %v5897 = vpack.c.b16 %v5539, %v5538
  %v5898 = vpack.c.b16 %v5541, %v5540
  %v5899 = vpack.c.b16 %v5543, %v5542
  %v5900 = vpack.c.b16 %v5545, %v5544
  %v5901 = vpack.c.b16 %v5547, %v5546
  %v5902 = vpack.c.b16 %v5549, %v5548
  %v5903 = vpack.c.b16 %v5551, %v5550
  %v5904 = vpack.c.b16 %v5553, %v5552
  %v5905 = vpack.c.b16 %v5555, %v5554
  %v5906 = vpack.c.b16 %v5557, %v5556
  %v5907 = vpack.c.b16 %v5559, %v5558
  %v5908 = vpack.c.b16 %v5561, %v5560
  %v5909 = vpack.c.b16 %v5563, %v5562
  %v5910 = vpack.c.b16 %v5565, %v5564
  %v5911 = vpack.c.b16 %v5567, %v5566
  %v5912 = vpack.c.b16 %v5569, %v5568
  %v5913 = vpack.c.b16 %v5571, %v5570
  %v5914 = vpack.c.b16 %v5573, %v5572
  %v5915 = vpack.c.b16 %v5575, %v5574
  %v5916 = vpack.c.b16 %v5577, %v5576
  %v5917 = vpack.c.b16 %v5579, %v5578
  %v5918 = vpack.c.b16 %v5581, %v5580
  %v5919 = vpack.c.b16 %v5583, %v5582
  %v5920 = vpack.c.b16 %v5585, %v5584
  %v5921 = vpack.c.b16 %v5587, %v5586
  %v5922 = vpack.c.b16 %v5589, %v5588
  %v5923 = vpack.c.b16 %v5591, %v5590
  %v5924 = vpack.c.b16 %v5593, %v5592
  %v5925 = vpack.c.b16 %v5595, %v5594
  %v5926 = vpack.c.b16 %v5597, %v5596
  %v5927 = vpack.c.b16 %v5599, %v5598
  %v5928 = vpack.c.b16 %v5601, %v5600
  %v5929 = vpack.c.b16 %v5603, %v5602
  %v5930 = vpack.c.b16 %v5605, %v5604
  %v5931 = vpack.c.b16 %v5607, %v5606
  %v5932 = vpack.c.b16 %v5609, %v5608
  %v5933 = vpack.c.b16 %v5611, %v5610
  %v5934 = vpack.c.b16 %v5613, %v5612
  %v5935 = vpack.c.b16 %v5615, %v5614
  %v5936 = vpack.c.b16 %v5617, %v5616
  %v5937 = vpack.c.b16 %v5619, %v5618
  %v5938 = vpack.c.b16 %v5621, %v5620
  %v5939 = vpack.c.b16 %v5623, %v5622
  %v5940 = vpack.c.b16 %v5625, %v5624
  %v5941 = vpack.c.b16 %v5627, %v5626
  %v5942 = vpack.c.b16 %v5629, %v5628
  %v5943 = vpack.c.b16 %v5631, %v5630
  %v5944 = vpack.c.b16 %v5633, %v5632
  %v5945 = vpack.c.b16 %v5635, %v5634
  %v5946 = vpack.c.b16 %v5637, %v5636
  %v5947 = vpack.c.b16 %v5639, %v5638
  %v5948 = vpack.c.b16 %v5641, %v5640
  %v5949 = vpack.c.b16 %v5643, %v5642
  %v5950 = vpack.c.b16 %v5645, %v5644
  %v5951 = vpack.c.b16 %v5647, %v5646
  %v5952 = vpack.c.b16 %v5649, %v5648
  %v5953 = vpack.c.b16 %v5651, %v5650
  %v5954 = vpack.c.b16 %v5653, %v5652
  %v5955 = vpack.c.b16 %v5655, %v5654
  %v5956 = vpack.c.b16 %v5657, %v5656
  %v5957 = vpack.c.b16 %v5659, %v5658
  %v5958 = vpack.c.b16 %v5661, %v5660
  %v5959 = vpack.c.b16 %v5663, %v5662
  %v5960 = vpack.c.b16 %v5665, %v5664
  %v5961 = vpack.c.b16 %v5667, %v5666
  %v5962 = vpack.c.b16 %v5669, %v5668
  %v5963 = vpack.c.b16 %v5671, %v5670
  %v5964 = vpack.c.b16 %v5673, %v5672
  %v5965 = vpack.c.b16 %v5675, %v5674
  %v5966 = vpack.c.b16 %v5677, %v5676
  %v5967 = vpack.c.b16 %v5679, %v5678
  %v5968 = vpack.c.b16 %v5681, %v5680
  %v5969 = vpack.c.b16 %v5683, %v5682
  %v5970 = vpack.c.b16 %v5685, %v5684
  %v5971 = vpack.c.b16 %v5687, %v5686
  %v5972 = vpack.c.b16 %v5689, %v5688
  %v5973 = vpack.c.b16 %v5691, %v5690
  %v5974 = vpack.c.b16 %v5693, %v5692
  %v5975 = vpack.c.b16 %v5695, %v5694
  %v5976 = vpack.c.b16 %v5697, %v5696
  %v5977 = vpack.c.b16 %v5699, %v5698
  %v5978 = vpack.c.b16 %v5701, %v5700
  %v5979 = vpack.c.b16 %v5703, %v5702
  %v5980 = vpack.c.b16 %v5705, %v5704
  %v5981 = vpack.c.b16 %v5707, %v5706
  %v5982 = vpack.c.b16 %v5709, %v5708
  %v5983 = vpack.c.b16 %v5711, %v5710
  %v5984 = vpack.c.b16 %v5713, %v5712
  %v5985 = vpack.c.b16 %v5715, %v5714
  %v5986 = vpack.c.b16 %v5717, %v5716
  %v5987 = vpack.c.b16 %v5719, %v5718
  %v5988 = vpack.c.b16 %v5721, %v5720
  %v5989 = vpack.c.b16 %v5723, %v5722
  %v5990 = vpack.c.b16 %v5725, %v5724
  %v5991 = vpack.c.b16 %v5727, %v5726
  %v5992 = vpack.c.b16 %v5729, %v5728
  %v5993 = vpack.c.b16 %v5731, %v5730
  %v5994 = vpack.c.b16 %v5733, %v5732
  %v5995 = vpack.c.b16 %v5735, %v5734
  %v5996 = vpack.c.b16 %v5737, %v5736
  %v5997 = vpack.c.b16 %v5739, %v5738
  %v5998 = vpack.c.b16 %v5741, %v5740
  %v5999 = vpack.c.b16 %v5743, %v5742
  %6256 = vmatpush.bf16.msra.mxu0 %v5751
  %6257 = vmatpush.bf16.msra.mxu0 %v5750
  %6258 = vmatpush.bf16.msra.mxu0 %v5749
  %6259 = vmatpush.bf16.msra.mxu0 %v5748
  %6260 = vmatpush.bf16.msra.mxu0 %v5747
  %6261 = vmatpush.bf16.msra.mxu0 %v5746
  %6262 = vmatpush.bf16.msra.mxu0 %v5745
  %6263 = vmatpush.bf16.msra.mxu0 %v5744
  %6264 = vmatmul.bf16.gmra.mxu0 %v4656
  %v6265 = vpop.f32.mrf.mxu0
  %v6266 = vadd.f32 %v4558, %v6265
  %v6267 = vpop.f32.mrf.mxu0
  %v6268 = vadd.f32 %v4558, %v6267
  %6269 = vdwg.mxu0
  %6270 = vmatpush.bf16.msra.mxu0 %v5759
  %6271 = vmatpush.bf16.msra.mxu0 %v5758
  %6272 = vmatpush.bf16.msra.mxu0 %v5757
  %6273 = vmatpush.bf16.msra.mxu0 %v5756
  %6274 = vmatpush.bf16.msra.mxu0 %v5755
  %6275 = vmatpush.bf16.msra.mxu0 %v5754
  %6276 = vmatpush.bf16.msra.mxu0 %v5753
  %6277 = vmatpush.bf16.msra.mxu0 %v5752
  %6278 = vmatmul.bf16.gmra.mxu0 %v4657
  %v6279 = vpop.f32.mrf.mxu0
  %v6280 = vadd.f32 %v6266, %v6279
  %v6281 = vpop.f32.mrf.mxu0
  %v6282 = vadd.f32 %v6268, %v6281
  %6283 = vdwg.mxu0
  %6284 = vmatpush.bf16.msra.mxu0 %v5767
  %6285 = vmatpush.bf16.msra.mxu0 %v5766
  %6286 = vmatpush.bf16.msra.mxu0 %v5765
  %6287 = vmatpush.bf16.msra.mxu0 %v5764
  %6288 = vmatpush.bf16.msra.mxu0 %v5763
  %6289 = vmatpush.bf16.msra.mxu0 %v5762
  %6290 = vmatpush.bf16.msra.mxu0 %v5761
  %6291 = vmatpush.bf16.msra.mxu0 %v5760
  %6292 = vmatmul.bf16.gmra.mxu0 %v4658
  %v6293 = vpop.f32.mrf.mxu0
  %v6294 = vadd.f32 %v6280, %v6293
  %v6295 = vpop.f32.mrf.mxu0
  %v6296 = vadd.f32 %v6282, %v6295
  %6297 = vdwg.mxu0
  %6298 = vmatpush.bf16.msra.mxu0 %v5775
  %6299 = vmatpush.bf16.msra.mxu0 %v5774
  %6300 = vmatpush.bf16.msra.mxu0 %v5773
  %6301 = vmatpush.bf16.msra.mxu0 %v5772
  %6302 = vmatpush.bf16.msra.mxu0 %v5771
  %6303 = vmatpush.bf16.msra.mxu0 %v5770
  %6304 = vmatpush.bf16.msra.mxu0 %v5769
  %6305 = vmatpush.bf16.msra.mxu0 %v5768
  %6306 = vmatmul.bf16.gmra.mxu0 %v4659
  %v6307 = vpop.f32.mrf.mxu0
  %v6308 = vadd.f32 %v6294, %v6307
  %v6309 = vpop.f32.mrf.mxu0
  %v6310 = vadd.f32 %v6296, %v6309
  %6311 = vdwg.mxu0
  %6312 = vmatpush.bf16.msra.mxu0 %v5783
  %6313 = vmatpush.bf16.msra.mxu0 %v5782
  %6314 = vmatpush.bf16.msra.mxu0 %v5781
  %6315 = vmatpush.bf16.msra.mxu0 %v5780
  %6316 = vmatpush.bf16.msra.mxu0 %v5779
  %6317 = vmatpush.bf16.msra.mxu0 %v5778
  %6318 = vmatpush.bf16.msra.mxu0 %v5777
  %6319 = vmatpush.bf16.msra.mxu0 %v5776
  %6320 = vmatmul.bf16.gmra.mxu0 %v4660
  %v6321 = vpop.f32.mrf.mxu0
  %v6322 = vadd.f32 %v6308, %v6321
  %v6323 = vpop.f32.mrf.mxu0
  %v6324 = vadd.f32 %v6310, %v6323
  %6325 = vdwg.mxu0
  %6326 = vmatpush.bf16.msra.mxu0 %v5791
  %6327 = vmatpush.bf16.msra.mxu0 %v5790
  %6328 = vmatpush.bf16.msra.mxu0 %v5789
  %6329 = vmatpush.bf16.msra.mxu0 %v5788
  %6330 = vmatpush.bf16.msra.mxu0 %v5787
  %6331 = vmatpush.bf16.msra.mxu0 %v5786
  %6332 = vmatpush.bf16.msra.mxu0 %v5785
  %6333 = vmatpush.bf16.msra.mxu0 %v5784
  %6334 = vmatmul.bf16.gmra.mxu0 %v4661
  %v6335 = vpop.f32.mrf.mxu0
  %v6336 = vadd.f32 %v6322, %v6335
  %v6337 = vpop.f32.mrf.mxu0
  %v6338 = vadd.f32 %v6324, %v6337
  %6339 = vdwg.mxu0
  %6340 = vmatpush.bf16.msra.mxu0 %v5799
  %6341 = vmatpush.bf16.msra.mxu0 %v5798
  %6342 = vmatpush.bf16.msra.mxu0 %v5797
  %6343 = vmatpush.bf16.msra.mxu0 %v5796
  %6344 = vmatpush.bf16.msra.mxu0 %v5795
  %6345 = vmatpush.bf16.msra.mxu0 %v5794
  %6346 = vmatpush.bf16.msra.mxu0 %v5793
  %6347 = vmatpush.bf16.msra.mxu0 %v5792
  %6348 = vmatmul.bf16.gmra.mxu0 %v4662
  %v6349 = vpop.f32.mrf.mxu0
  %v6350 = vadd.f32 %v6336, %v6349
  %v6351 = vpop.f32.mrf.mxu0
  %v6352 = vadd.f32 %v6338, %v6351
  %6353 = vdwg.mxu0
  %6354 = vmatpush.bf16.msra.mxu0 %v5807
  %6355 = vmatpush.bf16.msra.mxu0 %v5806
  %6356 = vmatpush.bf16.msra.mxu0 %v5805
  %6357 = vmatpush.bf16.msra.mxu0 %v5804
  %6358 = vmatpush.bf16.msra.mxu0 %v5803
  %6359 = vmatpush.bf16.msra.mxu0 %v5802
  %6360 = vmatpush.bf16.msra.mxu0 %v5801
  %6361 = vmatpush.bf16.msra.mxu0 %v5800
  %6362 = vmatmul.bf16.gmra.mxu0 %v4663
  %v6363 = vpop.f32.mrf.mxu0
  %v6364 = vadd.f32 %v6350, %v6363
  %v6365 = vpop.f32.mrf.mxu0
  %v6366 = vadd.f32 %v6352, %v6365
  %6367 = vdwg.mxu0
  %6368 = vmatpush.bf16.msra.mxu0 %v5815
  %6369 = vmatpush.bf16.msra.mxu0 %v5814
  %6370 = vmatpush.bf16.msra.mxu0 %v5813
  %6371 = vmatpush.bf16.msra.mxu0 %v5812
  %6372 = vmatpush.bf16.msra.mxu0 %v5811
  %6373 = vmatpush.bf16.msra.mxu0 %v5810
  %6374 = vmatpush.bf16.msra.mxu0 %v5809
  %6375 = vmatpush.bf16.msra.mxu0 %v5808
  %6376 = vmatmul.bf16.gmra.mxu0 %v4664
  %v6377 = vpop.f32.mrf.mxu0
  %v6378 = vadd.f32 %v6364, %v6377
  %v6379 = vpop.f32.mrf.mxu0
  %v6380 = vadd.f32 %v6366, %v6379
  %6381 = vdwg.mxu0
  %6382 = vmatpush.bf16.msra.mxu0 %v5823
  %6383 = vmatpush.bf16.msra.mxu0 %v5822
  %6384 = vmatpush.bf16.msra.mxu0 %v5821
  %6385 = vmatpush.bf16.msra.mxu0 %v5820
  %6386 = vmatpush.bf16.msra.mxu0 %v5819
  %6387 = vmatpush.bf16.msra.mxu0 %v5818
  %6388 = vmatpush.bf16.msra.mxu0 %v5817
  %6389 = vmatpush.bf16.msra.mxu0 %v5816
  %6390 = vmatmul.bf16.gmra.mxu0 %v4665
  %v6391 = vpop.f32.mrf.mxu0
  %v6392 = vadd.f32 %v6378, %v6391
  %v6393 = vpop.f32.mrf.mxu0
  %v6394 = vadd.f32 %v6380, %v6393
  %6395 = vdwg.mxu0
  %6396 = vmatpush.bf16.msra.mxu0 %v5831
  %6397 = vmatpush.bf16.msra.mxu0 %v5830
  %6398 = vmatpush.bf16.msra.mxu0 %v5829
  %6399 = vmatpush.bf16.msra.mxu0 %v5828
  %6400 = vmatpush.bf16.msra.mxu0 %v5827
  %6401 = vmatpush.bf16.msra.mxu0 %v5826
  %6402 = vmatpush.bf16.msra.mxu0 %v5825
  %6403 = vmatpush.bf16.msra.mxu0 %v5824
  %6404 = vmatmul.bf16.gmra.mxu0 %v4666
  %v6405 = vpop.f32.mrf.mxu0
  %v6406 = vadd.f32 %v6392, %v6405
  %v6407 = vpop.f32.mrf.mxu0
  %v6408 = vadd.f32 %v6394, %v6407
  %6409 = vdwg.mxu0
  %6410 = vmatpush.bf16.msra.mxu0 %v5839
  %6411 = vmatpush.bf16.msra.mxu0 %v5838
  %6412 = vmatpush.bf16.msra.mxu0 %v5837
  %6413 = vmatpush.bf16.msra.mxu0 %v5836
  %6414 = vmatpush.bf16.msra.mxu0 %v5835
  %6415 = vmatpush.bf16.msra.mxu0 %v5834
  %6416 = vmatpush.bf16.msra.mxu0 %v5833
  %6417 = vmatpush.bf16.msra.mxu0 %v5832
  %6418 = vmatmul.bf16.gmra.mxu0 %v4667
  %v6419 = vpop.f32.mrf.mxu0
  %v6420 = vadd.f32 %v6406, %v6419
  %v6421 = vpop.f32.mrf.mxu0
  %v6422 = vadd.f32 %v6408, %v6421
  %6423 = vdwg.mxu0
  %6424 = vmatpush.bf16.msra.mxu0 %v5847
  %6425 = vmatpush.bf16.msra.mxu0 %v5846
  %6426 = vmatpush.bf16.msra.mxu0 %v5845
  %6427 = vmatpush.bf16.msra.mxu0 %v5844
  %6428 = vmatpush.bf16.msra.mxu0 %v5843
  %6429 = vmatpush.bf16.msra.mxu0 %v5842
  %6430 = vmatpush.bf16.msra.mxu0 %v5841
  %6431 = vmatpush.bf16.msra.mxu0 %v5840
  %6432 = vmatmul.bf16.gmra.mxu0 %v4668
  %v6433 = vpop.f32.mrf.mxu0
  %v6434 = vadd.f32 %v6420, %v6433
  %v6435 = vpop.f32.mrf.mxu0
  %v6436 = vadd.f32 %v6422, %v6435
  %6437 = vdwg.mxu0
  %6438 = vmatpush.bf16.msra.mxu0 %v5855
  %6439 = vmatpush.bf16.msra.mxu0 %v5854
  %6440 = vmatpush.bf16.msra.mxu0 %v5853
  %6441 = vmatpush.bf16.msra.mxu0 %v5852
  %6442 = vmatpush.bf16.msra.mxu0 %v5851
  %6443 = vmatpush.bf16.msra.mxu0 %v5850
  %6444 = vmatpush.bf16.msra.mxu0 %v5849
  %6445 = vmatpush.bf16.msra.mxu0 %v5848
  %6446 = vmatmul.bf16.gmra.mxu0 %v4669
  %v6447 = vpop.f32.mrf.mxu0
  %v6448 = vadd.f32 %v6434, %v6447
  %v6449 = vpop.f32.mrf.mxu0
  %v6450 = vadd.f32 %v6436, %v6449
  %6451 = vdwg.mxu0
  %6452 = vmatpush.bf16.msra.mxu0 %v5863
  %6453 = vmatpush.bf16.msra.mxu0 %v5862
  %6454 = vmatpush.bf16.msra.mxu0 %v5861
  %6455 = vmatpush.bf16.msra.mxu0 %v5860
  %6456 = vmatpush.bf16.msra.mxu0 %v5859
  %6457 = vmatpush.bf16.msra.mxu0 %v5858
  %6458 = vmatpush.bf16.msra.mxu0 %v5857
  %6459 = vmatpush.bf16.msra.mxu0 %v5856
  %6460 = vmatmul.bf16.gmra.mxu0 %v4670
  %v6461 = vpop.f32.mrf.mxu0
  %v6462 = vadd.f32 %v6448, %v6461
  %v6463 = vpop.f32.mrf.mxu0
  %v6464 = vadd.f32 %v6450, %v6463
  %6465 = vdwg.mxu0
  %6466 = vmatpush.bf16.msra.mxu0 %v5871
  %6467 = vmatpush.bf16.msra.mxu0 %v5870
  %6468 = vmatpush.bf16.msra.mxu0 %v5869
  %6469 = vmatpush.bf16.msra.mxu0 %v5868
  %6470 = vmatpush.bf16.msra.mxu0 %v5867
  %6471 = vmatpush.bf16.msra.mxu0 %v5866
  %6472 = vmatpush.bf16.msra.mxu0 %v5865
  %6473 = vmatpush.bf16.msra.mxu0 %v5864
  %6474 = vmatmul.bf16.gmra.mxu0 %v4671
  %v6475 = vpop.f32.mrf.mxu0
  %v6476 = vadd.f32 %v6462, %v6475
  %v6477 = vpop.f32.mrf.mxu0
  %v6478 = vadd.f32 %v6464, %v6477
  %6479 = vdwg.mxu0
  %6480 = vmatpush.bf16.msra.mxu0 %v5879
  %6481 = vmatpush.bf16.msra.mxu0 %v5878
  %6482 = vmatpush.bf16.msra.mxu0 %v5877
  %6483 = vmatpush.bf16.msra.mxu0 %v5876
  %6484 = vmatpush.bf16.msra.mxu0 %v5875
  %6485 = vmatpush.bf16.msra.mxu0 %v5874
  %6486 = vmatpush.bf16.msra.mxu0 %v5873
  %6487 = vmatpush.bf16.msra.mxu0 %v5872
  %6488 = vmatmul.bf16.gmra.mxu0 %v4672
  %v6489 = vpop.f32.mrf.mxu0
  %v6490 = vadd.f32 %v6476, %v6489
  %v6491 = vpop.f32.mrf.mxu0
  %v6492 = vadd.f32 %v6478, %v6491
  %6493 = vdwg.mxu0
  %6494 = vmatpush.bf16.msra.mxu0 %v5887
  %6495 = vmatpush.bf16.msra.mxu0 %v5886
  %6496 = vmatpush.bf16.msra.mxu0 %v5885
  %6497 = vmatpush.bf16.msra.mxu0 %v5884
  %6498 = vmatpush.bf16.msra.mxu0 %v5883
  %6499 = vmatpush.bf16.msra.mxu0 %v5882
  %6500 = vmatpush.bf16.msra.mxu0 %v5881
  %6501 = vmatpush.bf16.msra.mxu0 %v5880
  %6502 = vmatmul.bf16.gmra.mxu0 %v4673
  %v6503 = vpop.f32.mrf.mxu0
  %v6504 = vadd.f32 %v6490, %v6503
  %v6505 = vpop.f32.mrf.mxu0
  %v6506 = vadd.f32 %v6492, %v6505
  %6507 = vdwg.mxu0
  %6508 = vmatpush.bf16.msra.mxu0 %v5895
  %6509 = vmatpush.bf16.msra.mxu0 %v5894
  %6510 = vmatpush.bf16.msra.mxu0 %v5893
  %6511 = vmatpush.bf16.msra.mxu0 %v5892
  %6512 = vmatpush.bf16.msra.mxu0 %v5891
  %6513 = vmatpush.bf16.msra.mxu0 %v5890
  %6514 = vmatpush.bf16.msra.mxu0 %v5889
  %6515 = vmatpush.bf16.msra.mxu0 %v5888
  %6516 = vmatmul.bf16.gmra.mxu0 %v4674
  %v6517 = vpop.f32.mrf.mxu0
  %v6518 = vadd.f32 %v6504, %v6517
  %v6519 = vpop.f32.mrf.mxu0
  %v6520 = vadd.f32 %v6506, %v6519
  %6521 = vdwg.mxu0
  %6522 = vmatpush.bf16.msra.mxu0 %v5903
  %6523 = vmatpush.bf16.msra.mxu0 %v5902
  %6524 = vmatpush.bf16.msra.mxu0 %v5901
  %6525 = vmatpush.bf16.msra.mxu0 %v5900
  %6526 = vmatpush.bf16.msra.mxu0 %v5899
  %6527 = vmatpush.bf16.msra.mxu0 %v5898
  %6528 = vmatpush.bf16.msra.mxu0 %v5897
  %6529 = vmatpush.bf16.msra.mxu0 %v5896
  %6530 = vmatmul.bf16.gmra.mxu0 %v4675
  %v6531 = vpop.f32.mrf.mxu0
  %v6532 = vadd.f32 %v6518, %v6531
  %v6533 = vpop.f32.mrf.mxu0
  %v6534 = vadd.f32 %v6520, %v6533
  %6535 = vdwg.mxu0
  %6536 = vmatpush.bf16.msra.mxu0 %v5911
  %6537 = vmatpush.bf16.msra.mxu0 %v5910
  %6538 = vmatpush.bf16.msra.mxu0 %v5909
  %6539 = vmatpush.bf16.msra.mxu0 %v5908
  %6540 = vmatpush.bf16.msra.mxu0 %v5907
  %6541 = vmatpush.bf16.msra.mxu0 %v5906
  %6542 = vmatpush.bf16.msra.mxu0 %v5905
  %6543 = vmatpush.bf16.msra.mxu0 %v5904
  %6544 = vmatmul.bf16.gmra.mxu0 %v4676
  %v6545 = vpop.f32.mrf.mxu0
  %v6546 = vadd.f32 %v6532, %v6545
  %v6547 = vpop.f32.mrf.mxu0
  %v6548 = vadd.f32 %v6534, %v6547
  %6549 = vdwg.mxu0
  %6550 = vmatpush.bf16.msra.mxu0 %v5919
  %6551 = vmatpush.bf16.msra.mxu0 %v5918
  %6552 = vmatpush.bf16.msra.mxu0 %v5917
  %6553 = vmatpush.bf16.msra.mxu0 %v5916
  %6554 = vmatpush.bf16.msra.mxu0 %v5915
  %6555 = vmatpush.bf16.msra.mxu0 %v5914
  %6556 = vmatpush.bf16.msra.mxu0 %v5913
  %6557 = vmatpush.bf16.msra.mxu0 %v5912
  %6558 = vmatmul.bf16.gmra.mxu0 %v4677
  %v6559 = vpop.f32.mrf.mxu0
  %v6560 = vadd.f32 %v6546, %v6559
  %v6561 = vpop.f32.mrf.mxu0
  %v6562 = vadd.f32 %v6548, %v6561
  %6563 = vdwg.mxu0
  %6564 = vmatpush.bf16.msra.mxu0 %v5927
  %6565 = vmatpush.bf16.msra.mxu0 %v5926
  %6566 = vmatpush.bf16.msra.mxu0 %v5925
  %6567 = vmatpush.bf16.msra.mxu0 %v5924
  %6568 = vmatpush.bf16.msra.mxu0 %v5923
  %6569 = vmatpush.bf16.msra.mxu0 %v5922
  %6570 = vmatpush.bf16.msra.mxu0 %v5921
  %6571 = vmatpush.bf16.msra.mxu0 %v5920
  %6572 = vmatmul.bf16.gmra.mxu0 %v4678
  %v6573 = vpop.f32.mrf.mxu0
  %v6574 = vadd.f32 %v6560, %v6573
  %v6575 = vpop.f32.mrf.mxu0
  %v6576 = vadd.f32 %v6562, %v6575
  %6577 = vdwg.mxu0
  %6578 = vmatpush.bf16.msra.mxu0 %v5935
  %6579 = vmatpush.bf16.msra.mxu0 %v5934
  %6580 = vmatpush.bf16.msra.mxu0 %v5933
  %6581 = vmatpush.bf16.msra.mxu0 %v5932
  %6582 = vmatpush.bf16.msra.mxu0 %v5931
  %6583 = vmatpush.bf16.msra.mxu0 %v5930
  %6584 = vmatpush.bf16.msra.mxu0 %v5929
  %6585 = vmatpush.bf16.msra.mxu0 %v5928
  %6586 = vmatmul.bf16.gmra.mxu0 %v4679
  %v6587 = vpop.f32.mrf.mxu0
  %v6588 = vadd.f32 %v6574, %v6587
  %v6589 = vpop.f32.mrf.mxu0
  %v6590 = vadd.f32 %v6576, %v6589
  %6591 = vdwg.mxu0
  %6592 = vmatpush.bf16.msra.mxu0 %v5943
  %6593 = vmatpush.bf16.msra.mxu0 %v5942
  %6594 = vmatpush.bf16.msra.mxu0 %v5941
  %6595 = vmatpush.bf16.msra.mxu0 %v5940
  %6596 = vmatpush.bf16.msra.mxu0 %v5939
  %6597 = vmatpush.bf16.msra.mxu0 %v5938
  %6598 = vmatpush.bf16.msra.mxu0 %v5937
  %6599 = vmatpush.bf16.msra.mxu0 %v5936
  %6600 = vmatmul.bf16.gmra.mxu0 %v4680
  %v6601 = vpop.f32.mrf.mxu0
  %v6602 = vadd.f32 %v6588, %v6601
  %v6603 = vpop.f32.mrf.mxu0
  %v6604 = vadd.f32 %v6590, %v6603
  %6605 = vdwg.mxu0
  %6606 = vmatpush.bf16.msra.mxu0 %v5951
  %6607 = vmatpush.bf16.msra.mxu0 %v5950
  %6608 = vmatpush.bf16.msra.mxu0 %v5949
  %6609 = vmatpush.bf16.msra.mxu0 %v5948
  %6610 = vmatpush.bf16.msra.mxu0 %v5947
  %6611 = vmatpush.bf16.msra.mxu0 %v5946
  %6612 = vmatpush.bf16.msra.mxu0 %v5945
  %6613 = vmatpush.bf16.msra.mxu0 %v5944
  %6614 = vmatmul.bf16.gmra.mxu0 %v4681
  %v6615 = vpop.f32.mrf.mxu0
  %v6616 = vadd.f32 %v6602, %v6615
  %v6617 = vpop.f32.mrf.mxu0
  %v6618 = vadd.f32 %v6604, %v6617
  %6619 = vdwg.mxu0
  %6620 = vmatpush.bf16.msra.mxu0 %v5959
  %6621 = vmatpush.bf16.msra.mxu0 %v5958
  %6622 = vmatpush.bf16.msra.mxu0 %v5957
  %6623 = vmatpush.bf16.msra.mxu0 %v5956
  %6624 = vmatpush.bf16.msra.mxu0 %v5955
  %6625 = vmatpush.bf16.msra.mxu0 %v5954
  %6626 = vmatpush.bf16.msra.mxu0 %v5953
  %6627 = vmatpush.bf16.msra.mxu0 %v5952
  %6628 = vmatmul.bf16.gmra.mxu0 %v4682
  %v6629 = vpop.f32.mrf.mxu0
  %v6630 = vadd.f32 %v6616, %v6629
  %v6631 = vpop.f32.mrf.mxu0
  %v6632 = vadd.f32 %v6618, %v6631
  %6633 = vdwg.mxu0
  %6634 = vmatpush.bf16.msra.mxu0 %v5967
  %6635 = vmatpush.bf16.msra.mxu0 %v5966
  %6636 = vmatpush.bf16.msra.mxu0 %v5965
  %6637 = vmatpush.bf16.msra.mxu0 %v5964
  %6638 = vmatpush.bf16.msra.mxu0 %v5963
  %6639 = vmatpush.bf16.msra.mxu0 %v5962
  %6640 = vmatpush.bf16.msra.mxu0 %v5961
  %6641 = vmatpush.bf16.msra.mxu0 %v5960
  %6642 = vmatmul.bf16.gmra.mxu0 %v4683
  %v6643 = vpop.f32.mrf.mxu0
  %v6644 = vadd.f32 %v6630, %v6643
  %v6645 = vpop.f32.mrf.mxu0
  %v6646 = vadd.f32 %v6632, %v6645
  %6647 = vdwg.mxu0
  %6648 = vmatpush.bf16.msra.mxu0 %v5975
  %6649 = vmatpush.bf16.msra.mxu0 %v5974
  %6650 = vmatpush.bf16.msra.mxu0 %v5973
  %6651 = vmatpush.bf16.msra.mxu0 %v5972
  %6652 = vmatpush.bf16.msra.mxu0 %v5971
  %6653 = vmatpush.bf16.msra.mxu0 %v5970
  %6654 = vmatpush.bf16.msra.mxu0 %v5969
  %6655 = vmatpush.bf16.msra.mxu0 %v5968
  %6656 = vmatmul.bf16.gmra.mxu0 %v4684
  %v6657 = vpop.f32.mrf.mxu0
  %v6658 = vadd.f32 %v6644, %v6657
  %v6659 = vpop.f32.mrf.mxu0
  %v6660 = vadd.f32 %v6646, %v6659
  %6661 = vdwg.mxu0
  %6662 = vmatpush.bf16.msra.mxu0 %v5983
  %6663 = vmatpush.bf16.msra.mxu0 %v5982
  %6664 = vmatpush.bf16.msra.mxu0 %v5981
  %6665 = vmatpush.bf16.msra.mxu0 %v5980
  %6666 = vmatpush.bf16.msra.mxu0 %v5979
  %6667 = vmatpush.bf16.msra.mxu0 %v5978
  %6668 = vmatpush.bf16.msra.mxu0 %v5977
  %6669 = vmatpush.bf16.msra.mxu0 %v5976
  %6670 = vmatmul.bf16.gmra.mxu0 %v4685
  %v6671 = vpop.f32.mrf.mxu0
  %v6672 = vadd.f32 %v6658, %v6671
  %v6673 = vpop.f32.mrf.mxu0
  %v6674 = vadd.f32 %v6660, %v6673
  %6675 = vdwg.mxu0
  %6676 = vmatpush.bf16.msra.mxu0 %v5991
  %6677 = vmatpush.bf16.msra.mxu0 %v5990
  %6678 = vmatpush.bf16.msra.mxu0 %v5989
  %6679 = vmatpush.bf16.msra.mxu0 %v5988
  %6680 = vmatpush.bf16.msra.mxu0 %v5987
  %6681 = vmatpush.bf16.msra.mxu0 %v5986
  %6682 = vmatpush.bf16.msra.mxu0 %v5985
  %6683 = vmatpush.bf16.msra.mxu0 %v5984
  %6684 = vmatmul.bf16.gmra.mxu0 %v4686
  %v6685 = vpop.f32.mrf.mxu0
  %v6686 = vadd.f32 %v6672, %v6685
  %v6687 = vpop.f32.mrf.mxu0
  %v6688 = vadd.f32 %v6674, %v6687
  %6689 = vdwg.mxu0
  %6690 = vmatpush.bf16.msra.mxu0 %v5999
  %6691 = vmatpush.bf16.msra.mxu0 %v5998
  %6692 = vmatpush.bf16.msra.mxu0 %v5997
  %6693 = vmatpush.bf16.msra.mxu0 %v5996
  %6694 = vmatpush.bf16.msra.mxu0 %v5995
  %6695 = vmatpush.bf16.msra.mxu0 %v5994
  %6696 = vmatpush.bf16.msra.mxu0 %v5993
  %6697 = vmatpush.bf16.msra.mxu0 %v5992
  %6698 = vmatmul.bf16.gmra.mxu0 %v4687
  %v6699 = vpop.f32.mrf.mxu0
  %v6700 = vadd.f32 %v6686, %v6699
  %v6701 = vpop.f32.mrf.mxu0
  %v6702 = vadd.f32 %v6688, %v6701
  %6703 = vdwg.mxu0
  %v6704 = vmax.f32 %v6700, 0.0
  %v6705 = vmax.f32 %v6702, 0.0
  %v6706 = vpack.c.bf16 %v6705, %v6704
  %v6707 = vld [vmem:[%s4] sm:$0xf]
  %v6708 = vld [vmem:[%s4 + $0x4] sm:$0xf]
  %v6709 = vld [vmem:[%s4 + $0x8] sm:$0xf]
  %v6710 = vld [vmem:[%s4 + $0xc] sm:$0xf]
  %v6711 = vld [vmem:[%s4 + $0x10] sm:$0xf]
  %v6712 = vld [vmem:[%s4 + $0x14] sm:$0xf]
  %v6713 = vld [vmem:[%s4 + $0x18] sm:$0xf]
  %v6714 = vld [vmem:[%s4 + $0x1c] sm:$0xf]
  %v6715 = vld [vmem:[%s5] sm:$0x1]
  %v6717 = vperm.slane %v6715, 0
  %v6727 = vunpack.c.l.b16 %v6707
  %v6728 = vunpack.c.l.b16 %v6708
  %v6729 = vunpack.c.l.b16 %v6709
  %v6730 = vunpack.c.l.b16 %v6710
  %v6731 = vunpack.c.l.b16 %v6711
  %v6732 = vunpack.c.l.b16 %v6712
  %v6733 = vunpack.c.l.b16 %v6713
  %v6734 = vunpack.c.l.b16 %v6714
  %v6735 = vpack.c.b16 %v6728, %v6727
  %v6736 = vpack.c.b16 %v6730, %v6729
  %v6737 = vpack.c.b16 %v6732, %v6731
  %v6738 = vpack.c.b16 %v6734, %v6733
  %vm6743 = vcmask 523264
  %v6745 = vsel %vm6743, %v6706, 0
  %6747 = vmatpush.bf16.msra.mxu0 0
  %6748 = vmatpush.bf16.msra.mxu0 0
  %6749 = vmatpush.bf16.msra.mxu0 0
  %6750 = vmatpush.bf16.msra.mxu0 0
  %6751 = vmatpush.bf16.msra.mxu0 %v6738
  %6752 = vmatpush.bf16.msra.mxu0 %v6737
  %6753 = vmatpush.bf16.msra.mxu0 %v6736
  %6754 = vmatpush.bf16.msra.mxu0 %v6735
  %6755 = vmatmul.bf16.gmra.mxu0 %v6745
  %v6756 = vpop.f32.mrf.mxu0
  %v6757 = vadd.f32 %v6717, %v6756
  %v6758 = vpop.f32.mrf.mxu0
  %v6759 = vadd.f32 %v6717, %v6758
  %6760 = vdwg.mxu0
  %6761 = vst [vmem:[%s6] sm:$0xff] %v6757
  %6762 = vst [vmem:[%s6 + $0x8] sm:$0xff] %v6759
  // Predicated region
  $region26: #{cnn_forward.1} parent=0 // pred_check
    _
  $region27: #{cnn_forward.1} parent=0 // pred_check_branch
    %6764 = sbr.rel (0) target = $region29
  $region28: #{cnn_forward.1} parent=0 // pred_region
    _
  $region29: #{cnn_forward.1} parent=0 // pred_fallthru
    _
  // Predicated region
  $region30: #{cnn_forward.1} parent=0 // pred_check
    _
  $region31: #{cnn_forward.1} parent=0 // pred_check_branch
    %6766 = sbr.rel (0) target = $region33
  $region32: #{cnn_forward.1} parent=0 // pred_region
    _
  $region33: #{cnn_forward.1} parent=0 // pred_fallthru
    _

</llo_original>
